<compile_context>
chip_gen: v5e
topology: v5e:2x2
jax: 0.10.0
libtpu: 0.0.40
codegen_flags: <defaults>
</compile_context>

<pallas_src>
import functools

import jax
import jax.numpy as jnp
from jax.experimental import pallas as pl
from jax.experimental.pallas import tpu as pltpu

# Small, deterministic "config" for the synthetic module.
CIN = 4            # input channels
K = 3              # conv kernel size (stride 1, pad 1)
EMBED = 32         # self.embedding_size (encoder.fc.in_features)
MLP_OUT = 16       # config['mlp_out_features']

FEAT_PAD = 128     # lane-dense padded feature width for activations / outputs

_VMEM = pl.BlockSpec(memory_space=pltpu.MemorySpace.VMEM)


def _pick_h_chunk(n, h, w, target_rows=128):
    """Largest h-row chunk dividing h with n*chunk*w <= target_rows (>=1)."""
    hc = max(1, min(h, target_rows // max(1, n * w)))
    while h % hc:
        hc -= 1
    return hc


# ---------------------------------------------------------------------------
# In-kernel compute
# ---------------------------------------------------------------------------
def _backbone(x_ref, cw_ref, cb_ref, *, n, h, w, c):
    """Fused 3x3 conv (stride 1, pad 1) + bias + ReLU + global average pool.

    x_ref : (n, h+2, w+2, c)    bf16 spatially zero-padded NHWC input
    cw_ref: (K*K, c, FEAT_PAD)  bf16 conv weights (one (c, FEAT_PAD) slab per tap)
    cb_ref: (1, FEAT_PAD)       f32 conv bias (zero beyond EMBED)
    returns (n, FEAT_PAD) f32 pooled embedding (zero beyond EMBED)
    """
    hc = _pick_h_chunk(n, h, w)          # h-rows per chunk
    rows = n * hc * w                    # output rows per chunk (<=128)
    inv_hw = 1.0 / float(h * w)

    # Hoisted loads: 9 weight taps + bias live across the whole chunk loop.
    taps = [cw_ref[t] for t in range(K * K)]     # each (c, FEAT_PAD) bf16
    bias = cb_ref[...]                           # (1, FEAT_PAD) f32

    pool = jnp.zeros((n, FEAT_PAD), jnp.float32)
    for h0 in range(0, h, hc):
        # Conv-as-9-shifted-slice-dots, accumulated in f32 on the MXU.
        acc = jnp.zeros((rows, FEAT_PAD), jnp.float32)
        for di in range(K):
            for dj in range(K):
                xs = x_ref[:, h0 + di:h0 + hc + di, dj:dj + w, :]   # (n,hc,w,c) bf16
                acc = acc + jnp.dot(xs.reshape(rows, c), taps[di * K + dj],
                                    preferred_element_type=jnp.float32)
        acts = jnp.maximum(acc + bias, 0.0)                          # (rows, FEAT_PAD)
        # Per-batch pool sum: pure major-dim split reshape + one reduction.
        pool = pool + jnp.sum(acts.reshape(n, hc * w, FEAT_PAD), axis=1)
    return pool * inv_hw


def _eval_kernel(x_ref, cw_ref, cb_ref, out_ref, *, n, h, w, c):
    """eval mode: backbone embedding only (fc replaced by Identity)."""
    out_ref[...] = _backbone(x_ref, cw_ref, cb_ref, n=n, h=h, w=w, c=c)


def _train_kernel(x_ref, cw_ref, cb_ref, w1_ref, b1_ref, w2_ref, b2_ref, out_ref,
                  *, n, h, w, c):
    """training mode: backbone + fused MLP head (fc1 -> ReLU -> fc2)."""
    emb = _backbone(x_ref, cw_ref, cb_ref, n=n, h=h, w=w, c=c)       # (n, FEAT_PAD)
    hdn = jnp.dot(emb[:, :EMBED].astype(jnp.bfloat16), w1_ref[...],
                  preferred_element_type=jnp.float32) + b1_ref[...]
    hdn = jnp.maximum(hdn, 0.0)
    out_ref[...] = jnp.dot(hdn[:, :EMBED].astype(jnp.bfloat16), w2_ref[...],
                           preferred_element_type=jnp.float32) + b2_ref[...]


# ---------------------------------------------------------------------------
# Module forward
# ---------------------------------------------------------------------------
@functools.partial(jax.jit, static_argnames="training")
def moco_encoder_forward(x_nchw, params, training=True):
    # NCHW -> spatially padded NHWC bf16 (one tiny fused XLA op, ~5 KiB to HBM).
    x = jnp.transpose(x_nchw, (0, 2, 3, 1)).astype(jnp.bfloat16)
    n, h, w, c = x.shape
    x_pad = jnp.pad(x, ((0, 0), (1, 1), (1, 1), (0, 0)))             # (n, h+2, w+2, c)

    conv_flops = 2 * n * h * w * (K * K * c) * EMBED
    head_flops = 2 * n * EMBED * (EMBED + MLP_OUT)

    def _cost(arrays, flops):
        nbytes = sum(a.size * a.dtype.itemsize for a in arrays) + n * FEAT_PAD * 4
        return pl.CostEstimate(flops=flops, transcendentals=0, bytes_accessed=nbytes)

    if training:
        ins = (x_pad, params["conv_w"], params["conv_b"],
               params["w1"], params["b1"], params["w2"], params["b2"])
        out_pad = pl.pallas_call(
            functools.partial(_train_kernel, n=n, h=h, w=w, c=c),
            out_shape=jax.ShapeDtypeStruct((n, FEAT_PAD), jnp.float32),
            in_specs=[_VMEM] * len(ins),
            out_specs=_VMEM,
            cost_estimate=_cost(ins, conv_flops + head_flops),
        )(*ins)
        return out_pad[:, :MLP_OUT]

    ins = (x_pad, params["conv_w"], params["conv_b"])
    emb_pad = pl.pallas_call(
        functools.partial(_eval_kernel, n=n, h=h, w=w, c=c),
        out_shape=jax.ShapeDtypeStruct((n, FEAT_PAD), jnp.float32),
        in_specs=[_VMEM] * len(ins),
        out_specs=_VMEM,
        cost_estimate=_cost(ins, conv_flops),
    )(*ins)
    return emb_pad[:, :EMBED]


# ---------------------------------------------------------------------------
# Parameters (only the feature/output axis is lane-padded; contractions real)
# ---------------------------------------------------------------------------
def init_params(key):
    k1, k2, k3, k4, k5, k6 = jax.random.split(key, 6)
    scale = 0.05
    conv_w = scale * jax.random.normal(k1, (K * K, CIN, EMBED), jnp.float32)
    conv_b = scale * jax.random.normal(k2, (1, EMBED), jnp.float32)
    w1 = scale * jax.random.normal(k3, (EMBED, EMBED), jnp.float32)
    b1 = scale * jax.random.normal(k4, (1, EMBED), jnp.float32)
    w2 = scale * jax.random.normal(k5, (EMBED, MLP_OUT), jnp.float32)
    b2 = scale * jax.random.normal(k6, (1, MLP_OUT), jnp.float32)

    def pad_lanes(a):
        pad = FEAT_PAD - a.shape[-1]
        return jnp.pad(a, [(0, 0)] * (a.ndim - 1) + [(0, pad)])

    # Matmul weights as bf16 operands (f32 MXU accumulation); biases stay f32.
    return {
        "conv_w": pad_lanes(conv_w).astype(jnp.bfloat16),   # (9, CIN, 128)
        "conv_b": pad_lanes(conv_b),                        # (1, 128) f32
        "w1": pad_lanes(w1).astype(jnp.bfloat16),           # (32, 128)
        "b1": pad_lanes(b1),                                # (1, 128) f32
        "w2": pad_lanes(w2).astype(jnp.bfloat16),           # (32, 128)
        "b2": pad_lanes(b2),                                # (1, 128) f32
    }


# ---------------------------------------------------------------------------
# Plain-JAX reference (same bf16 operand rounding, f32 accumulation)
# ---------------------------------------------------------------------------
def _reference_forward(x_nchw, params, training):
    x = jnp.transpose(x_nchw, (0, 2, 3, 1)).astype(jnp.bfloat16)
    n, h, w, c = x.shape
    xp = jnp.pad(x, ((0, 0), (1, 1), (1, 1), (0, 0)))
    cols = [xp[:, di:di + h, dj:dj + w, :] for di in range(K) for dj in range(K)]
    patches = jnp.concatenate(cols, axis=-1).reshape(n * h * w, K * K * c)
    patches = patches.astype(jnp.float32)
    cw = params["conv_w"].astype(jnp.float32)[..., :EMBED].reshape(K * K * c, EMBED)
    acts = jnp.maximum(patches @ cw + params["conv_b"][:, :EMBED], 0.0)
    emb = jnp.mean(acts.reshape(n, h * w, EMBED), axis=1)
    if not training:
        return emb
    w1 = params["w1"].astype(jnp.float32)[:, :EMBED]
    w2 = params["w2"].astype(jnp.float32)[:, :MLP_OUT]
    hdn = jnp.maximum(
        emb.astype(jnp.bfloat16).astype(jnp.float32) @ w1 + params["b1"][:, :EMBED], 0.0)
    return hdn.astype(jnp.bfloat16).astype(jnp.float32) @ w2 + params["b2"][:, :MLP_OUT]


if __name__ == "__main__":
    key = jax.random.PRNGKey(0)
    k_param, k_x = jax.random.split(key)
    params = init_params(k_param)

    # Small NCHW image input consistent with the module.
    x = jax.random.normal(k_x, (2, CIN, 16, 16), jnp.float32)

    # training=True path (backbone + MLP head)
    out_train = jax.block_until_ready(moco_encoder_forward(x, params, training=True))
    assert out_train.shape == (2, MLP_OUT)

    # training=False path (backbone embedding only)
    out_eval = jax.block_until_ready(moco_encoder_forward(x, params, training=False))
    assert out_eval.shape == (2, EMBED)

    # Numerical sanity check against the plain-JAX reference.
    ref_train = _reference_forward(x, params, training=True)
    ref_eval = _reference_forward(x, params, training=False)
    assert jnp.allclose(out_train, ref_train, rtol=1e-2, atol=1e-3)
    assert jnp.allclose(out_eval, ref_eval, rtol=1e-2, atol=1e-3)

    print("KERNEL_OK")
</pallas_src>

<mosaic_0001>
module attributes {stable_mosaic.version = 11 : i64} {
  func.func @_train_kernel(%arg0: memref<2x18x18x4xbf16, #tpu.memory_space<vmem>>, %arg1: memref<9x4x128xbf16, #tpu.memory_space<vmem>>, %arg2: memref<1x128xf32, #tpu.memory_space<vmem>>, %arg3: memref<32x128xbf16, #tpu.memory_space<vmem>>, %arg4: memref<1x128xf32, #tpu.memory_space<vmem>>, %arg5: memref<32x128xbf16, #tpu.memory_space<vmem>>, %arg6: memref<1x128xf32, #tpu.memory_space<vmem>>, %arg7: memref<2x128xf32, #tpu.memory_space<vmem>>) attributes {dimension_semantics = [], scalar_prefetch = 0 : i64, scratch_operands = 0 : i64, tpu.core_type = #tpu.core_type<tc>} {
    %c0 = arith.constant 0 : index
    %c0_0 = arith.constant 0 : index
    %c0_1 = arith.constant 0 : index
    %0 = vector.load %arg1[%c0, %c0_0, %c0_1] : memref<9x4x128xbf16, #tpu.memory_space<vmem>>, vector<1x4x128xbf16>
    %1 = vector.shape_cast %0 : vector<1x4x128xbf16> to vector<4x128xbf16>
    %c1 = arith.constant 1 : index
    %c0_2 = arith.constant 0 : index
    %c0_3 = arith.constant 0 : index
    %2 = vector.load %arg1[%c1, %c0_2, %c0_3] : memref<9x4x128xbf16, #tpu.memory_space<vmem>>, vector<1x4x128xbf16>
    %3 = vector.shape_cast %2 : vector<1x4x128xbf16> to vector<4x128xbf16>
    %c2 = arith.constant 2 : index
    %c0_4 = arith.constant 0 : index
    %c0_5 = arith.constant 0 : index
    %4 = vector.load %arg1[%c2, %c0_4, %c0_5] : memref<9x4x128xbf16, #tpu.memory_space<vmem>>, vector<1x4x128xbf16>
    %5 = vector.shape_cast %4 : vector<1x4x128xbf16> to vector<4x128xbf16>
    %c3 = arith.constant 3 : index
    %c0_6 = arith.constant 0 : index
    %c0_7 = arith.constant 0 : index
    %6 = vector.load %arg1[%c3, %c0_6, %c0_7] : memref<9x4x128xbf16, #tpu.memory_space<vmem>>, vector<1x4x128xbf16>
    %7 = vector.shape_cast %6 : vector<1x4x128xbf16> to vector<4x128xbf16>
    %c4 = arith.constant 4 : index
    %c0_8 = arith.constant 0 : index
    %c0_9 = arith.constant 0 : index
    %8 = vector.load %arg1[%c4, %c0_8, %c0_9] : memref<9x4x128xbf16, #tpu.memory_space<vmem>>, vector<1x4x128xbf16>
    %9 = vector.shape_cast %8 : vector<1x4x128xbf16> to vector<4x128xbf16>
    %c5 = arith.constant 5 : index
    %c0_10 = arith.constant 0 : index
    %c0_11 = arith.constant 0 : index
    %10 = vector.load %arg1[%c5, %c0_10, %c0_11] : memref<9x4x128xbf16, #tpu.memory_space<vmem>>, vector<1x4x128xbf16>
    %11 = vector.shape_cast %10 : vector<1x4x128xbf16> to vector<4x128xbf16>
    %c6 = arith.constant 6 : index
    %c0_12 = arith.constant 0 : index
    %c0_13 = arith.constant 0 : index
    %12 = vector.load %arg1[%c6, %c0_12, %c0_13] : memref<9x4x128xbf16, #tpu.memory_space<vmem>>, vector<1x4x128xbf16>
    %13 = vector.shape_cast %12 : vector<1x4x128xbf16> to vector<4x128xbf16>
    %c7 = arith.constant 7 : index
    %c0_14 = arith.constant 0 : index
    %c0_15 = arith.constant 0 : index
    %14 = vector.load %arg1[%c7, %c0_14, %c0_15] : memref<9x4x128xbf16, #tpu.memory_space<vmem>>, vector<1x4x128xbf16>
    %15 = vector.shape_cast %14 : vector<1x4x128xbf16> to vector<4x128xbf16>
    %c8 = arith.constant 8 : index
    %c0_16 = arith.constant 0 : index
    %c0_17 = arith.constant 0 : index
    %16 = vector.load %arg1[%c8, %c0_16, %c0_17] : memref<9x4x128xbf16, #tpu.memory_space<vmem>>, vector<1x4x128xbf16>
    %17 = vector.shape_cast %16 : vector<1x4x128xbf16> to vector<4x128xbf16>
    %c0_18 = arith.constant 0 : index
    %c0_19 = arith.constant 0 : index
    %18 = vector.load %arg2[%c0_18, %c0_19] : memref<1x128xf32, #tpu.memory_space<vmem>>, vector<1x128xf32>
    %cst = arith.constant 0.000000e+00 : f32
    %19 = vector.broadcast %cst : f32 to vector<2x128xf32>
    %cst_20 = arith.constant 0.000000e+00 : f32
    %20 = vector.broadcast %cst_20 : f32 to vector<128x128xf32>
    %c0_21 = arith.constant 0 : index
    %c0_22 = arith.constant 0 : index
    %c0_23 = arith.constant 0 : index
    %c0_24 = arith.constant 0 : index
    %21 = vector.load %arg0[%c0_21, %c0_22, %c0_23, %c0_24] : memref<2x18x18x4xbf16, #tpu.memory_space<vmem>>, vector<2x4x16x4xbf16>
    %22 = vector.shape_cast %21 : vector<2x4x16x4xbf16> to vector<128x4xbf16>
    %cst_25 = arith.constant dense<0.000000e+00> : vector<128x128xf32>
    %23 = tpu.matmul %22, %1, %cst_25 {dimension_numbers = #tpu.dot_dimension_numbers<[1], [0], [0], [1], [0, 0, 1, 1], [], []>} : vector<128x4xbf16>, vector<4x128xbf16>, vector<128x128xf32> -> vector<128x128xf32>
    %24 = arith.addf %20, %23 : vector<128x128xf32>
    %c0_26 = arith.constant 0 : index
    %c0_27 = arith.constant 0 : index
    %c1_28 = arith.constant 1 : index
    %c0_29 = arith.constant 0 : index
    %25 = vector.load %arg0[%c0_26, %c0_27, %c1_28, %c0_29] : memref<2x18x18x4xbf16, #tpu.memory_space<vmem>>, vector<2x4x16x4xbf16>
    %26 = vector.shape_cast %25 : vector<2x4x16x4xbf16> to vector<128x4xbf16>
    %cst_30 = arith.constant dense<0.000000e+00> : vector<128x128xf32>
    %27 = tpu.matmul %26, %3, %cst_30 {dimension_numbers = #tpu.dot_dimension_numbers<[1], [0], [0], [1], [0, 0, 1, 1], [], []>} : vector<128x4xbf16>, vector<4x128xbf16>, vector<128x128xf32> -> vector<128x128xf32>
    %28 = arith.addf %24, %27 : vector<128x128xf32>
    %c0_31 = arith.constant 0 : index
    %c0_32 = arith.constant 0 : index
    %c2_33 = arith.constant 2 : index
    %c0_34 = arith.constant 0 : index
    %29 = vector.load %arg0[%c0_31, %c0_32, %c2_33, %c0_34] : memref<2x18x18x4xbf16, #tpu.memory_space<vmem>>, vector<2x4x16x4xbf16>
    %30 = vector.shape_cast %29 : vector<2x4x16x4xbf16> to vector<128x4xbf16>
    %cst_35 = arith.constant dense<0.000000e+00> : vector<128x128xf32>
    %31 = tpu.matmul %30, %5, %cst_35 {dimension_numbers = #tpu.dot_dimension_numbers<[1], [0], [0], [1], [0, 0, 1, 1], [], []>} : vector<128x4xbf16>, vector<4x128xbf16>, vector<128x128xf32> -> vector<128x128xf32>
    %32 = arith.addf %28, %31 : vector<128x128xf32>
    %c0_36 = arith.constant 0 : index
    %c1_37 = arith.constant 1 : index
    %c0_38 = arith.constant 0 : index
    %c0_39 = arith.constant 0 : index
    %33 = vector.load %arg0[%c0_36, %c1_37, %c0_38, %c0_39] : memref<2x18x18x4xbf16, #tpu.memory_space<vmem>>, vector<2x4x16x4xbf16>
    %34 = vector.shape_cast %33 : vector<2x4x16x4xbf16> to vector<128x4xbf16>
    %cst_40 = arith.constant dense<0.000000e+00> : vector<128x128xf32>
    %35 = tpu.matmul %34, %7, %cst_40 {dimension_numbers = #tpu.dot_dimension_numbers<[1], [0], [0], [1], [0, 0, 1, 1], [], []>} : vector<128x4xbf16>, vector<4x128xbf16>, vector<128x128xf32> -> vector<128x128xf32>
    %36 = arith.addf %32, %35 : vector<128x128xf32>
    %c0_41 = arith.constant 0 : index
    %c1_42 = arith.constant 1 : index
    %c1_43 = arith.constant 1 : index
    %c0_44 = arith.constant 0 : index
    %37 = vector.load %arg0[%c0_41, %c1_42, %c1_43, %c0_44] : memref<2x18x18x4xbf16, #tpu.memory_space<vmem>>, vector<2x4x16x4xbf16>
    %38 = vector.shape_cast %37 : vector<2x4x16x4xbf16> to vector<128x4xbf16>
    %cst_45 = arith.constant dense<0.000000e+00> : vector<128x128xf32>
    %39 = tpu.matmul %38, %9, %cst_45 {dimension_numbers = #tpu.dot_dimension_numbers<[1], [0], [0], [1], [0, 0, 1, 1], [], []>} : vector<128x4xbf16>, vector<4x128xbf16>, vector<128x128xf32> -> vector<128x128xf32>
    %40 = arith.addf %36, %39 : vector<128x128xf32>
    %c0_46 = arith.constant 0 : index
    %c1_47 = arith.constant 1 : index
    %c2_48 = arith.constant 2 : index
    %c0_49 = arith.constant 0 : index
    %41 = vector.load %arg0[%c0_46, %c1_47, %c2_48, %c0_49] : memref<2x18x18x4xbf16, #tpu.memory_space<vmem>>, vector<2x4x16x4xbf16>
    %42 = vector.shape_cast %41 : vector<2x4x16x4xbf16> to vector<128x4xbf16>
    %cst_50 = arith.constant dense<0.000000e+00> : vector<128x128xf32>
    %43 = tpu.matmul %42, %11, %cst_50 {dimension_numbers = #tpu.dot_dimension_numbers<[1], [0], [0], [1], [0, 0, 1, 1], [], []>} : vector<128x4xbf16>, vector<4x128xbf16>, vector<128x128xf32> -> vector<128x128xf32>
    %44 = arith.addf %40, %43 : vector<128x128xf32>
    %c0_51 = arith.constant 0 : index
    %c2_52 = arith.constant 2 : index
    %c0_53 = arith.constant 0 : index
    %c0_54 = arith.constant 0 : index
    %45 = vector.load %arg0[%c0_51, %c2_52, %c0_53, %c0_54] : memref<2x18x18x4xbf16, #tpu.memory_space<vmem>>, vector<2x4x16x4xbf16>
    %46 = vector.shape_cast %45 : vector<2x4x16x4xbf16> to vector<128x4xbf16>
    %cst_55 = arith.constant dense<0.000000e+00> : vector<128x128xf32>
    %47 = tpu.matmul %46, %13, %cst_55 {dimension_numbers = #tpu.dot_dimension_numbers<[1], [0], [0], [1], [0, 0, 1, 1], [], []>} : vector<128x4xbf16>, vector<4x128xbf16>, vector<128x128xf32> -> vector<128x128xf32>
    %48 = arith.addf %44, %47 : vector<128x128xf32>
    %c0_56 = arith.constant 0 : index
    %c2_57 = arith.constant 2 : index
    %c1_58 = arith.constant 1 : index
    %c0_59 = arith.constant 0 : index
    %49 = vector.load %arg0[%c0_56, %c2_57, %c1_58, %c0_59] : memref<2x18x18x4xbf16, #tpu.memory_space<vmem>>, vector<2x4x16x4xbf16>
    %50 = vector.shape_cast %49 : vector<2x4x16x4xbf16> to vector<128x4xbf16>
    %cst_60 = arith.constant dense<0.000000e+00> : vector<128x128xf32>
    %51 = tpu.matmul %50, %15, %cst_60 {dimension_numbers = #tpu.dot_dimension_numbers<[1], [0], [0], [1], [0, 0, 1, 1], [], []>} : vector<128x4xbf16>, vector<4x128xbf16>, vector<128x128xf32> -> vector<128x128xf32>
    %52 = arith.addf %48, %51 : vector<128x128xf32>
    %c0_61 = arith.constant 0 : index
    %c2_62 = arith.constant 2 : index
    %c2_63 = arith.constant 2 : index
    %c0_64 = arith.constant 0 : index
    %53 = vector.load %arg0[%c0_61, %c2_62, %c2_63, %c0_64] : memref<2x18x18x4xbf16, #tpu.memory_space<vmem>>, vector<2x4x16x4xbf16>
    %54 = vector.shape_cast %53 : vector<2x4x16x4xbf16> to vector<128x4xbf16>
    %cst_65 = arith.constant dense<0.000000e+00> : vector<128x128xf32>
    %55 = tpu.matmul %54, %17, %cst_65 {dimension_numbers = #tpu.dot_dimension_numbers<[1], [0], [0], [1], [0, 0, 1, 1], [], []>} : vector<128x4xbf16>, vector<4x128xbf16>, vector<128x128xf32> -> vector<128x128xf32>
    %56 = arith.addf %52, %55 : vector<128x128xf32>
    %57 = vector.broadcast %18 : vector<1x128xf32> to vector<128x128xf32>
    %58 = arith.addf %56, %57 : vector<128x128xf32>
    %cst_66 = arith.constant 0.000000e+00 : f32
    %59 = vector.broadcast %cst_66 : f32 to vector<128x128xf32>
    %60 = arith.maximumf %58, %59 : vector<128x128xf32>
    %61 = vector.shape_cast %60 : vector<128x128xf32> to vector<2x64x128xf32>
    %cst_67 = arith.constant dense<0.000000e+00> : vector<2x128xf32>
    %62 = vector.multi_reduction <add>, %61, %cst_67 [1] : vector<2x64x128xf32> to vector<2x128xf32>
    %63 = arith.addf %19, %62 : vector<2x128xf32>
    %cst_68 = arith.constant 0.000000e+00 : f32
    %64 = vector.broadcast %cst_68 : f32 to vector<128x128xf32>
    %c0_69 = arith.constant 0 : index
    %c4_70 = arith.constant 4 : index
    %c0_71 = arith.constant 0 : index
    %c0_72 = arith.constant 0 : index
    %65 = vector.load %arg0[%c0_69, %c4_70, %c0_71, %c0_72] : memref<2x18x18x4xbf16, #tpu.memory_space<vmem>>, vector<2x4x16x4xbf16>
    %66 = vector.shape_cast %65 : vector<2x4x16x4xbf16> to vector<128x4xbf16>
    %cst_73 = arith.constant dense<0.000000e+00> : vector<128x128xf32>
    %67 = tpu.matmul %66, %1, %cst_73 {dimension_numbers = #tpu.dot_dimension_numbers<[1], [0], [0], [1], [0, 0, 1, 1], [], []>} : vector<128x4xbf16>, vector<4x128xbf16>, vector<128x128xf32> -> vector<128x128xf32>
    %68 = arith.addf %64, %67 : vector<128x128xf32>
    %c0_74 = arith.constant 0 : index
    %c4_75 = arith.constant 4 : index
    %c1_76 = arith.constant 1 : index
    %c0_77 = arith.constant 0 : index
    %69 = vector.load %arg0[%c0_74, %c4_75, %c1_76, %c0_77] : memref<2x18x18x4xbf16, #tpu.memory_space<vmem>>, vector<2x4x16x4xbf16>
    %70 = vector.shape_cast %69 : vector<2x4x16x4xbf16> to vector<128x4xbf16>
    %cst_78 = arith.constant dense<0.000000e+00> : vector<128x128xf32>
    %71 = tpu.matmul %70, %3, %cst_78 {dimension_numbers = #tpu.dot_dimension_numbers<[1], [0], [0], [1], [0, 0, 1, 1], [], []>} : vector<128x4xbf16>, vector<4x128xbf16>, vector<128x128xf32> -> vector<128x128xf32>
    %72 = arith.addf %68, %71 : vector<128x128xf32>
    %c0_79 = arith.constant 0 : index
    %c4_80 = arith.constant 4 : index
    %c2_81 = arith.constant 2 : index
    %c0_82 = arith.constant 0 : index
    %73 = vector.load %arg0[%c0_79, %c4_80, %c2_81, %c0_82] : memref<2x18x18x4xbf16, #tpu.memory_space<vmem>>, vector<2x4x16x4xbf16>
    %74 = vector.shape_cast %73 : vector<2x4x16x4xbf16> to vector<128x4xbf16>
    %cst_83 = arith.constant dense<0.000000e+00> : vector<128x128xf32>
    %75 = tpu.matmul %74, %5, %cst_83 {dimension_numbers = #tpu.dot_dimension_numbers<[1], [0], [0], [1], [0, 0, 1, 1], [], []>} : vector<128x4xbf16>, vector<4x128xbf16>, vector<128x128xf32> -> vector<128x128xf32>
    %76 = arith.addf %72, %75 : vector<128x128xf32>
    %c0_84 = arith.constant 0 : index
    %c5_85 = arith.constant 5 : index
    %c0_86 = arith.constant 0 : index
    %c0_87 = arith.constant 0 : index
    %77 = vector.load %arg0[%c0_84, %c5_85, %c0_86, %c0_87] : memref<2x18x18x4xbf16, #tpu.memory_space<vmem>>, vector<2x4x16x4xbf16>
    %78 = vector.shape_cast %77 : vector<2x4x16x4xbf16> to vector<128x4xbf16>
    %cst_88 = arith.constant dense<0.000000e+00> : vector<128x128xf32>
    %79 = tpu.matmul %78, %7, %cst_88 {dimension_numbers = #tpu.dot_dimension_numbers<[1], [0], [0], [1], [0, 0, 1, 1], [], []>} : vector<128x4xbf16>, vector<4x128xbf16>, vector<128x128xf32> -> vector<128x128xf32>
    %80 = arith.addf %76, %79 : vector<128x128xf32>
    %c0_89 = arith.constant 0 : index
    %c5_90 = arith.constant 5 : index
    %c1_91 = arith.constant 1 : index
    %c0_92 = arith.constant 0 : index
    %81 = vector.load %arg0[%c0_89, %c5_90, %c1_91, %c0_92] : memref<2x18x18x4xbf16, #tpu.memory_space<vmem>>, vector<2x4x16x4xbf16>
    %82 = vector.shape_cast %81 : vector<2x4x16x4xbf16> to vector<128x4xbf16>
    %cst_93 = arith.constant dense<0.000000e+00> : vector<128x128xf32>
    %83 = tpu.matmul %82, %9, %cst_93 {dimension_numbers = #tpu.dot_dimension_numbers<[1], [0], [0], [1], [0, 0, 1, 1], [], []>} : vector<128x4xbf16>, vector<4x128xbf16>, vector<128x128xf32> -> vector<128x128xf32>
    %84 = arith.addf %80, %83 : vector<128x128xf32>
    %c0_94 = arith.constant 0 : index
    %c5_95 = arith.constant 5 : index
    %c2_96 = arith.constant 2 : index
    %c0_97 = arith.constant 0 : index
    %85 = vector.load %arg0[%c0_94, %c5_95, %c2_96, %c0_97] : memref<2x18x18x4xbf16, #tpu.memory_space<vmem>>, vector<2x4x16x4xbf16>
    %86 = vector.shape_cast %85 : vector<2x4x16x4xbf16> to vector<128x4xbf16>
    %cst_98 = arith.constant dense<0.000000e+00> : vector<128x128xf32>
    %87 = tpu.matmul %86, %11, %cst_98 {dimension_numbers = #tpu.dot_dimension_numbers<[1], [0], [0], [1], [0, 0, 1, 1], [], []>} : vector<128x4xbf16>, vector<4x128xbf16>, vector<128x128xf32> -> vector<128x128xf32>
    %88 = arith.addf %84, %87 : vector<128x128xf32>
    %c0_99 = arith.constant 0 : index
    %c6_100 = arith.constant 6 : index
    %c0_101 = arith.constant 0 : index
    %c0_102 = arith.constant 0 : index
    %89 = vector.load %arg0[%c0_99, %c6_100, %c0_101, %c0_102] : memref<2x18x18x4xbf16, #tpu.memory_space<vmem>>, vector<2x4x16x4xbf16>
    %90 = vector.shape_cast %89 : vector<2x4x16x4xbf16> to vector<128x4xbf16>
    %cst_103 = arith.constant dense<0.000000e+00> : vector<128x128xf32>
    %91 = tpu.matmul %90, %13, %cst_103 {dimension_numbers = #tpu.dot_dimension_numbers<[1], [0], [0], [1], [0, 0, 1, 1], [], []>} : vector<128x4xbf16>, vector<4x128xbf16>, vector<128x128xf32> -> vector<128x128xf32>
    %92 = arith.addf %88, %91 : vector<128x128xf32>
    %c0_104 = arith.constant 0 : index
    %c6_105 = arith.constant 6 : index
    %c1_106 = arith.constant 1 : index
    %c0_107 = arith.constant 0 : index
    %93 = vector.load %arg0[%c0_104, %c6_105, %c1_106, %c0_107] : memref<2x18x18x4xbf16, #tpu.memory_space<vmem>>, vector<2x4x16x4xbf16>
    %94 = vector.shape_cast %93 : vector<2x4x16x4xbf16> to vector<128x4xbf16>
    %cst_108 = arith.constant dense<0.000000e+00> : vector<128x128xf32>
    %95 = tpu.matmul %94, %15, %cst_108 {dimension_numbers = #tpu.dot_dimension_numbers<[1], [0], [0], [1], [0, 0, 1, 1], [], []>} : vector<128x4xbf16>, vector<4x128xbf16>, vector<128x128xf32> -> vector<128x128xf32>
    %96 = arith.addf %92, %95 : vector<128x128xf32>
    %c0_109 = arith.constant 0 : index
    %c6_110 = arith.constant 6 : index
    %c2_111 = arith.constant 2 : index
    %c0_112 = arith.constant 0 : index
    %97 = vector.load %arg0[%c0_109, %c6_110, %c2_111, %c0_112] : memref<2x18x18x4xbf16, #tpu.memory_space<vmem>>, vector<2x4x16x4xbf16>
    %98 = vector.shape_cast %97 : vector<2x4x16x4xbf16> to vector<128x4xbf16>
    %cst_113 = arith.constant dense<0.000000e+00> : vector<128x128xf32>
    %99 = tpu.matmul %98, %17, %cst_113 {dimension_numbers = #tpu.dot_dimension_numbers<[1], [0], [0], [1], [0, 0, 1, 1], [], []>} : vector<128x4xbf16>, vector<4x128xbf16>, vector<128x128xf32> -> vector<128x128xf32>
    %100 = arith.addf %96, %99 : vector<128x128xf32>
    %101 = vector.broadcast %18 : vector<1x128xf32> to vector<128x128xf32>
    %102 = arith.addf %100, %101 : vector<128x128xf32>
    %cst_114 = arith.constant 0.000000e+00 : f32
    %103 = vector.broadcast %cst_114 : f32 to vector<128x128xf32>
    %104 = arith.maximumf %102, %103 : vector<128x128xf32>
    %105 = vector.shape_cast %104 : vector<128x128xf32> to vector<2x64x128xf32>
    %cst_115 = arith.constant dense<0.000000e+00> : vector<2x128xf32>
    %106 = vector.multi_reduction <add>, %105, %cst_115 [1] : vector<2x64x128xf32> to vector<2x128xf32>
    %107 = arith.addf %63, %106 : vector<2x128xf32>
    %cst_116 = arith.constant 0.000000e+00 : f32
    %108 = vector.broadcast %cst_116 : f32 to vector<128x128xf32>
    %c0_117 = arith.constant 0 : index
    %c8_118 = arith.constant 8 : index
    %c0_119 = arith.constant 0 : index
    %c0_120 = arith.constant 0 : index
    %109 = vector.load %arg0[%c0_117, %c8_118, %c0_119, %c0_120] : memref<2x18x18x4xbf16, #tpu.memory_space<vmem>>, vector<2x4x16x4xbf16>
    %110 = vector.shape_cast %109 : vector<2x4x16x4xbf16> to vector<128x4xbf16>
    %cst_121 = arith.constant dense<0.000000e+00> : vector<128x128xf32>
    %111 = tpu.matmul %110, %1, %cst_121 {dimension_numbers = #tpu.dot_dimension_numbers<[1], [0], [0], [1], [0, 0, 1, 1], [], []>} : vector<128x4xbf16>, vector<4x128xbf16>, vector<128x128xf32> -> vector<128x128xf32>
    %112 = arith.addf %108, %111 : vector<128x128xf32>
    %c0_122 = arith.constant 0 : index
    %c8_123 = arith.constant 8 : index
    %c1_124 = arith.constant 1 : index
    %c0_125 = arith.constant 0 : index
    %113 = vector.load %arg0[%c0_122, %c8_123, %c1_124, %c0_125] : memref<2x18x18x4xbf16, #tpu.memory_space<vmem>>, vector<2x4x16x4xbf16>
    %114 = vector.shape_cast %113 : vector<2x4x16x4xbf16> to vector<128x4xbf16>
    %cst_126 = arith.constant dense<0.000000e+00> : vector<128x128xf32>
    %115 = tpu.matmul %114, %3, %cst_126 {dimension_numbers = #tpu.dot_dimension_numbers<[1], [0], [0], [1], [0, 0, 1, 1], [], []>} : vector<128x4xbf16>, vector<4x128xbf16>, vector<128x128xf32> -> vector<128x128xf32>
    %116 = arith.addf %112, %115 : vector<128x128xf32>
    %c0_127 = arith.constant 0 : index
    %c8_128 = arith.constant 8 : index
    %c2_129 = arith.constant 2 : index
    %c0_130 = arith.constant 0 : index
    %117 = vector.load %arg0[%c0_127, %c8_128, %c2_129, %c0_130] : memref<2x18x18x4xbf16, #tpu.memory_space<vmem>>, vector<2x4x16x4xbf16>
    %118 = vector.shape_cast %117 : vector<2x4x16x4xbf16> to vector<128x4xbf16>
    %cst_131 = arith.constant dense<0.000000e+00> : vector<128x128xf32>
    %119 = tpu.matmul %118, %5, %cst_131 {dimension_numbers = #tpu.dot_dimension_numbers<[1], [0], [0], [1], [0, 0, 1, 1], [], []>} : vector<128x4xbf16>, vector<4x128xbf16>, vector<128x128xf32> -> vector<128x128xf32>
    %120 = arith.addf %116, %119 : vector<128x128xf32>
    %c0_132 = arith.constant 0 : index
    %c9 = arith.constant 9 : index
    %c0_133 = arith.constant 0 : index
    %c0_134 = arith.constant 0 : index
    %121 = vector.load %arg0[%c0_132, %c9, %c0_133, %c0_134] : memref<2x18x18x4xbf16, #tpu.memory_space<vmem>>, vector<2x4x16x4xbf16>
    %122 = vector.shape_cast %121 : vector<2x4x16x4xbf16> to vector<128x4xbf16>
    %cst_135 = arith.constant dense<0.000000e+00> : vector<128x128xf32>
    %123 = tpu.matmul %122, %7, %cst_135 {dimension_numbers = #tpu.dot_dimension_numbers<[1], [0], [0], [1], [0, 0, 1, 1], [], []>} : vector<128x4xbf16>, vector<4x128xbf16>, vector<128x128xf32> -> vector<128x128xf32>
    %124 = arith.addf %120, %123 : vector<128x128xf32>
    %c0_136 = arith.constant 0 : index
    %c9_137 = arith.constant 9 : index
    %c1_138 = arith.constant 1 : index
    %c0_139 = arith.constant 0 : index
    %125 = vector.load %arg0[%c0_136, %c9_137, %c1_138, %c0_139] : memref<2x18x18x4xbf16, #tpu.memory_space<vmem>>, vector<2x4x16x4xbf16>
    %126 = vector.shape_cast %125 : vector<2x4x16x4xbf16> to vector<128x4xbf16>
    %cst_140 = arith.constant dense<0.000000e+00> : vector<128x128xf32>
    %127 = tpu.matmul %126, %9, %cst_140 {dimension_numbers = #tpu.dot_dimension_numbers<[1], [0], [0], [1], [0, 0, 1, 1], [], []>} : vector<128x4xbf16>, vector<4x128xbf16>, vector<128x128xf32> -> vector<128x128xf32>
    %128 = arith.addf %124, %127 : vector<128x128xf32>
    %c0_141 = arith.constant 0 : index
    %c9_142 = arith.constant 9 : index
    %c2_143 = arith.constant 2 : index
    %c0_144 = arith.constant 0 : index
    %129 = vector.load %arg0[%c0_141, %c9_142, %c2_143, %c0_144] : memref<2x18x18x4xbf16, #tpu.memory_space<vmem>>, vector<2x4x16x4xbf16>
    %130 = vector.shape_cast %129 : vector<2x4x16x4xbf16> to vector<128x4xbf16>
    %cst_145 = arith.constant dense<0.000000e+00> : vector<128x128xf32>
    %131 = tpu.matmul %130, %11, %cst_145 {dimension_numbers = #tpu.dot_dimension_numbers<[1], [0], [0], [1], [0, 0, 1, 1], [], []>} : vector<128x4xbf16>, vector<4x128xbf16>, vector<128x128xf32> -> vector<128x128xf32>
    %132 = arith.addf %128, %131 : vector<128x128xf32>
    %c0_146 = arith.constant 0 : index
    %c10 = arith.constant 10 : index
    %c0_147 = arith.constant 0 : index
    %c0_148 = arith.constant 0 : index
    %133 = vector.load %arg0[%c0_146, %c10, %c0_147, %c0_148] : memref<2x18x18x4xbf16, #tpu.memory_space<vmem>>, vector<2x4x16x4xbf16>
    %134 = vector.shape_cast %133 : vector<2x4x16x4xbf16> to vector<128x4xbf16>
    %cst_149 = arith.constant dense<0.000000e+00> : vector<128x128xf32>
    %135 = tpu.matmul %134, %13, %cst_149 {dimension_numbers = #tpu.dot_dimension_numbers<[1], [0], [0], [1], [0, 0, 1, 1], [], []>} : vector<128x4xbf16>, vector<4x128xbf16>, vector<128x128xf32> -> vector<128x128xf32>
    %136 = arith.addf %132, %135 : vector<128x128xf32>
    %c0_150 = arith.constant 0 : index
    %c10_151 = arith.constant 10 : index
    %c1_152 = arith.constant 1 : index
    %c0_153 = arith.constant 0 : index
    %137 = vector.load %arg0[%c0_150, %c10_151, %c1_152, %c0_153] : memref<2x18x18x4xbf16, #tpu.memory_space<vmem>>, vector<2x4x16x4xbf16>
    %138 = vector.shape_cast %137 : vector<2x4x16x4xbf16> to vector<128x4xbf16>
    %cst_154 = arith.constant dense<0.000000e+00> : vector<128x128xf32>
    %139 = tpu.matmul %138, %15, %cst_154 {dimension_numbers = #tpu.dot_dimension_numbers<[1], [0], [0], [1], [0, 0, 1, 1], [], []>} : vector<128x4xbf16>, vector<4x128xbf16>, vector<128x128xf32> -> vector<128x128xf32>
    %140 = arith.addf %136, %139 : vector<128x128xf32>
    %c0_155 = arith.constant 0 : index
    %c10_156 = arith.constant 10 : index
    %c2_157 = arith.constant 2 : index
    %c0_158 = arith.constant 0 : index
    %141 = vector.load %arg0[%c0_155, %c10_156, %c2_157, %c0_158] : memref<2x18x18x4xbf16, #tpu.memory_space<vmem>>, vector<2x4x16x4xbf16>
    %142 = vector.shape_cast %141 : vector<2x4x16x4xbf16> to vector<128x4xbf16>
    %cst_159 = arith.constant dense<0.000000e+00> : vector<128x128xf32>
    %143 = tpu.matmul %142, %17, %cst_159 {dimension_numbers = #tpu.dot_dimension_numbers<[1], [0], [0], [1], [0, 0, 1, 1], [], []>} : vector<128x4xbf16>, vector<4x128xbf16>, vector<128x128xf32> -> vector<128x128xf32>
    %144 = arith.addf %140, %143 : vector<128x128xf32>
    %145 = vector.broadcast %18 : vector<1x128xf32> to vector<128x128xf32>
    %146 = arith.addf %144, %145 : vector<128x128xf32>
    %cst_160 = arith.constant 0.000000e+00 : f32
    %147 = vector.broadcast %cst_160 : f32 to vector<128x128xf32>
    %148 = arith.maximumf %146, %147 : vector<128x128xf32>
    %149 = vector.shape_cast %148 : vector<128x128xf32> to vector<2x64x128xf32>
    %cst_161 = arith.constant dense<0.000000e+00> : vector<2x128xf32>
    %150 = vector.multi_reduction <add>, %149, %cst_161 [1] : vector<2x64x128xf32> to vector<2x128xf32>
    %151 = arith.addf %107, %150 : vector<2x128xf32>
    %cst_162 = arith.constant 0.000000e+00 : f32
    %152 = vector.broadcast %cst_162 : f32 to vector<128x128xf32>
    %c0_163 = arith.constant 0 : index
    %c12 = arith.constant 12 : index
    %c0_164 = arith.constant 0 : index
    %c0_165 = arith.constant 0 : index
    %153 = vector.load %arg0[%c0_163, %c12, %c0_164, %c0_165] : memref<2x18x18x4xbf16, #tpu.memory_space<vmem>>, vector<2x4x16x4xbf16>
    %154 = vector.shape_cast %153 : vector<2x4x16x4xbf16> to vector<128x4xbf16>
    %cst_166 = arith.constant dense<0.000000e+00> : vector<128x128xf32>
    %155 = tpu.matmul %154, %1, %cst_166 {dimension_numbers = #tpu.dot_dimension_numbers<[1], [0], [0], [1], [0, 0, 1, 1], [], []>} : vector<128x4xbf16>, vector<4x128xbf16>, vector<128x128xf32> -> vector<128x128xf32>
    %156 = arith.addf %152, %155 : vector<128x128xf32>
    %c0_167 = arith.constant 0 : index
    %c12_168 = arith.constant 12 : index
    %c1_169 = arith.constant 1 : index
    %c0_170 = arith.constant 0 : index
    %157 = vector.load %arg0[%c0_167, %c12_168, %c1_169, %c0_170] : memref<2x18x18x4xbf16, #tpu.memory_space<vmem>>, vector<2x4x16x4xbf16>
    %158 = vector.shape_cast %157 : vector<2x4x16x4xbf16> to vector<128x4xbf16>
    %cst_171 = arith.constant dense<0.000000e+00> : vector<128x128xf32>
    %159 = tpu.matmul %158, %3, %cst_171 {dimension_numbers = #tpu.dot_dimension_numbers<[1], [0], [0], [1], [0, 0, 1, 1], [], []>} : vector<128x4xbf16>, vector<4x128xbf16>, vector<128x128xf32> -> vector<128x128xf32>
    %160 = arith.addf %156, %159 : vector<128x128xf32>
    %c0_172 = arith.constant 0 : index
    %c12_173 = arith.constant 12 : index
    %c2_174 = arith.constant 2 : index
    %c0_175 = arith.constant 0 : index
    %161 = vector.load %arg0[%c0_172, %c12_173, %c2_174, %c0_175] : memref<2x18x18x4xbf16, #tpu.memory_space<vmem>>, vector<2x4x16x4xbf16>
    %162 = vector.shape_cast %161 : vector<2x4x16x4xbf16> to vector<128x4xbf16>
    %cst_176 = arith.constant dense<0.000000e+00> : vector<128x128xf32>
    %163 = tpu.matmul %162, %5, %cst_176 {dimension_numbers = #tpu.dot_dimension_numbers<[1], [0], [0], [1], [0, 0, 1, 1], [], []>} : vector<128x4xbf16>, vector<4x128xbf16>, vector<128x128xf32> -> vector<128x128xf32>
    %164 = arith.addf %160, %163 : vector<128x128xf32>
    %c0_177 = arith.constant 0 : index
    %c13 = arith.constant 13 : index
    %c0_178 = arith.constant 0 : index
    %c0_179 = arith.constant 0 : index
    %165 = vector.load %arg0[%c0_177, %c13, %c0_178, %c0_179] : memref<2x18x18x4xbf16, #tpu.memory_space<vmem>>, vector<2x4x16x4xbf16>
    %166 = vector.shape_cast %165 : vector<2x4x16x4xbf16> to vector<128x4xbf16>
    %cst_180 = arith.constant dense<0.000000e+00> : vector<128x128xf32>
    %167 = tpu.matmul %166, %7, %cst_180 {dimension_numbers = #tpu.dot_dimension_numbers<[1], [0], [0], [1], [0, 0, 1, 1], [], []>} : vector<128x4xbf16>, vector<4x128xbf16>, vector<128x128xf32> -> vector<128x128xf32>
    %168 = arith.addf %164, %167 : vector<128x128xf32>
    %c0_181 = arith.constant 0 : index
    %c13_182 = arith.constant 13 : index
    %c1_183 = arith.constant 1 : index
    %c0_184 = arith.constant 0 : index
    %169 = vector.load %arg0[%c0_181, %c13_182, %c1_183, %c0_184] : memref<2x18x18x4xbf16, #tpu.memory_space<vmem>>, vector<2x4x16x4xbf16>
    %170 = vector.shape_cast %169 : vector<2x4x16x4xbf16> to vector<128x4xbf16>
    %cst_185 = arith.constant dense<0.000000e+00> : vector<128x128xf32>
    %171 = tpu.matmul %170, %9, %cst_185 {dimension_numbers = #tpu.dot_dimension_numbers<[1], [0], [0], [1], [0, 0, 1, 1], [], []>} : vector<128x4xbf16>, vector<4x128xbf16>, vector<128x128xf32> -> vector<128x128xf32>
    %172 = arith.addf %168, %171 : vector<128x128xf32>
    %c0_186 = arith.constant 0 : index
    %c13_187 = arith.constant 13 : index
    %c2_188 = arith.constant 2 : index
    %c0_189 = arith.constant 0 : index
    %173 = vector.load %arg0[%c0_186, %c13_187, %c2_188, %c0_189] : memref<2x18x18x4xbf16, #tpu.memory_space<vmem>>, vector<2x4x16x4xbf16>
    %174 = vector.shape_cast %173 : vector<2x4x16x4xbf16> to vector<128x4xbf16>
    %cst_190 = arith.constant dense<0.000000e+00> : vector<128x128xf32>
    %175 = tpu.matmul %174, %11, %cst_190 {dimension_numbers = #tpu.dot_dimension_numbers<[1], [0], [0], [1], [0, 0, 1, 1], [], []>} : vector<128x4xbf16>, vector<4x128xbf16>, vector<128x128xf32> -> vector<128x128xf32>
    %176 = arith.addf %172, %175 : vector<128x128xf32>
    %c0_191 = arith.constant 0 : index
    %c14 = arith.constant 14 : index
    %c0_192 = arith.constant 0 : index
    %c0_193 = arith.constant 0 : index
    %177 = vector.load %arg0[%c0_191, %c14, %c0_192, %c0_193] : memref<2x18x18x4xbf16, #tpu.memory_space<vmem>>, vector<2x4x16x4xbf16>
    %178 = vector.shape_cast %177 : vector<2x4x16x4xbf16> to vector<128x4xbf16>
    %cst_194 = arith.constant dense<0.000000e+00> : vector<128x128xf32>
    %179 = tpu.matmul %178, %13, %cst_194 {dimension_numbers = #tpu.dot_dimension_numbers<[1], [0], [0], [1], [0, 0, 1, 1], [], []>} : vector<128x4xbf16>, vector<4x128xbf16>, vector<128x128xf32> -> vector<128x128xf32>
    %180 = arith.addf %176, %179 : vector<128x128xf32>
    %c0_195 = arith.constant 0 : index
    %c14_196 = arith.constant 14 : index
    %c1_197 = arith.constant 1 : index
    %c0_198 = arith.constant 0 : index
    %181 = vector.load %arg0[%c0_195, %c14_196, %c1_197, %c0_198] : memref<2x18x18x4xbf16, #tpu.memory_space<vmem>>, vector<2x4x16x4xbf16>
    %182 = vector.shape_cast %181 : vector<2x4x16x4xbf16> to vector<128x4xbf16>
    %cst_199 = arith.constant dense<0.000000e+00> : vector<128x128xf32>
    %183 = tpu.matmul %182, %15, %cst_199 {dimension_numbers = #tpu.dot_dimension_numbers<[1], [0], [0], [1], [0, 0, 1, 1], [], []>} : vector<128x4xbf16>, vector<4x128xbf16>, vector<128x128xf32> -> vector<128x128xf32>
    %184 = arith.addf %180, %183 : vector<128x128xf32>
    %c0_200 = arith.constant 0 : index
    %c14_201 = arith.constant 14 : index
    %c2_202 = arith.constant 2 : index
    %c0_203 = arith.constant 0 : index
    %185 = vector.load %arg0[%c0_200, %c14_201, %c2_202, %c0_203] : memref<2x18x18x4xbf16, #tpu.memory_space<vmem>>, vector<2x4x16x4xbf16>
    %186 = vector.shape_cast %185 : vector<2x4x16x4xbf16> to vector<128x4xbf16>
    %cst_204 = arith.constant dense<0.000000e+00> : vector<128x128xf32>
    %187 = tpu.matmul %186, %17, %cst_204 {dimension_numbers = #tpu.dot_dimension_numbers<[1], [0], [0], [1], [0, 0, 1, 1], [], []>} : vector<128x4xbf16>, vector<4x128xbf16>, vector<128x128xf32> -> vector<128x128xf32>
    %188 = arith.addf %184, %187 : vector<128x128xf32>
    %189 = vector.broadcast %18 : vector<1x128xf32> to vector<128x128xf32>
    %190 = arith.addf %188, %189 : vector<128x128xf32>
    %cst_205 = arith.constant 0.000000e+00 : f32
    %191 = vector.broadcast %cst_205 : f32 to vector<128x128xf32>
    %192 = arith.maximumf %190, %191 : vector<128x128xf32>
    %193 = vector.shape_cast %192 : vector<128x128xf32> to vector<2x64x128xf32>
    %cst_206 = arith.constant dense<0.000000e+00> : vector<2x128xf32>
    %194 = vector.multi_reduction <add>, %193, %cst_206 [1] : vector<2x64x128xf32> to vector<2x128xf32>
    %195 = arith.addf %151, %194 : vector<2x128xf32>
    %cst_207 = arith.constant 3.906250e-03 : f32
    %196 = vector.broadcast %cst_207 : f32 to vector<2x128xf32>
    %197 = arith.mulf %195, %196 : vector<2x128xf32>
    %198 = vector.extract_strided_slice %197 {offsets = [0, 0], sizes = [2, 32], strides = [1, 1]} : vector<2x128xf32> to vector<2x32xf32>
    %199 = arith.truncf %198 : vector<2x32xf32> to vector<2x32xbf16>
    %c0_208 = arith.constant 0 : index
    %c0_209 = arith.constant 0 : index
    %200 = vector.load %arg3[%c0_208, %c0_209] : memref<32x128xbf16, #tpu.memory_space<vmem>>, vector<32x128xbf16>
    %cst_210 = arith.constant dense<0.000000e+00> : vector<2x128xf32>
    %201 = tpu.matmul %199, %200, %cst_210 {dimension_numbers = #tpu.dot_dimension_numbers<[1], [0], [0], [1], [0, 0, 1, 1], [], []>} : vector<2x32xbf16>, vector<32x128xbf16>, vector<2x128xf32> -> vector<2x128xf32>
    %c0_211 = arith.constant 0 : index
    %c0_212 = arith.constant 0 : index
    %202 = vector.load %arg4[%c0_211, %c0_212] : memref<1x128xf32, #tpu.memory_space<vmem>>, vector<1x128xf32>
    %203 = vector.broadcast %202 : vector<1x128xf32> to vector<2x128xf32>
    %204 = arith.addf %201, %203 : vector<2x128xf32>
    %cst_213 = arith.constant 0.000000e+00 : f32
    %205 = vector.broadcast %cst_213 : f32 to vector<2x128xf32>
    %206 = arith.maximumf %204, %205 : vector<2x128xf32>
    %207 = vector.extract_strided_slice %206 {offsets = [0, 0], sizes = [2, 32], strides = [1, 1]} : vector<2x128xf32> to vector<2x32xf32>
    %208 = arith.truncf %207 : vector<2x32xf32> to vector<2x32xbf16>
    %c0_214 = arith.constant 0 : index
    %c0_215 = arith.constant 0 : index
    %209 = vector.load %arg5[%c0_214, %c0_215] : memref<32x128xbf16, #tpu.memory_space<vmem>>, vector<32x128xbf16>
    %cst_216 = arith.constant dense<0.000000e+00> : vector<2x128xf32>
    %210 = tpu.matmul %208, %209, %cst_216 {dimension_numbers = #tpu.dot_dimension_numbers<[1], [0], [0], [1], [0, 0, 1, 1], [], []>} : vector<2x32xbf16>, vector<32x128xbf16>, vector<2x128xf32> -> vector<2x128xf32>
    %c0_217 = arith.constant 0 : index
    %c0_218 = arith.constant 0 : index
    %211 = vector.load %arg6[%c0_217, %c0_218] : memref<1x128xf32, #tpu.memory_space<vmem>>, vector<1x128xf32>
    %212 = vector.broadcast %211 : vector<1x128xf32> to vector<2x128xf32>
    %213 = arith.addf %210, %212 : vector<2x128xf32>
    %c0_219 = arith.constant 0 : index
    %c0_220 = arith.constant 0 : index
    %214 = vector.load %arg7[%c0_219, %c0_220] : memref<2x128xf32, #tpu.memory_space<vmem>>, vector<2x128xf32>
    tpu.vector_store %arg7[%c0_219, %c0_220], %213 {strides = array<i32>} : memref<2x128xf32, #tpu.memory_space<vmem>>, vector<2x128xf32>,
    return
  }
}

</mosaic_0001>

<llo_original>
// kernel: moco_encoder_forward.1
$region0: #{moco_encoder_forward.1}
  #allocation0 [shape = 'u32[]', space=smem, size = 0x4, offset = 0x4, fixed_abs, tag = 'smem constant byte address 0x4 - core index']
  #allocation1 [shape = 'u32[72,128]{1,0:T(1,128)}', space=vmem, size = 0x9000, scoped, tag = 'internal scratch']
  %s0 = inlined_call_operand.vmem [shape: bf16[2,18,18,4], index: 0, kind: input, shape index: {}]
  %s1 = inlined_call_operand.vmem [shape: bf16[9,4,128], index: 1, kind: input, shape index: {}]
  %s2 = inlined_call_operand.vmem [shape: f32[1,128], index: 2, kind: input, shape index: {}]
  %s3 = inlined_call_operand.vmem [shape: bf16[32,128], index: 3, kind: input, shape index: {}]
  %s4 = inlined_call_operand.vmem [shape: f32[1,128], index: 4, kind: input, shape index: {}]
  %s5 = inlined_call_operand.vmem [shape: bf16[32,128], index: 5, kind: input, shape index: {}]
  %s6 = inlined_call_operand.vmem [shape: f32[1,128], index: 6, kind: input, shape index: {}]
  %s7 = inlined_call_operand.hbm [shape: f32[2,128], index: 7, kind: output, shape index: {}]
  %s8 = sld [smem:[#allocation0]]
  $region38: #{moco_encoder_forward.1} parent=0
    _
  %s10 = ssub.s32 1, %s8
  %s11 = scalar_select 0, %s10, %s8
  $region1: #{moco_encoder_forward.1} parent=0
    #allocation2 [shape = 'u8[1024]{0}', space=vmem, size = 0x400, scoped, tag = 'output window, operand 0, single buffered']
    #allocation3 [shape = 's32[1]{0}', space=sflag, size = 0x4, scoped, tag = 'scoped memory for moco_encoder_forward.1']
    %12 = vsyncpa [#allocation3], 0
    // Predicated region
    $region2: #{moco_encoder_forward.1} parent=1 // pred_check
      _
    $region3: #{moco_encoder_forward.1} parent=1 // pred_check_branch
      %14 = sbr.rel (0) target = $region5
    $region4: #{moco_encoder_forward.1} parent=1 // pred_region
      _
    $region5: #{moco_encoder_forward.1} parent=1 // pred_fallthru
      _
    // Predicated region
    $region6: #{moco_encoder_forward.1} parent=1 // pred_check
      _
    $region7: #{moco_encoder_forward.1} parent=1 // pred_check_branch
      %16 = sbr.rel (0) target = $region9
    $region8: #{moco_encoder_forward.1} parent=1 // pred_region
      _
    $region9: #{moco_encoder_forward.1} parent=1 // pred_fallthru
      _
    // Predicated region
    $region10: #{moco_encoder_forward.1} parent=1 // pred_check
      _
    $region11: #{moco_encoder_forward.1} parent=1 // pred_check_branch
      %18 = sbr.rel (0) target = $region13
    $region12: #{moco_encoder_forward.1} parent=1 // pred_region
      _
    $region13: #{moco_encoder_forward.1} parent=1 // pred_fallthru
      _
    // Predicated region
    $region14: #{moco_encoder_forward.1} parent=1 // pred_check
      _
    $region15: #{moco_encoder_forward.1} parent=1 // pred_check_branch
      %20 = sbr.rel (0) target = $region17
    $region16: #{moco_encoder_forward.1} parent=1 // pred_region
      _
    $region17: #{moco_encoder_forward.1} parent=1 // pred_fallthru
      _
    // Predicated region
    $region18: #{moco_encoder_forward.1} parent=1 // pred_check
      _
    $region19: #{moco_encoder_forward.1} parent=1 // pred_check_branch
      %22 = sbr.rel (0) target = $region21
    $region20: #{moco_encoder_forward.1} parent=1 // pred_region
      _
    $region21: #{moco_encoder_forward.1} parent=1 // pred_fallthru
      _
    // Predicated region
    $region22: #{moco_encoder_forward.1} parent=1 // pred_check
      _
    $region23: #{moco_encoder_forward.1} parent=1 // pred_check_branch
      %24 = sbr.rel (0) target = $region25
    $region24: #{moco_encoder_forward.1} parent=1 // pred_region
      _
    $region25: #{moco_encoder_forward.1} parent=1 // pred_fallthru
      _
    // Predicated region
    $region26: #{moco_encoder_forward.1} parent=1 // pred_check
      _
    $region27: #{moco_encoder_forward.1} parent=1 // pred_check_branch
      %26 = sbr.rel (0) target = $region29
    $region28: #{moco_encoder_forward.1} parent=1 // pred_region
      _
    $region29: #{moco_encoder_forward.1} parent=1 // pred_fallthru
      _
    %v28 = vld [vmem:[%s1] sm:$0x3]
    %s29 = scalar_lea.vmem %s1, 2
    %v30 = vld [vmem:[%s29] sm:$0x3]
    %s31 = scalar_lea.vmem %s1, 4
    %v32 = vld [vmem:[%s31] sm:$0x3]
    %s33 = scalar_lea.vmem %s1, 6
    %v34 = vld [vmem:[%s33] sm:$0x3]
    %s35 = scalar_lea.vmem %s1, 8
    %v36 = vld [vmem:[%s35] sm:$0x3]
    %s37 = scalar_lea.vmem %s1, 10
    %v38 = vld [vmem:[%s37] sm:$0x3]
    %s39 = scalar_lea.vmem %s1, 12
    %v40 = vld [vmem:[%s39] sm:$0x3]
    %s41 = scalar_lea.vmem %s1, 14
    %v42 = vld [vmem:[%s41] sm:$0x3]
    %s43 = scalar_lea.vmem %s1, 16
    %v44 = vld [vmem:[%s43] sm:$0x3]
    %v45 = vld [vmem:[%s2] sm:$0x1]
    %v46 = vld [vmem:[%s0] sm:$0xf]
    %v47 = vld [vmem:[%s0 + $0x4] sm:$0xf]
    %v48 = vld [vmem:[%s0 + $0xc] sm:$0xf]
    %v49 = vld [vmem:[%s0 + $0x10] sm:$0xf]
    %v50 = vld [vmem:[%s0 + $0x18] sm:$0xf]
    %v51 = vld [vmem:[%s0 + $0x1c] sm:$0xf]
    %v52 = vld [vmem:[%s0 + $0x24] sm:$0xf]
    %v53 = vld [vmem:[%s0 + $0x28] sm:$0xf]
    %v54 = vld [vmem:[%s0 + $0xd8] sm:$0xf]
    %v55 = vld [vmem:[%s0 + $0xdc] sm:$0xf]
    %v56 = vld [vmem:[%s0 + $0xe4] sm:$0xf]
    %v57 = vld [vmem:[%s0 + $0xe8] sm:$0xf]
    %v58 = vld [vmem:[%s0 + $0xf0] sm:$0xf]
    %v59 = vld [vmem:[%s0 + $0xf4] sm:$0xf]
    %v60 = vld [vmem:[%s0 + $0xfc] sm:$0xf]
    %v61 = vld [vmem:[%s0 + $0x100] sm:$0xf]
    %v62 = vld [vmem:[%s0 + $0x8] sm:$0x1]
    %v63 = vld [vmem:[%s0 + $0x14] sm:$0x1]
    %v64 = vld [vmem:[%s0 + $0x20] sm:$0x1]
    %v65 = vld [vmem:[%s0 + $0x2c] sm:$0x1]
    %v66 = vld [vmem:[%s0 + $0xe0] sm:$0x1]
    %v67 = vld [vmem:[%s0 + $0xec] sm:$0x1]
    %v68 = vld [vmem:[%s0 + $0xf8] sm:$0x1]
    %v69 = vld [vmem:[%s0 + $0x104] sm:$0x1]
    %vm70 = vsmask.f32 3328
    %vm71 = vsmask.f32 7440
    %vm72 = vmor %vm70, %vm71
    %v74 = vshrl.u32 %v46, 16
    %v76 = vrot.slane %v74, 4
    %v77 = vshll.u32 %v46, 16
    %v79 = vrot.slane %v77, 5
    %v80 = vor.u32 %v76, %v79
    %v81 = vrot.slane %v80, 4
    %v83 = vshll.u32 %v47, 16
    %v85 = vrot.slane %v83, 5
    %v86 = vsel %vm72, %v81, %v85
    %v87 = vshrl.u32 %v47, 16
    %v89 = vrot.slane %v87, 4
    %v90 = vor.u32 %v89, %v85
    %v91 = vrot.slane %v90, 4
    %v93 = vshll.u32 %v62, 16
    %v95 = vrot.slane %v93, 5
    %v96 = vsel %vm72, %v91, %v95
    %v98 = vshrl.u32 %v48, 16
    %v100 = vrot.slane %v98, 4
    %v101 = vshll.u32 %v48, 16
    %v103 = vrot.slane %v101, 5
    %v104 = vor.u32 %v100, %v103
    %v105 = vrot.slane %v104, 4
    %v107 = vshll.u32 %v49, 16
    %v109 = vrot.slane %v107, 5
    %v110 = vsel %vm72, %v105, %v109
    %v111 = vshrl.u32 %v49, 16
    %v113 = vrot.slane %v111, 4
    %v114 = vor.u32 %v113, %v109
    %v115 = vrot.slane %v114, 4
    %v117 = vshll.u32 %v63, 16
    %v119 = vrot.slane %v117, 5
    %v120 = vsel %vm72, %v115, %v119
    %v122 = vshrl.u32 %v50, 16
    %v124 = vrot.slane %v122, 4
    %v125 = vshll.u32 %v50, 16
    %v127 = vrot.slane %v125, 5
    %v128 = vor.u32 %v124, %v127
    %v129 = vrot.slane %v128, 4
    %v131 = vshll.u32 %v51, 16
    %v133 = vrot.slane %v131, 5
    %v134 = vsel %vm72, %v129, %v133
    %v135 = vshrl.u32 %v51, 16
    %v137 = vrot.slane %v135, 4
    %v138 = vor.u32 %v137, %v133
    %v139 = vrot.slane %v138, 4
    %v141 = vshll.u32 %v64, 16
    %v143 = vrot.slane %v141, 5
    %v144 = vsel %vm72, %v139, %v143
    %v146 = vshrl.u32 %v52, 16
    %v148 = vrot.slane %v146, 4
    %v149 = vshll.u32 %v52, 16
    %v151 = vrot.slane %v149, 5
    %v152 = vor.u32 %v148, %v151
    %v153 = vrot.slane %v152, 4
    %v155 = vshll.u32 %v53, 16
    %v157 = vrot.slane %v155, 5
    %v158 = vsel %vm72, %v153, %v157
    %v159 = vshrl.u32 %v53, 16
    %v161 = vrot.slane %v159, 4
    %v162 = vor.u32 %v161, %v157
    %v163 = vrot.slane %v162, 4
    %v165 = vshll.u32 %v65, 16
    %v167 = vrot.slane %v165, 5
    %v168 = vsel %vm72, %v163, %v167
    %v170 = vshrl.u32 %v54, 16
    %v172 = vrot.slane %v170, 4
    %v173 = vshll.u32 %v54, 16
    %v175 = vrot.slane %v173, 5
    %v176 = vor.u32 %v172, %v175
    %v177 = vrot.slane %v176, 4
    %v179 = vshll.u32 %v55, 16
    %v181 = vrot.slane %v179, 5
    %v182 = vsel %vm72, %v177, %v181
    %v183 = vshrl.u32 %v55, 16
    %v185 = vrot.slane %v183, 4
    %v186 = vor.u32 %v185, %v181
    %v187 = vrot.slane %v186, 4
    %v189 = vshll.u32 %v66, 16
    %v191 = vrot.slane %v189, 5
    %v192 = vsel %vm72, %v187, %v191
    %v194 = vshrl.u32 %v56, 16
    %v196 = vrot.slane %v194, 4
    %v197 = vshll.u32 %v56, 16
    %v199 = vrot.slane %v197, 5
    %v200 = vor.u32 %v196, %v199
    %v201 = vrot.slane %v200, 4
    %v203 = vshll.u32 %v57, 16
    %v205 = vrot.slane %v203, 5
    %v206 = vsel %vm72, %v201, %v205
    %v207 = vshrl.u32 %v57, 16
    %v209 = vrot.slane %v207, 4
    %v210 = vor.u32 %v209, %v205
    %v211 = vrot.slane %v210, 4
    %v213 = vshll.u32 %v67, 16
    %v215 = vrot.slane %v213, 5
    %v216 = vsel %vm72, %v211, %v215
    %v218 = vshrl.u32 %v58, 16
    %v220 = vrot.slane %v218, 4
    %v221 = vshll.u32 %v58, 16
    %v223 = vrot.slane %v221, 5
    %v224 = vor.u32 %v220, %v223
    %v225 = vrot.slane %v224, 4
    %v227 = vshll.u32 %v59, 16
    %v229 = vrot.slane %v227, 5
    %v230 = vsel %vm72, %v225, %v229
    %v231 = vshrl.u32 %v59, 16
    %v233 = vrot.slane %v231, 4
    %v234 = vor.u32 %v233, %v229
    %v235 = vrot.slane %v234, 4
    %v237 = vshll.u32 %v68, 16
    %v239 = vrot.slane %v237, 5
    %v240 = vsel %vm72, %v235, %v239
    %v242 = vshrl.u32 %v60, 16
    %v244 = vrot.slane %v242, 4
    %v245 = vshll.u32 %v60, 16
    %v247 = vrot.slane %v245, 5
    %v248 = vor.u32 %v244, %v247
    %v249 = vrot.slane %v248, 4
    %v251 = vshll.u32 %v61, 16
    %v253 = vrot.slane %v251, 5
    %v254 = vsel %vm72, %v249, %v253
    %v255 = vshrl.u32 %v61, 16
    %v257 = vrot.slane %v255, 4
    %v258 = vor.u32 %v257, %v253
    %v259 = vrot.slane %v258, 4
    %v261 = vshll.u32 %v69, 16
    %v263 = vrot.slane %v261, 5
    %v264 = vsel %vm72, %v259, %v263
    %v265 = vunpack.c.l.b16 %v86
    %v266 = vunpack.c.l.b16 %v96
    %v267 = vunpack.c.l.b16 %v110
    %v268 = vunpack.c.l.b16 %v120
    %v269 = vunpack.c.l.b16 %v134
    %v270 = vunpack.c.l.b16 %v144
    %v271 = vunpack.c.l.b16 %v158
    %v272 = vunpack.c.l.b16 %v168
    %v273 = vunpack.c.l.b16 %v182
    %v274 = vunpack.c.l.b16 %v192
    %v275 = vunpack.c.l.b16 %v206
    %v276 = vunpack.c.l.b16 %v216
    %v277 = vunpack.c.l.b16 %v230
    %v278 = vunpack.c.l.b16 %v240
    %v279 = vunpack.c.l.b16 %v254
    %v280 = vunpack.c.l.b16 %v264
    %v281 = vpack.c.b16 %v266, %v265
    %v282 = vpack.c.b16 %v268, %v267
    %v283 = vpack.c.b16 %v270, %v269
    %v284 = vpack.c.b16 %v272, %v271
    %v285 = vpack.c.b16 %v274, %v273
    %v286 = vpack.c.b16 %v276, %v275
    %v287 = vpack.c.b16 %v278, %v277
    %v288 = vpack.c.b16 %v280, %v279
    %vm289 = vcmask 31744
    %v291 = vsel %vm289, %v281, 0
    %v294 = vsel %vm289, %v282, 0
    %v297 = vsel %vm289, %v283, 0
    %v300 = vsel %vm289, %v284, 0
    %v303 = vsel %vm289, %v285, 0
    %v306 = vsel %vm289, %v286, 0
    %v309 = vsel %vm289, %v287, 0
    %v312 = vsel %vm289, %v288, 0
    %vm314 = vcmask 1041408
    %v316 = vsel %vm314, %v30, 0
    %318 = vmatpush.bf16.msra.mxu0 0
    %319 = vmatpush.bf16.msra.mxu0 0
    %320 = vmatpush.bf16.msra.mxu0 0
    %321 = vmatpush.bf16.msra.mxu0 0
    %322 = vmatpush.bf16.msra.mxu0 0
    %323 = vmatpush.bf16.msra.mxu0 0
    %324 = vmatpush.bf16.msra.mxu0 0
    %325 = vmatpush.bf16.msra.mxu0 %v316
    %326 = vmatmul.bf16.gmra.mxu0 %v291
    %v327 = vpop.f32.mrf.mxu0
    %v328 = vadd.f32 0.0, %v327
    %v329 = vpop.f32.mrf.mxu0
    %v330 = vadd.f32 0.0, %v329
    %331 = vmatmul.bf16.gmra.mxu0 %v294
    %v332 = vpop.f32.mrf.mxu0
    %v333 = vadd.f32 0.0, %v332
    %v334 = vpop.f32.mrf.mxu0
    %v335 = vadd.f32 0.0, %v334
    %336 = vmatmul.bf16.gmra.mxu0 %v297
    %v337 = vpop.f32.mrf.mxu0
    %v338 = vadd.f32 0.0, %v337
    %v339 = vpop.f32.mrf.mxu0
    %v340 = vadd.f32 0.0, %v339
    %341 = vmatmul.bf16.gmra.mxu0 %v300
    %v342 = vpop.f32.mrf.mxu0
    %v343 = vadd.f32 0.0, %v342
    %v344 = vpop.f32.mrf.mxu0
    %v345 = vadd.f32 0.0, %v344
    %346 = vmatmul.bf16.gmra.mxu0 %v303
    %v347 = vpop.f32.mrf.mxu0
    %v348 = vadd.f32 0.0, %v347
    %v349 = vpop.f32.mrf.mxu0
    %v350 = vadd.f32 0.0, %v349
    %351 = vmatmul.bf16.gmra.mxu0 %v306
    %v352 = vpop.f32.mrf.mxu0
    %v353 = vadd.f32 0.0, %v352
    %v354 = vpop.f32.mrf.mxu0
    %v355 = vadd.f32 0.0, %v354
    %356 = vmatmul.bf16.gmra.mxu0 %v309
    %v357 = vpop.f32.mrf.mxu0
    %v358 = vadd.f32 0.0, %v357
    %v359 = vpop.f32.mrf.mxu0
    %v360 = vadd.f32 0.0, %v359
    %361 = vmatmul.bf16.gmra.mxu0 %v312
    %v362 = vpop.f32.mrf.mxu0
    %v363 = vadd.f32 0.0, %v362
    %v364 = vpop.f32.mrf.mxu0
    %v365 = vadd.f32 0.0, %v364
    %366 = vdwg.mxu0
    %v383 = vunpack.c.l.b16 %v46
    %v384 = vunpack.c.l.b16 %v47
    %v385 = vunpack.c.l.b16 %v48
    %v386 = vunpack.c.l.b16 %v49
    %v387 = vunpack.c.l.b16 %v50
    %v388 = vunpack.c.l.b16 %v51
    %v389 = vunpack.c.l.b16 %v52
    %v390 = vunpack.c.l.b16 %v53
    %v391 = vunpack.c.l.b16 %v54
    %v392 = vunpack.c.l.b16 %v55
    %v393 = vunpack.c.l.b16 %v56
    %v394 = vunpack.c.l.b16 %v57
    %v395 = vunpack.c.l.b16 %v58
    %v396 = vunpack.c.l.b16 %v59
    %v397 = vunpack.c.l.b16 %v60
    %v398 = vunpack.c.l.b16 %v61
    %v399 = vpack.c.b16 %v384, %v383
    %v400 = vpack.c.b16 %v386, %v385
    %v401 = vpack.c.b16 %v388, %v387
    %v402 = vpack.c.b16 %v390, %v389
    %v403 = vpack.c.b16 %v392, %v391
    %v404 = vpack.c.b16 %v394, %v393
    %v405 = vpack.c.b16 %v396, %v395
    %v406 = vpack.c.b16 %v398, %v397
    %v408 = vsel %vm289, %v399, 0
    %v411 = vsel %vm289, %v400, 0
    %v414 = vsel %vm289, %v401, 0
    %v417 = vsel %vm289, %v402, 0
    %v420 = vsel %vm289, %v403, 0
    %v423 = vsel %vm289, %v404, 0
    %v426 = vsel %vm289, %v405, 0
    %v429 = vsel %vm289, %v406, 0
    %v432 = vsel %vm314, %v28, 0
    %434 = vmatpush.bf16.msra.mxu0 0
    %435 = vmatpush.bf16.msra.mxu0 0
    %436 = vmatpush.bf16.msra.mxu0 0
    %437 = vmatpush.bf16.msra.mxu0 0
    %438 = vmatpush.bf16.msra.mxu0 0
    %439 = vmatpush.bf16.msra.mxu0 0
    %440 = vmatpush.bf16.msra.mxu0 0
    %441 = vmatpush.bf16.msra.mxu0 %v432
    %442 = vmatmul.bf16.gmra.mxu0 %v408
    %v443 = vpop.f32.mrf.mxu0
    %v444 = vadd.f32 %v328, %v443
    %v445 = vpop.f32.mrf.mxu0
    %v446 = vadd.f32 %v330, %v445
    %447 = vmatmul.bf16.gmra.mxu0 %v411
    %v448 = vpop.f32.mrf.mxu0
    %v449 = vadd.f32 %v333, %v448
    %v450 = vpop.f32.mrf.mxu0
    %v451 = vadd.f32 %v335, %v450
    %452 = vmatmul.bf16.gmra.mxu0 %v414
    %v453 = vpop.f32.mrf.mxu0
    %v454 = vadd.f32 %v338, %v453
    %v455 = vpop.f32.mrf.mxu0
    %v456 = vadd.f32 %v340, %v455
    %457 = vmatmul.bf16.gmra.mxu0 %v417
    %v458 = vpop.f32.mrf.mxu0
    %v459 = vadd.f32 %v343, %v458
    %v460 = vpop.f32.mrf.mxu0
    %v461 = vadd.f32 %v345, %v460
    %462 = vmatmul.bf16.gmra.mxu0 %v420
    %v463 = vpop.f32.mrf.mxu0
    %v464 = vadd.f32 %v348, %v463
    %v465 = vpop.f32.mrf.mxu0
    %v466 = vadd.f32 %v350, %v465
    %467 = vmatmul.bf16.gmra.mxu0 %v423
    %v468 = vpop.f32.mrf.mxu0
    %v469 = vadd.f32 %v353, %v468
    %v470 = vpop.f32.mrf.mxu0
    %v471 = vadd.f32 %v355, %v470
    %472 = vmatmul.bf16.gmra.mxu0 %v426
    %v473 = vpop.f32.mrf.mxu0
    %v474 = vadd.f32 %v358, %v473
    %v475 = vpop.f32.mrf.mxu0
    %v476 = vadd.f32 %v360, %v475
    %477 = vmatmul.bf16.gmra.mxu0 %v429
    %v478 = vpop.f32.mrf.mxu0
    %v479 = vadd.f32 %v363, %v478
    %v480 = vpop.f32.mrf.mxu0
    %v481 = vadd.f32 %v365, %v480
    %482 = vdwg.mxu0
    %v483 = vld [vmem:[%s0] sm:$0xe]
    %v484 = vld [vmem:[%s0 + $0xc] sm:$0xe]
    %v485 = vld [vmem:[%s0 + $0x18] sm:$0xe]
    %v486 = vld [vmem:[%s0 + $0x24] sm:$0xe]
    %v487 = vld [vmem:[%s0 + $0xd8] sm:$0xe]
    %v488 = vld [vmem:[%s0 + $0xe4] sm:$0xe]
    %v489 = vld [vmem:[%s0 + $0xf0] sm:$0xe]
    %v490 = vld [vmem:[%s0 + $0xfc] sm:$0xe]
    %vm507 = vcmask 1042432
    %vm508 = vcmask 1046532
    %vm509 = vmor %vm507, %vm508
    %v510 = vrot.slane %v483, 5
    %v511 = vrot.slane %v510, 4
    %v512 = vrot.slane %v47, 5
    %v513 = vsel %vm509, %v511, %v512
    %v514 = vrot.slane %v512, 4
    %v515 = vrot.slane %v62, 5
    %v516 = vsel %vm509, %v514, %v515
    %v517 = vrot.slane %v484, 5
    %v518 = vrot.slane %v517, 4
    %v519 = vrot.slane %v49, 5
    %v520 = vsel %vm509, %v518, %v519
    %v521 = vrot.slane %v519, 4
    %v522 = vrot.slane %v63, 5
    %v523 = vsel %vm509, %v521, %v522
    %v524 = vrot.slane %v485, 5
    %v525 = vrot.slane %v524, 4
    %v526 = vrot.slane %v51, 5
    %v527 = vsel %vm509, %v525, %v526
    %v528 = vrot.slane %v526, 4
    %v529 = vrot.slane %v64, 5
    %v530 = vsel %vm509, %v528, %v529
    %v531 = vrot.slane %v486, 5
    %v532 = vrot.slane %v531, 4
    %v533 = vrot.slane %v53, 5
    %v534 = vsel %vm509, %v532, %v533
    %v535 = vrot.slane %v533, 4
    %v536 = vrot.slane %v65, 5
    %v537 = vsel %vm509, %v535, %v536
    %v538 = vrot.slane %v487, 5
    %v539 = vrot.slane %v538, 4
    %v540 = vrot.slane %v55, 5
    %v541 = vsel %vm509, %v539, %v540
    %v542 = vrot.slane %v540, 4
    %v543 = vrot.slane %v66, 5
    %v544 = vsel %vm509, %v542, %v543
    %v545 = vrot.slane %v488, 5
    %v546 = vrot.slane %v545, 4
    %v547 = vrot.slane %v57, 5
    %v548 = vsel %vm509, %v546, %v547
    %v549 = vrot.slane %v547, 4
    %v550 = vrot.slane %v67, 5
    %v551 = vsel %vm509, %v549, %v550
    %v552 = vrot.slane %v489, 5
    %v553 = vrot.slane %v552, 4
    %v554 = vrot.slane %v59, 5
    %v555 = vsel %vm509, %v553, %v554
    %v556 = vrot.slane %v554, 4
    %v557 = vrot.slane %v68, 5
    %v558 = vsel %vm509, %v556, %v557
    %v559 = vrot.slane %v490, 5
    %v560 = vrot.slane %v559, 4
    %v561 = vrot.slane %v61, 5
    %v562 = vsel %vm509, %v560, %v561
    %v563 = vrot.slane %v561, 4
    %v564 = vrot.slane %v69, 5
    %v565 = vsel %vm509, %v563, %v564
    %v566 = vunpack.c.l.b16 %v513
    %v567 = vunpack.c.l.b16 %v516
    %v568 = vunpack.c.l.b16 %v520
    %v569 = vunpack.c.l.b16 %v523
    %v570 = vunpack.c.l.b16 %v527
    %v571 = vunpack.c.l.b16 %v530
    %v572 = vunpack.c.l.b16 %v534
    %v573 = vunpack.c.l.b16 %v537
    %v574 = vunpack.c.l.b16 %v541
    %v575 = vunpack.c.l.b16 %v544
    %v576 = vunpack.c.l.b16 %v548
    %v577 = vunpack.c.l.b16 %v551
    %v578 = vunpack.c.l.b16 %v555
    %v579 = vunpack.c.l.b16 %v558
    %v580 = vunpack.c.l.b16 %v562
    %v581 = vunpack.c.l.b16 %v565
    %v582 = vpack.c.b16 %v567, %v566
    %v583 = vpack.c.b16 %v569, %v568
    %v584 = vpack.c.b16 %v571, %v570
    %v585 = vpack.c.b16 %v573, %v572
    %v586 = vpack.c.b16 %v575, %v574
    %v587 = vpack.c.b16 %v577, %v576
    %v588 = vpack.c.b16 %v579, %v578
    %v589 = vpack.c.b16 %v581, %v580
    %v591 = vsel %vm289, %v582, 0
    %v594 = vsel %vm289, %v583, 0
    %v597 = vsel %vm289, %v584, 0
    %v600 = vsel %vm289, %v585, 0
    %v603 = vsel %vm289, %v586, 0
    %v606 = vsel %vm289, %v587, 0
    %v609 = vsel %vm289, %v588, 0
    %v612 = vsel %vm289, %v589, 0
    %v615 = vsel %vm314, %v32, 0
    %617 = vmatpush.bf16.msra.mxu0 0
    %618 = vmatpush.bf16.msra.mxu0 0
    %619 = vmatpush.bf16.msra.mxu0 0
    %620 = vmatpush.bf16.msra.mxu0 0
    %621 = vmatpush.bf16.msra.mxu0 0
    %622 = vmatpush.bf16.msra.mxu0 0
    %623 = vmatpush.bf16.msra.mxu0 0
    %624 = vmatpush.bf16.msra.mxu0 %v615
    %625 = vmatmul.bf16.gmra.mxu0 %v591
    %v626 = vpop.f32.mrf.mxu0
    %v627 = vadd.f32 0.0, %v626
    %v628 = vpop.f32.mrf.mxu0
    %v629 = vadd.f32 0.0, %v628
    %630 = vmatmul.bf16.gmra.mxu0 %v594
    %v631 = vpop.f32.mrf.mxu0
    %v632 = vadd.f32 0.0, %v631
    %v633 = vpop.f32.mrf.mxu0
    %v634 = vadd.f32 0.0, %v633
    %635 = vmatmul.bf16.gmra.mxu0 %v597
    %v636 = vpop.f32.mrf.mxu0
    %v637 = vadd.f32 0.0, %v636
    %v638 = vpop.f32.mrf.mxu0
    %v639 = vadd.f32 0.0, %v638
    %640 = vmatmul.bf16.gmra.mxu0 %v600
    %v641 = vpop.f32.mrf.mxu0
    %v642 = vadd.f32 0.0, %v641
    %v643 = vpop.f32.mrf.mxu0
    %v644 = vadd.f32 0.0, %v643
    %645 = vmatmul.bf16.gmra.mxu0 %v603
    %v646 = vpop.f32.mrf.mxu0
    %v647 = vadd.f32 0.0, %v646
    %v648 = vpop.f32.mrf.mxu0
    %v649 = vadd.f32 0.0, %v648
    %650 = vmatmul.bf16.gmra.mxu0 %v606
    %v651 = vpop.f32.mrf.mxu0
    %v652 = vadd.f32 0.0, %v651
    %v653 = vpop.f32.mrf.mxu0
    %v654 = vadd.f32 0.0, %v653
    %655 = vmatmul.bf16.gmra.mxu0 %v609
    %v656 = vpop.f32.mrf.mxu0
    %v657 = vadd.f32 0.0, %v656
    %v658 = vpop.f32.mrf.mxu0
    %v659 = vadd.f32 0.0, %v658
    %660 = vmatmul.bf16.gmra.mxu0 %v612
    %v661 = vpop.f32.mrf.mxu0
    %v662 = vadd.f32 0.0, %v661
    %v663 = vpop.f32.mrf.mxu0
    %v664 = vadd.f32 0.0, %v663
    %665 = vdwg.mxu0
    %v666 = vadd.f32 %v444, %v627
    %v667 = vadd.f32 %v446, %v629
    %v668 = vadd.f32 %v449, %v632
    %v669 = vadd.f32 %v451, %v634
    %v670 = vadd.f32 %v454, %v637
    %v671 = vadd.f32 %v456, %v639
    %v672 = vadd.f32 %v459, %v642
    %v673 = vadd.f32 %v461, %v644
    %v674 = vadd.f32 %v464, %v647
    %v675 = vadd.f32 %v466, %v649
    %v676 = vadd.f32 %v469, %v652
    %v677 = vadd.f32 %v471, %v654
    %v678 = vadd.f32 %v474, %v657
    %v679 = vadd.f32 %v476, %v659
    %v680 = vadd.f32 %v479, %v662
    %v681 = vadd.f32 %v481, %v664
    %s682 = scalar_lea.vmem %s0, 12
    %v683 = vld [vmem:[%s682] sm:$0xf]
    %v684 = vld [vmem:[%s682 + $0x4] sm:$0xf]
    %v685 = vld [vmem:[%s682 + $0xc] sm:$0xf]
    %v686 = vld [vmem:[%s682 + $0x10] sm:$0xf]
    %v687 = vld [vmem:[%s682 + $0x18] sm:$0xf]
    %v688 = vld [vmem:[%s682 + $0x1c] sm:$0xf]
    %v689 = vld [vmem:[%s682 + $0x24] sm:$0xf]
    %v690 = vld [vmem:[%s682 + $0x28] sm:$0xf]
    %v691 = vld [vmem:[%s682 + $0xd8] sm:$0xf]
    %v692 = vld [vmem:[%s682 + $0xdc] sm:$0xf]
    %v693 = vld [vmem:[%s682 + $0xe4] sm:$0xf]
    %v694 = vld [vmem:[%s682 + $0xe8] sm:$0xf]
    %v695 = vld [vmem:[%s682 + $0xf0] sm:$0xf]
    %v696 = vld [vmem:[%s682 + $0xf4] sm:$0xf]
    %v697 = vld [vmem:[%s682 + $0xfc] sm:$0xf]
    %v698 = vld [vmem:[%s682 + $0x100] sm:$0xf]
    %v715 = vunpack.c.l.b16 %v683
    %v716 = vunpack.c.l.b16 %v684
    %v717 = vunpack.c.l.b16 %v685
    %v718 = vunpack.c.l.b16 %v686
    %v719 = vunpack.c.l.b16 %v687
    %v720 = vunpack.c.l.b16 %v688
    %v721 = vunpack.c.l.b16 %v689
    %v722 = vunpack.c.l.b16 %v690
    %v723 = vunpack.c.l.b16 %v691
    %v724 = vunpack.c.l.b16 %v692
    %v725 = vunpack.c.l.b16 %v693
    %v726 = vunpack.c.l.b16 %v694
    %v727 = vunpack.c.l.b16 %v695
    %v728 = vunpack.c.l.b16 %v696
    %v729 = vunpack.c.l.b16 %v697
    %v730 = vunpack.c.l.b16 %v698
    %v731 = vpack.c.b16 %v716, %v715
    %v732 = vpack.c.b16 %v718, %v717
    %v733 = vpack.c.b16 %v720, %v719
    %v734 = vpack.c.b16 %v722, %v721
    %v735 = vpack.c.b16 %v724, %v723
    %v736 = vpack.c.b16 %v726, %v725
    %v737 = vpack.c.b16 %v728, %v727
    %v738 = vpack.c.b16 %v730, %v729
    %v740 = vsel %vm289, %v731, 0
    %v743 = vsel %vm289, %v732, 0
    %v746 = vsel %vm289, %v733, 0
    %v749 = vsel %vm289, %v734, 0
    %v752 = vsel %vm289, %v735, 0
    %v755 = vsel %vm289, %v736, 0
    %v758 = vsel %vm289, %v737, 0
    %v761 = vsel %vm289, %v738, 0
    %v764 = vsel %vm314, %v34, 0
    %766 = vmatpush.bf16.msra.mxu0 0
    %767 = vmatpush.bf16.msra.mxu0 0
    %768 = vmatpush.bf16.msra.mxu0 0
    %769 = vmatpush.bf16.msra.mxu0 0
    %770 = vmatpush.bf16.msra.mxu0 0
    %771 = vmatpush.bf16.msra.mxu0 0
    %772 = vmatpush.bf16.msra.mxu0 0
    %773 = vmatpush.bf16.msra.mxu0 %v764
    %774 = vmatmul.bf16.gmra.mxu0 %v740
    %v775 = vpop.f32.mrf.mxu0
    %v776 = vadd.f32 0.0, %v775
    %v777 = vpop.f32.mrf.mxu0
    %v778 = vadd.f32 0.0, %v777
    %779 = vmatmul.bf16.gmra.mxu0 %v743
    %v780 = vpop.f32.mrf.mxu0
    %v781 = vadd.f32 0.0, %v780
    %v782 = vpop.f32.mrf.mxu0
    %v783 = vadd.f32 0.0, %v782
    %784 = vmatmul.bf16.gmra.mxu0 %v746
    %v785 = vpop.f32.mrf.mxu0
    %v786 = vadd.f32 0.0, %v785
    %v787 = vpop.f32.mrf.mxu0
    %v788 = vadd.f32 0.0, %v787
    %789 = vmatmul.bf16.gmra.mxu0 %v749
    %v790 = vpop.f32.mrf.mxu0
    %v791 = vadd.f32 0.0, %v790
    %v792 = vpop.f32.mrf.mxu0
    %v793 = vadd.f32 0.0, %v792
    %794 = vmatmul.bf16.gmra.mxu0 %v752
    %v795 = vpop.f32.mrf.mxu0
    %v796 = vadd.f32 0.0, %v795
    %v797 = vpop.f32.mrf.mxu0
    %v798 = vadd.f32 0.0, %v797
    %799 = vmatmul.bf16.gmra.mxu0 %v755
    %v800 = vpop.f32.mrf.mxu0
    %v801 = vadd.f32 0.0, %v800
    %v802 = vpop.f32.mrf.mxu0
    %v803 = vadd.f32 0.0, %v802
    %804 = vmatmul.bf16.gmra.mxu0 %v758
    %v805 = vpop.f32.mrf.mxu0
    %v806 = vadd.f32 0.0, %v805
    %v807 = vpop.f32.mrf.mxu0
    %v808 = vadd.f32 0.0, %v807
    %809 = vmatmul.bf16.gmra.mxu0 %v761
    %v810 = vpop.f32.mrf.mxu0
    %v811 = vadd.f32 0.0, %v810
    %v812 = vpop.f32.mrf.mxu0
    %v813 = vadd.f32 0.0, %v812
    %814 = vdwg.mxu0
    %v815 = vadd.f32 %v666, %v776
    %v816 = vadd.f32 %v667, %v778
    %v817 = vadd.f32 %v668, %v781
    %v818 = vadd.f32 %v669, %v783
    %v819 = vadd.f32 %v670, %v786
    %v820 = vadd.f32 %v671, %v788
    %v821 = vadd.f32 %v672, %v791
    %v822 = vadd.f32 %v673, %v793
    %v823 = vadd.f32 %v674, %v796
    %v824 = vadd.f32 %v675, %v798
    %v825 = vadd.f32 %v676, %v801
    %v826 = vadd.f32 %v677, %v803
    %v827 = vadd.f32 %v678, %v806
    %v828 = vadd.f32 %v679, %v808
    %v829 = vadd.f32 %v680, %v811
    %v830 = vadd.f32 %v681, %v813
    %v831 = vld [vmem:[%s682] sm:$0xf]
    %v832 = vld [vmem:[%s682 + $0x4] sm:$0xf]
    %v833 = vld [vmem:[%s682 + $0x8] sm:$0x1]
    %v834 = vld [vmem:[%s682 + $0xc] sm:$0xf]
    %v835 = vld [vmem:[%s682 + $0x10] sm:$0xf]
    %v836 = vld [vmem:[%s682 + $0x14] sm:$0x1]
    %v837 = vld [vmem:[%s682 + $0x18] sm:$0xf]
    %v838 = vld [vmem:[%s682 + $0x1c] sm:$0xf]
    %v839 = vld [vmem:[%s682 + $0x20] sm:$0x1]
    %v840 = vld [vmem:[%s682 + $0x24] sm:$0xf]
    %v841 = vld [vmem:[%s682 + $0x28] sm:$0xf]
    %v842 = vld [vmem:[%s682 + $0x2c] sm:$0x1]
    %v843 = vld [vmem:[%s682 + $0xd8] sm:$0xf]
    %v844 = vld [vmem:[%s682 + $0xdc] sm:$0xf]
    %v845 = vld [vmem:[%s682 + $0xe0] sm:$0x1]
    %v846 = vld [vmem:[%s682 + $0xe4] sm:$0xf]
    %v847 = vld [vmem:[%s682 + $0xe8] sm:$0xf]
    %v848 = vld [vmem:[%s682 + $0xec] sm:$0x1]
    %v849 = vld [vmem:[%s682 + $0xf0] sm:$0xf]
    %v850 = vld [vmem:[%s682 + $0xf4] sm:$0xf]
    %v851 = vld [vmem:[%s682 + $0xf8] sm:$0x1]
    %v852 = vld [vmem:[%s682 + $0xfc] sm:$0xf]
    %v853 = vld [vmem:[%s682 + $0x100] sm:$0xf]
    %v854 = vld [vmem:[%s682 + $0x104] sm:$0x1]
    %v856 = vshrl.u32 %v831, 16
    %v858 = vrot.slane %v856, 4
    %v859 = vshll.u32 %v831, 16
    %v861 = vrot.slane %v859, 5
    %v862 = vor.u32 %v858, %v861
    %v863 = vrot.slane %v862, 4
    %v865 = vshll.u32 %v832, 16
    %v867 = vrot.slane %v865, 5
    %v868 = vsel %vm72, %v863, %v867
    %v869 = vshrl.u32 %v832, 16
    %v871 = vrot.slane %v869, 4
    %v872 = vor.u32 %v871, %v867
    %v873 = vrot.slane %v872, 4
    %v875 = vshll.u32 %v833, 16
    %v877 = vrot.slane %v875, 5
    %v878 = vsel %vm72, %v873, %v877
    %v880 = vshrl.u32 %v834, 16
    %v882 = vrot.slane %v880, 4
    %v883 = vshll.u32 %v834, 16
    %v885 = vrot.slane %v883, 5
    %v886 = vor.u32 %v882, %v885
    %v887 = vrot.slane %v886, 4
    %v889 = vshll.u32 %v835, 16
    %v891 = vrot.slane %v889, 5
    %v892 = vsel %vm72, %v887, %v891
    %v893 = vshrl.u32 %v835, 16
    %v895 = vrot.slane %v893, 4
    %v896 = vor.u32 %v895, %v891
    %v897 = vrot.slane %v896, 4
    %v899 = vshll.u32 %v836, 16
    %v901 = vrot.slane %v899, 5
    %v902 = vsel %vm72, %v897, %v901
    %v904 = vshrl.u32 %v837, 16
    %v906 = vrot.slane %v904, 4
    %v907 = vshll.u32 %v837, 16
    %v909 = vrot.slane %v907, 5
    %v910 = vor.u32 %v906, %v909
    %v911 = vrot.slane %v910, 4
    %v913 = vshll.u32 %v838, 16
    %v915 = vrot.slane %v913, 5
    %v916 = vsel %vm72, %v911, %v915
    %v917 = vshrl.u32 %v838, 16
    %v919 = vrot.slane %v917, 4
    %v920 = vor.u32 %v919, %v915
    %v921 = vrot.slane %v920, 4
    %v923 = vshll.u32 %v839, 16
    %v925 = vrot.slane %v923, 5
    %v926 = vsel %vm72, %v921, %v925
    %v928 = vshrl.u32 %v840, 16
    %v930 = vrot.slane %v928, 4
    %v931 = vshll.u32 %v840, 16
    %v933 = vrot.slane %v931, 5
    %v934 = vor.u32 %v930, %v933
    %v935 = vrot.slane %v934, 4
    %v937 = vshll.u32 %v841, 16
    %v939 = vrot.slane %v937, 5
    %v940 = vsel %vm72, %v935, %v939
    %v941 = vshrl.u32 %v841, 16
    %v943 = vrot.slane %v941, 4
    %v944 = vor.u32 %v943, %v939
    %v945 = vrot.slane %v944, 4
    %v947 = vshll.u32 %v842, 16
    %v949 = vrot.slane %v947, 5
    %v950 = vsel %vm72, %v945, %v949
    %v952 = vshrl.u32 %v843, 16
    %v954 = vrot.slane %v952, 4
    %v955 = vshll.u32 %v843, 16
    %v957 = vrot.slane %v955, 5
    %v958 = vor.u32 %v954, %v957
    %v959 = vrot.slane %v958, 4
    %v961 = vshll.u32 %v844, 16
    %v963 = vrot.slane %v961, 5
    %v964 = vsel %vm72, %v959, %v963
    %v965 = vshrl.u32 %v844, 16
    %v967 = vrot.slane %v965, 4
    %v968 = vor.u32 %v967, %v963
    %v969 = vrot.slane %v968, 4
    %v971 = vshll.u32 %v845, 16
    %v973 = vrot.slane %v971, 5
    %v974 = vsel %vm72, %v969, %v973
    %v976 = vshrl.u32 %v846, 16
    %v978 = vrot.slane %v976, 4
    %v979 = vshll.u32 %v846, 16
    %v981 = vrot.slane %v979, 5
    %v982 = vor.u32 %v978, %v981
    %v983 = vrot.slane %v982, 4
    %v985 = vshll.u32 %v847, 16
    %v987 = vrot.slane %v985, 5
    %v988 = vsel %vm72, %v983, %v987
    %v989 = vshrl.u32 %v847, 16
    %v991 = vrot.slane %v989, 4
    %v992 = vor.u32 %v991, %v987
    %v993 = vrot.slane %v992, 4
    %v995 = vshll.u32 %v848, 16
    %v997 = vrot.slane %v995, 5
    %v998 = vsel %vm72, %v993, %v997
    %v1000 = vshrl.u32 %v849, 16
    %v1002 = vrot.slane %v1000, 4
    %v1003 = vshll.u32 %v849, 16
    %v1005 = vrot.slane %v1003, 5
    %v1006 = vor.u32 %v1002, %v1005
    %v1007 = vrot.slane %v1006, 4
    %v1009 = vshll.u32 %v850, 16
    %v1011 = vrot.slane %v1009, 5
    %v1012 = vsel %vm72, %v1007, %v1011
    %v1013 = vshrl.u32 %v850, 16
    %v1015 = vrot.slane %v1013, 4
    %v1016 = vor.u32 %v1015, %v1011
    %v1017 = vrot.slane %v1016, 4
    %v1019 = vshll.u32 %v851, 16
    %v1021 = vrot.slane %v1019, 5
    %v1022 = vsel %vm72, %v1017, %v1021
    %v1024 = vshrl.u32 %v852, 16
    %v1026 = vrot.slane %v1024, 4
    %v1027 = vshll.u32 %v852, 16
    %v1029 = vrot.slane %v1027, 5
    %v1030 = vor.u32 %v1026, %v1029
    %v1031 = vrot.slane %v1030, 4
    %v1033 = vshll.u32 %v853, 16
    %v1035 = vrot.slane %v1033, 5
    %v1036 = vsel %vm72, %v1031, %v1035
    %v1037 = vshrl.u32 %v853, 16
    %v1039 = vrot.slane %v1037, 4
    %v1040 = vor.u32 %v1039, %v1035
    %v1041 = vrot.slane %v1040, 4
    %v1043 = vshll.u32 %v854, 16
    %v1045 = vrot.slane %v1043, 5
    %v1046 = vsel %vm72, %v1041, %v1045
    %v1047 = vunpack.c.l.b16 %v868
    %v1048 = vunpack.c.l.b16 %v878
    %v1049 = vunpack.c.l.b16 %v892
    %v1050 = vunpack.c.l.b16 %v902
    %v1051 = vunpack.c.l.b16 %v916
    %v1052 = vunpack.c.l.b16 %v926
    %v1053 = vunpack.c.l.b16 %v940
    %v1054 = vunpack.c.l.b16 %v950
    %v1055 = vunpack.c.l.b16 %v964
    %v1056 = vunpack.c.l.b16 %v974
    %v1057 = vunpack.c.l.b16 %v988
    %v1058 = vunpack.c.l.b16 %v998
    %v1059 = vunpack.c.l.b16 %v1012
    %v1060 = vunpack.c.l.b16 %v1022
    %v1061 = vunpack.c.l.b16 %v1036
    %v1062 = vunpack.c.l.b16 %v1046
    %v1063 = vpack.c.b16 %v1048, %v1047
    %v1064 = vpack.c.b16 %v1050, %v1049
    %v1065 = vpack.c.b16 %v1052, %v1051
    %v1066 = vpack.c.b16 %v1054, %v1053
    %v1067 = vpack.c.b16 %v1056, %v1055
    %v1068 = vpack.c.b16 %v1058, %v1057
    %v1069 = vpack.c.b16 %v1060, %v1059
    %v1070 = vpack.c.b16 %v1062, %v1061
    %v1072 = vsel %vm289, %v1063, 0
    %v1075 = vsel %vm289, %v1064, 0
    %v1078 = vsel %vm289, %v1065, 0
    %v1081 = vsel %vm289, %v1066, 0
    %v1084 = vsel %vm289, %v1067, 0
    %v1087 = vsel %vm289, %v1068, 0
    %v1090 = vsel %vm289, %v1069, 0
    %v1093 = vsel %vm289, %v1070, 0
    %v1096 = vsel %vm314, %v36, 0
    %1098 = vmatpush.bf16.msra.mxu0 0
    %1099 = vmatpush.bf16.msra.mxu0 0
    %1100 = vmatpush.bf16.msra.mxu0 0
    %1101 = vmatpush.bf16.msra.mxu0 0
    %1102 = vmatpush.bf16.msra.mxu0 0
    %1103 = vmatpush.bf16.msra.mxu0 0
    %1104 = vmatpush.bf16.msra.mxu0 0
    %1105 = vmatpush.bf16.msra.mxu0 %v1096
    %1106 = vmatmul.bf16.gmra.mxu0 %v1072
    %v1107 = vpop.f32.mrf.mxu0
    %v1108 = vadd.f32 0.0, %v1107
    %v1109 = vpop.f32.mrf.mxu0
    %v1110 = vadd.f32 0.0, %v1109
    %1111 = vmatmul.bf16.gmra.mxu0 %v1075
    %v1112 = vpop.f32.mrf.mxu0
    %v1113 = vadd.f32 0.0, %v1112
    %v1114 = vpop.f32.mrf.mxu0
    %v1115 = vadd.f32 0.0, %v1114
    %1116 = vmatmul.bf16.gmra.mxu0 %v1078
    %v1117 = vpop.f32.mrf.mxu0
    %v1118 = vadd.f32 0.0, %v1117
    %v1119 = vpop.f32.mrf.mxu0
    %v1120 = vadd.f32 0.0, %v1119
    %1121 = vmatmul.bf16.gmra.mxu0 %v1081
    %v1122 = vpop.f32.mrf.mxu0
    %v1123 = vadd.f32 0.0, %v1122
    %v1124 = vpop.f32.mrf.mxu0
    %v1125 = vadd.f32 0.0, %v1124
    %1126 = vmatmul.bf16.gmra.mxu0 %v1084
    %v1127 = vpop.f32.mrf.mxu0
    %v1128 = vadd.f32 0.0, %v1127
    %v1129 = vpop.f32.mrf.mxu0
    %v1130 = vadd.f32 0.0, %v1129
    %1131 = vmatmul.bf16.gmra.mxu0 %v1087
    %v1132 = vpop.f32.mrf.mxu0
    %v1133 = vadd.f32 0.0, %v1132
    %v1134 = vpop.f32.mrf.mxu0
    %v1135 = vadd.f32 0.0, %v1134
    %1136 = vmatmul.bf16.gmra.mxu0 %v1090
    %v1137 = vpop.f32.mrf.mxu0
    %v1138 = vadd.f32 0.0, %v1137
    %v1139 = vpop.f32.mrf.mxu0
    %v1140 = vadd.f32 0.0, %v1139
    %1141 = vmatmul.bf16.gmra.mxu0 %v1093
    %v1142 = vpop.f32.mrf.mxu0
    %v1143 = vadd.f32 0.0, %v1142
    %v1144 = vpop.f32.mrf.mxu0
    %v1145 = vadd.f32 0.0, %v1144
    %1146 = vdwg.mxu0
    %v1147 = vadd.f32 %v815, %v1108
    %v1148 = vadd.f32 %v816, %v1110
    %v1149 = vadd.f32 %v817, %v1113
    %v1150 = vadd.f32 %v818, %v1115
    %v1151 = vadd.f32 %v819, %v1118
    %v1152 = vadd.f32 %v820, %v1120
    %v1153 = vadd.f32 %v821, %v1123
    %v1154 = vadd.f32 %v822, %v1125
    %v1155 = vadd.f32 %v823, %v1128
    %v1156 = vadd.f32 %v824, %v1130
    %v1157 = vadd.f32 %v825, %v1133
    %v1158 = vadd.f32 %v826, %v1135
    %v1159 = vadd.f32 %v827, %v1138
    %v1160 = vadd.f32 %v828, %v1140
    %v1161 = vadd.f32 %v829, %v1143
    %v1162 = vadd.f32 %v830, %v1145
    %v1163 = vld [vmem:[%s682] sm:$0xe]
    %v1164 = vld [vmem:[%s682 + $0xc] sm:$0xe]
    %v1165 = vld [vmem:[%s682 + $0x18] sm:$0xe]
    %v1166 = vld [vmem:[%s682 + $0x24] sm:$0xe]
    %v1167 = vld [vmem:[%s682 + $0xd8] sm:$0xe]
    %v1168 = vld [vmem:[%s682 + $0xe4] sm:$0xe]
    %v1169 = vld [vmem:[%s682 + $0xf0] sm:$0xe]
    %v1170 = vld [vmem:[%s682 + $0xfc] sm:$0xe]
    %v1195 = vrot.slane %v1163, 5
    %v1196 = vrot.slane %v1195, 4
    %v1197 = vrot.slane %v832, 5
    %v1198 = vsel %vm509, %v1196, %v1197
    %v1199 = vrot.slane %v1197, 4
    %v1200 = vrot.slane %v833, 5
    %v1201 = vsel %vm509, %v1199, %v1200
    %v1202 = vrot.slane %v1164, 5
    %v1203 = vrot.slane %v1202, 4
    %v1204 = vrot.slane %v835, 5
    %v1205 = vsel %vm509, %v1203, %v1204
    %v1206 = vrot.slane %v1204, 4
    %v1207 = vrot.slane %v836, 5
    %v1208 = vsel %vm509, %v1206, %v1207
    %v1209 = vrot.slane %v1165, 5
    %v1210 = vrot.slane %v1209, 4
    %v1211 = vrot.slane %v838, 5
    %v1212 = vsel %vm509, %v1210, %v1211
    %v1213 = vrot.slane %v1211, 4
    %v1214 = vrot.slane %v839, 5
    %v1215 = vsel %vm509, %v1213, %v1214
    %v1216 = vrot.slane %v1166, 5
    %v1217 = vrot.slane %v1216, 4
    %v1218 = vrot.slane %v841, 5
    %v1219 = vsel %vm509, %v1217, %v1218
    %v1220 = vrot.slane %v1218, 4
    %v1221 = vrot.slane %v842, 5
    %v1222 = vsel %vm509, %v1220, %v1221
    %v1223 = vrot.slane %v1167, 5
    %v1224 = vrot.slane %v1223, 4
    %v1225 = vrot.slane %v844, 5
    %v1226 = vsel %vm509, %v1224, %v1225
    %v1227 = vrot.slane %v1225, 4
    %v1228 = vrot.slane %v845, 5
    %v1229 = vsel %vm509, %v1227, %v1228
    %v1230 = vrot.slane %v1168, 5
    %v1231 = vrot.slane %v1230, 4
    %v1232 = vrot.slane %v847, 5
    %v1233 = vsel %vm509, %v1231, %v1232
    %v1234 = vrot.slane %v1232, 4
    %v1235 = vrot.slane %v848, 5
    %v1236 = vsel %vm509, %v1234, %v1235
    %v1237 = vrot.slane %v1169, 5
    %v1238 = vrot.slane %v1237, 4
    %v1239 = vrot.slane %v850, 5
    %v1240 = vsel %vm509, %v1238, %v1239
    %v1241 = vrot.slane %v1239, 4
    %v1242 = vrot.slane %v851, 5
    %v1243 = vsel %vm509, %v1241, %v1242
    %v1244 = vrot.slane %v1170, 5
    %v1245 = vrot.slane %v1244, 4
    %v1246 = vrot.slane %v853, 5
    %v1247 = vsel %vm509, %v1245, %v1246
    %v1248 = vrot.slane %v1246, 4
    %v1249 = vrot.slane %v854, 5
    %v1250 = vsel %vm509, %v1248, %v1249
    %v1251 = vunpack.c.l.b16 %v1198
    %v1252 = vunpack.c.l.b16 %v1201
    %v1253 = vunpack.c.l.b16 %v1205
    %v1254 = vunpack.c.l.b16 %v1208
    %v1255 = vunpack.c.l.b16 %v1212
    %v1256 = vunpack.c.l.b16 %v1215
    %v1257 = vunpack.c.l.b16 %v1219
    %v1258 = vunpack.c.l.b16 %v1222
    %v1259 = vunpack.c.l.b16 %v1226
    %v1260 = vunpack.c.l.b16 %v1229
    %v1261 = vunpack.c.l.b16 %v1233
    %v1262 = vunpack.c.l.b16 %v1236
    %v1263 = vunpack.c.l.b16 %v1240
    %v1264 = vunpack.c.l.b16 %v1243
    %v1265 = vunpack.c.l.b16 %v1247
    %v1266 = vunpack.c.l.b16 %v1250
    %v1267 = vpack.c.b16 %v1252, %v1251
    %v1268 = vpack.c.b16 %v1254, %v1253
    %v1269 = vpack.c.b16 %v1256, %v1255
    %v1270 = vpack.c.b16 %v1258, %v1257
    %v1271 = vpack.c.b16 %v1260, %v1259
    %v1272 = vpack.c.b16 %v1262, %v1261
    %v1273 = vpack.c.b16 %v1264, %v1263
    %v1274 = vpack.c.b16 %v1266, %v1265
    %v1276 = vsel %vm289, %v1267, 0
    %v1279 = vsel %vm289, %v1268, 0
    %v1282 = vsel %vm289, %v1269, 0
    %v1285 = vsel %vm289, %v1270, 0
    %v1288 = vsel %vm289, %v1271, 0
    %v1291 = vsel %vm289, %v1272, 0
    %v1294 = vsel %vm289, %v1273, 0
    %v1297 = vsel %vm289, %v1274, 0
    %v1300 = vsel %vm314, %v38, 0
    %1302 = vmatpush.bf16.msra.mxu0 0
    %1303 = vmatpush.bf16.msra.mxu0 0
    %1304 = vmatpush.bf16.msra.mxu0 0
    %1305 = vmatpush.bf16.msra.mxu0 0
    %1306 = vmatpush.bf16.msra.mxu0 0
    %1307 = vmatpush.bf16.msra.mxu0 0
    %1308 = vmatpush.bf16.msra.mxu0 0
    %1309 = vmatpush.bf16.msra.mxu0 %v1300
    %1310 = vmatmul.bf16.gmra.mxu0 %v1276
    %v1311 = vpop.f32.mrf.mxu0
    %v1312 = vadd.f32 0.0, %v1311
    %v1313 = vpop.f32.mrf.mxu0
    %v1314 = vadd.f32 0.0, %v1313
    %1315 = vmatmul.bf16.gmra.mxu0 %v1279
    %v1316 = vpop.f32.mrf.mxu0
    %v1317 = vadd.f32 0.0, %v1316
    %v1318 = vpop.f32.mrf.mxu0
    %v1319 = vadd.f32 0.0, %v1318
    %1320 = vmatmul.bf16.gmra.mxu0 %v1282
    %v1321 = vpop.f32.mrf.mxu0
    %v1322 = vadd.f32 0.0, %v1321
    %v1323 = vpop.f32.mrf.mxu0
    %v1324 = vadd.f32 0.0, %v1323
    %1325 = vmatmul.bf16.gmra.mxu0 %v1285
    %v1326 = vpop.f32.mrf.mxu0
    %v1327 = vadd.f32 0.0, %v1326
    %v1328 = vpop.f32.mrf.mxu0
    %v1329 = vadd.f32 0.0, %v1328
    %1330 = vmatmul.bf16.gmra.mxu0 %v1288
    %v1331 = vpop.f32.mrf.mxu0
    %v1332 = vadd.f32 0.0, %v1331
    %v1333 = vpop.f32.mrf.mxu0
    %v1334 = vadd.f32 0.0, %v1333
    %1335 = vmatmul.bf16.gmra.mxu0 %v1291
    %v1336 = vpop.f32.mrf.mxu0
    %v1337 = vadd.f32 0.0, %v1336
    %v1338 = vpop.f32.mrf.mxu0
    %v1339 = vadd.f32 0.0, %v1338
    %1340 = vmatmul.bf16.gmra.mxu0 %v1294
    %v1341 = vpop.f32.mrf.mxu0
    %v1342 = vadd.f32 0.0, %v1341
    %v1343 = vpop.f32.mrf.mxu0
    %v1344 = vadd.f32 0.0, %v1343
    %1345 = vmatmul.bf16.gmra.mxu0 %v1297
    %v1346 = vpop.f32.mrf.mxu0
    %v1347 = vadd.f32 0.0, %v1346
    %v1348 = vpop.f32.mrf.mxu0
    %v1349 = vadd.f32 0.0, %v1348
    %1350 = vdwg.mxu0
    %v1351 = vadd.f32 %v1147, %v1312
    %v1352 = vadd.f32 %v1148, %v1314
    %v1353 = vadd.f32 %v1149, %v1317
    %v1354 = vadd.f32 %v1150, %v1319
    %v1355 = vadd.f32 %v1151, %v1322
    %v1356 = vadd.f32 %v1152, %v1324
    %v1357 = vadd.f32 %v1153, %v1327
    %v1358 = vadd.f32 %v1154, %v1329
    %v1359 = vadd.f32 %v1155, %v1332
    %v1360 = vadd.f32 %v1156, %v1334
    %v1361 = vadd.f32 %v1157, %v1337
    %v1362 = vadd.f32 %v1158, %v1339
    %v1363 = vadd.f32 %v1159, %v1342
    %v1364 = vadd.f32 %v1160, %v1344
    %v1365 = vadd.f32 %v1161, %v1347
    %v1366 = vadd.f32 %v1162, %v1349
    %s1367 = scalar_lea.vmem %s0, 24
    %v1368 = vld [vmem:[%s1367] sm:$0xf]
    %v1369 = vld [vmem:[%s1367 + $0x4] sm:$0xf]
    %v1370 = vld [vmem:[%s1367 + $0xc] sm:$0xf]
    %v1371 = vld [vmem:[%s1367 + $0x10] sm:$0xf]
    %v1372 = vld [vmem:[%s1367 + $0x18] sm:$0xf]
    %v1373 = vld [vmem:[%s1367 + $0x1c] sm:$0xf]
    %v1374 = vld [vmem:[%s1367 + $0x24] sm:$0xf]
    %v1375 = vld [vmem:[%s1367 + $0x28] sm:$0xf]
    %v1376 = vld [vmem:[%s1367 + $0xd8] sm:$0xf]
    %v1377 = vld [vmem:[%s1367 + $0xdc] sm:$0xf]
    %v1378 = vld [vmem:[%s1367 + $0xe4] sm:$0xf]
    %v1379 = vld [vmem:[%s1367 + $0xe8] sm:$0xf]
    %v1380 = vld [vmem:[%s1367 + $0xf0] sm:$0xf]
    %v1381 = vld [vmem:[%s1367 + $0xf4] sm:$0xf]
    %v1382 = vld [vmem:[%s1367 + $0xfc] sm:$0xf]
    %v1383 = vld [vmem:[%s1367 + $0x100] sm:$0xf]
    %v1400 = vunpack.c.l.b16 %v1368
    %v1401 = vunpack.c.l.b16 %v1369
    %v1402 = vunpack.c.l.b16 %v1370
    %v1403 = vunpack.c.l.b16 %v1371
    %v1404 = vunpack.c.l.b16 %v1372
    %v1405 = vunpack.c.l.b16 %v1373
    %v1406 = vunpack.c.l.b16 %v1374
    %v1407 = vunpack.c.l.b16 %v1375
    %v1408 = vunpack.c.l.b16 %v1376
    %v1409 = vunpack.c.l.b16 %v1377
    %v1410 = vunpack.c.l.b16 %v1378
    %v1411 = vunpack.c.l.b16 %v1379
    %v1412 = vunpack.c.l.b16 %v1380
    %v1413 = vunpack.c.l.b16 %v1381
    %v1414 = vunpack.c.l.b16 %v1382
    %v1415 = vunpack.c.l.b16 %v1383
    %v1416 = vpack.c.b16 %v1401, %v1400
    %v1417 = vpack.c.b16 %v1403, %v1402
    %v1418 = vpack.c.b16 %v1405, %v1404
    %v1419 = vpack.c.b16 %v1407, %v1406
    %v1420 = vpack.c.b16 %v1409, %v1408
    %v1421 = vpack.c.b16 %v1411, %v1410
    %v1422 = vpack.c.b16 %v1413, %v1412
    %v1423 = vpack.c.b16 %v1415, %v1414
    %v1425 = vsel %vm289, %v1416, 0
    %v1428 = vsel %vm289, %v1417, 0
    %v1431 = vsel %vm289, %v1418, 0
    %v1434 = vsel %vm289, %v1419, 0
    %v1437 = vsel %vm289, %v1420, 0
    %v1440 = vsel %vm289, %v1421, 0
    %v1443 = vsel %vm289, %v1422, 0
    %v1446 = vsel %vm289, %v1423, 0
    %v1449 = vsel %vm314, %v40, 0
    %1451 = vmatpush.bf16.msra.mxu0 0
    %1452 = vmatpush.bf16.msra.mxu0 0
    %1453 = vmatpush.bf16.msra.mxu0 0
    %1454 = vmatpush.bf16.msra.mxu0 0
    %1455 = vmatpush.bf16.msra.mxu0 0
    %1456 = vmatpush.bf16.msra.mxu0 0
    %1457 = vmatpush.bf16.msra.mxu0 0
    %1458 = vmatpush.bf16.msra.mxu0 %v1449
    %1459 = vmatmul.bf16.gmra.mxu0 %v1425
    %v1460 = vpop.f32.mrf.mxu0
    %v1461 = vadd.f32 0.0, %v1460
    %v1462 = vpop.f32.mrf.mxu0
    %v1463 = vadd.f32 0.0, %v1462
    %1464 = vmatmul.bf16.gmra.mxu0 %v1428
    %v1465 = vpop.f32.mrf.mxu0
    %v1466 = vadd.f32 0.0, %v1465
    %v1467 = vpop.f32.mrf.mxu0
    %v1468 = vadd.f32 0.0, %v1467
    %1469 = vmatmul.bf16.gmra.mxu0 %v1431
    %v1470 = vpop.f32.mrf.mxu0
    %v1471 = vadd.f32 0.0, %v1470
    %v1472 = vpop.f32.mrf.mxu0
    %v1473 = vadd.f32 0.0, %v1472
    %1474 = vmatmul.bf16.gmra.mxu0 %v1434
    %v1475 = vpop.f32.mrf.mxu0
    %v1476 = vadd.f32 0.0, %v1475
    %v1477 = vpop.f32.mrf.mxu0
    %v1478 = vadd.f32 0.0, %v1477
    %1479 = vmatmul.bf16.gmra.mxu0 %v1437
    %v1480 = vpop.f32.mrf.mxu0
    %v1481 = vadd.f32 0.0, %v1480
    %v1482 = vpop.f32.mrf.mxu0
    %v1483 = vadd.f32 0.0, %v1482
    %1484 = vmatmul.bf16.gmra.mxu0 %v1440
    %v1485 = vpop.f32.mrf.mxu0
    %v1486 = vadd.f32 0.0, %v1485
    %v1487 = vpop.f32.mrf.mxu0
    %v1488 = vadd.f32 0.0, %v1487
    %1489 = vmatmul.bf16.gmra.mxu0 %v1443
    %v1490 = vpop.f32.mrf.mxu0
    %v1491 = vadd.f32 0.0, %v1490
    %v1492 = vpop.f32.mrf.mxu0
    %v1493 = vadd.f32 0.0, %v1492
    %1494 = vmatmul.bf16.gmra.mxu0 %v1446
    %v1495 = vpop.f32.mrf.mxu0
    %v1496 = vadd.f32 0.0, %v1495
    %v1497 = vpop.f32.mrf.mxu0
    %v1498 = vadd.f32 0.0, %v1497
    %1499 = vdwg.mxu0
    %v1500 = vadd.f32 %v1351, %v1461
    %v1501 = vadd.f32 %v1352, %v1463
    %v1502 = vadd.f32 %v1353, %v1466
    %v1503 = vadd.f32 %v1354, %v1468
    %v1504 = vadd.f32 %v1355, %v1471
    %v1505 = vadd.f32 %v1356, %v1473
    %v1506 = vadd.f32 %v1357, %v1476
    %v1507 = vadd.f32 %v1358, %v1478
    %v1508 = vadd.f32 %v1359, %v1481
    %v1509 = vadd.f32 %v1360, %v1483
    %v1510 = vadd.f32 %v1361, %v1486
    %v1511 = vadd.f32 %v1362, %v1488
    %v1512 = vadd.f32 %v1363, %v1491
    %v1513 = vadd.f32 %v1364, %v1493
    %v1514 = vadd.f32 %v1365, %v1496
    %v1515 = vadd.f32 %v1366, %v1498
    %v1516 = vld [vmem:[%s1367] sm:$0xf]
    %v1517 = vld [vmem:[%s1367 + $0x4] sm:$0xf]
    %v1518 = vld [vmem:[%s1367 + $0x8] sm:$0x1]
    %v1519 = vld [vmem:[%s1367 + $0xc] sm:$0xf]
    %v1520 = vld [vmem:[%s1367 + $0x10] sm:$0xf]
    %v1521 = vld [vmem:[%s1367 + $0x14] sm:$0x1]
    %v1522 = vld [vmem:[%s1367 + $0x18] sm:$0xf]
    %v1523 = vld [vmem:[%s1367 + $0x1c] sm:$0xf]
    %v1524 = vld [vmem:[%s1367 + $0x20] sm:$0x1]
    %v1525 = vld [vmem:[%s1367 + $0x24] sm:$0xf]
    %v1526 = vld [vmem:[%s1367 + $0x28] sm:$0xf]
    %v1527 = vld [vmem:[%s1367 + $0x2c] sm:$0x1]
    %v1528 = vld [vmem:[%s1367 + $0xd8] sm:$0xf]
    %v1529 = vld [vmem:[%s1367 + $0xdc] sm:$0xf]
    %v1530 = vld [vmem:[%s1367 + $0xe0] sm:$0x1]
    %v1531 = vld [vmem:[%s1367 + $0xe4] sm:$0xf]
    %v1532 = vld [vmem:[%s1367 + $0xe8] sm:$0xf]
    %v1533 = vld [vmem:[%s1367 + $0xec] sm:$0x1]
    %v1534 = vld [vmem:[%s1367 + $0xf0] sm:$0xf]
    %v1535 = vld [vmem:[%s1367 + $0xf4] sm:$0xf]
    %v1536 = vld [vmem:[%s1367 + $0xf8] sm:$0x1]
    %v1537 = vld [vmem:[%s1367 + $0xfc] sm:$0xf]
    %v1538 = vld [vmem:[%s1367 + $0x100] sm:$0xf]
    %v1539 = vld [vmem:[%s1367 + $0x104] sm:$0x1]
    %v1541 = vshrl.u32 %v1516, 16
    %v1543 = vrot.slane %v1541, 4
    %v1544 = vshll.u32 %v1516, 16
    %v1546 = vrot.slane %v1544, 5
    %v1547 = vor.u32 %v1543, %v1546
    %v1548 = vrot.slane %v1547, 4
    %v1550 = vshll.u32 %v1517, 16
    %v1552 = vrot.slane %v1550, 5
    %v1553 = vsel %vm72, %v1548, %v1552
    %v1554 = vshrl.u32 %v1517, 16
    %v1556 = vrot.slane %v1554, 4
    %v1557 = vor.u32 %v1556, %v1552
    %v1558 = vrot.slane %v1557, 4
    %v1560 = vshll.u32 %v1518, 16
    %v1562 = vrot.slane %v1560, 5
    %v1563 = vsel %vm72, %v1558, %v1562
    %v1565 = vshrl.u32 %v1519, 16
    %v1567 = vrot.slane %v1565, 4
    %v1568 = vshll.u32 %v1519, 16
    %v1570 = vrot.slane %v1568, 5
    %v1571 = vor.u32 %v1567, %v1570
    %v1572 = vrot.slane %v1571, 4
    %v1574 = vshll.u32 %v1520, 16
    %v1576 = vrot.slane %v1574, 5
    %v1577 = vsel %vm72, %v1572, %v1576
    %v1578 = vshrl.u32 %v1520, 16
    %v1580 = vrot.slane %v1578, 4
    %v1581 = vor.u32 %v1580, %v1576
    %v1582 = vrot.slane %v1581, 4
    %v1584 = vshll.u32 %v1521, 16
    %v1586 = vrot.slane %v1584, 5
    %v1587 = vsel %vm72, %v1582, %v1586
    %v1589 = vshrl.u32 %v1522, 16
    %v1591 = vrot.slane %v1589, 4
    %v1592 = vshll.u32 %v1522, 16
    %v1594 = vrot.slane %v1592, 5
    %v1595 = vor.u32 %v1591, %v1594
    %v1596 = vrot.slane %v1595, 4
    %v1598 = vshll.u32 %v1523, 16
    %v1600 = vrot.slane %v1598, 5
    %v1601 = vsel %vm72, %v1596, %v1600
    %v1602 = vshrl.u32 %v1523, 16
    %v1604 = vrot.slane %v1602, 4
    %v1605 = vor.u32 %v1604, %v1600
    %v1606 = vrot.slane %v1605, 4
    %v1608 = vshll.u32 %v1524, 16
    %v1610 = vrot.slane %v1608, 5
    %v1611 = vsel %vm72, %v1606, %v1610
    %v1613 = vshrl.u32 %v1525, 16
    %v1615 = vrot.slane %v1613, 4
    %v1616 = vshll.u32 %v1525, 16
    %v1618 = vrot.slane %v1616, 5
    %v1619 = vor.u32 %v1615, %v1618
    %v1620 = vrot.slane %v1619, 4
    %v1622 = vshll.u32 %v1526, 16
    %v1624 = vrot.slane %v1622, 5
    %v1625 = vsel %vm72, %v1620, %v1624
    %v1626 = vshrl.u32 %v1526, 16
    %v1628 = vrot.slane %v1626, 4
    %v1629 = vor.u32 %v1628, %v1624
    %v1630 = vrot.slane %v1629, 4
    %v1632 = vshll.u32 %v1527, 16
    %v1634 = vrot.slane %v1632, 5
    %v1635 = vsel %vm72, %v1630, %v1634
    %v1637 = vshrl.u32 %v1528, 16
    %v1639 = vrot.slane %v1637, 4
    %v1640 = vshll.u32 %v1528, 16
    %v1642 = vrot.slane %v1640, 5
    %v1643 = vor.u32 %v1639, %v1642
    %v1644 = vrot.slane %v1643, 4
    %v1646 = vshll.u32 %v1529, 16
    %v1648 = vrot.slane %v1646, 5
    %v1649 = vsel %vm72, %v1644, %v1648
    %v1650 = vshrl.u32 %v1529, 16
    %v1652 = vrot.slane %v1650, 4
    %v1653 = vor.u32 %v1652, %v1648
    %v1654 = vrot.slane %v1653, 4
    %v1656 = vshll.u32 %v1530, 16
    %v1658 = vrot.slane %v1656, 5
    %v1659 = vsel %vm72, %v1654, %v1658
    %v1661 = vshrl.u32 %v1531, 16
    %v1663 = vrot.slane %v1661, 4
    %v1664 = vshll.u32 %v1531, 16
    %v1666 = vrot.slane %v1664, 5
    %v1667 = vor.u32 %v1663, %v1666
    %v1668 = vrot.slane %v1667, 4
    %v1670 = vshll.u32 %v1532, 16
    %v1672 = vrot.slane %v1670, 5
    %v1673 = vsel %vm72, %v1668, %v1672
    %v1674 = vshrl.u32 %v1532, 16
    %v1676 = vrot.slane %v1674, 4
    %v1677 = vor.u32 %v1676, %v1672
    %v1678 = vrot.slane %v1677, 4
    %v1680 = vshll.u32 %v1533, 16
    %v1682 = vrot.slane %v1680, 5
    %v1683 = vsel %vm72, %v1678, %v1682
    %v1685 = vshrl.u32 %v1534, 16
    %v1687 = vrot.slane %v1685, 4
    %v1688 = vshll.u32 %v1534, 16
    %v1690 = vrot.slane %v1688, 5
    %v1691 = vor.u32 %v1687, %v1690
    %v1692 = vrot.slane %v1691, 4
    %v1694 = vshll.u32 %v1535, 16
    %v1696 = vrot.slane %v1694, 5
    %v1697 = vsel %vm72, %v1692, %v1696
    %v1698 = vshrl.u32 %v1535, 16
    %v1700 = vrot.slane %v1698, 4
    %v1701 = vor.u32 %v1700, %v1696
    %v1702 = vrot.slane %v1701, 4
    %v1704 = vshll.u32 %v1536, 16
    %v1706 = vrot.slane %v1704, 5
    %v1707 = vsel %vm72, %v1702, %v1706
    %v1709 = vshrl.u32 %v1537, 16
    %v1711 = vrot.slane %v1709, 4
    %v1712 = vshll.u32 %v1537, 16
    %v1714 = vrot.slane %v1712, 5
    %v1715 = vor.u32 %v1711, %v1714
    %v1716 = vrot.slane %v1715, 4
    %v1718 = vshll.u32 %v1538, 16
    %v1720 = vrot.slane %v1718, 5
    %v1721 = vsel %vm72, %v1716, %v1720
    %v1722 = vshrl.u32 %v1538, 16
    %v1724 = vrot.slane %v1722, 4
    %v1725 = vor.u32 %v1724, %v1720
    %v1726 = vrot.slane %v1725, 4
    %v1728 = vshll.u32 %v1539, 16
    %v1730 = vrot.slane %v1728, 5
    %v1731 = vsel %vm72, %v1726, %v1730
    %v1732 = vunpack.c.l.b16 %v1553
    %v1733 = vunpack.c.l.b16 %v1563
    %v1734 = vunpack.c.l.b16 %v1577
    %v1735 = vunpack.c.l.b16 %v1587
    %v1736 = vunpack.c.l.b16 %v1601
    %v1737 = vunpack.c.l.b16 %v1611
    %v1738 = vunpack.c.l.b16 %v1625
    %v1739 = vunpack.c.l.b16 %v1635
    %v1740 = vunpack.c.l.b16 %v1649
    %v1741 = vunpack.c.l.b16 %v1659
    %v1742 = vunpack.c.l.b16 %v1673
    %v1743 = vunpack.c.l.b16 %v1683
    %v1744 = vunpack.c.l.b16 %v1697
    %v1745 = vunpack.c.l.b16 %v1707
    %v1746 = vunpack.c.l.b16 %v1721
    %v1747 = vunpack.c.l.b16 %v1731
    %v1748 = vpack.c.b16 %v1733, %v1732
    %v1749 = vpack.c.b16 %v1735, %v1734
    %v1750 = vpack.c.b16 %v1737, %v1736
    %v1751 = vpack.c.b16 %v1739, %v1738
    %v1752 = vpack.c.b16 %v1741, %v1740
    %v1753 = vpack.c.b16 %v1743, %v1742
    %v1754 = vpack.c.b16 %v1745, %v1744
    %v1755 = vpack.c.b16 %v1747, %v1746
    %v1757 = vsel %vm289, %v1748, 0
    %v1760 = vsel %vm289, %v1749, 0
    %v1763 = vsel %vm289, %v1750, 0
    %v1766 = vsel %vm289, %v1751, 0
    %v1769 = vsel %vm289, %v1752, 0
    %v1772 = vsel %vm289, %v1753, 0
    %v1775 = vsel %vm289, %v1754, 0
    %v1778 = vsel %vm289, %v1755, 0
    %v1781 = vsel %vm314, %v42, 0
    %1783 = vmatpush.bf16.msra.mxu0 0
    %1784 = vmatpush.bf16.msra.mxu0 0
    %1785 = vmatpush.bf16.msra.mxu0 0
    %1786 = vmatpush.bf16.msra.mxu0 0
    %1787 = vmatpush.bf16.msra.mxu0 0
    %1788 = vmatpush.bf16.msra.mxu0 0
    %1789 = vmatpush.bf16.msra.mxu0 0
    %1790 = vmatpush.bf16.msra.mxu0 %v1781
    %1791 = vmatmul.bf16.gmra.mxu0 %v1757
    %v1792 = vpop.f32.mrf.mxu0
    %v1793 = vadd.f32 0.0, %v1792
    %v1794 = vpop.f32.mrf.mxu0
    %v1795 = vadd.f32 0.0, %v1794
    %1796 = vmatmul.bf16.gmra.mxu0 %v1760
    %v1797 = vpop.f32.mrf.mxu0
    %v1798 = vadd.f32 0.0, %v1797
    %v1799 = vpop.f32.mrf.mxu0
    %v1800 = vadd.f32 0.0, %v1799
    %1801 = vmatmul.bf16.gmra.mxu0 %v1763
    %v1802 = vpop.f32.mrf.mxu0
    %v1803 = vadd.f32 0.0, %v1802
    %v1804 = vpop.f32.mrf.mxu0
    %v1805 = vadd.f32 0.0, %v1804
    %1806 = vmatmul.bf16.gmra.mxu0 %v1766
    %v1807 = vpop.f32.mrf.mxu0
    %v1808 = vadd.f32 0.0, %v1807
    %v1809 = vpop.f32.mrf.mxu0
    %v1810 = vadd.f32 0.0, %v1809
    %1811 = vmatmul.bf16.gmra.mxu0 %v1769
    %v1812 = vpop.f32.mrf.mxu0
    %v1813 = vadd.f32 0.0, %v1812
    %v1814 = vpop.f32.mrf.mxu0
    %v1815 = vadd.f32 0.0, %v1814
    %1816 = vmatmul.bf16.gmra.mxu0 %v1772
    %v1817 = vpop.f32.mrf.mxu0
    %v1818 = vadd.f32 0.0, %v1817
    %v1819 = vpop.f32.mrf.mxu0
    %v1820 = vadd.f32 0.0, %v1819
    %1821 = vmatmul.bf16.gmra.mxu0 %v1775
    %v1822 = vpop.f32.mrf.mxu0
    %v1823 = vadd.f32 0.0, %v1822
    %v1824 = vpop.f32.mrf.mxu0
    %v1825 = vadd.f32 0.0, %v1824
    %1826 = vmatmul.bf16.gmra.mxu0 %v1778
    %v1827 = vpop.f32.mrf.mxu0
    %v1828 = vadd.f32 0.0, %v1827
    %v1829 = vpop.f32.mrf.mxu0
    %v1830 = vadd.f32 0.0, %v1829
    %1831 = vdwg.mxu0
    %v1832 = vadd.f32 %v1500, %v1793
    %v1833 = vadd.f32 %v1501, %v1795
    %v1834 = vadd.f32 %v1502, %v1798
    %v1835 = vadd.f32 %v1503, %v1800
    %v1836 = vadd.f32 %v1504, %v1803
    %v1837 = vadd.f32 %v1505, %v1805
    %v1838 = vadd.f32 %v1506, %v1808
    %v1839 = vadd.f32 %v1507, %v1810
    %v1840 = vadd.f32 %v1508, %v1813
    %v1841 = vadd.f32 %v1509, %v1815
    %v1842 = vadd.f32 %v1510, %v1818
    %v1843 = vadd.f32 %v1511, %v1820
    %v1844 = vadd.f32 %v1512, %v1823
    %v1845 = vadd.f32 %v1513, %v1825
    %v1846 = vadd.f32 %v1514, %v1828
    %v1847 = vadd.f32 %v1515, %v1830
    %v1848 = vld [vmem:[%s1367] sm:$0xe]
    %v1849 = vld [vmem:[%s1367 + $0xc] sm:$0xe]
    %v1850 = vld [vmem:[%s1367 + $0x18] sm:$0xe]
    %v1851 = vld [vmem:[%s1367 + $0x24] sm:$0xe]
    %v1852 = vld [vmem:[%s1367 + $0xd8] sm:$0xe]
    %v1853 = vld [vmem:[%s1367 + $0xe4] sm:$0xe]
    %v1854 = vld [vmem:[%s1367 + $0xf0] sm:$0xe]
    %v1855 = vld [vmem:[%s1367 + $0xfc] sm:$0xe]
    %v1880 = vrot.slane %v1848, 5
    %v1881 = vrot.slane %v1880, 4
    %v1882 = vrot.slane %v1517, 5
    %v1883 = vsel %vm509, %v1881, %v1882
    %v1884 = vrot.slane %v1882, 4
    %v1885 = vrot.slane %v1518, 5
    %v1886 = vsel %vm509, %v1884, %v1885
    %v1887 = vrot.slane %v1849, 5
    %v1888 = vrot.slane %v1887, 4
    %v1889 = vrot.slane %v1520, 5
    %v1890 = vsel %vm509, %v1888, %v1889
    %v1891 = vrot.slane %v1889, 4
    %v1892 = vrot.slane %v1521, 5
    %v1893 = vsel %vm509, %v1891, %v1892
    %v1894 = vrot.slane %v1850, 5
    %v1895 = vrot.slane %v1894, 4
    %v1896 = vrot.slane %v1523, 5
    %v1897 = vsel %vm509, %v1895, %v1896
    %v1898 = vrot.slane %v1896, 4
    %v1899 = vrot.slane %v1524, 5
    %v1900 = vsel %vm509, %v1898, %v1899
    %v1901 = vrot.slane %v1851, 5
    %v1902 = vrot.slane %v1901, 4
    %v1903 = vrot.slane %v1526, 5
    %v1904 = vsel %vm509, %v1902, %v1903
    %v1905 = vrot.slane %v1903, 4
    %v1906 = vrot.slane %v1527, 5
    %v1907 = vsel %vm509, %v1905, %v1906
    %v1908 = vrot.slane %v1852, 5
    %v1909 = vrot.slane %v1908, 4
    %v1910 = vrot.slane %v1529, 5
    %v1911 = vsel %vm509, %v1909, %v1910
    %v1912 = vrot.slane %v1910, 4
    %v1913 = vrot.slane %v1530, 5
    %v1914 = vsel %vm509, %v1912, %v1913
    %v1915 = vrot.slane %v1853, 5
    %v1916 = vrot.slane %v1915, 4
    %v1917 = vrot.slane %v1532, 5
    %v1918 = vsel %vm509, %v1916, %v1917
    %v1919 = vrot.slane %v1917, 4
    %v1920 = vrot.slane %v1533, 5
    %v1921 = vsel %vm509, %v1919, %v1920
    %v1922 = vrot.slane %v1854, 5
    %v1923 = vrot.slane %v1922, 4
    %v1924 = vrot.slane %v1535, 5
    %v1925 = vsel %vm509, %v1923, %v1924
    %v1926 = vrot.slane %v1924, 4
    %v1927 = vrot.slane %v1536, 5
    %v1928 = vsel %vm509, %v1926, %v1927
    %v1929 = vrot.slane %v1855, 5
    %v1930 = vrot.slane %v1929, 4
    %v1931 = vrot.slane %v1538, 5
    %v1932 = vsel %vm509, %v1930, %v1931
    %v1933 = vrot.slane %v1931, 4
    %v1934 = vrot.slane %v1539, 5
    %v1935 = vsel %vm509, %v1933, %v1934
    %v1936 = vunpack.c.l.b16 %v1883
    %v1937 = vunpack.c.l.b16 %v1886
    %v1938 = vunpack.c.l.b16 %v1890
    %v1939 = vunpack.c.l.b16 %v1893
    %v1940 = vunpack.c.l.b16 %v1897
    %v1941 = vunpack.c.l.b16 %v1900
    %v1942 = vunpack.c.l.b16 %v1904
    %v1943 = vunpack.c.l.b16 %v1907
    %v1944 = vunpack.c.l.b16 %v1911
    %v1945 = vunpack.c.l.b16 %v1914
    %v1946 = vunpack.c.l.b16 %v1918
    %v1947 = vunpack.c.l.b16 %v1921
    %v1948 = vunpack.c.l.b16 %v1925
    %v1949 = vunpack.c.l.b16 %v1928
    %v1950 = vunpack.c.l.b16 %v1932
    %v1951 = vunpack.c.l.b16 %v1935
    %v1952 = vpack.c.b16 %v1937, %v1936
    %v1953 = vpack.c.b16 %v1939, %v1938
    %v1954 = vpack.c.b16 %v1941, %v1940
    %v1955 = vpack.c.b16 %v1943, %v1942
    %v1956 = vpack.c.b16 %v1945, %v1944
    %v1957 = vpack.c.b16 %v1947, %v1946
    %v1958 = vpack.c.b16 %v1949, %v1948
    %v1959 = vpack.c.b16 %v1951, %v1950
    %v1961 = vsel %vm289, %v1952, 0
    %v1964 = vsel %vm289, %v1953, 0
    %v1967 = vsel %vm289, %v1954, 0
    %v1970 = vsel %vm289, %v1955, 0
    %v1973 = vsel %vm289, %v1956, 0
    %v1976 = vsel %vm289, %v1957, 0
    %v1979 = vsel %vm289, %v1958, 0
    %v1982 = vsel %vm289, %v1959, 0
    %v1985 = vsel %vm314, %v44, 0
    %1987 = vmatpush.bf16.msra.mxu0 0
    %1988 = vmatpush.bf16.msra.mxu0 0
    %1989 = vmatpush.bf16.msra.mxu0 0
    %1990 = vmatpush.bf16.msra.mxu0 0
    %1991 = vmatpush.bf16.msra.mxu0 0
    %1992 = vmatpush.bf16.msra.mxu0 0
    %1993 = vmatpush.bf16.msra.mxu0 0
    %1994 = vmatpush.bf16.msra.mxu0 %v1985
    %1995 = vmatmul.bf16.gmra.mxu0 %v1961
    %v1996 = vpop.f32.mrf.mxu0
    %v1997 = vadd.f32 0.0, %v1996
    %v1998 = vpop.f32.mrf.mxu0
    %v1999 = vadd.f32 0.0, %v1998
    %2000 = vmatmul.bf16.gmra.mxu0 %v1964
    %v2001 = vpop.f32.mrf.mxu0
    %v2002 = vadd.f32 0.0, %v2001
    %v2003 = vpop.f32.mrf.mxu0
    %v2004 = vadd.f32 0.0, %v2003
    %2005 = vmatmul.bf16.gmra.mxu0 %v1967
    %v2006 = vpop.f32.mrf.mxu0
    %v2007 = vadd.f32 0.0, %v2006
    %v2008 = vpop.f32.mrf.mxu0
    %v2009 = vadd.f32 0.0, %v2008
    %2010 = vmatmul.bf16.gmra.mxu0 %v1970
    %v2011 = vpop.f32.mrf.mxu0
    %v2012 = vadd.f32 0.0, %v2011
    %v2013 = vpop.f32.mrf.mxu0
    %v2014 = vadd.f32 0.0, %v2013
    %2015 = vmatmul.bf16.gmra.mxu0 %v1973
    %v2016 = vpop.f32.mrf.mxu0
    %v2017 = vadd.f32 0.0, %v2016
    %v2018 = vpop.f32.mrf.mxu0
    %v2019 = vadd.f32 0.0, %v2018
    %2020 = vmatmul.bf16.gmra.mxu0 %v1976
    %v2021 = vpop.f32.mrf.mxu0
    %v2022 = vadd.f32 0.0, %v2021
    %v2023 = vpop.f32.mrf.mxu0
    %v2024 = vadd.f32 0.0, %v2023
    %2025 = vmatmul.bf16.gmra.mxu0 %v1979
    %v2026 = vpop.f32.mrf.mxu0
    %v2027 = vadd.f32 0.0, %v2026
    %v2028 = vpop.f32.mrf.mxu0
    %v2029 = vadd.f32 0.0, %v2028
    %2030 = vmatmul.bf16.gmra.mxu0 %v1982
    %v2031 = vpop.f32.mrf.mxu0
    %v2032 = vadd.f32 0.0, %v2031
    %v2033 = vpop.f32.mrf.mxu0
    %v2034 = vadd.f32 0.0, %v2033
    %2035 = vdwg.mxu0
    %v2036 = vadd.f32 %v1832, %v1997
    %v2037 = vadd.f32 %v1833, %v1999
    %v2038 = vadd.f32 %v1834, %v2002
    %v2039 = vadd.f32 %v1835, %v2004
    %v2040 = vadd.f32 %v1836, %v2007
    %v2041 = vadd.f32 %v1837, %v2009
    %v2042 = vadd.f32 %v1838, %v2012
    %v2043 = vadd.f32 %v1839, %v2014
    %v2044 = vadd.f32 %v1840, %v2017
    %v2045 = vadd.f32 %v1841, %v2019
    %v2046 = vadd.f32 %v1842, %v2022
    %v2047 = vadd.f32 %v1843, %v2024
    %v2048 = vadd.f32 %v1844, %v2027
    %v2049 = vadd.f32 %v1845, %v2029
    %v2050 = vadd.f32 %v1846, %v2032
    %v2051 = vadd.f32 %v1847, %v2034
    %v2053 = vperm.slane %v45, 0
    %v2055 = vadd.f32 %v2036, %v2053
    %v2056 = vadd.f32 %v2037, %v2053
    %v2057 = vadd.f32 %v2038, %v2053
    %v2058 = vadd.f32 %v2039, %v2053
    %v2059 = vadd.f32 %v2040, %v2053
    %v2060 = vadd.f32 %v2041, %v2053
    %v2061 = vadd.f32 %v2042, %v2053
    %v2062 = vadd.f32 %v2043, %v2053
    %v2063 = vadd.f32 %v2044, %v2053
    %v2064 = vadd.f32 %v2045, %v2053
    %v2065 = vadd.f32 %v2046, %v2053
    %v2066 = vadd.f32 %v2047, %v2053
    %v2067 = vadd.f32 %v2048, %v2053
    %v2068 = vadd.f32 %v2049, %v2053
    %v2069 = vadd.f32 %v2050, %v2053
    %v2070 = vadd.f32 %v2051, %v2053
    %v2071 = vmax.f32 %v2055, 0.0
    %v2072 = vmax.f32 %v2056, 0.0
    %v2073 = vmax.f32 %v2057, 0.0
    %v2074 = vmax.f32 %v2058, 0.0
    %v2075 = vmax.f32 %v2059, 0.0
    %v2076 = vmax.f32 %v2060, 0.0
    %v2077 = vmax.f32 %v2061, 0.0
    %v2078 = vmax.f32 %v2062, 0.0
    %v2079 = vmax.f32 %v2063, 0.0
    %v2080 = vmax.f32 %v2064, 0.0
    %v2081 = vmax.f32 %v2065, 0.0
    %v2082 = vmax.f32 %v2066, 0.0
    %v2083 = vmax.f32 %v2067, 0.0
    %v2084 = vmax.f32 %v2068, 0.0
    %v2085 = vmax.f32 %v2069, 0.0
    %v2086 = vmax.f32 %v2070, 0.0
    %v2087 = vadd.f32 %v2071, %v2072
    %v2088 = vadd.f32 %v2087, %v2073
    %v2089 = vadd.f32 %v2088, %v2074
    %v2090 = vadd.f32 %v2089, %v2075
    %v2091 = vadd.f32 %v2090, %v2076
    %v2092 = vadd.f32 %v2091, %v2077
    %v2093 = vadd.f32 %v2092, %v2078
    %v2094 = vrot.slane %v2093, 4
    %v2095 = vadd.f32 %v2093, %v2094
    %v2096 = vrot.slane %v2095, 2
    %v2097 = vadd.f32 %v2095, %v2096
    %v2098 = vrot.slane %v2097, 1
    %v2099 = vadd.f32 %v2097, %v2098
    %v2100 = vadd.f32 %v2079, %v2080
    %v2101 = vadd.f32 %v2100, %v2081
    %v2102 = vadd.f32 %v2101, %v2082
    %v2103 = vadd.f32 %v2102, %v2083
    %v2104 = vadd.f32 %v2103, %v2084
    %v2105 = vadd.f32 %v2104, %v2085
    %v2106 = vadd.f32 %v2105, %v2086
    %v2107 = vrot.slane %v2106, 4
    %v2108 = vadd.f32 %v2106, %v2107
    %v2109 = vrot.slane %v2108, 2
    %v2110 = vadd.f32 %v2108, %v2109
    %v2111 = vrot.slane %v2110, 1
    %v2112 = vadd.f32 %v2110, %v2111
    %v2113 = vadd.f32 %v2099, 0.0
    %v2114 = vadd.f32 %v2112, 0.0
    %s2115 = scalar_lea.vmem %s0, 48
    %v2116 = vld [vmem:[%s2115] sm:$0xf]
    %v2117 = vld [vmem:[%s2115 + $0x4] sm:$0xf]
    %v2118 = vld [vmem:[%s2115 + $0xc] sm:$0xf]
    %v2119 = vld [vmem:[%s2115 + $0x10] sm:$0xf]
    %v2120 = vld [vmem:[%s2115 + $0x18] sm:$0xf]
    %v2121 = vld [vmem:[%s2115 + $0x1c] sm:$0xf]
    %v2122 = vld [vmem:[%s2115 + $0x24] sm:$0xf]
    %v2123 = vld [vmem:[%s2115 + $0x28] sm:$0xf]
    %v2124 = vld [vmem:[%s2115 + $0xd8] sm:$0xf]
    %v2125 = vld [vmem:[%s2115 + $0xdc] sm:$0xf]
    %v2126 = vld [vmem:[%s2115 + $0xe4] sm:$0xf]
    %v2127 = vld [vmem:[%s2115 + $0xe8] sm:$0xf]
    %v2128 = vld [vmem:[%s2115 + $0xf0] sm:$0xf]
    %v2129 = vld [vmem:[%s2115 + $0xf4] sm:$0xf]
    %v2130 = vld [vmem:[%s2115 + $0xfc] sm:$0xf]
    %v2131 = vld [vmem:[%s2115 + $0x100] sm:$0xf]
    %v2132 = vld [vmem:[%s2115 + $0x8] sm:$0x1]
    %v2133 = vld [vmem:[%s2115 + $0x14] sm:$0x1]
    %v2134 = vld [vmem:[%s2115 + $0x20] sm:$0x1]
    %v2135 = vld [vmem:[%s2115 + $0x2c] sm:$0x1]
    %v2136 = vld [vmem:[%s2115 + $0xe0] sm:$0x1]
    %v2137 = vld [vmem:[%s2115 + $0xec] sm:$0x1]
    %v2138 = vld [vmem:[%s2115 + $0xf8] sm:$0x1]
    %v2139 = vld [vmem:[%s2115 + $0x104] sm:$0x1]
    %v2141 = vshrl.u32 %v2116, 16
    %v2143 = vrot.slane %v2141, 4
    %v2144 = vshll.u32 %v2116, 16
    %v2146 = vrot.slane %v2144, 5
    %v2147 = vor.u32 %v2143, %v2146
    %v2148 = vrot.slane %v2147, 4
    %v2150 = vshll.u32 %v2117, 16
    %v2152 = vrot.slane %v2150, 5
    %v2153 = vsel %vm72, %v2148, %v2152
    %v2154 = vshrl.u32 %v2117, 16
    %v2156 = vrot.slane %v2154, 4
    %v2157 = vor.u32 %v2156, %v2152
    %v2158 = vrot.slane %v2157, 4
    %v2160 = vshll.u32 %v2132, 16
    %v2162 = vrot.slane %v2160, 5
    %v2163 = vsel %vm72, %v2158, %v2162
    %v2165 = vshrl.u32 %v2118, 16
    %v2167 = vrot.slane %v2165, 4
    %v2168 = vshll.u32 %v2118, 16
    %v2170 = vrot.slane %v2168, 5
    %v2171 = vor.u32 %v2167, %v2170
    %v2172 = vrot.slane %v2171, 4
    %v2174 = vshll.u32 %v2119, 16
    %v2176 = vrot.slane %v2174, 5
    %v2177 = vsel %vm72, %v2172, %v2176
    %v2178 = vshrl.u32 %v2119, 16
    %v2180 = vrot.slane %v2178, 4
    %v2181 = vor.u32 %v2180, %v2176
    %v2182 = vrot.slane %v2181, 4
    %v2184 = vshll.u32 %v2133, 16
    %v2186 = vrot.slane %v2184, 5
    %v2187 = vsel %vm72, %v2182, %v2186
    %v2189 = vshrl.u32 %v2120, 16
    %v2191 = vrot.slane %v2189, 4
    %v2192 = vshll.u32 %v2120, 16
    %v2194 = vrot.slane %v2192, 5
    %v2195 = vor.u32 %v2191, %v2194
    %v2196 = vrot.slane %v2195, 4
    %v2198 = vshll.u32 %v2121, 16
    %v2200 = vrot.slane %v2198, 5
    %v2201 = vsel %vm72, %v2196, %v2200
    %v2202 = vshrl.u32 %v2121, 16
    %v2204 = vrot.slane %v2202, 4
    %v2205 = vor.u32 %v2204, %v2200
    %v2206 = vrot.slane %v2205, 4
    %v2208 = vshll.u32 %v2134, 16
    %v2210 = vrot.slane %v2208, 5
    %v2211 = vsel %vm72, %v2206, %v2210
    %v2213 = vshrl.u32 %v2122, 16
    %v2215 = vrot.slane %v2213, 4
    %v2216 = vshll.u32 %v2122, 16
    %v2218 = vrot.slane %v2216, 5
    %v2219 = vor.u32 %v2215, %v2218
    %v2220 = vrot.slane %v2219, 4
    %v2222 = vshll.u32 %v2123, 16
    %v2224 = vrot.slane %v2222, 5
    %v2225 = vsel %vm72, %v2220, %v2224
    %v2226 = vshrl.u32 %v2123, 16
    %v2228 = vrot.slane %v2226, 4
    %v2229 = vor.u32 %v2228, %v2224
    %v2230 = vrot.slane %v2229, 4
    %v2232 = vshll.u32 %v2135, 16
    %v2234 = vrot.slane %v2232, 5
    %v2235 = vsel %vm72, %v2230, %v2234
    %v2237 = vshrl.u32 %v2124, 16
    %v2239 = vrot.slane %v2237, 4
    %v2240 = vshll.u32 %v2124, 16
    %v2242 = vrot.slane %v2240, 5
    %v2243 = vor.u32 %v2239, %v2242
    %v2244 = vrot.slane %v2243, 4
    %v2246 = vshll.u32 %v2125, 16
    %v2248 = vrot.slane %v2246, 5
    %v2249 = vsel %vm72, %v2244, %v2248
    %v2250 = vshrl.u32 %v2125, 16
    %v2252 = vrot.slane %v2250, 4
    %v2253 = vor.u32 %v2252, %v2248
    %v2254 = vrot.slane %v2253, 4
    %v2256 = vshll.u32 %v2136, 16
    %v2258 = vrot.slane %v2256, 5
    %v2259 = vsel %vm72, %v2254, %v2258
    %v2261 = vshrl.u32 %v2126, 16
    %v2263 = vrot.slane %v2261, 4
    %v2264 = vshll.u32 %v2126, 16
    %v2266 = vrot.slane %v2264, 5
    %v2267 = vor.u32 %v2263, %v2266
    %v2268 = vrot.slane %v2267, 4
    %v2270 = vshll.u32 %v2127, 16
    %v2272 = vrot.slane %v2270, 5
    %v2273 = vsel %vm72, %v2268, %v2272
    %v2274 = vshrl.u32 %v2127, 16
    %v2276 = vrot.slane %v2274, 4
    %v2277 = vor.u32 %v2276, %v2272
    %v2278 = vrot.slane %v2277, 4
    %v2280 = vshll.u32 %v2137, 16
    %v2282 = vrot.slane %v2280, 5
    %v2283 = vsel %vm72, %v2278, %v2282
    %v2285 = vshrl.u32 %v2128, 16
    %v2287 = vrot.slane %v2285, 4
    %v2288 = vshll.u32 %v2128, 16
    %v2290 = vrot.slane %v2288, 5
    %v2291 = vor.u32 %v2287, %v2290
    %v2292 = vrot.slane %v2291, 4
    %v2294 = vshll.u32 %v2129, 16
    %v2296 = vrot.slane %v2294, 5
    %v2297 = vsel %vm72, %v2292, %v2296
    %v2298 = vshrl.u32 %v2129, 16
    %v2300 = vrot.slane %v2298, 4
    %v2301 = vor.u32 %v2300, %v2296
    %v2302 = vrot.slane %v2301, 4
    %v2304 = vshll.u32 %v2138, 16
    %v2306 = vrot.slane %v2304, 5
    %v2307 = vsel %vm72, %v2302, %v2306
    %v2309 = vshrl.u32 %v2130, 16
    %v2311 = vrot.slane %v2309, 4
    %v2312 = vshll.u32 %v2130, 16
    %v2314 = vrot.slane %v2312, 5
    %v2315 = vor.u32 %v2311, %v2314
    %v2316 = vrot.slane %v2315, 4
    %v2318 = vshll.u32 %v2131, 16
    %v2320 = vrot.slane %v2318, 5
    %v2321 = vsel %vm72, %v2316, %v2320
    %v2322 = vshrl.u32 %v2131, 16
    %v2324 = vrot.slane %v2322, 4
    %v2325 = vor.u32 %v2324, %v2320
    %v2326 = vrot.slane %v2325, 4
    %v2328 = vshll.u32 %v2139, 16
    %v2330 = vrot.slane %v2328, 5
    %v2331 = vsel %vm72, %v2326, %v2330
    %v2332 = vunpack.c.l.b16 %v2153
    %v2333 = vunpack.c.l.b16 %v2163
    %v2334 = vunpack.c.l.b16 %v2177
    %v2335 = vunpack.c.l.b16 %v2187
    %v2336 = vunpack.c.l.b16 %v2201
    %v2337 = vunpack.c.l.b16 %v2211
    %v2338 = vunpack.c.l.b16 %v2225
    %v2339 = vunpack.c.l.b16 %v2235
    %v2340 = vunpack.c.l.b16 %v2249
    %v2341 = vunpack.c.l.b16 %v2259
    %v2342 = vunpack.c.l.b16 %v2273
    %v2343 = vunpack.c.l.b16 %v2283
    %v2344 = vunpack.c.l.b16 %v2297
    %v2345 = vunpack.c.l.b16 %v2307
    %v2346 = vunpack.c.l.b16 %v2321
    %v2347 = vunpack.c.l.b16 %v2331
    %v2348 = vpack.c.b16 %v2333, %v2332
    %v2349 = vpack.c.b16 %v2335, %v2334
    %v2350 = vpack.c.b16 %v2337, %v2336
    %v2351 = vpack.c.b16 %v2339, %v2338
    %v2352 = vpack.c.b16 %v2341, %v2340
    %v2353 = vpack.c.b16 %v2343, %v2342
    %v2354 = vpack.c.b16 %v2345, %v2344
    %v2355 = vpack.c.b16 %v2347, %v2346
    %v2357 = vsel %vm289, %v2348, 0
    %v2360 = vsel %vm289, %v2349, 0
    %v2363 = vsel %vm289, %v2350, 0
    %v2366 = vsel %vm289, %v2351, 0
    %v2369 = vsel %vm289, %v2352, 0
    %v2372 = vsel %vm289, %v2353, 0
    %v2375 = vsel %vm289, %v2354, 0
    %v2378 = vsel %vm289, %v2355, 0
    %2380 = vmatpush.bf16.msra.mxu0 0
    %2381 = vmatpush.bf16.msra.mxu0 0
    %2382 = vmatpush.bf16.msra.mxu0 0
    %2383 = vmatpush.bf16.msra.mxu0 0
    %2384 = vmatpush.bf16.msra.mxu0 0
    %2385 = vmatpush.bf16.msra.mxu0 0
    %2386 = vmatpush.bf16.msra.mxu0 0
    %2387 = vmatpush.bf16.msra.mxu0 %v316
    %2388 = vmatmul.bf16.gmra.mxu0 %v2357
    %v2389 = vpop.f32.mrf.mxu0
    %v2390 = vadd.f32 0.0, %v2389
    %v2391 = vpop.f32.mrf.mxu0
    %v2392 = vadd.f32 0.0, %v2391
    %2393 = vmatmul.bf16.gmra.mxu0 %v2360
    %v2394 = vpop.f32.mrf.mxu0
    %v2395 = vadd.f32 0.0, %v2394
    %v2396 = vpop.f32.mrf.mxu0
    %v2397 = vadd.f32 0.0, %v2396
    %2398 = vmatmul.bf16.gmra.mxu0 %v2363
    %v2399 = vpop.f32.mrf.mxu0
    %v2400 = vadd.f32 0.0, %v2399
    %v2401 = vpop.f32.mrf.mxu0
    %v2402 = vadd.f32 0.0, %v2401
    %2403 = vmatmul.bf16.gmra.mxu0 %v2366
    %v2404 = vpop.f32.mrf.mxu0
    %v2405 = vadd.f32 0.0, %v2404
    %v2406 = vpop.f32.mrf.mxu0
    %v2407 = vadd.f32 0.0, %v2406
    %2408 = vmatmul.bf16.gmra.mxu0 %v2369
    %v2409 = vpop.f32.mrf.mxu0
    %v2410 = vadd.f32 0.0, %v2409
    %v2411 = vpop.f32.mrf.mxu0
    %v2412 = vadd.f32 0.0, %v2411
    %2413 = vmatmul.bf16.gmra.mxu0 %v2372
    %v2414 = vpop.f32.mrf.mxu0
    %v2415 = vadd.f32 0.0, %v2414
    %v2416 = vpop.f32.mrf.mxu0
    %v2417 = vadd.f32 0.0, %v2416
    %2418 = vmatmul.bf16.gmra.mxu0 %v2375
    %v2419 = vpop.f32.mrf.mxu0
    %v2420 = vadd.f32 0.0, %v2419
    %v2421 = vpop.f32.mrf.mxu0
    %v2422 = vadd.f32 0.0, %v2421
    %2423 = vmatmul.bf16.gmra.mxu0 %v2378
    %v2424 = vpop.f32.mrf.mxu0
    %v2425 = vadd.f32 0.0, %v2424
    %v2426 = vpop.f32.mrf.mxu0
    %v2427 = vadd.f32 0.0, %v2426
    %2428 = vdwg.mxu0
    %v2445 = vunpack.c.l.b16 %v2116
    %v2446 = vunpack.c.l.b16 %v2117
    %v2447 = vunpack.c.l.b16 %v2118
    %v2448 = vunpack.c.l.b16 %v2119
    %v2449 = vunpack.c.l.b16 %v2120
    %v2450 = vunpack.c.l.b16 %v2121
    %v2451 = vunpack.c.l.b16 %v2122
    %v2452 = vunpack.c.l.b16 %v2123
    %v2453 = vunpack.c.l.b16 %v2124
    %v2454 = vunpack.c.l.b16 %v2125
    %v2455 = vunpack.c.l.b16 %v2126
    %v2456 = vunpack.c.l.b16 %v2127
    %v2457 = vunpack.c.l.b16 %v2128
    %v2458 = vunpack.c.l.b16 %v2129
    %v2459 = vunpack.c.l.b16 %v2130
    %v2460 = vunpack.c.l.b16 %v2131
    %v2461 = vpack.c.b16 %v2446, %v2445
    %v2462 = vpack.c.b16 %v2448, %v2447
    %v2463 = vpack.c.b16 %v2450, %v2449
    %v2464 = vpack.c.b16 %v2452, %v2451
    %v2465 = vpack.c.b16 %v2454, %v2453
    %v2466 = vpack.c.b16 %v2456, %v2455
    %v2467 = vpack.c.b16 %v2458, %v2457
    %v2468 = vpack.c.b16 %v2460, %v2459
    %v2470 = vsel %vm289, %v2461, 0
    %v2473 = vsel %vm289, %v2462, 0
    %v2476 = vsel %vm289, %v2463, 0
    %v2479 = vsel %vm289, %v2464, 0
    %v2482 = vsel %vm289, %v2465, 0
    %v2485 = vsel %vm289, %v2466, 0
    %v2488 = vsel %vm289, %v2467, 0
    %v2491 = vsel %vm289, %v2468, 0
    %2493 = vmatpush.bf16.msra.mxu0 0
    %2494 = vmatpush.bf16.msra.mxu0 0
    %2495 = vmatpush.bf16.msra.mxu0 0
    %2496 = vmatpush.bf16.msra.mxu0 0
    %2497 = vmatpush.bf16.msra.mxu0 0
    %2498 = vmatpush.bf16.msra.mxu0 0
    %2499 = vmatpush.bf16.msra.mxu0 0
    %2500 = vmatpush.bf16.msra.mxu0 %v432
    %2501 = vmatmul.bf16.gmra.mxu0 %v2470
    %v2502 = vpop.f32.mrf.mxu0
    %v2503 = vadd.f32 %v2390, %v2502
    %v2504 = vpop.f32.mrf.mxu0
    %v2505 = vadd.f32 %v2392, %v2504
    %2506 = vmatmul.bf16.gmra.mxu0 %v2473
    %v2507 = vpop.f32.mrf.mxu0
    %v2508 = vadd.f32 %v2395, %v2507
    %v2509 = vpop.f32.mrf.mxu0
    %v2510 = vadd.f32 %v2397, %v2509
    %2511 = vmatmul.bf16.gmra.mxu0 %v2476
    %v2512 = vpop.f32.mrf.mxu0
    %v2513 = vadd.f32 %v2400, %v2512
    %v2514 = vpop.f32.mrf.mxu0
    %v2515 = vadd.f32 %v2402, %v2514
    %2516 = vmatmul.bf16.gmra.mxu0 %v2479
    %v2517 = vpop.f32.mrf.mxu0
    %v2518 = vadd.f32 %v2405, %v2517
    %v2519 = vpop.f32.mrf.mxu0
    %v2520 = vadd.f32 %v2407, %v2519
    %2521 = vmatmul.bf16.gmra.mxu0 %v2482
    %v2522 = vpop.f32.mrf.mxu0
    %v2523 = vadd.f32 %v2410, %v2522
    %v2524 = vpop.f32.mrf.mxu0
    %v2525 = vadd.f32 %v2412, %v2524
    %2526 = vmatmul.bf16.gmra.mxu0 %v2485
    %v2527 = vpop.f32.mrf.mxu0
    %v2528 = vadd.f32 %v2415, %v2527
    %v2529 = vpop.f32.mrf.mxu0
    %v2530 = vadd.f32 %v2417, %v2529
    %2531 = vmatmul.bf16.gmra.mxu0 %v2488
    %v2532 = vpop.f32.mrf.mxu0
    %v2533 = vadd.f32 %v2420, %v2532
    %v2534 = vpop.f32.mrf.mxu0
    %v2535 = vadd.f32 %v2422, %v2534
    %2536 = vmatmul.bf16.gmra.mxu0 %v2491
    %v2537 = vpop.f32.mrf.mxu0
    %v2538 = vadd.f32 %v2425, %v2537
    %v2539 = vpop.f32.mrf.mxu0
    %v2540 = vadd.f32 %v2427, %v2539
    %2541 = vdwg.mxu0
    %v2542 = vld [vmem:[%s2115] sm:$0xe]
    %v2543 = vld [vmem:[%s2115 + $0xc] sm:$0xe]
    %v2544 = vld [vmem:[%s2115 + $0x18] sm:$0xe]
    %v2545 = vld [vmem:[%s2115 + $0x24] sm:$0xe]
    %v2546 = vld [vmem:[%s2115 + $0xd8] sm:$0xe]
    %v2547 = vld [vmem:[%s2115 + $0xe4] sm:$0xe]
    %v2548 = vld [vmem:[%s2115 + $0xf0] sm:$0xe]
    %v2549 = vld [vmem:[%s2115 + $0xfc] sm:$0xe]
    %v2566 = vrot.slane %v2542, 5
    %v2567 = vrot.slane %v2566, 4
    %v2568 = vrot.slane %v2117, 5
    %v2569 = vsel %vm509, %v2567, %v2568
    %v2570 = vrot.slane %v2568, 4
    %v2571 = vrot.slane %v2132, 5
    %v2572 = vsel %vm509, %v2570, %v2571
    %v2573 = vrot.slane %v2543, 5
    %v2574 = vrot.slane %v2573, 4
    %v2575 = vrot.slane %v2119, 5
    %v2576 = vsel %vm509, %v2574, %v2575
    %v2577 = vrot.slane %v2575, 4
    %v2578 = vrot.slane %v2133, 5
    %v2579 = vsel %vm509, %v2577, %v2578
    %v2580 = vrot.slane %v2544, 5
    %v2581 = vrot.slane %v2580, 4
    %v2582 = vrot.slane %v2121, 5
    %v2583 = vsel %vm509, %v2581, %v2582
    %v2584 = vrot.slane %v2582, 4
    %v2585 = vrot.slane %v2134, 5
    %v2586 = vsel %vm509, %v2584, %v2585
    %v2587 = vrot.slane %v2545, 5
    %v2588 = vrot.slane %v2587, 4
    %v2589 = vrot.slane %v2123, 5
    %v2590 = vsel %vm509, %v2588, %v2589
    %v2591 = vrot.slane %v2589, 4
    %v2592 = vrot.slane %v2135, 5
    %v2593 = vsel %vm509, %v2591, %v2592
    %v2594 = vrot.slane %v2546, 5
    %v2595 = vrot.slane %v2594, 4
    %v2596 = vrot.slane %v2125, 5
    %v2597 = vsel %vm509, %v2595, %v2596
    %v2598 = vrot.slane %v2596, 4
    %v2599 = vrot.slane %v2136, 5
    %v2600 = vsel %vm509, %v2598, %v2599
    %v2601 = vrot.slane %v2547, 5
    %v2602 = vrot.slane %v2601, 4
    %v2603 = vrot.slane %v2127, 5
    %v2604 = vsel %vm509, %v2602, %v2603
    %v2605 = vrot.slane %v2603, 4
    %v2606 = vrot.slane %v2137, 5
    %v2607 = vsel %vm509, %v2605, %v2606
    %v2608 = vrot.slane %v2548, 5
    %v2609 = vrot.slane %v2608, 4
    %v2610 = vrot.slane %v2129, 5
    %v2611 = vsel %vm509, %v2609, %v2610
    %v2612 = vrot.slane %v2610, 4
    %v2613 = vrot.slane %v2138, 5
    %v2614 = vsel %vm509, %v2612, %v2613
    %v2615 = vrot.slane %v2549, 5
    %v2616 = vrot.slane %v2615, 4
    %v2617 = vrot.slane %v2131, 5
    %v2618 = vsel %vm509, %v2616, %v2617
    %v2619 = vrot.slane %v2617, 4
    %v2620 = vrot.slane %v2139, 5
    %v2621 = vsel %vm509, %v2619, %v2620
    %v2622 = vunpack.c.l.b16 %v2569
    %v2623 = vunpack.c.l.b16 %v2572
    %v2624 = vunpack.c.l.b16 %v2576
    %v2625 = vunpack.c.l.b16 %v2579
    %v2626 = vunpack.c.l.b16 %v2583
    %v2627 = vunpack.c.l.b16 %v2586
    %v2628 = vunpack.c.l.b16 %v2590
    %v2629 = vunpack.c.l.b16 %v2593
    %v2630 = vunpack.c.l.b16 %v2597
    %v2631 = vunpack.c.l.b16 %v2600
    %v2632 = vunpack.c.l.b16 %v2604
    %v2633 = vunpack.c.l.b16 %v2607
    %v2634 = vunpack.c.l.b16 %v2611
    %v2635 = vunpack.c.l.b16 %v2614
    %v2636 = vunpack.c.l.b16 %v2618
    %v2637 = vunpack.c.l.b16 %v2621
    %v2638 = vpack.c.b16 %v2623, %v2622
    %v2639 = vpack.c.b16 %v2625, %v2624
    %v2640 = vpack.c.b16 %v2627, %v2626
    %v2641 = vpack.c.b16 %v2629, %v2628
    %v2642 = vpack.c.b16 %v2631, %v2630
    %v2643 = vpack.c.b16 %v2633, %v2632
    %v2644 = vpack.c.b16 %v2635, %v2634
    %v2645 = vpack.c.b16 %v2637, %v2636
    %v2647 = vsel %vm289, %v2638, 0
    %v2650 = vsel %vm289, %v2639, 0
    %v2653 = vsel %vm289, %v2640, 0
    %v2656 = vsel %vm289, %v2641, 0
    %v2659 = vsel %vm289, %v2642, 0
    %v2662 = vsel %vm289, %v2643, 0
    %v2665 = vsel %vm289, %v2644, 0
    %v2668 = vsel %vm289, %v2645, 0
    %2670 = vmatpush.bf16.msra.mxu0 0
    %2671 = vmatpush.bf16.msra.mxu0 0
    %2672 = vmatpush.bf16.msra.mxu0 0
    %2673 = vmatpush.bf16.msra.mxu0 0
    %2674 = vmatpush.bf16.msra.mxu0 0
    %2675 = vmatpush.bf16.msra.mxu0 0
    %2676 = vmatpush.bf16.msra.mxu0 0
    %2677 = vmatpush.bf16.msra.mxu0 %v615
    %2678 = vmatmul.bf16.gmra.mxu0 %v2647
    %v2679 = vpop.f32.mrf.mxu0
    %v2680 = vadd.f32 0.0, %v2679
    %v2681 = vpop.f32.mrf.mxu0
    %v2682 = vadd.f32 0.0, %v2681
    %2683 = vmatmul.bf16.gmra.mxu0 %v2650
    %v2684 = vpop.f32.mrf.mxu0
    %v2685 = vadd.f32 0.0, %v2684
    %v2686 = vpop.f32.mrf.mxu0
    %v2687 = vadd.f32 0.0, %v2686
    %2688 = vmatmul.bf16.gmra.mxu0 %v2653
    %v2689 = vpop.f32.mrf.mxu0
    %v2690 = vadd.f32 0.0, %v2689
    %v2691 = vpop.f32.mrf.mxu0
    %v2692 = vadd.f32 0.0, %v2691
    %2693 = vmatmul.bf16.gmra.mxu0 %v2656
    %v2694 = vpop.f32.mrf.mxu0
    %v2695 = vadd.f32 0.0, %v2694
    %v2696 = vpop.f32.mrf.mxu0
    %v2697 = vadd.f32 0.0, %v2696
    %2698 = vmatmul.bf16.gmra.mxu0 %v2659
    %v2699 = vpop.f32.mrf.mxu0
    %v2700 = vadd.f32 0.0, %v2699
    %v2701 = vpop.f32.mrf.mxu0
    %v2702 = vadd.f32 0.0, %v2701
    %2703 = vmatmul.bf16.gmra.mxu0 %v2662
    %v2704 = vpop.f32.mrf.mxu0
    %v2705 = vadd.f32 0.0, %v2704
    %v2706 = vpop.f32.mrf.mxu0
    %v2707 = vadd.f32 0.0, %v2706
    %2708 = vmatmul.bf16.gmra.mxu0 %v2665
    %v2709 = vpop.f32.mrf.mxu0
    %v2710 = vadd.f32 0.0, %v2709
    %v2711 = vpop.f32.mrf.mxu0
    %v2712 = vadd.f32 0.0, %v2711
    %2713 = vmatmul.bf16.gmra.mxu0 %v2668
    %v2714 = vpop.f32.mrf.mxu0
    %v2715 = vadd.f32 0.0, %v2714
    %v2716 = vpop.f32.mrf.mxu0
    %v2717 = vadd.f32 0.0, %v2716
    %2718 = vdwg.mxu0
    %v2719 = vadd.f32 %v2503, %v2680
    %v2720 = vadd.f32 %v2505, %v2682
    %v2721 = vadd.f32 %v2508, %v2685
    %v2722 = vadd.f32 %v2510, %v2687
    %v2723 = vadd.f32 %v2513, %v2690
    %v2724 = vadd.f32 %v2515, %v2692
    %v2725 = vadd.f32 %v2518, %v2695
    %v2726 = vadd.f32 %v2520, %v2697
    %v2727 = vadd.f32 %v2523, %v2700
    %v2728 = vadd.f32 %v2525, %v2702
    %v2729 = vadd.f32 %v2528, %v2705
    %v2730 = vadd.f32 %v2530, %v2707
    %v2731 = vadd.f32 %v2533, %v2710
    %v2732 = vadd.f32 %v2535, %v2712
    %v2733 = vadd.f32 %v2538, %v2715
    %v2734 = vadd.f32 %v2540, %v2717
    %s2735 = scalar_lea.vmem %s0, 60
    %v2736 = vld [vmem:[%s2735] sm:$0xf]
    %v2737 = vld [vmem:[%s2735 + $0x4] sm:$0xf]
    %v2738 = vld [vmem:[%s2735 + $0xc] sm:$0xf]
    %v2739 = vld [vmem:[%s2735 + $0x10] sm:$0xf]
    %v2740 = vld [vmem:[%s2735 + $0x18] sm:$0xf]
    %v2741 = vld [vmem:[%s2735 + $0x1c] sm:$0xf]
    %v2742 = vld [vmem:[%s2735 + $0x24] sm:$0xf]
    %v2743 = vld [vmem:[%s2735 + $0x28] sm:$0xf]
    %v2744 = vld [vmem:[%s2735 + $0xd8] sm:$0xf]
    %v2745 = vld [vmem:[%s2735 + $0xdc] sm:$0xf]
    %v2746 = vld [vmem:[%s2735 + $0xe4] sm:$0xf]
    %v2747 = vld [vmem:[%s2735 + $0xe8] sm:$0xf]
    %v2748 = vld [vmem:[%s2735 + $0xf0] sm:$0xf]
    %v2749 = vld [vmem:[%s2735 + $0xf4] sm:$0xf]
    %v2750 = vld [vmem:[%s2735 + $0xfc] sm:$0xf]
    %v2751 = vld [vmem:[%s2735 + $0x100] sm:$0xf]
    %v2768 = vunpack.c.l.b16 %v2736
    %v2769 = vunpack.c.l.b16 %v2737
    %v2770 = vunpack.c.l.b16 %v2738
    %v2771 = vunpack.c.l.b16 %v2739
    %v2772 = vunpack.c.l.b16 %v2740
    %v2773 = vunpack.c.l.b16 %v2741
    %v2774 = vunpack.c.l.b16 %v2742
    %v2775 = vunpack.c.l.b16 %v2743
    %v2776 = vunpack.c.l.b16 %v2744
    %v2777 = vunpack.c.l.b16 %v2745
    %v2778 = vunpack.c.l.b16 %v2746
    %v2779 = vunpack.c.l.b16 %v2747
    %v2780 = vunpack.c.l.b16 %v2748
    %v2781 = vunpack.c.l.b16 %v2749
    %v2782 = vunpack.c.l.b16 %v2750
    %v2783 = vunpack.c.l.b16 %v2751
    %v2784 = vpack.c.b16 %v2769, %v2768
    %v2785 = vpack.c.b16 %v2771, %v2770
    %v2786 = vpack.c.b16 %v2773, %v2772
    %v2787 = vpack.c.b16 %v2775, %v2774
    %v2788 = vpack.c.b16 %v2777, %v2776
    %v2789 = vpack.c.b16 %v2779, %v2778
    %v2790 = vpack.c.b16 %v2781, %v2780
    %v2791 = vpack.c.b16 %v2783, %v2782
    %v2793 = vsel %vm289, %v2784, 0
    %v2796 = vsel %vm289, %v2785, 0
    %v2799 = vsel %vm289, %v2786, 0
    %v2802 = vsel %vm289, %v2787, 0
    %v2805 = vsel %vm289, %v2788, 0
    %v2808 = vsel %vm289, %v2789, 0
    %v2811 = vsel %vm289, %v2790, 0
    %v2814 = vsel %vm289, %v2791, 0
    %2816 = vmatpush.bf16.msra.mxu0 0
    %2817 = vmatpush.bf16.msra.mxu0 0
    %2818 = vmatpush.bf16.msra.mxu0 0
    %2819 = vmatpush.bf16.msra.mxu0 0
    %2820 = vmatpush.bf16.msra.mxu0 0
    %2821 = vmatpush.bf16.msra.mxu0 0
    %2822 = vmatpush.bf16.msra.mxu0 0
    %2823 = vmatpush.bf16.msra.mxu0 %v764
    %2824 = vmatmul.bf16.gmra.mxu0 %v2793
    %v2825 = vpop.f32.mrf.mxu0
    %v2826 = vadd.f32 0.0, %v2825
    %v2827 = vpop.f32.mrf.mxu0
    %v2828 = vadd.f32 0.0, %v2827
    %2829 = vmatmul.bf16.gmra.mxu0 %v2796
    %v2830 = vpop.f32.mrf.mxu0
    %v2831 = vadd.f32 0.0, %v2830
    %v2832 = vpop.f32.mrf.mxu0
    %v2833 = vadd.f32 0.0, %v2832
    %2834 = vmatmul.bf16.gmra.mxu0 %v2799
    %v2835 = vpop.f32.mrf.mxu0
    %v2836 = vadd.f32 0.0, %v2835
    %v2837 = vpop.f32.mrf.mxu0
    %v2838 = vadd.f32 0.0, %v2837
    %2839 = vmatmul.bf16.gmra.mxu0 %v2802
    %v2840 = vpop.f32.mrf.mxu0
    %v2841 = vadd.f32 0.0, %v2840
    %v2842 = vpop.f32.mrf.mxu0
    %v2843 = vadd.f32 0.0, %v2842
    %2844 = vmatmul.bf16.gmra.mxu0 %v2805
    %v2845 = vpop.f32.mrf.mxu0
    %v2846 = vadd.f32 0.0, %v2845
    %v2847 = vpop.f32.mrf.mxu0
    %v2848 = vadd.f32 0.0, %v2847
    %2849 = vmatmul.bf16.gmra.mxu0 %v2808
    %v2850 = vpop.f32.mrf.mxu0
    %v2851 = vadd.f32 0.0, %v2850
    %v2852 = vpop.f32.mrf.mxu0
    %v2853 = vadd.f32 0.0, %v2852
    %2854 = vmatmul.bf16.gmra.mxu0 %v2811
    %v2855 = vpop.f32.mrf.mxu0
    %v2856 = vadd.f32 0.0, %v2855
    %v2857 = vpop.f32.mrf.mxu0
    %v2858 = vadd.f32 0.0, %v2857
    %2859 = vmatmul.bf16.gmra.mxu0 %v2814
    %v2860 = vpop.f32.mrf.mxu0
    %v2861 = vadd.f32 0.0, %v2860
    %v2862 = vpop.f32.mrf.mxu0
    %v2863 = vadd.f32 0.0, %v2862
    %2864 = vdwg.mxu0
    %v2865 = vadd.f32 %v2719, %v2826
    %v2866 = vadd.f32 %v2720, %v2828
    %v2867 = vadd.f32 %v2721, %v2831
    %v2868 = vadd.f32 %v2722, %v2833
    %v2869 = vadd.f32 %v2723, %v2836
    %v2870 = vadd.f32 %v2724, %v2838
    %v2871 = vadd.f32 %v2725, %v2841
    %v2872 = vadd.f32 %v2726, %v2843
    %v2873 = vadd.f32 %v2727, %v2846
    %v2874 = vadd.f32 %v2728, %v2848
    %v2875 = vadd.f32 %v2729, %v2851
    %v2876 = vadd.f32 %v2730, %v2853
    %v2877 = vadd.f32 %v2731, %v2856
    %v2878 = vadd.f32 %v2732, %v2858
    %v2879 = vadd.f32 %v2733, %v2861
    %v2880 = vadd.f32 %v2734, %v2863
    %v2881 = vld [vmem:[%s2735] sm:$0xf]
    %v2882 = vld [vmem:[%s2735 + $0x4] sm:$0xf]
    %v2883 = vld [vmem:[%s2735 + $0x8] sm:$0x1]
    %v2884 = vld [vmem:[%s2735 + $0xc] sm:$0xf]
    %v2885 = vld [vmem:[%s2735 + $0x10] sm:$0xf]
    %v2886 = vld [vmem:[%s2735 + $0x14] sm:$0x1]
    %v2887 = vld [vmem:[%s2735 + $0x18] sm:$0xf]
    %v2888 = vld [vmem:[%s2735 + $0x1c] sm:$0xf]
    %v2889 = vld [vmem:[%s2735 + $0x20] sm:$0x1]
    %v2890 = vld [vmem:[%s2735 + $0x24] sm:$0xf]
    %v2891 = vld [vmem:[%s2735 + $0x28] sm:$0xf]
    %v2892 = vld [vmem:[%s2735 + $0x2c] sm:$0x1]
    %v2893 = vld [vmem:[%s2735 + $0xd8] sm:$0xf]
    %v2894 = vld [vmem:[%s2735 + $0xdc] sm:$0xf]
    %v2895 = vld [vmem:[%s2735 + $0xe0] sm:$0x1]
    %v2896 = vld [vmem:[%s2735 + $0xe4] sm:$0xf]
    %v2897 = vld [vmem:[%s2735 + $0xe8] sm:$0xf]
    %v2898 = vld [vmem:[%s2735 + $0xec] sm:$0x1]
    %v2899 = vld [vmem:[%s2735 + $0xf0] sm:$0xf]
    %v2900 = vld [vmem:[%s2735 + $0xf4] sm:$0xf]
    %v2901 = vld [vmem:[%s2735 + $0xf8] sm:$0x1]
    %v2902 = vld [vmem:[%s2735 + $0xfc] sm:$0xf]
    %v2903 = vld [vmem:[%s2735 + $0x100] sm:$0xf]
    %v2904 = vld [vmem:[%s2735 + $0x104] sm:$0x1]
    %v2906 = vshrl.u32 %v2881, 16
    %v2908 = vrot.slane %v2906, 4
    %v2909 = vshll.u32 %v2881, 16
    %v2911 = vrot.slane %v2909, 5
    %v2912 = vor.u32 %v2908, %v2911
    %v2913 = vrot.slane %v2912, 4
    %v2915 = vshll.u32 %v2882, 16
    %v2917 = vrot.slane %v2915, 5
    %v2918 = vsel %vm72, %v2913, %v2917
    %v2919 = vshrl.u32 %v2882, 16
    %v2921 = vrot.slane %v2919, 4
    %v2922 = vor.u32 %v2921, %v2917
    %v2923 = vrot.slane %v2922, 4
    %v2925 = vshll.u32 %v2883, 16
    %v2927 = vrot.slane %v2925, 5
    %v2928 = vsel %vm72, %v2923, %v2927
    %v2930 = vshrl.u32 %v2884, 16
    %v2932 = vrot.slane %v2930, 4
    %v2933 = vshll.u32 %v2884, 16
    %v2935 = vrot.slane %v2933, 5
    %v2936 = vor.u32 %v2932, %v2935
    %v2937 = vrot.slane %v2936, 4
    %v2939 = vshll.u32 %v2885, 16
    %v2941 = vrot.slane %v2939, 5
    %v2942 = vsel %vm72, %v2937, %v2941
    %v2943 = vshrl.u32 %v2885, 16
    %v2945 = vrot.slane %v2943, 4
    %v2946 = vor.u32 %v2945, %v2941
    %v2947 = vrot.slane %v2946, 4
    %v2949 = vshll.u32 %v2886, 16
    %v2951 = vrot.slane %v2949, 5
    %v2952 = vsel %vm72, %v2947, %v2951
    %v2954 = vshrl.u32 %v2887, 16
    %v2956 = vrot.slane %v2954, 4
    %v2957 = vshll.u32 %v2887, 16
    %v2959 = vrot.slane %v2957, 5
    %v2960 = vor.u32 %v2956, %v2959
    %v2961 = vrot.slane %v2960, 4
    %v2963 = vshll.u32 %v2888, 16
    %v2965 = vrot.slane %v2963, 5
    %v2966 = vsel %vm72, %v2961, %v2965
    %v2967 = vshrl.u32 %v2888, 16
    %v2969 = vrot.slane %v2967, 4
    %v2970 = vor.u32 %v2969, %v2965
    %v2971 = vrot.slane %v2970, 4
    %v2973 = vshll.u32 %v2889, 16
    %v2975 = vrot.slane %v2973, 5
    %v2976 = vsel %vm72, %v2971, %v2975
    %v2978 = vshrl.u32 %v2890, 16
    %v2980 = vrot.slane %v2978, 4
    %v2981 = vshll.u32 %v2890, 16
    %v2983 = vrot.slane %v2981, 5
    %v2984 = vor.u32 %v2980, %v2983
    %v2985 = vrot.slane %v2984, 4
    %v2987 = vshll.u32 %v2891, 16
    %v2989 = vrot.slane %v2987, 5
    %v2990 = vsel %vm72, %v2985, %v2989
    %v2991 = vshrl.u32 %v2891, 16
    %v2993 = vrot.slane %v2991, 4
    %v2994 = vor.u32 %v2993, %v2989
    %v2995 = vrot.slane %v2994, 4
    %v2997 = vshll.u32 %v2892, 16
    %v2999 = vrot.slane %v2997, 5
    %v3000 = vsel %vm72, %v2995, %v2999
    %v3002 = vshrl.u32 %v2893, 16
    %v3004 = vrot.slane %v3002, 4
    %v3005 = vshll.u32 %v2893, 16
    %v3007 = vrot.slane %v3005, 5
    %v3008 = vor.u32 %v3004, %v3007
    %v3009 = vrot.slane %v3008, 4
    %v3011 = vshll.u32 %v2894, 16
    %v3013 = vrot.slane %v3011, 5
    %v3014 = vsel %vm72, %v3009, %v3013
    %v3015 = vshrl.u32 %v2894, 16
    %v3017 = vrot.slane %v3015, 4
    %v3018 = vor.u32 %v3017, %v3013
    %v3019 = vrot.slane %v3018, 4
    %v3021 = vshll.u32 %v2895, 16
    %v3023 = vrot.slane %v3021, 5
    %v3024 = vsel %vm72, %v3019, %v3023
    %v3026 = vshrl.u32 %v2896, 16
    %v3028 = vrot.slane %v3026, 4
    %v3029 = vshll.u32 %v2896, 16
    %v3031 = vrot.slane %v3029, 5
    %v3032 = vor.u32 %v3028, %v3031
    %v3033 = vrot.slane %v3032, 4
    %v3035 = vshll.u32 %v2897, 16
    %v3037 = vrot.slane %v3035, 5
    %v3038 = vsel %vm72, %v3033, %v3037
    %v3039 = vshrl.u32 %v2897, 16
    %v3041 = vrot.slane %v3039, 4
    %v3042 = vor.u32 %v3041, %v3037
    %v3043 = vrot.slane %v3042, 4
    %v3045 = vshll.u32 %v2898, 16
    %v3047 = vrot.slane %v3045, 5
    %v3048 = vsel %vm72, %v3043, %v3047
    %v3050 = vshrl.u32 %v2899, 16
    %v3052 = vrot.slane %v3050, 4
    %v3053 = vshll.u32 %v2899, 16
    %v3055 = vrot.slane %v3053, 5
    %v3056 = vor.u32 %v3052, %v3055
    %v3057 = vrot.slane %v3056, 4
    %v3059 = vshll.u32 %v2900, 16
    %v3061 = vrot.slane %v3059, 5
    %v3062 = vsel %vm72, %v3057, %v3061
    %v3063 = vshrl.u32 %v2900, 16
    %v3065 = vrot.slane %v3063, 4
    %v3066 = vor.u32 %v3065, %v3061
    %v3067 = vrot.slane %v3066, 4
    %v3069 = vshll.u32 %v2901, 16
    %v3071 = vrot.slane %v3069, 5
    %v3072 = vsel %vm72, %v3067, %v3071
    %v3074 = vshrl.u32 %v2902, 16
    %v3076 = vrot.slane %v3074, 4
    %v3077 = vshll.u32 %v2902, 16
    %v3079 = vrot.slane %v3077, 5
    %v3080 = vor.u32 %v3076, %v3079
    %v3081 = vrot.slane %v3080, 4
    %v3083 = vshll.u32 %v2903, 16
    %v3085 = vrot.slane %v3083, 5
    %v3086 = vsel %vm72, %v3081, %v3085
    %v3087 = vshrl.u32 %v2903, 16
    %v3089 = vrot.slane %v3087, 4
    %v3090 = vor.u32 %v3089, %v3085
    %v3091 = vrot.slane %v3090, 4
    %v3093 = vshll.u32 %v2904, 16
    %v3095 = vrot.slane %v3093, 5
    %v3096 = vsel %vm72, %v3091, %v3095
    %v3097 = vunpack.c.l.b16 %v2918
    %v3098 = vunpack.c.l.b16 %v2928
    %v3099 = vunpack.c.l.b16 %v2942
    %v3100 = vunpack.c.l.b16 %v2952
    %v3101 = vunpack.c.l.b16 %v2966
    %v3102 = vunpack.c.l.b16 %v2976
    %v3103 = vunpack.c.l.b16 %v2990
    %v3104 = vunpack.c.l.b16 %v3000
    %v3105 = vunpack.c.l.b16 %v3014
    %v3106 = vunpack.c.l.b16 %v3024
    %v3107 = vunpack.c.l.b16 %v3038
    %v3108 = vunpack.c.l.b16 %v3048
    %v3109 = vunpack.c.l.b16 %v3062
    %v3110 = vunpack.c.l.b16 %v3072
    %v3111 = vunpack.c.l.b16 %v3086
    %v3112 = vunpack.c.l.b16 %v3096
    %v3113 = vpack.c.b16 %v3098, %v3097
    %v3114 = vpack.c.b16 %v3100, %v3099
    %v3115 = vpack.c.b16 %v3102, %v3101
    %v3116 = vpack.c.b16 %v3104, %v3103
    %v3117 = vpack.c.b16 %v3106, %v3105
    %v3118 = vpack.c.b16 %v3108, %v3107
    %v3119 = vpack.c.b16 %v3110, %v3109
    %v3120 = vpack.c.b16 %v3112, %v3111
    %v3122 = vsel %vm289, %v3113, 0
    %v3125 = vsel %vm289, %v3114, 0
    %v3128 = vsel %vm289, %v3115, 0
    %v3131 = vsel %vm289, %v3116, 0
    %v3134 = vsel %vm289, %v3117, 0
    %v3137 = vsel %vm289, %v3118, 0
    %v3140 = vsel %vm289, %v3119, 0
    %v3143 = vsel %vm289, %v3120, 0
    %3145 = vmatpush.bf16.msra.mxu0 0
    %3146 = vmatpush.bf16.msra.mxu0 0
    %3147 = vmatpush.bf16.msra.mxu0 0
    %3148 = vmatpush.bf16.msra.mxu0 0
    %3149 = vmatpush.bf16.msra.mxu0 0
    %3150 = vmatpush.bf16.msra.mxu0 0
    %3151 = vmatpush.bf16.msra.mxu0 0
    %3152 = vmatpush.bf16.msra.mxu0 %v1096
    %3153 = vmatmul.bf16.gmra.mxu0 %v3122
    %v3154 = vpop.f32.mrf.mxu0
    %v3155 = vadd.f32 0.0, %v3154
    %v3156 = vpop.f32.mrf.mxu0
    %v3157 = vadd.f32 0.0, %v3156
    %3158 = vmatmul.bf16.gmra.mxu0 %v3125
    %v3159 = vpop.f32.mrf.mxu0
    %v3160 = vadd.f32 0.0, %v3159
    %v3161 = vpop.f32.mrf.mxu0
    %v3162 = vadd.f32 0.0, %v3161
    %3163 = vmatmul.bf16.gmra.mxu0 %v3128
    %v3164 = vpop.f32.mrf.mxu0
    %v3165 = vadd.f32 0.0, %v3164
    %v3166 = vpop.f32.mrf.mxu0
    %v3167 = vadd.f32 0.0, %v3166
    %3168 = vmatmul.bf16.gmra.mxu0 %v3131
    %v3169 = vpop.f32.mrf.mxu0
    %v3170 = vadd.f32 0.0, %v3169
    %v3171 = vpop.f32.mrf.mxu0
    %v3172 = vadd.f32 0.0, %v3171
    %3173 = vmatmul.bf16.gmra.mxu0 %v3134
    %v3174 = vpop.f32.mrf.mxu0
    %v3175 = vadd.f32 0.0, %v3174
    %v3176 = vpop.f32.mrf.mxu0
    %v3177 = vadd.f32 0.0, %v3176
    %3178 = vmatmul.bf16.gmra.mxu0 %v3137
    %v3179 = vpop.f32.mrf.mxu0
    %v3180 = vadd.f32 0.0, %v3179
    %v3181 = vpop.f32.mrf.mxu0
    %v3182 = vadd.f32 0.0, %v3181
    %3183 = vmatmul.bf16.gmra.mxu0 %v3140
    %v3184 = vpop.f32.mrf.mxu0
    %v3185 = vadd.f32 0.0, %v3184
    %v3186 = vpop.f32.mrf.mxu0
    %v3187 = vadd.f32 0.0, %v3186
    %3188 = vmatmul.bf16.gmra.mxu0 %v3143
    %v3189 = vpop.f32.mrf.mxu0
    %v3190 = vadd.f32 0.0, %v3189
    %v3191 = vpop.f32.mrf.mxu0
    %v3192 = vadd.f32 0.0, %v3191
    %3193 = vdwg.mxu0
    %v3194 = vadd.f32 %v2865, %v3155
    %v3195 = vadd.f32 %v2866, %v3157
    %v3196 = vadd.f32 %v2867, %v3160
    %v3197 = vadd.f32 %v2868, %v3162
    %v3198 = vadd.f32 %v2869, %v3165
    %v3199 = vadd.f32 %v2870, %v3167
    %v3200 = vadd.f32 %v2871, %v3170
    %v3201 = vadd.f32 %v2872, %v3172
    %v3202 = vadd.f32 %v2873, %v3175
    %v3203 = vadd.f32 %v2874, %v3177
    %v3204 = vadd.f32 %v2875, %v3180
    %v3205 = vadd.f32 %v2876, %v3182
    %v3206 = vadd.f32 %v2877, %v3185
    %v3207 = vadd.f32 %v2878, %v3187
    %v3208 = vadd.f32 %v2879, %v3190
    %v3209 = vadd.f32 %v2880, %v3192
    %v3210 = vld [vmem:[%s2735] sm:$0xe]
    %v3211 = vld [vmem:[%s2735 + $0xc] sm:$0xe]
    %v3212 = vld [vmem:[%s2735 + $0x18] sm:$0xe]
    %v3213 = vld [vmem:[%s2735 + $0x24] sm:$0xe]
    %v3214 = vld [vmem:[%s2735 + $0xd8] sm:$0xe]
    %v3215 = vld [vmem:[%s2735 + $0xe4] sm:$0xe]
    %v3216 = vld [vmem:[%s2735 + $0xf0] sm:$0xe]
    %v3217 = vld [vmem:[%s2735 + $0xfc] sm:$0xe]
    %v3242 = vrot.slane %v3210, 5
    %v3243 = vrot.slane %v3242, 4
    %v3244 = vrot.slane %v2882, 5
    %v3245 = vsel %vm509, %v3243, %v3244
    %v3246 = vrot.slane %v3244, 4
    %v3247 = vrot.slane %v2883, 5
    %v3248 = vsel %vm509, %v3246, %v3247
    %v3249 = vrot.slane %v3211, 5
    %v3250 = vrot.slane %v3249, 4
    %v3251 = vrot.slane %v2885, 5
    %v3252 = vsel %vm509, %v3250, %v3251
    %v3253 = vrot.slane %v3251, 4
    %v3254 = vrot.slane %v2886, 5
    %v3255 = vsel %vm509, %v3253, %v3254
    %v3256 = vrot.slane %v3212, 5
    %v3257 = vrot.slane %v3256, 4
    %v3258 = vrot.slane %v2888, 5
    %v3259 = vsel %vm509, %v3257, %v3258
    %v3260 = vrot.slane %v3258, 4
    %v3261 = vrot.slane %v2889, 5
    %v3262 = vsel %vm509, %v3260, %v3261
    %v3263 = vrot.slane %v3213, 5
    %v3264 = vrot.slane %v3263, 4
    %v3265 = vrot.slane %v2891, 5
    %v3266 = vsel %vm509, %v3264, %v3265
    %v3267 = vrot.slane %v3265, 4
    %v3268 = vrot.slane %v2892, 5
    %v3269 = vsel %vm509, %v3267, %v3268
    %v3270 = vrot.slane %v3214, 5
    %v3271 = vrot.slane %v3270, 4
    %v3272 = vrot.slane %v2894, 5
    %v3273 = vsel %vm509, %v3271, %v3272
    %v3274 = vrot.slane %v3272, 4
    %v3275 = vrot.slane %v2895, 5
    %v3276 = vsel %vm509, %v3274, %v3275
    %v3277 = vrot.slane %v3215, 5
    %v3278 = vrot.slane %v3277, 4
    %v3279 = vrot.slane %v2897, 5
    %v3280 = vsel %vm509, %v3278, %v3279
    %v3281 = vrot.slane %v3279, 4
    %v3282 = vrot.slane %v2898, 5
    %v3283 = vsel %vm509, %v3281, %v3282
    %v3284 = vrot.slane %v3216, 5
    %v3285 = vrot.slane %v3284, 4
    %v3286 = vrot.slane %v2900, 5
    %v3287 = vsel %vm509, %v3285, %v3286
    %v3288 = vrot.slane %v3286, 4
    %v3289 = vrot.slane %v2901, 5
    %v3290 = vsel %vm509, %v3288, %v3289
    %v3291 = vrot.slane %v3217, 5
    %v3292 = vrot.slane %v3291, 4
    %v3293 = vrot.slane %v2903, 5
    %v3294 = vsel %vm509, %v3292, %v3293
    %v3295 = vrot.slane %v3293, 4
    %v3296 = vrot.slane %v2904, 5
    %v3297 = vsel %vm509, %v3295, %v3296
    %v3298 = vunpack.c.l.b16 %v3245
    %v3299 = vunpack.c.l.b16 %v3248
    %v3300 = vunpack.c.l.b16 %v3252
    %v3301 = vunpack.c.l.b16 %v3255
    %v3302 = vunpack.c.l.b16 %v3259
    %v3303 = vunpack.c.l.b16 %v3262
    %v3304 = vunpack.c.l.b16 %v3266
    %v3305 = vunpack.c.l.b16 %v3269
    %v3306 = vunpack.c.l.b16 %v3273
    %v3307 = vunpack.c.l.b16 %v3276
    %v3308 = vunpack.c.l.b16 %v3280
    %v3309 = vunpack.c.l.b16 %v3283
    %v3310 = vunpack.c.l.b16 %v3287
    %v3311 = vunpack.c.l.b16 %v3290
    %v3312 = vunpack.c.l.b16 %v3294
    %v3313 = vunpack.c.l.b16 %v3297
    %v3314 = vpack.c.b16 %v3299, %v3298
    %v3315 = vpack.c.b16 %v3301, %v3300
    %v3316 = vpack.c.b16 %v3303, %v3302
    %v3317 = vpack.c.b16 %v3305, %v3304
    %v3318 = vpack.c.b16 %v3307, %v3306
    %v3319 = vpack.c.b16 %v3309, %v3308
    %v3320 = vpack.c.b16 %v3311, %v3310
    %v3321 = vpack.c.b16 %v3313, %v3312
    %v3323 = vsel %vm289, %v3314, 0
    %v3326 = vsel %vm289, %v3315, 0
    %v3329 = vsel %vm289, %v3316, 0
    %v3332 = vsel %vm289, %v3317, 0
    %v3335 = vsel %vm289, %v3318, 0
    %v3338 = vsel %vm289, %v3319, 0
    %v3341 = vsel %vm289, %v3320, 0
    %v3344 = vsel %vm289, %v3321, 0
    %3346 = vmatpush.bf16.msra.mxu0 0
    %3347 = vmatpush.bf16.msra.mxu0 0
    %3348 = vmatpush.bf16.msra.mxu0 0
    %3349 = vmatpush.bf16.msra.mxu0 0
    %3350 = vmatpush.bf16.msra.mxu0 0
    %3351 = vmatpush.bf16.msra.mxu0 0
    %3352 = vmatpush.bf16.msra.mxu0 0
    %3353 = vmatpush.bf16.msra.mxu0 %v1300
    %3354 = vmatmul.bf16.gmra.mxu0 %v3323
    %v3355 = vpop.f32.mrf.mxu0
    %v3356 = vadd.f32 0.0, %v3355
    %v3357 = vpop.f32.mrf.mxu0
    %v3358 = vadd.f32 0.0, %v3357
    %3359 = vmatmul.bf16.gmra.mxu0 %v3326
    %v3360 = vpop.f32.mrf.mxu0
    %v3361 = vadd.f32 0.0, %v3360
    %v3362 = vpop.f32.mrf.mxu0
    %v3363 = vadd.f32 0.0, %v3362
    %3364 = vmatmul.bf16.gmra.mxu0 %v3329
    %v3365 = vpop.f32.mrf.mxu0
    %v3366 = vadd.f32 0.0, %v3365
    %v3367 = vpop.f32.mrf.mxu0
    %v3368 = vadd.f32 0.0, %v3367
    %3369 = vmatmul.bf16.gmra.mxu0 %v3332
    %v3370 = vpop.f32.mrf.mxu0
    %v3371 = vadd.f32 0.0, %v3370
    %v3372 = vpop.f32.mrf.mxu0
    %v3373 = vadd.f32 0.0, %v3372
    %3374 = vmatmul.bf16.gmra.mxu0 %v3335
    %v3375 = vpop.f32.mrf.mxu0
    %v3376 = vadd.f32 0.0, %v3375
    %v3377 = vpop.f32.mrf.mxu0
    %v3378 = vadd.f32 0.0, %v3377
    %3379 = vmatmul.bf16.gmra.mxu0 %v3338
    %v3380 = vpop.f32.mrf.mxu0
    %v3381 = vadd.f32 0.0, %v3380
    %v3382 = vpop.f32.mrf.mxu0
    %v3383 = vadd.f32 0.0, %v3382
    %3384 = vmatmul.bf16.gmra.mxu0 %v3341
    %v3385 = vpop.f32.mrf.mxu0
    %v3386 = vadd.f32 0.0, %v3385
    %v3387 = vpop.f32.mrf.mxu0
    %v3388 = vadd.f32 0.0, %v3387
    %3389 = vmatmul.bf16.gmra.mxu0 %v3344
    %v3390 = vpop.f32.mrf.mxu0
    %v3391 = vadd.f32 0.0, %v3390
    %v3392 = vpop.f32.mrf.mxu0
    %v3393 = vadd.f32 0.0, %v3392
    %3394 = vdwg.mxu0
    %v3395 = vadd.f32 %v3194, %v3356
    %v3396 = vadd.f32 %v3195, %v3358
    %v3397 = vadd.f32 %v3196, %v3361
    %v3398 = vadd.f32 %v3197, %v3363
    %v3399 = vadd.f32 %v3198, %v3366
    %v3400 = vadd.f32 %v3199, %v3368
    %v3401 = vadd.f32 %v3200, %v3371
    %v3402 = vadd.f32 %v3201, %v3373
    %v3403 = vadd.f32 %v3202, %v3376
    %v3404 = vadd.f32 %v3203, %v3378
    %v3405 = vadd.f32 %v3204, %v3381
    %v3406 = vadd.f32 %v3205, %v3383
    %v3407 = vadd.f32 %v3206, %v3386
    %v3408 = vadd.f32 %v3207, %v3388
    %v3409 = vadd.f32 %v3208, %v3391
    %v3410 = vadd.f32 %v3209, %v3393
    %s3411 = scalar_lea.vmem %s0, 72
    %v3412 = vld [vmem:[%s3411] sm:$0xf]
    %v3413 = vld [vmem:[%s3411 + $0x4] sm:$0xf]
    %v3414 = vld [vmem:[%s3411 + $0xc] sm:$0xf]
    %v3415 = vld [vmem:[%s3411 + $0x10] sm:$0xf]
    %v3416 = vld [vmem:[%s3411 + $0x18] sm:$0xf]
    %v3417 = vld [vmem:[%s3411 + $0x1c] sm:$0xf]
    %v3418 = vld [vmem:[%s3411 + $0x24] sm:$0xf]
    %v3419 = vld [vmem:[%s3411 + $0x28] sm:$0xf]
    %v3420 = vld [vmem:[%s3411 + $0xd8] sm:$0xf]
    %v3421 = vld [vmem:[%s3411 + $0xdc] sm:$0xf]
    %v3422 = vld [vmem:[%s3411 + $0xe4] sm:$0xf]
    %v3423 = vld [vmem:[%s3411 + $0xe8] sm:$0xf]
    %v3424 = vld [vmem:[%s3411 + $0xf0] sm:$0xf]
    %v3425 = vld [vmem:[%s3411 + $0xf4] sm:$0xf]
    %v3426 = vld [vmem:[%s3411 + $0xfc] sm:$0xf]
    %v3427 = vld [vmem:[%s3411 + $0x100] sm:$0xf]
    %v3444 = vunpack.c.l.b16 %v3412
    %v3445 = vunpack.c.l.b16 %v3413
    %v3446 = vunpack.c.l.b16 %v3414
    %v3447 = vunpack.c.l.b16 %v3415
    %v3448 = vunpack.c.l.b16 %v3416
    %v3449 = vunpack.c.l.b16 %v3417
    %v3450 = vunpack.c.l.b16 %v3418
    %v3451 = vunpack.c.l.b16 %v3419
    %v3452 = vunpack.c.l.b16 %v3420
    %v3453 = vunpack.c.l.b16 %v3421
    %v3454 = vunpack.c.l.b16 %v3422
    %v3455 = vunpack.c.l.b16 %v3423
    %v3456 = vunpack.c.l.b16 %v3424
    %v3457 = vunpack.c.l.b16 %v3425
    %v3458 = vunpack.c.l.b16 %v3426
    %v3459 = vunpack.c.l.b16 %v3427
    %v3460 = vpack.c.b16 %v3445, %v3444
    %v3461 = vpack.c.b16 %v3447, %v3446
    %v3462 = vpack.c.b16 %v3449, %v3448
    %v3463 = vpack.c.b16 %v3451, %v3450
    %v3464 = vpack.c.b16 %v3453, %v3452
    %v3465 = vpack.c.b16 %v3455, %v3454
    %v3466 = vpack.c.b16 %v3457, %v3456
    %v3467 = vpack.c.b16 %v3459, %v3458
    %v3469 = vsel %vm289, %v3460, 0
    %v3472 = vsel %vm289, %v3461, 0
    %v3475 = vsel %vm289, %v3462, 0
    %v3478 = vsel %vm289, %v3463, 0
    %v3481 = vsel %vm289, %v3464, 0
    %v3484 = vsel %vm289, %v3465, 0
    %v3487 = vsel %vm289, %v3466, 0
    %v3490 = vsel %vm289, %v3467, 0
    %3492 = vmatpush.bf16.msra.mxu0 0
    %3493 = vmatpush.bf16.msra.mxu0 0
    %3494 = vmatpush.bf16.msra.mxu0 0
    %3495 = vmatpush.bf16.msra.mxu0 0
    %3496 = vmatpush.bf16.msra.mxu0 0
    %3497 = vmatpush.bf16.msra.mxu0 0
    %3498 = vmatpush.bf16.msra.mxu0 0
    %3499 = vmatpush.bf16.msra.mxu0 %v1449
    %3500 = vmatmul.bf16.gmra.mxu0 %v3469
    %v3501 = vpop.f32.mrf.mxu0
    %v3502 = vadd.f32 0.0, %v3501
    %v3503 = vpop.f32.mrf.mxu0
    %v3504 = vadd.f32 0.0, %v3503
    %3505 = vmatmul.bf16.gmra.mxu0 %v3472
    %v3506 = vpop.f32.mrf.mxu0
    %v3507 = vadd.f32 0.0, %v3506
    %v3508 = vpop.f32.mrf.mxu0
    %v3509 = vadd.f32 0.0, %v3508
    %3510 = vmatmul.bf16.gmra.mxu0 %v3475
    %v3511 = vpop.f32.mrf.mxu0
    %v3512 = vadd.f32 0.0, %v3511
    %v3513 = vpop.f32.mrf.mxu0
    %v3514 = vadd.f32 0.0, %v3513
    %3515 = vmatmul.bf16.gmra.mxu0 %v3478
    %v3516 = vpop.f32.mrf.mxu0
    %v3517 = vadd.f32 0.0, %v3516
    %v3518 = vpop.f32.mrf.mxu0
    %v3519 = vadd.f32 0.0, %v3518
    %3520 = vmatmul.bf16.gmra.mxu0 %v3481
    %v3521 = vpop.f32.mrf.mxu0
    %v3522 = vadd.f32 0.0, %v3521
    %v3523 = vpop.f32.mrf.mxu0
    %v3524 = vadd.f32 0.0, %v3523
    %3525 = vmatmul.bf16.gmra.mxu0 %v3484
    %v3526 = vpop.f32.mrf.mxu0
    %v3527 = vadd.f32 0.0, %v3526
    %v3528 = vpop.f32.mrf.mxu0
    %v3529 = vadd.f32 0.0, %v3528
    %3530 = vmatmul.bf16.gmra.mxu0 %v3487
    %v3531 = vpop.f32.mrf.mxu0
    %v3532 = vadd.f32 0.0, %v3531
    %v3533 = vpop.f32.mrf.mxu0
    %v3534 = vadd.f32 0.0, %v3533
    %3535 = vmatmul.bf16.gmra.mxu0 %v3490
    %v3536 = vpop.f32.mrf.mxu0
    %v3537 = vadd.f32 0.0, %v3536
    %v3538 = vpop.f32.mrf.mxu0
    %v3539 = vadd.f32 0.0, %v3538
    %3540 = vdwg.mxu0
    %v3541 = vadd.f32 %v3395, %v3502
    %v3542 = vadd.f32 %v3396, %v3504
    %v3543 = vadd.f32 %v3397, %v3507
    %v3544 = vadd.f32 %v3398, %v3509
    %v3545 = vadd.f32 %v3399, %v3512
    %v3546 = vadd.f32 %v3400, %v3514
    %v3547 = vadd.f32 %v3401, %v3517
    %v3548 = vadd.f32 %v3402, %v3519
    %v3549 = vadd.f32 %v3403, %v3522
    %v3550 = vadd.f32 %v3404, %v3524
    %v3551 = vadd.f32 %v3405, %v3527
    %v3552 = vadd.f32 %v3406, %v3529
    %v3553 = vadd.f32 %v3407, %v3532
    %v3554 = vadd.f32 %v3408, %v3534
    %v3555 = vadd.f32 %v3409, %v3537
    %v3556 = vadd.f32 %v3410, %v3539
    %v3557 = vld [vmem:[%s3411] sm:$0xf]
    %v3558 = vld [vmem:[%s3411 + $0x4] sm:$0xf]
    %v3559 = vld [vmem:[%s3411 + $0x8] sm:$0x1]
    %v3560 = vld [vmem:[%s3411 + $0xc] sm:$0xf]
    %v3561 = vld [vmem:[%s3411 + $0x10] sm:$0xf]
    %v3562 = vld [vmem:[%s3411 + $0x14] sm:$0x1]
    %v3563 = vld [vmem:[%s3411 + $0x18] sm:$0xf]
    %v3564 = vld [vmem:[%s3411 + $0x1c] sm:$0xf]
    %v3565 = vld [vmem:[%s3411 + $0x20] sm:$0x1]
    %v3566 = vld [vmem:[%s3411 + $0x24] sm:$0xf]
    %v3567 = vld [vmem:[%s3411 + $0x28] sm:$0xf]
    %v3568 = vld [vmem:[%s3411 + $0x2c] sm:$0x1]
    %v3569 = vld [vmem:[%s3411 + $0xd8] sm:$0xf]
    %v3570 = vld [vmem:[%s3411 + $0xdc] sm:$0xf]
    %v3571 = vld [vmem:[%s3411 + $0xe0] sm:$0x1]
    %v3572 = vld [vmem:[%s3411 + $0xe4] sm:$0xf]
    %v3573 = vld [vmem:[%s3411 + $0xe8] sm:$0xf]
    %v3574 = vld [vmem:[%s3411 + $0xec] sm:$0x1]
    %v3575 = vld [vmem:[%s3411 + $0xf0] sm:$0xf]
    %v3576 = vld [vmem:[%s3411 + $0xf4] sm:$0xf]
    %v3577 = vld [vmem:[%s3411 + $0xf8] sm:$0x1]
    %v3578 = vld [vmem:[%s3411 + $0xfc] sm:$0xf]
    %v3579 = vld [vmem:[%s3411 + $0x100] sm:$0xf]
    %v3580 = vld [vmem:[%s3411 + $0x104] sm:$0x1]
    %v3582 = vshrl.u32 %v3557, 16
    %v3584 = vrot.slane %v3582, 4
    %v3585 = vshll.u32 %v3557, 16
    %v3587 = vrot.slane %v3585, 5
    %v3588 = vor.u32 %v3584, %v3587
    %v3589 = vrot.slane %v3588, 4
    %v3591 = vshll.u32 %v3558, 16
    %v3593 = vrot.slane %v3591, 5
    %v3594 = vsel %vm72, %v3589, %v3593
    %v3595 = vshrl.u32 %v3558, 16
    %v3597 = vrot.slane %v3595, 4
    %v3598 = vor.u32 %v3597, %v3593
    %v3599 = vrot.slane %v3598, 4
    %v3601 = vshll.u32 %v3559, 16
    %v3603 = vrot.slane %v3601, 5
    %v3604 = vsel %vm72, %v3599, %v3603
    %v3606 = vshrl.u32 %v3560, 16
    %v3608 = vrot.slane %v3606, 4
    %v3609 = vshll.u32 %v3560, 16
    %v3611 = vrot.slane %v3609, 5
    %v3612 = vor.u32 %v3608, %v3611
    %v3613 = vrot.slane %v3612, 4
    %v3615 = vshll.u32 %v3561, 16
    %v3617 = vrot.slane %v3615, 5
    %v3618 = vsel %vm72, %v3613, %v3617
    %v3619 = vshrl.u32 %v3561, 16
    %v3621 = vrot.slane %v3619, 4
    %v3622 = vor.u32 %v3621, %v3617
    %v3623 = vrot.slane %v3622, 4
    %v3625 = vshll.u32 %v3562, 16
    %v3627 = vrot.slane %v3625, 5
    %v3628 = vsel %vm72, %v3623, %v3627
    %v3630 = vshrl.u32 %v3563, 16
    %v3632 = vrot.slane %v3630, 4
    %v3633 = vshll.u32 %v3563, 16
    %v3635 = vrot.slane %v3633, 5
    %v3636 = vor.u32 %v3632, %v3635
    %v3637 = vrot.slane %v3636, 4
    %v3639 = vshll.u32 %v3564, 16
    %v3641 = vrot.slane %v3639, 5
    %v3642 = vsel %vm72, %v3637, %v3641
    %v3643 = vshrl.u32 %v3564, 16
    %v3645 = vrot.slane %v3643, 4
    %v3646 = vor.u32 %v3645, %v3641
    %v3647 = vrot.slane %v3646, 4
    %v3649 = vshll.u32 %v3565, 16
    %v3651 = vrot.slane %v3649, 5
    %v3652 = vsel %vm72, %v3647, %v3651
    %v3654 = vshrl.u32 %v3566, 16
    %v3656 = vrot.slane %v3654, 4
    %v3657 = vshll.u32 %v3566, 16
    %v3659 = vrot.slane %v3657, 5
    %v3660 = vor.u32 %v3656, %v3659
    %v3661 = vrot.slane %v3660, 4
    %v3663 = vshll.u32 %v3567, 16
    %v3665 = vrot.slane %v3663, 5
    %v3666 = vsel %vm72, %v3661, %v3665
    %v3667 = vshrl.u32 %v3567, 16
    %v3669 = vrot.slane %v3667, 4
    %v3670 = vor.u32 %v3669, %v3665
    %v3671 = vrot.slane %v3670, 4
    %v3673 = vshll.u32 %v3568, 16
    %v3675 = vrot.slane %v3673, 5
    %v3676 = vsel %vm72, %v3671, %v3675
    %v3678 = vshrl.u32 %v3569, 16
    %v3680 = vrot.slane %v3678, 4
    %v3681 = vshll.u32 %v3569, 16
    %v3683 = vrot.slane %v3681, 5
    %v3684 = vor.u32 %v3680, %v3683
    %v3685 = vrot.slane %v3684, 4
    %v3687 = vshll.u32 %v3570, 16
    %v3689 = vrot.slane %v3687, 5
    %v3690 = vsel %vm72, %v3685, %v3689
    %v3691 = vshrl.u32 %v3570, 16
    %v3693 = vrot.slane %v3691, 4
    %v3694 = vor.u32 %v3693, %v3689
    %v3695 = vrot.slane %v3694, 4
    %v3697 = vshll.u32 %v3571, 16
    %v3699 = vrot.slane %v3697, 5
    %v3700 = vsel %vm72, %v3695, %v3699
    %v3702 = vshrl.u32 %v3572, 16
    %v3704 = vrot.slane %v3702, 4
    %v3705 = vshll.u32 %v3572, 16
    %v3707 = vrot.slane %v3705, 5
    %v3708 = vor.u32 %v3704, %v3707
    %v3709 = vrot.slane %v3708, 4
    %v3711 = vshll.u32 %v3573, 16
    %v3713 = vrot.slane %v3711, 5
    %v3714 = vsel %vm72, %v3709, %v3713
    %v3715 = vshrl.u32 %v3573, 16
    %v3717 = vrot.slane %v3715, 4
    %v3718 = vor.u32 %v3717, %v3713
    %v3719 = vrot.slane %v3718, 4
    %v3721 = vshll.u32 %v3574, 16
    %v3723 = vrot.slane %v3721, 5
    %v3724 = vsel %vm72, %v3719, %v3723
    %v3726 = vshrl.u32 %v3575, 16
    %v3728 = vrot.slane %v3726, 4
    %v3729 = vshll.u32 %v3575, 16
    %v3731 = vrot.slane %v3729, 5
    %v3732 = vor.u32 %v3728, %v3731
    %v3733 = vrot.slane %v3732, 4
    %v3735 = vshll.u32 %v3576, 16
    %v3737 = vrot.slane %v3735, 5
    %v3738 = vsel %vm72, %v3733, %v3737
    %v3739 = vshrl.u32 %v3576, 16
    %v3741 = vrot.slane %v3739, 4
    %v3742 = vor.u32 %v3741, %v3737
    %v3743 = vrot.slane %v3742, 4
    %v3745 = vshll.u32 %v3577, 16
    %v3747 = vrot.slane %v3745, 5
    %v3748 = vsel %vm72, %v3743, %v3747
    %v3750 = vshrl.u32 %v3578, 16
    %v3752 = vrot.slane %v3750, 4
    %v3753 = vshll.u32 %v3578, 16
    %v3755 = vrot.slane %v3753, 5
    %v3756 = vor.u32 %v3752, %v3755
    %v3757 = vrot.slane %v3756, 4
    %v3759 = vshll.u32 %v3579, 16
    %v3761 = vrot.slane %v3759, 5
    %v3762 = vsel %vm72, %v3757, %v3761
    %v3763 = vshrl.u32 %v3579, 16
    %v3765 = vrot.slane %v3763, 4
    %v3766 = vor.u32 %v3765, %v3761
    %v3767 = vrot.slane %v3766, 4
    %v3769 = vshll.u32 %v3580, 16
    %v3771 = vrot.slane %v3769, 5
    %v3772 = vsel %vm72, %v3767, %v3771
    %v3773 = vunpack.c.l.b16 %v3594
    %v3774 = vunpack.c.l.b16 %v3604
    %v3775 = vunpack.c.l.b16 %v3618
    %v3776 = vunpack.c.l.b16 %v3628
    %v3777 = vunpack.c.l.b16 %v3642
    %v3778 = vunpack.c.l.b16 %v3652
    %v3779 = vunpack.c.l.b16 %v3666
    %v3780 = vunpack.c.l.b16 %v3676
    %v3781 = vunpack.c.l.b16 %v3690
    %v3782 = vunpack.c.l.b16 %v3700
    %v3783 = vunpack.c.l.b16 %v3714
    %v3784 = vunpack.c.l.b16 %v3724
    %v3785 = vunpack.c.l.b16 %v3738
    %v3786 = vunpack.c.l.b16 %v3748
    %v3787 = vunpack.c.l.b16 %v3762
    %v3788 = vunpack.c.l.b16 %v3772
    %v3789 = vpack.c.b16 %v3774, %v3773
    %v3790 = vpack.c.b16 %v3776, %v3775
    %v3791 = vpack.c.b16 %v3778, %v3777
    %v3792 = vpack.c.b16 %v3780, %v3779
    %v3793 = vpack.c.b16 %v3782, %v3781
    %v3794 = vpack.c.b16 %v3784, %v3783
    %v3795 = vpack.c.b16 %v3786, %v3785
    %v3796 = vpack.c.b16 %v3788, %v3787
    %v3798 = vsel %vm289, %v3789, 0
    %v3801 = vsel %vm289, %v3790, 0
    %v3804 = vsel %vm289, %v3791, 0
    %v3807 = vsel %vm289, %v3792, 0
    %v3810 = vsel %vm289, %v3793, 0
    %v3813 = vsel %vm289, %v3794, 0
    %v3816 = vsel %vm289, %v3795, 0
    %v3819 = vsel %vm289, %v3796, 0
    %3821 = vmatpush.bf16.msra.mxu0 0
    %3822 = vmatpush.bf16.msra.mxu0 0
    %3823 = vmatpush.bf16.msra.mxu0 0
    %3824 = vmatpush.bf16.msra.mxu0 0
    %3825 = vmatpush.bf16.msra.mxu0 0
    %3826 = vmatpush.bf16.msra.mxu0 0
    %3827 = vmatpush.bf16.msra.mxu0 0
    %3828 = vmatpush.bf16.msra.mxu0 %v1781
    %3829 = vmatmul.bf16.gmra.mxu0 %v3798
    %v3830 = vpop.f32.mrf.mxu0
    %v3831 = vadd.f32 0.0, %v3830
    %v3832 = vpop.f32.mrf.mxu0
    %v3833 = vadd.f32 0.0, %v3832
    %3834 = vmatmul.bf16.gmra.mxu0 %v3801
    %v3835 = vpop.f32.mrf.mxu0
    %v3836 = vadd.f32 0.0, %v3835
    %v3837 = vpop.f32.mrf.mxu0
    %v3838 = vadd.f32 0.0, %v3837
    %3839 = vmatmul.bf16.gmra.mxu0 %v3804
    %v3840 = vpop.f32.mrf.mxu0
    %v3841 = vadd.f32 0.0, %v3840
    %v3842 = vpop.f32.mrf.mxu0
    %v3843 = vadd.f32 0.0, %v3842
    %3844 = vmatmul.bf16.gmra.mxu0 %v3807
    %v3845 = vpop.f32.mrf.mxu0
    %v3846 = vadd.f32 0.0, %v3845
    %v3847 = vpop.f32.mrf.mxu0
    %v3848 = vadd.f32 0.0, %v3847
    %3849 = vmatmul.bf16.gmra.mxu0 %v3810
    %v3850 = vpop.f32.mrf.mxu0
    %v3851 = vadd.f32 0.0, %v3850
    %v3852 = vpop.f32.mrf.mxu0
    %v3853 = vadd.f32 0.0, %v3852
    %3854 = vmatmul.bf16.gmra.mxu0 %v3813
    %v3855 = vpop.f32.mrf.mxu0
    %v3856 = vadd.f32 0.0, %v3855
    %v3857 = vpop.f32.mrf.mxu0
    %v3858 = vadd.f32 0.0, %v3857
    %3859 = vmatmul.bf16.gmra.mxu0 %v3816
    %v3860 = vpop.f32.mrf.mxu0
    %v3861 = vadd.f32 0.0, %v3860
    %v3862 = vpop.f32.mrf.mxu0
    %v3863 = vadd.f32 0.0, %v3862
    %3864 = vmatmul.bf16.gmra.mxu0 %v3819
    %v3865 = vpop.f32.mrf.mxu0
    %v3866 = vadd.f32 0.0, %v3865
    %v3867 = vpop.f32.mrf.mxu0
    %v3868 = vadd.f32 0.0, %v3867
    %3869 = vdwg.mxu0
    %v3870 = vadd.f32 %v3541, %v3831
    %v3871 = vadd.f32 %v3542, %v3833
    %v3872 = vadd.f32 %v3543, %v3836
    %v3873 = vadd.f32 %v3544, %v3838
    %v3874 = vadd.f32 %v3545, %v3841
    %v3875 = vadd.f32 %v3546, %v3843
    %v3876 = vadd.f32 %v3547, %v3846
    %v3877 = vadd.f32 %v3548, %v3848
    %v3878 = vadd.f32 %v3549, %v3851
    %v3879 = vadd.f32 %v3550, %v3853
    %v3880 = vadd.f32 %v3551, %v3856
    %v3881 = vadd.f32 %v3552, %v3858
    %v3882 = vadd.f32 %v3553, %v3861
    %v3883 = vadd.f32 %v3554, %v3863
    %v3884 = vadd.f32 %v3555, %v3866
    %v3885 = vadd.f32 %v3556, %v3868
    %v3886 = vld [vmem:[%s3411] sm:$0xe]
    %v3887 = vld [vmem:[%s3411 + $0xc] sm:$0xe]
    %v3888 = vld [vmem:[%s3411 + $0x18] sm:$0xe]
    %v3889 = vld [vmem:[%s3411 + $0x24] sm:$0xe]
    %v3890 = vld [vmem:[%s3411 + $0xd8] sm:$0xe]
    %v3891 = vld [vmem:[%s3411 + $0xe4] sm:$0xe]
    %v3892 = vld [vmem:[%s3411 + $0xf0] sm:$0xe]
    %v3893 = vld [vmem:[%s3411 + $0xfc] sm:$0xe]
    %v3918 = vrot.slane %v3886, 5
    %v3919 = vrot.slane %v3918, 4
    %v3920 = vrot.slane %v3558, 5
    %v3921 = vsel %vm509, %v3919, %v3920
    %v3922 = vrot.slane %v3920, 4
    %v3923 = vrot.slane %v3559, 5
    %v3924 = vsel %vm509, %v3922, %v3923
    %v3925 = vrot.slane %v3887, 5
    %v3926 = vrot.slane %v3925, 4
    %v3927 = vrot.slane %v3561, 5
    %v3928 = vsel %vm509, %v3926, %v3927
    %v3929 = vrot.slane %v3927, 4
    %v3930 = vrot.slane %v3562, 5
    %v3931 = vsel %vm509, %v3929, %v3930
    %v3932 = vrot.slane %v3888, 5
    %v3933 = vrot.slane %v3932, 4
    %v3934 = vrot.slane %v3564, 5
    %v3935 = vsel %vm509, %v3933, %v3934
    %v3936 = vrot.slane %v3934, 4
    %v3937 = vrot.slane %v3565, 5
    %v3938 = vsel %vm509, %v3936, %v3937
    %v3939 = vrot.slane %v3889, 5
    %v3940 = vrot.slane %v3939, 4
    %v3941 = vrot.slane %v3567, 5
    %v3942 = vsel %vm509, %v3940, %v3941
    %v3943 = vrot.slane %v3941, 4
    %v3944 = vrot.slane %v3568, 5
    %v3945 = vsel %vm509, %v3943, %v3944
    %v3946 = vrot.slane %v3890, 5
    %v3947 = vrot.slane %v3946, 4
    %v3948 = vrot.slane %v3570, 5
    %v3949 = vsel %vm509, %v3947, %v3948
    %v3950 = vrot.slane %v3948, 4
    %v3951 = vrot.slane %v3571, 5
    %v3952 = vsel %vm509, %v3950, %v3951
    %v3953 = vrot.slane %v3891, 5
    %v3954 = vrot.slane %v3953, 4
    %v3955 = vrot.slane %v3573, 5
    %v3956 = vsel %vm509, %v3954, %v3955
    %v3957 = vrot.slane %v3955, 4
    %v3958 = vrot.slane %v3574, 5
    %v3959 = vsel %vm509, %v3957, %v3958
    %v3960 = vrot.slane %v3892, 5
    %v3961 = vrot.slane %v3960, 4
    %v3962 = vrot.slane %v3576, 5
    %v3963 = vsel %vm509, %v3961, %v3962
    %v3964 = vrot.slane %v3962, 4
    %v3965 = vrot.slane %v3577, 5
    %v3966 = vsel %vm509, %v3964, %v3965
    %v3967 = vrot.slane %v3893, 5
    %v3968 = vrot.slane %v3967, 4
    %v3969 = vrot.slane %v3579, 5
    %v3970 = vsel %vm509, %v3968, %v3969
    %v3971 = vrot.slane %v3969, 4
    %v3972 = vrot.slane %v3580, 5
    %v3973 = vsel %vm509, %v3971, %v3972
    %v3974 = vunpack.c.l.b16 %v3921
    %v3975 = vunpack.c.l.b16 %v3924
    %v3976 = vunpack.c.l.b16 %v3928
    %v3977 = vunpack.c.l.b16 %v3931
    %v3978 = vunpack.c.l.b16 %v3935
    %v3979 = vunpack.c.l.b16 %v3938
    %v3980 = vunpack.c.l.b16 %v3942
    %v3981 = vunpack.c.l.b16 %v3945
    %v3982 = vunpack.c.l.b16 %v3949
    %v3983 = vunpack.c.l.b16 %v3952
    %v3984 = vunpack.c.l.b16 %v3956
    %v3985 = vunpack.c.l.b16 %v3959
    %v3986 = vunpack.c.l.b16 %v3963
    %v3987 = vunpack.c.l.b16 %v3966
    %v3988 = vunpack.c.l.b16 %v3970
    %v3989 = vunpack.c.l.b16 %v3973
    %v3990 = vpack.c.b16 %v3975, %v3974
    %v3991 = vpack.c.b16 %v3977, %v3976
    %v3992 = vpack.c.b16 %v3979, %v3978
    %v3993 = vpack.c.b16 %v3981, %v3980
    %v3994 = vpack.c.b16 %v3983, %v3982
    %v3995 = vpack.c.b16 %v3985, %v3984
    %v3996 = vpack.c.b16 %v3987, %v3986
    %v3997 = vpack.c.b16 %v3989, %v3988
    %v3999 = vsel %vm289, %v3990, 0
    %v4002 = vsel %vm289, %v3991, 0
    %v4005 = vsel %vm289, %v3992, 0
    %v4008 = vsel %vm289, %v3993, 0
    %v4011 = vsel %vm289, %v3994, 0
    %v4014 = vsel %vm289, %v3995, 0
    %v4017 = vsel %vm289, %v3996, 0
    %v4020 = vsel %vm289, %v3997, 0
    %4022 = vmatpush.bf16.msra.mxu0 0
    %4023 = vmatpush.bf16.msra.mxu0 0
    %4024 = vmatpush.bf16.msra.mxu0 0
    %4025 = vmatpush.bf16.msra.mxu0 0
    %4026 = vmatpush.bf16.msra.mxu0 0
    %4027 = vmatpush.bf16.msra.mxu0 0
    %4028 = vmatpush.bf16.msra.mxu0 0
    %4029 = vmatpush.bf16.msra.mxu0 %v1985
    %4030 = vmatmul.bf16.gmra.mxu0 %v3999
    %v4031 = vpop.f32.mrf.mxu0
    %v4032 = vadd.f32 0.0, %v4031
    %v4033 = vpop.f32.mrf.mxu0
    %v4034 = vadd.f32 0.0, %v4033
    %4035 = vmatmul.bf16.gmra.mxu0 %v4002
    %v4036 = vpop.f32.mrf.mxu0
    %v4037 = vadd.f32 0.0, %v4036
    %v4038 = vpop.f32.mrf.mxu0
    %v4039 = vadd.f32 0.0, %v4038
    %4040 = vmatmul.bf16.gmra.mxu0 %v4005
    %v4041 = vpop.f32.mrf.mxu0
    %v4042 = vadd.f32 0.0, %v4041
    %v4043 = vpop.f32.mrf.mxu0
    %v4044 = vadd.f32 0.0, %v4043
    %4045 = vmatmul.bf16.gmra.mxu0 %v4008
    %v4046 = vpop.f32.mrf.mxu0
    %v4047 = vadd.f32 0.0, %v4046
    %v4048 = vpop.f32.mrf.mxu0
    %v4049 = vadd.f32 0.0, %v4048
    %4050 = vmatmul.bf16.gmra.mxu0 %v4011
    %v4051 = vpop.f32.mrf.mxu0
    %v4052 = vadd.f32 0.0, %v4051
    %v4053 = vpop.f32.mrf.mxu0
    %v4054 = vadd.f32 0.0, %v4053
    %4055 = vmatmul.bf16.gmra.mxu0 %v4014
    %v4056 = vpop.f32.mrf.mxu0
    %v4057 = vadd.f32 0.0, %v4056
    %v4058 = vpop.f32.mrf.mxu0
    %v4059 = vadd.f32 0.0, %v4058
    %4060 = vmatmul.bf16.gmra.mxu0 %v4017
    %v4061 = vpop.f32.mrf.mxu0
    %v4062 = vadd.f32 0.0, %v4061
    %v4063 = vpop.f32.mrf.mxu0
    %v4064 = vadd.f32 0.0, %v4063
    %4065 = vmatmul.bf16.gmra.mxu0 %v4020
    %v4066 = vpop.f32.mrf.mxu0
    %v4067 = vadd.f32 0.0, %v4066
    %v4068 = vpop.f32.mrf.mxu0
    %v4069 = vadd.f32 0.0, %v4068
    %4070 = vdwg.mxu0
    %v4071 = vadd.f32 %v3870, %v4032
    %v4072 = vadd.f32 %v3871, %v4034
    %v4073 = vadd.f32 %v3872, %v4037
    %v4074 = vadd.f32 %v3873, %v4039
    %v4075 = vadd.f32 %v3874, %v4042
    %v4076 = vadd.f32 %v3875, %v4044
    %v4077 = vadd.f32 %v3876, %v4047
    %v4078 = vadd.f32 %v3877, %v4049
    %v4079 = vadd.f32 %v3878, %v4052
    %v4080 = vadd.f32 %v3879, %v4054
    %v4081 = vadd.f32 %v3880, %v4057
    %v4082 = vadd.f32 %v3881, %v4059
    %v4083 = vadd.f32 %v3882, %v4062
    %v4084 = vadd.f32 %v3883, %v4064
    %v4085 = vadd.f32 %v3884, %v4067
    %v4086 = vadd.f32 %v3885, %v4069
    %v4087 = vadd.f32 %v4071, %v2053
    %v4088 = vadd.f32 %v4072, %v2053
    %v4089 = vadd.f32 %v4073, %v2053
    %v4090 = vadd.f32 %v4074, %v2053
    %v4091 = vadd.f32 %v4075, %v2053
    %v4092 = vadd.f32 %v4076, %v2053
    %v4093 = vadd.f32 %v4077, %v2053
    %v4094 = vadd.f32 %v4078, %v2053
    %v4095 = vadd.f32 %v4079, %v2053
    %v4096 = vadd.f32 %v4080, %v2053
    %v4097 = vadd.f32 %v4081, %v2053
    %v4098 = vadd.f32 %v4082, %v2053
    %v4099 = vadd.f32 %v4083, %v2053
    %v4100 = vadd.f32 %v4084, %v2053
    %v4101 = vadd.f32 %v4085, %v2053
    %v4102 = vadd.f32 %v4086, %v2053
    %v4103 = vmax.f32 %v4087, 0.0
    %v4104 = vmax.f32 %v4088, 0.0
    %v4105 = vmax.f32 %v4089, 0.0
    %v4106 = vmax.f32 %v4090, 0.0
    %v4107 = vmax.f32 %v4091, 0.0
    %v4108 = vmax.f32 %v4092, 0.0
    %v4109 = vmax.f32 %v4093, 0.0
    %v4110 = vmax.f32 %v4094, 0.0
    %v4111 = vmax.f32 %v4095, 0.0
    %v4112 = vmax.f32 %v4096, 0.0
    %v4113 = vmax.f32 %v4097, 0.0
    %v4114 = vmax.f32 %v4098, 0.0
    %v4115 = vmax.f32 %v4099, 0.0
    %v4116 = vmax.f32 %v4100, 0.0
    %v4117 = vmax.f32 %v4101, 0.0
    %v4118 = vmax.f32 %v4102, 0.0
    %v4119 = vadd.f32 %v4103, %v4104
    %v4120 = vadd.f32 %v4119, %v4105
    %v4121 = vadd.f32 %v4120, %v4106
    %v4122 = vadd.f32 %v4121, %v4107
    %v4123 = vadd.f32 %v4122, %v4108
    %v4124 = vadd.f32 %v4123, %v4109
    %v4125 = vadd.f32 %v4124, %v4110
    %v4126 = vrot.slane %v4125, 4
    %v4127 = vadd.f32 %v4125, %v4126
    %v4128 = vrot.slane %v4127, 2
    %v4129 = vadd.f32 %v4127, %v4128
    %v4130 = vrot.slane %v4129, 1
    %v4131 = vadd.f32 %v4129, %v4130
    %v4132 = vadd.f32 %v4111, %v4112
    %v4133 = vadd.f32 %v4132, %v4113
    %v4134 = vadd.f32 %v4133, %v4114
    %v4135 = vadd.f32 %v4134, %v4115
    %v4136 = vadd.f32 %v4135, %v4116
    %v4137 = vadd.f32 %v4136, %v4117
    %v4138 = vadd.f32 %v4137, %v4118
    %v4139 = vrot.slane %v4138, 4
    %v4140 = vadd.f32 %v4138, %v4139
    %v4141 = vrot.slane %v4140, 2
    %v4142 = vadd.f32 %v4140, %v4141
    %v4143 = vrot.slane %v4142, 1
    %v4144 = vadd.f32 %v4142, %v4143
    %v4145 = vadd.f32 %v2113, %v4131
    %v4146 = vadd.f32 %v2114, %v4144
    %s4147 = scalar_lea.vmem %s0, 96
    %v4148 = vld [vmem:[%s4147] sm:$0xf]
    %v4149 = vld [vmem:[%s4147 + $0x4] sm:$0xf]
    %v4150 = vld [vmem:[%s4147 + $0xc] sm:$0xf]
    %v4151 = vld [vmem:[%s4147 + $0x10] sm:$0xf]
    %v4152 = vld [vmem:[%s4147 + $0x18] sm:$0xf]
    %v4153 = vld [vmem:[%s4147 + $0x1c] sm:$0xf]
    %v4154 = vld [vmem:[%s4147 + $0x24] sm:$0xf]
    %v4155 = vld [vmem:[%s4147 + $0x28] sm:$0xf]
    %v4156 = vld [vmem:[%s4147 + $0xd8] sm:$0xf]
    %v4157 = vld [vmem:[%s4147 + $0xdc] sm:$0xf]
    %v4158 = vld [vmem:[%s4147 + $0xe4] sm:$0xf]
    %v4159 = vld [vmem:[%s4147 + $0xe8] sm:$0xf]
    %v4160 = vld [vmem:[%s4147 + $0xf0] sm:$0xf]
    %v4161 = vld [vmem:[%s4147 + $0xf4] sm:$0xf]
    %v4162 = vld [vmem:[%s4147 + $0xfc] sm:$0xf]
    %v4163 = vld [vmem:[%s4147 + $0x100] sm:$0xf]
    %v4164 = vld [vmem:[%s4147 + $0x8] sm:$0x1]
    %v4165 = vld [vmem:[%s4147 + $0x14] sm:$0x1]
    %v4166 = vld [vmem:[%s4147 + $0x20] sm:$0x1]
    %v4167 = vld [vmem:[%s4147 + $0x2c] sm:$0x1]
    %v4168 = vld [vmem:[%s4147 + $0xe0] sm:$0x1]
    %v4169 = vld [vmem:[%s4147 + $0xec] sm:$0x1]
    %v4170 = vld [vmem:[%s4147 + $0xf8] sm:$0x1]
    %v4171 = vld [vmem:[%s4147 + $0x104] sm:$0x1]
    %v4173 = vshrl.u32 %v4148, 16
    %v4175 = vrot.slane %v4173, 4
    %v4176 = vshll.u32 %v4148, 16
    %v4178 = vrot.slane %v4176, 5
    %v4179 = vor.u32 %v4175, %v4178
    %v4180 = vrot.slane %v4179, 4
    %v4182 = vshll.u32 %v4149, 16
    %v4184 = vrot.slane %v4182, 5
    %v4185 = vsel %vm72, %v4180, %v4184
    %v4186 = vshrl.u32 %v4149, 16
    %v4188 = vrot.slane %v4186, 4
    %v4189 = vor.u32 %v4188, %v4184
    %v4190 = vrot.slane %v4189, 4
    %v4192 = vshll.u32 %v4164, 16
    %v4194 = vrot.slane %v4192, 5
    %v4195 = vsel %vm72, %v4190, %v4194
    %v4197 = vshrl.u32 %v4150, 16
    %v4199 = vrot.slane %v4197, 4
    %v4200 = vshll.u32 %v4150, 16
    %v4202 = vrot.slane %v4200, 5
    %v4203 = vor.u32 %v4199, %v4202
    %v4204 = vrot.slane %v4203, 4
    %v4206 = vshll.u32 %v4151, 16
    %v4208 = vrot.slane %v4206, 5
    %v4209 = vsel %vm72, %v4204, %v4208
    %v4210 = vshrl.u32 %v4151, 16
    %v4212 = vrot.slane %v4210, 4
    %v4213 = vor.u32 %v4212, %v4208
    %v4214 = vrot.slane %v4213, 4
    %v4216 = vshll.u32 %v4165, 16
    %v4218 = vrot.slane %v4216, 5
    %v4219 = vsel %vm72, %v4214, %v4218
    %v4221 = vshrl.u32 %v4152, 16
    %v4223 = vrot.slane %v4221, 4
    %v4224 = vshll.u32 %v4152, 16
    %v4226 = vrot.slane %v4224, 5
    %v4227 = vor.u32 %v4223, %v4226
    %v4228 = vrot.slane %v4227, 4
    %v4230 = vshll.u32 %v4153, 16
    %v4232 = vrot.slane %v4230, 5
    %v4233 = vsel %vm72, %v4228, %v4232
    %v4234 = vshrl.u32 %v4153, 16
    %v4236 = vrot.slane %v4234, 4
    %v4237 = vor.u32 %v4236, %v4232
    %v4238 = vrot.slane %v4237, 4
    %v4240 = vshll.u32 %v4166, 16
    %v4242 = vrot.slane %v4240, 5
    %v4243 = vsel %vm72, %v4238, %v4242
    %v4245 = vshrl.u32 %v4154, 16
    %v4247 = vrot.slane %v4245, 4
    %v4248 = vshll.u32 %v4154, 16
    %v4250 = vrot.slane %v4248, 5
    %v4251 = vor.u32 %v4247, %v4250
    %v4252 = vrot.slane %v4251, 4
    %v4254 = vshll.u32 %v4155, 16
    %v4256 = vrot.slane %v4254, 5
    %v4257 = vsel %vm72, %v4252, %v4256
    %v4258 = vshrl.u32 %v4155, 16
    %v4260 = vrot.slane %v4258, 4
    %v4261 = vor.u32 %v4260, %v4256
    %v4262 = vrot.slane %v4261, 4
    %v4264 = vshll.u32 %v4167, 16
    %v4266 = vrot.slane %v4264, 5
    %v4267 = vsel %vm72, %v4262, %v4266
    %v4269 = vshrl.u32 %v4156, 16
    %v4271 = vrot.slane %v4269, 4
    %v4272 = vshll.u32 %v4156, 16
    %v4274 = vrot.slane %v4272, 5
    %v4275 = vor.u32 %v4271, %v4274
    %v4276 = vrot.slane %v4275, 4
    %v4278 = vshll.u32 %v4157, 16
    %v4280 = vrot.slane %v4278, 5
    %v4281 = vsel %vm72, %v4276, %v4280
    %v4282 = vshrl.u32 %v4157, 16
    %v4284 = vrot.slane %v4282, 4
    %v4285 = vor.u32 %v4284, %v4280
    %v4286 = vrot.slane %v4285, 4
    %v4288 = vshll.u32 %v4168, 16
    %v4290 = vrot.slane %v4288, 5
    %v4291 = vsel %vm72, %v4286, %v4290
    %v4293 = vshrl.u32 %v4158, 16
    %v4295 = vrot.slane %v4293, 4
    %v4296 = vshll.u32 %v4158, 16
    %v4298 = vrot.slane %v4296, 5
    %v4299 = vor.u32 %v4295, %v4298
    %v4300 = vrot.slane %v4299, 4
    %v4302 = vshll.u32 %v4159, 16
    %v4304 = vrot.slane %v4302, 5
    %v4305 = vsel %vm72, %v4300, %v4304
    %v4306 = vshrl.u32 %v4159, 16
    %v4308 = vrot.slane %v4306, 4
    %v4309 = vor.u32 %v4308, %v4304
    %v4310 = vrot.slane %v4309, 4
    %v4312 = vshll.u32 %v4169, 16
    %v4314 = vrot.slane %v4312, 5
    %v4315 = vsel %vm72, %v4310, %v4314
    %v4317 = vshrl.u32 %v4160, 16
    %v4319 = vrot.slane %v4317, 4
    %v4320 = vshll.u32 %v4160, 16
    %v4322 = vrot.slane %v4320, 5
    %v4323 = vor.u32 %v4319, %v4322
    %v4324 = vrot.slane %v4323, 4
    %v4326 = vshll.u32 %v4161, 16
    %v4328 = vrot.slane %v4326, 5
    %v4329 = vsel %vm72, %v4324, %v4328
    %v4330 = vshrl.u32 %v4161, 16
    %v4332 = vrot.slane %v4330, 4
    %v4333 = vor.u32 %v4332, %v4328
    %v4334 = vrot.slane %v4333, 4
    %v4336 = vshll.u32 %v4170, 16
    %v4338 = vrot.slane %v4336, 5
    %v4339 = vsel %vm72, %v4334, %v4338
    %v4341 = vshrl.u32 %v4162, 16
    %v4343 = vrot.slane %v4341, 4
    %v4344 = vshll.u32 %v4162, 16
    %v4346 = vrot.slane %v4344, 5
    %v4347 = vor.u32 %v4343, %v4346
    %v4348 = vrot.slane %v4347, 4
    %v4350 = vshll.u32 %v4163, 16
    %v4352 = vrot.slane %v4350, 5
    %v4353 = vsel %vm72, %v4348, %v4352
    %v4354 = vshrl.u32 %v4163, 16
    %v4356 = vrot.slane %v4354, 4
    %v4357 = vor.u32 %v4356, %v4352
    %v4358 = vrot.slane %v4357, 4
    %v4360 = vshll.u32 %v4171, 16
    %v4362 = vrot.slane %v4360, 5
    %v4363 = vsel %vm72, %v4358, %v4362
    %v4364 = vunpack.c.l.b16 %v4185
    %v4365 = vunpack.c.l.b16 %v4195
    %v4366 = vunpack.c.l.b16 %v4209
    %v4367 = vunpack.c.l.b16 %v4219
    %v4368 = vunpack.c.l.b16 %v4233
    %v4369 = vunpack.c.l.b16 %v4243
    %v4370 = vunpack.c.l.b16 %v4257
    %v4371 = vunpack.c.l.b16 %v4267
    %v4372 = vunpack.c.l.b16 %v4281
    %v4373 = vunpack.c.l.b16 %v4291
    %v4374 = vunpack.c.l.b16 %v4305
    %v4375 = vunpack.c.l.b16 %v4315
    %v4376 = vunpack.c.l.b16 %v4329
    %v4377 = vunpack.c.l.b16 %v4339
    %v4378 = vunpack.c.l.b16 %v4353
    %v4379 = vunpack.c.l.b16 %v4363
    %v4380 = vpack.c.b16 %v4365, %v4364
    %v4381 = vpack.c.b16 %v4367, %v4366
    %v4382 = vpack.c.b16 %v4369, %v4368
    %v4383 = vpack.c.b16 %v4371, %v4370
    %v4384 = vpack.c.b16 %v4373, %v4372
    %v4385 = vpack.c.b16 %v4375, %v4374
    %v4386 = vpack.c.b16 %v4377, %v4376
    %v4387 = vpack.c.b16 %v4379, %v4378
    %v4389 = vsel %vm289, %v4380, 0
    %v4392 = vsel %vm289, %v4381, 0
    %v4395 = vsel %vm289, %v4382, 0
    %v4398 = vsel %vm289, %v4383, 0
    %v4401 = vsel %vm289, %v4384, 0
    %v4404 = vsel %vm289, %v4385, 0
    %v4407 = vsel %vm289, %v4386, 0
    %v4410 = vsel %vm289, %v4387, 0
    %4412 = vmatpush.bf16.msra.mxu0 0
    %4413 = vmatpush.bf16.msra.mxu0 0
    %4414 = vmatpush.bf16.msra.mxu0 0
    %4415 = vmatpush.bf16.msra.mxu0 0
    %4416 = vmatpush.bf16.msra.mxu0 0
    %4417 = vmatpush.bf16.msra.mxu0 0
    %4418 = vmatpush.bf16.msra.mxu0 0
    %4419 = vmatpush.bf16.msra.mxu0 %v316
    %4420 = vmatmul.bf16.gmra.mxu0 %v4389
    %v4421 = vpop.f32.mrf.mxu0
    %v4422 = vadd.f32 0.0, %v4421
    %v4423 = vpop.f32.mrf.mxu0
    %v4424 = vadd.f32 0.0, %v4423
    %4425 = vmatmul.bf16.gmra.mxu0 %v4392
    %v4426 = vpop.f32.mrf.mxu0
    %v4427 = vadd.f32 0.0, %v4426
    %v4428 = vpop.f32.mrf.mxu0
    %v4429 = vadd.f32 0.0, %v4428
    %4430 = vmatmul.bf16.gmra.mxu0 %v4395
    %v4431 = vpop.f32.mrf.mxu0
    %v4432 = vadd.f32 0.0, %v4431
    %v4433 = vpop.f32.mrf.mxu0
    %v4434 = vadd.f32 0.0, %v4433
    %4435 = vmatmul.bf16.gmra.mxu0 %v4398
    %v4436 = vpop.f32.mrf.mxu0
    %v4437 = vadd.f32 0.0, %v4436
    %v4438 = vpop.f32.mrf.mxu0
    %v4439 = vadd.f32 0.0, %v4438
    %4440 = vmatmul.bf16.gmra.mxu0 %v4401
    %v4441 = vpop.f32.mrf.mxu0
    %v4442 = vadd.f32 0.0, %v4441
    %v4443 = vpop.f32.mrf.mxu0
    %v4444 = vadd.f32 0.0, %v4443
    %4445 = vmatmul.bf16.gmra.mxu0 %v4404
    %v4446 = vpop.f32.mrf.mxu0
    %v4447 = vadd.f32 0.0, %v4446
    %v4448 = vpop.f32.mrf.mxu0
    %v4449 = vadd.f32 0.0, %v4448
    %4450 = vmatmul.bf16.gmra.mxu0 %v4407
    %v4451 = vpop.f32.mrf.mxu0
    %v4452 = vadd.f32 0.0, %v4451
    %v4453 = vpop.f32.mrf.mxu0
    %v4454 = vadd.f32 0.0, %v4453
    %4455 = vmatmul.bf16.gmra.mxu0 %v4410
    %v4456 = vpop.f32.mrf.mxu0
    %v4457 = vadd.f32 0.0, %v4456
    %v4458 = vpop.f32.mrf.mxu0
    %v4459 = vadd.f32 0.0, %v4458
    %4460 = vdwg.mxu0
    %v4477 = vunpack.c.l.b16 %v4148
    %v4478 = vunpack.c.l.b16 %v4149
    %v4479 = vunpack.c.l.b16 %v4150
    %v4480 = vunpack.c.l.b16 %v4151
    %v4481 = vunpack.c.l.b16 %v4152
    %v4482 = vunpack.c.l.b16 %v4153
    %v4483 = vunpack.c.l.b16 %v4154
    %v4484 = vunpack.c.l.b16 %v4155
    %v4485 = vunpack.c.l.b16 %v4156
    %v4486 = vunpack.c.l.b16 %v4157
    %v4487 = vunpack.c.l.b16 %v4158
    %v4488 = vunpack.c.l.b16 %v4159
    %v4489 = vunpack.c.l.b16 %v4160
    %v4490 = vunpack.c.l.b16 %v4161
    %v4491 = vunpack.c.l.b16 %v4162
    %v4492 = vunpack.c.l.b16 %v4163
    %v4493 = vpack.c.b16 %v4478, %v4477
    %v4494 = vpack.c.b16 %v4480, %v4479
    %v4495 = vpack.c.b16 %v4482, %v4481
    %v4496 = vpack.c.b16 %v4484, %v4483
    %v4497 = vpack.c.b16 %v4486, %v4485
    %v4498 = vpack.c.b16 %v4488, %v4487
    %v4499 = vpack.c.b16 %v4490, %v4489
    %v4500 = vpack.c.b16 %v4492, %v4491
    %v4502 = vsel %vm289, %v4493, 0
    %v4505 = vsel %vm289, %v4494, 0
    %v4508 = vsel %vm289, %v4495, 0
    %v4511 = vsel %vm289, %v4496, 0
    %v4514 = vsel %vm289, %v4497, 0
    %v4517 = vsel %vm289, %v4498, 0
    %v4520 = vsel %vm289, %v4499, 0
    %v4523 = vsel %vm289, %v4500, 0
    %4525 = vmatpush.bf16.msra.mxu0 0
    %4526 = vmatpush.bf16.msra.mxu0 0
    %4527 = vmatpush.bf16.msra.mxu0 0
    %4528 = vmatpush.bf16.msra.mxu0 0
    %4529 = vmatpush.bf16.msra.mxu0 0
    %4530 = vmatpush.bf16.msra.mxu0 0
    %4531 = vmatpush.bf16.msra.mxu0 0
    %4532 = vmatpush.bf16.msra.mxu0 %v432
    %4533 = vmatmul.bf16.gmra.mxu0 %v4502
    %v4534 = vpop.f32.mrf.mxu0
    %v4535 = vadd.f32 %v4422, %v4534
    %v4536 = vpop.f32.mrf.mxu0
    %v4537 = vadd.f32 %v4424, %v4536
    %4538 = vmatmul.bf16.gmra.mxu0 %v4505
    %v4539 = vpop.f32.mrf.mxu0
    %v4540 = vadd.f32 %v4427, %v4539
    %v4541 = vpop.f32.mrf.mxu0
    %v4542 = vadd.f32 %v4429, %v4541
    %4543 = vmatmul.bf16.gmra.mxu0 %v4508
    %v4544 = vpop.f32.mrf.mxu0
    %v4545 = vadd.f32 %v4432, %v4544
    %v4546 = vpop.f32.mrf.mxu0
    %v4547 = vadd.f32 %v4434, %v4546
    %4548 = vmatmul.bf16.gmra.mxu0 %v4511
    %v4549 = vpop.f32.mrf.mxu0
    %v4550 = vadd.f32 %v4437, %v4549
    %v4551 = vpop.f32.mrf.mxu0
    %v4552 = vadd.f32 %v4439, %v4551
    %4553 = vmatmul.bf16.gmra.mxu0 %v4514
    %v4554 = vpop.f32.mrf.mxu0
    %v4555 = vadd.f32 %v4442, %v4554
    %v4556 = vpop.f32.mrf.mxu0
    %v4557 = vadd.f32 %v4444, %v4556
    %4558 = vmatmul.bf16.gmra.mxu0 %v4517
    %v4559 = vpop.f32.mrf.mxu0
    %v4560 = vadd.f32 %v4447, %v4559
    %v4561 = vpop.f32.mrf.mxu0
    %v4562 = vadd.f32 %v4449, %v4561
    %4563 = vmatmul.bf16.gmra.mxu0 %v4520
    %v4564 = vpop.f32.mrf.mxu0
    %v4565 = vadd.f32 %v4452, %v4564
    %v4566 = vpop.f32.mrf.mxu0
    %v4567 = vadd.f32 %v4454, %v4566
    %4568 = vmatmul.bf16.gmra.mxu0 %v4523
    %v4569 = vpop.f32.mrf.mxu0
    %v4570 = vadd.f32 %v4457, %v4569
    %v4571 = vpop.f32.mrf.mxu0
    %v4572 = vadd.f32 %v4459, %v4571
    %4573 = vdwg.mxu0
    %v4574 = vld [vmem:[%s4147] sm:$0xe]
    %v4575 = vld [vmem:[%s4147 + $0xc] sm:$0xe]
    %v4576 = vld [vmem:[%s4147 + $0x18] sm:$0xe]
    %v4577 = vld [vmem:[%s4147 + $0x24] sm:$0xe]
    %v4578 = vld [vmem:[%s4147 + $0xd8] sm:$0xe]
    %v4579 = vld [vmem:[%s4147 + $0xe4] sm:$0xe]
    %v4580 = vld [vmem:[%s4147 + $0xf0] sm:$0xe]
    %v4581 = vld [vmem:[%s4147 + $0xfc] sm:$0xe]
    %v4598 = vrot.slane %v4574, 5
    %v4599 = vrot.slane %v4598, 4
    %v4600 = vrot.slane %v4149, 5
    %v4601 = vsel %vm509, %v4599, %v4600
    %v4602 = vrot.slane %v4600, 4
    %v4603 = vrot.slane %v4164, 5
    %v4604 = vsel %vm509, %v4602, %v4603
    %v4605 = vrot.slane %v4575, 5
    %v4606 = vrot.slane %v4605, 4
    %v4607 = vrot.slane %v4151, 5
    %v4608 = vsel %vm509, %v4606, %v4607
    %v4609 = vrot.slane %v4607, 4
    %v4610 = vrot.slane %v4165, 5
    %v4611 = vsel %vm509, %v4609, %v4610
    %v4612 = vrot.slane %v4576, 5
    %v4613 = vrot.slane %v4612, 4
    %v4614 = vrot.slane %v4153, 5
    %v4615 = vsel %vm509, %v4613, %v4614
    %v4616 = vrot.slane %v4614, 4
    %v4617 = vrot.slane %v4166, 5
    %v4618 = vsel %vm509, %v4616, %v4617
    %v4619 = vrot.slane %v4577, 5
    %v4620 = vrot.slane %v4619, 4
    %v4621 = vrot.slane %v4155, 5
    %v4622 = vsel %vm509, %v4620, %v4621
    %v4623 = vrot.slane %v4621, 4
    %v4624 = vrot.slane %v4167, 5
    %v4625 = vsel %vm509, %v4623, %v4624
    %v4626 = vrot.slane %v4578, 5
    %v4627 = vrot.slane %v4626, 4
    %v4628 = vrot.slane %v4157, 5
    %v4629 = vsel %vm509, %v4627, %v4628
    %v4630 = vrot.slane %v4628, 4
    %v4631 = vrot.slane %v4168, 5
    %v4632 = vsel %vm509, %v4630, %v4631
    %v4633 = vrot.slane %v4579, 5
    %v4634 = vrot.slane %v4633, 4
    %v4635 = vrot.slane %v4159, 5
    %v4636 = vsel %vm509, %v4634, %v4635
    %v4637 = vrot.slane %v4635, 4
    %v4638 = vrot.slane %v4169, 5
    %v4639 = vsel %vm509, %v4637, %v4638
    %v4640 = vrot.slane %v4580, 5
    %v4641 = vrot.slane %v4640, 4
    %v4642 = vrot.slane %v4161, 5
    %v4643 = vsel %vm509, %v4641, %v4642
    %v4644 = vrot.slane %v4642, 4
    %v4645 = vrot.slane %v4170, 5
    %v4646 = vsel %vm509, %v4644, %v4645
    %v4647 = vrot.slane %v4581, 5
    %v4648 = vrot.slane %v4647, 4
    %v4649 = vrot.slane %v4163, 5
    %v4650 = vsel %vm509, %v4648, %v4649
    %v4651 = vrot.slane %v4649, 4
    %v4652 = vrot.slane %v4171, 5
    %v4653 = vsel %vm509, %v4651, %v4652
    %v4654 = vunpack.c.l.b16 %v4601
    %v4655 = vunpack.c.l.b16 %v4604
    %v4656 = vunpack.c.l.b16 %v4608
    %v4657 = vunpack.c.l.b16 %v4611
    %v4658 = vunpack.c.l.b16 %v4615
    %v4659 = vunpack.c.l.b16 %v4618
    %v4660 = vunpack.c.l.b16 %v4622
    %v4661 = vunpack.c.l.b16 %v4625
    %v4662 = vunpack.c.l.b16 %v4629
    %v4663 = vunpack.c.l.b16 %v4632
    %v4664 = vunpack.c.l.b16 %v4636
    %v4665 = vunpack.c.l.b16 %v4639
    %v4666 = vunpack.c.l.b16 %v4643
    %v4667 = vunpack.c.l.b16 %v4646
    %v4668 = vunpack.c.l.b16 %v4650
    %v4669 = vunpack.c.l.b16 %v4653
    %v4670 = vpack.c.b16 %v4655, %v4654
    %v4671 = vpack.c.b16 %v4657, %v4656
    %v4672 = vpack.c.b16 %v4659, %v4658
    %v4673 = vpack.c.b16 %v4661, %v4660
    %v4674 = vpack.c.b16 %v4663, %v4662
    %v4675 = vpack.c.b16 %v4665, %v4664
    %v4676 = vpack.c.b16 %v4667, %v4666
    %v4677 = vpack.c.b16 %v4669, %v4668
    %v4679 = vsel %vm289, %v4670, 0
    %v4682 = vsel %vm289, %v4671, 0
    %v4685 = vsel %vm289, %v4672, 0
    %v4688 = vsel %vm289, %v4673, 0
    %v4691 = vsel %vm289, %v4674, 0
    %v4694 = vsel %vm289, %v4675, 0
    %v4697 = vsel %vm289, %v4676, 0
    %v4700 = vsel %vm289, %v4677, 0
    %4702 = vmatpush.bf16.msra.mxu0 0
    %4703 = vmatpush.bf16.msra.mxu0 0
    %4704 = vmatpush.bf16.msra.mxu0 0
    %4705 = vmatpush.bf16.msra.mxu0 0
    %4706 = vmatpush.bf16.msra.mxu0 0
    %4707 = vmatpush.bf16.msra.mxu0 0
    %4708 = vmatpush.bf16.msra.mxu0 0
    %4709 = vmatpush.bf16.msra.mxu0 %v615
    %4710 = vmatmul.bf16.gmra.mxu0 %v4679
    %v4711 = vpop.f32.mrf.mxu0
    %v4712 = vadd.f32 0.0, %v4711
    %v4713 = vpop.f32.mrf.mxu0
    %v4714 = vadd.f32 0.0, %v4713
    %4715 = vmatmul.bf16.gmra.mxu0 %v4682
    %v4716 = vpop.f32.mrf.mxu0
    %v4717 = vadd.f32 0.0, %v4716
    %v4718 = vpop.f32.mrf.mxu0
    %v4719 = vadd.f32 0.0, %v4718
    %4720 = vmatmul.bf16.gmra.mxu0 %v4685
    %v4721 = vpop.f32.mrf.mxu0
    %v4722 = vadd.f32 0.0, %v4721
    %v4723 = vpop.f32.mrf.mxu0
    %v4724 = vadd.f32 0.0, %v4723
    %4725 = vmatmul.bf16.gmra.mxu0 %v4688
    %v4726 = vpop.f32.mrf.mxu0
    %v4727 = vadd.f32 0.0, %v4726
    %v4728 = vpop.f32.mrf.mxu0
    %v4729 = vadd.f32 0.0, %v4728
    %4730 = vmatmul.bf16.gmra.mxu0 %v4691
    %v4731 = vpop.f32.mrf.mxu0
    %v4732 = vadd.f32 0.0, %v4731
    %v4733 = vpop.f32.mrf.mxu0
    %v4734 = vadd.f32 0.0, %v4733
    %4735 = vmatmul.bf16.gmra.mxu0 %v4694
    %v4736 = vpop.f32.mrf.mxu0
    %v4737 = vadd.f32 0.0, %v4736
    %v4738 = vpop.f32.mrf.mxu0
    %v4739 = vadd.f32 0.0, %v4738
    %4740 = vmatmul.bf16.gmra.mxu0 %v4697
    %v4741 = vpop.f32.mrf.mxu0
    %v4742 = vadd.f32 0.0, %v4741
    %v4743 = vpop.f32.mrf.mxu0
    %v4744 = vadd.f32 0.0, %v4743
    %4745 = vmatmul.bf16.gmra.mxu0 %v4700
    %v4746 = vpop.f32.mrf.mxu0
    %v4747 = vadd.f32 0.0, %v4746
    %v4748 = vpop.f32.mrf.mxu0
    %v4749 = vadd.f32 0.0, %v4748
    %4750 = vdwg.mxu0
    %v4751 = vadd.f32 %v4535, %v4712
    %v4752 = vadd.f32 %v4537, %v4714
    %v4753 = vadd.f32 %v4540, %v4717
    %v4754 = vadd.f32 %v4542, %v4719
    %v4755 = vadd.f32 %v4545, %v4722
    %v4756 = vadd.f32 %v4547, %v4724
    %v4757 = vadd.f32 %v4550, %v4727
    %v4758 = vadd.f32 %v4552, %v4729
    %v4759 = vadd.f32 %v4555, %v4732
    %v4760 = vadd.f32 %v4557, %v4734
    %v4761 = vadd.f32 %v4560, %v4737
    %v4762 = vadd.f32 %v4562, %v4739
    %v4763 = vadd.f32 %v4565, %v4742
    %v4764 = vadd.f32 %v4567, %v4744
    %v4765 = vadd.f32 %v4570, %v4747
    %v4766 = vadd.f32 %v4572, %v4749
    %s4767 = scalar_lea.vmem %s0, 108
    %v4768 = vld [vmem:[%s4767] sm:$0xf]
    %v4769 = vld [vmem:[%s4767 + $0x4] sm:$0xf]
    %v4770 = vld [vmem:[%s4767 + $0xc] sm:$0xf]
    %v4771 = vld [vmem:[%s4767 + $0x10] sm:$0xf]
    %v4772 = vld [vmem:[%s4767 + $0x18] sm:$0xf]
    %v4773 = vld [vmem:[%s4767 + $0x1c] sm:$0xf]
    %v4774 = vld [vmem:[%s4767 + $0x24] sm:$0xf]
    %v4775 = vld [vmem:[%s4767 + $0x28] sm:$0xf]
    %v4776 = vld [vmem:[%s4767 + $0xd8] sm:$0xf]
    %v4777 = vld [vmem:[%s4767 + $0xdc] sm:$0xf]
    %v4778 = vld [vmem:[%s4767 + $0xe4] sm:$0xf]
    %v4779 = vld [vmem:[%s4767 + $0xe8] sm:$0xf]
    %v4780 = vld [vmem:[%s4767 + $0xf0] sm:$0xf]
    %v4781 = vld [vmem:[%s4767 + $0xf4] sm:$0xf]
    %v4782 = vld [vmem:[%s4767 + $0xfc] sm:$0xf]
    %v4783 = vld [vmem:[%s4767 + $0x100] sm:$0xf]
    %v4800 = vunpack.c.l.b16 %v4768
    %v4801 = vunpack.c.l.b16 %v4769
    %v4802 = vunpack.c.l.b16 %v4770
    %v4803 = vunpack.c.l.b16 %v4771
    %v4804 = vunpack.c.l.b16 %v4772
    %v4805 = vunpack.c.l.b16 %v4773
    %v4806 = vunpack.c.l.b16 %v4774
    %v4807 = vunpack.c.l.b16 %v4775
    %v4808 = vunpack.c.l.b16 %v4776
    %v4809 = vunpack.c.l.b16 %v4777
    %v4810 = vunpack.c.l.b16 %v4778
    %v4811 = vunpack.c.l.b16 %v4779
    %v4812 = vunpack.c.l.b16 %v4780
    %v4813 = vunpack.c.l.b16 %v4781
    %v4814 = vunpack.c.l.b16 %v4782
    %v4815 = vunpack.c.l.b16 %v4783
    %v4816 = vpack.c.b16 %v4801, %v4800
    %v4817 = vpack.c.b16 %v4803, %v4802
    %v4818 = vpack.c.b16 %v4805, %v4804
    %v4819 = vpack.c.b16 %v4807, %v4806
    %v4820 = vpack.c.b16 %v4809, %v4808
    %v4821 = vpack.c.b16 %v4811, %v4810
    %v4822 = vpack.c.b16 %v4813, %v4812
    %v4823 = vpack.c.b16 %v4815, %v4814
    %v4825 = vsel %vm289, %v4816, 0
    %v4828 = vsel %vm289, %v4817, 0
    %v4831 = vsel %vm289, %v4818, 0
    %v4834 = vsel %vm289, %v4819, 0
    %v4837 = vsel %vm289, %v4820, 0
    %v4840 = vsel %vm289, %v4821, 0
    %v4843 = vsel %vm289, %v4822, 0
    %v4846 = vsel %vm289, %v4823, 0
    %4848 = vmatpush.bf16.msra.mxu0 0
    %4849 = vmatpush.bf16.msra.mxu0 0
    %4850 = vmatpush.bf16.msra.mxu0 0
    %4851 = vmatpush.bf16.msra.mxu0 0
    %4852 = vmatpush.bf16.msra.mxu0 0
    %4853 = vmatpush.bf16.msra.mxu0 0
    %4854 = vmatpush.bf16.msra.mxu0 0
    %4855 = vmatpush.bf16.msra.mxu0 %v764
    %4856 = vmatmul.bf16.gmra.mxu0 %v4825
    %v4857 = vpop.f32.mrf.mxu0
    %v4858 = vadd.f32 0.0, %v4857
    %v4859 = vpop.f32.mrf.mxu0
    %v4860 = vadd.f32 0.0, %v4859
    %4861 = vmatmul.bf16.gmra.mxu0 %v4828
    %v4862 = vpop.f32.mrf.mxu0
    %v4863 = vadd.f32 0.0, %v4862
    %v4864 = vpop.f32.mrf.mxu0
    %v4865 = vadd.f32 0.0, %v4864
    %4866 = vmatmul.bf16.gmra.mxu0 %v4831
    %v4867 = vpop.f32.mrf.mxu0
    %v4868 = vadd.f32 0.0, %v4867
    %v4869 = vpop.f32.mrf.mxu0
    %v4870 = vadd.f32 0.0, %v4869
    %4871 = vmatmul.bf16.gmra.mxu0 %v4834
    %v4872 = vpop.f32.mrf.mxu0
    %v4873 = vadd.f32 0.0, %v4872
    %v4874 = vpop.f32.mrf.mxu0
    %v4875 = vadd.f32 0.0, %v4874
    %4876 = vmatmul.bf16.gmra.mxu0 %v4837
    %v4877 = vpop.f32.mrf.mxu0
    %v4878 = vadd.f32 0.0, %v4877
    %v4879 = vpop.f32.mrf.mxu0
    %v4880 = vadd.f32 0.0, %v4879
    %4881 = vmatmul.bf16.gmra.mxu0 %v4840
    %v4882 = vpop.f32.mrf.mxu0
    %v4883 = vadd.f32 0.0, %v4882
    %v4884 = vpop.f32.mrf.mxu0
    %v4885 = vadd.f32 0.0, %v4884
    %4886 = vmatmul.bf16.gmra.mxu0 %v4843
    %v4887 = vpop.f32.mrf.mxu0
    %v4888 = vadd.f32 0.0, %v4887
    %v4889 = vpop.f32.mrf.mxu0
    %v4890 = vadd.f32 0.0, %v4889
    %4891 = vmatmul.bf16.gmra.mxu0 %v4846
    %v4892 = vpop.f32.mrf.mxu0
    %v4893 = vadd.f32 0.0, %v4892
    %v4894 = vpop.f32.mrf.mxu0
    %v4895 = vadd.f32 0.0, %v4894
    %4896 = vdwg.mxu0
    %v4897 = vadd.f32 %v4751, %v4858
    %v4898 = vadd.f32 %v4752, %v4860
    %v4899 = vadd.f32 %v4753, %v4863
    %v4900 = vadd.f32 %v4754, %v4865
    %v4901 = vadd.f32 %v4755, %v4868
    %v4902 = vadd.f32 %v4756, %v4870
    %v4903 = vadd.f32 %v4757, %v4873
    %v4904 = vadd.f32 %v4758, %v4875
    %v4905 = vadd.f32 %v4759, %v4878
    %v4906 = vadd.f32 %v4760, %v4880
    %v4907 = vadd.f32 %v4761, %v4883
    %v4908 = vadd.f32 %v4762, %v4885
    %v4909 = vadd.f32 %v4763, %v4888
    %v4910 = vadd.f32 %v4764, %v4890
    %v4911 = vadd.f32 %v4765, %v4893
    %v4912 = vadd.f32 %v4766, %v4895
    %v4913 = vld [vmem:[%s4767] sm:$0xf]
    %v4914 = vld [vmem:[%s4767 + $0x4] sm:$0xf]
    %v4915 = vld [vmem:[%s4767 + $0x8] sm:$0x1]
    %v4916 = vld [vmem:[%s4767 + $0xc] sm:$0xf]
    %v4917 = vld [vmem:[%s4767 + $0x10] sm:$0xf]
    %v4918 = vld [vmem:[%s4767 + $0x14] sm:$0x1]
    %v4919 = vld [vmem:[%s4767 + $0x18] sm:$0xf]
    %v4920 = vld [vmem:[%s4767 + $0x1c] sm:$0xf]
    %v4921 = vld [vmem:[%s4767 + $0x20] sm:$0x1]
    %v4922 = vld [vmem:[%s4767 + $0x24] sm:$0xf]
    %v4923 = vld [vmem:[%s4767 + $0x28] sm:$0xf]
    %v4924 = vld [vmem:[%s4767 + $0x2c] sm:$0x1]
    %v4925 = vld [vmem:[%s4767 + $0xd8] sm:$0xf]
    %v4926 = vld [vmem:[%s4767 + $0xdc] sm:$0xf]
    %v4927 = vld [vmem:[%s4767 + $0xe0] sm:$0x1]
    %v4928 = vld [vmem:[%s4767 + $0xe4] sm:$0xf]
    %v4929 = vld [vmem:[%s4767 + $0xe8] sm:$0xf]
    %v4930 = vld [vmem:[%s4767 + $0xec] sm:$0x1]
    %v4931 = vld [vmem:[%s4767 + $0xf0] sm:$0xf]
    %v4932 = vld [vmem:[%s4767 + $0xf4] sm:$0xf]
    %v4933 = vld [vmem:[%s4767 + $0xf8] sm:$0x1]
    %v4934 = vld [vmem:[%s4767 + $0xfc] sm:$0xf]
    %v4935 = vld [vmem:[%s4767 + $0x100] sm:$0xf]
    %v4936 = vld [vmem:[%s4767 + $0x104] sm:$0x1]
    %v4938 = vshrl.u32 %v4913, 16
    %v4940 = vrot.slane %v4938, 4
    %v4941 = vshll.u32 %v4913, 16
    %v4943 = vrot.slane %v4941, 5
    %v4944 = vor.u32 %v4940, %v4943
    %v4945 = vrot.slane %v4944, 4
    %v4947 = vshll.u32 %v4914, 16
    %v4949 = vrot.slane %v4947, 5
    %v4950 = vsel %vm72, %v4945, %v4949
    %v4951 = vshrl.u32 %v4914, 16
    %v4953 = vrot.slane %v4951, 4
    %v4954 = vor.u32 %v4953, %v4949
    %v4955 = vrot.slane %v4954, 4
    %v4957 = vshll.u32 %v4915, 16
    %v4959 = vrot.slane %v4957, 5
    %v4960 = vsel %vm72, %v4955, %v4959
    %v4962 = vshrl.u32 %v4916, 16
    %v4964 = vrot.slane %v4962, 4
    %v4965 = vshll.u32 %v4916, 16
    %v4967 = vrot.slane %v4965, 5
    %v4968 = vor.u32 %v4964, %v4967
    %v4969 = vrot.slane %v4968, 4
    %v4971 = vshll.u32 %v4917, 16
    %v4973 = vrot.slane %v4971, 5
    %v4974 = vsel %vm72, %v4969, %v4973
    %v4975 = vshrl.u32 %v4917, 16
    %v4977 = vrot.slane %v4975, 4
    %v4978 = vor.u32 %v4977, %v4973
    %v4979 = vrot.slane %v4978, 4
    %v4981 = vshll.u32 %v4918, 16
    %v4983 = vrot.slane %v4981, 5
    %v4984 = vsel %vm72, %v4979, %v4983
    %v4986 = vshrl.u32 %v4919, 16
    %v4988 = vrot.slane %v4986, 4
    %v4989 = vshll.u32 %v4919, 16
    %v4991 = vrot.slane %v4989, 5
    %v4992 = vor.u32 %v4988, %v4991
    %v4993 = vrot.slane %v4992, 4
    %v4995 = vshll.u32 %v4920, 16
    %v4997 = vrot.slane %v4995, 5
    %v4998 = vsel %vm72, %v4993, %v4997
    %v4999 = vshrl.u32 %v4920, 16
    %v5001 = vrot.slane %v4999, 4
    %v5002 = vor.u32 %v5001, %v4997
    %v5003 = vrot.slane %v5002, 4
    %v5005 = vshll.u32 %v4921, 16
    %v5007 = vrot.slane %v5005, 5
    %v5008 = vsel %vm72, %v5003, %v5007
    %v5010 = vshrl.u32 %v4922, 16
    %v5012 = vrot.slane %v5010, 4
    %v5013 = vshll.u32 %v4922, 16
    %v5015 = vrot.slane %v5013, 5
    %v5016 = vor.u32 %v5012, %v5015
    %v5017 = vrot.slane %v5016, 4
    %v5019 = vshll.u32 %v4923, 16
    %v5021 = vrot.slane %v5019, 5
    %v5022 = vsel %vm72, %v5017, %v5021
    %v5023 = vshrl.u32 %v4923, 16
    %v5025 = vrot.slane %v5023, 4
    %v5026 = vor.u32 %v5025, %v5021
    %v5027 = vrot.slane %v5026, 4
    %v5029 = vshll.u32 %v4924, 16
    %v5031 = vrot.slane %v5029, 5
    %v5032 = vsel %vm72, %v5027, %v5031
    %v5034 = vshrl.u32 %v4925, 16
    %v5036 = vrot.slane %v5034, 4
    %v5037 = vshll.u32 %v4925, 16
    %v5039 = vrot.slane %v5037, 5
    %v5040 = vor.u32 %v5036, %v5039
    %v5041 = vrot.slane %v5040, 4
    %v5043 = vshll.u32 %v4926, 16
    %v5045 = vrot.slane %v5043, 5
    %v5046 = vsel %vm72, %v5041, %v5045
    %v5047 = vshrl.u32 %v4926, 16
    %v5049 = vrot.slane %v5047, 4
    %v5050 = vor.u32 %v5049, %v5045
    %v5051 = vrot.slane %v5050, 4
    %v5053 = vshll.u32 %v4927, 16
    %v5055 = vrot.slane %v5053, 5
    %v5056 = vsel %vm72, %v5051, %v5055
    %v5058 = vshrl.u32 %v4928, 16
    %v5060 = vrot.slane %v5058, 4
    %v5061 = vshll.u32 %v4928, 16
    %v5063 = vrot.slane %v5061, 5
    %v5064 = vor.u32 %v5060, %v5063
    %v5065 = vrot.slane %v5064, 4
    %v5067 = vshll.u32 %v4929, 16
    %v5069 = vrot.slane %v5067, 5
    %v5070 = vsel %vm72, %v5065, %v5069
    %v5071 = vshrl.u32 %v4929, 16
    %v5073 = vrot.slane %v5071, 4
    %v5074 = vor.u32 %v5073, %v5069
    %v5075 = vrot.slane %v5074, 4
    %v5077 = vshll.u32 %v4930, 16
    %v5079 = vrot.slane %v5077, 5
    %v5080 = vsel %vm72, %v5075, %v5079
    %v5082 = vshrl.u32 %v4931, 16
    %v5084 = vrot.slane %v5082, 4
    %v5085 = vshll.u32 %v4931, 16
    %v5087 = vrot.slane %v5085, 5
    %v5088 = vor.u32 %v5084, %v5087
    %v5089 = vrot.slane %v5088, 4
    %v5091 = vshll.u32 %v4932, 16
    %v5093 = vrot.slane %v5091, 5
    %v5094 = vsel %vm72, %v5089, %v5093
    %v5095 = vshrl.u32 %v4932, 16
    %v5097 = vrot.slane %v5095, 4
    %v5098 = vor.u32 %v5097, %v5093
    %v5099 = vrot.slane %v5098, 4
    %v5101 = vshll.u32 %v4933, 16
    %v5103 = vrot.slane %v5101, 5
    %v5104 = vsel %vm72, %v5099, %v5103
    %v5106 = vshrl.u32 %v4934, 16
    %v5108 = vrot.slane %v5106, 4
    %v5109 = vshll.u32 %v4934, 16
    %v5111 = vrot.slane %v5109, 5
    %v5112 = vor.u32 %v5108, %v5111
    %v5113 = vrot.slane %v5112, 4
    %v5115 = vshll.u32 %v4935, 16
    %v5117 = vrot.slane %v5115, 5
    %v5118 = vsel %vm72, %v5113, %v5117
    %v5119 = vshrl.u32 %v4935, 16
    %v5121 = vrot.slane %v5119, 4
    %v5122 = vor.u32 %v5121, %v5117
    %v5123 = vrot.slane %v5122, 4
    %v5125 = vshll.u32 %v4936, 16
    %v5127 = vrot.slane %v5125, 5
    %v5128 = vsel %vm72, %v5123, %v5127
    %v5129 = vunpack.c.l.b16 %v4950
    %v5130 = vunpack.c.l.b16 %v4960
    %v5131 = vunpack.c.l.b16 %v4974
    %v5132 = vunpack.c.l.b16 %v4984
    %v5133 = vunpack.c.l.b16 %v4998
    %v5134 = vunpack.c.l.b16 %v5008
    %v5135 = vunpack.c.l.b16 %v5022
    %v5136 = vunpack.c.l.b16 %v5032
    %v5137 = vunpack.c.l.b16 %v5046
    %v5138 = vunpack.c.l.b16 %v5056
    %v5139 = vunpack.c.l.b16 %v5070
    %v5140 = vunpack.c.l.b16 %v5080
    %v5141 = vunpack.c.l.b16 %v5094
    %v5142 = vunpack.c.l.b16 %v5104
    %v5143 = vunpack.c.l.b16 %v5118
    %v5144 = vunpack.c.l.b16 %v5128
    %v5145 = vpack.c.b16 %v5130, %v5129
    %v5146 = vpack.c.b16 %v5132, %v5131
    %v5147 = vpack.c.b16 %v5134, %v5133
    %v5148 = vpack.c.b16 %v5136, %v5135
    %v5149 = vpack.c.b16 %v5138, %v5137
    %v5150 = vpack.c.b16 %v5140, %v5139
    %v5151 = vpack.c.b16 %v5142, %v5141
    %v5152 = vpack.c.b16 %v5144, %v5143
    %v5154 = vsel %vm289, %v5145, 0
    %v5157 = vsel %vm289, %v5146, 0
    %v5160 = vsel %vm289, %v5147, 0
    %v5163 = vsel %vm289, %v5148, 0
    %v5166 = vsel %vm289, %v5149, 0
    %v5169 = vsel %vm289, %v5150, 0
    %v5172 = vsel %vm289, %v5151, 0
    %v5175 = vsel %vm289, %v5152, 0
    %5177 = vmatpush.bf16.msra.mxu0 0
    %5178 = vmatpush.bf16.msra.mxu0 0
    %5179 = vmatpush.bf16.msra.mxu0 0
    %5180 = vmatpush.bf16.msra.mxu0 0
    %5181 = vmatpush.bf16.msra.mxu0 0
    %5182 = vmatpush.bf16.msra.mxu0 0
    %5183 = vmatpush.bf16.msra.mxu0 0
    %5184 = vmatpush.bf16.msra.mxu0 %v1096
    %5185 = vmatmul.bf16.gmra.mxu0 %v5154
    %v5186 = vpop.f32.mrf.mxu0
    %v5187 = vadd.f32 0.0, %v5186
    %v5188 = vpop.f32.mrf.mxu0
    %v5189 = vadd.f32 0.0, %v5188
    %5190 = vmatmul.bf16.gmra.mxu0 %v5157
    %v5191 = vpop.f32.mrf.mxu0
    %v5192 = vadd.f32 0.0, %v5191
    %v5193 = vpop.f32.mrf.mxu0
    %v5194 = vadd.f32 0.0, %v5193
    %5195 = vmatmul.bf16.gmra.mxu0 %v5160
    %v5196 = vpop.f32.mrf.mxu0
    %v5197 = vadd.f32 0.0, %v5196
    %v5198 = vpop.f32.mrf.mxu0
    %v5199 = vadd.f32 0.0, %v5198
    %5200 = vmatmul.bf16.gmra.mxu0 %v5163
    %v5201 = vpop.f32.mrf.mxu0
    %v5202 = vadd.f32 0.0, %v5201
    %v5203 = vpop.f32.mrf.mxu0
    %v5204 = vadd.f32 0.0, %v5203
    %5205 = vmatmul.bf16.gmra.mxu0 %v5166
    %v5206 = vpop.f32.mrf.mxu0
    %v5207 = vadd.f32 0.0, %v5206
    %v5208 = vpop.f32.mrf.mxu0
    %v5209 = vadd.f32 0.0, %v5208
    %5210 = vmatmul.bf16.gmra.mxu0 %v5169
    %v5211 = vpop.f32.mrf.mxu0
    %v5212 = vadd.f32 0.0, %v5211
    %v5213 = vpop.f32.mrf.mxu0
    %v5214 = vadd.f32 0.0, %v5213
    %5215 = vmatmul.bf16.gmra.mxu0 %v5172
    %v5216 = vpop.f32.mrf.mxu0
    %v5217 = vadd.f32 0.0, %v5216
    %v5218 = vpop.f32.mrf.mxu0
    %v5219 = vadd.f32 0.0, %v5218
    %5220 = vmatmul.bf16.gmra.mxu0 %v5175
    %v5221 = vpop.f32.mrf.mxu0
    %v5222 = vadd.f32 0.0, %v5221
    %v5223 = vpop.f32.mrf.mxu0
    %v5224 = vadd.f32 0.0, %v5223
    %5225 = vdwg.mxu0
    %v5226 = vadd.f32 %v4897, %v5187
    %v5227 = vadd.f32 %v4898, %v5189
    %v5228 = vadd.f32 %v4899, %v5192
    %v5229 = vadd.f32 %v4900, %v5194
    %v5230 = vadd.f32 %v4901, %v5197
    %v5231 = vadd.f32 %v4902, %v5199
    %v5232 = vadd.f32 %v4903, %v5202
    %v5233 = vadd.f32 %v4904, %v5204
    %v5234 = vadd.f32 %v4905, %v5207
    %v5235 = vadd.f32 %v4906, %v5209
    %v5236 = vadd.f32 %v4907, %v5212
    %v5237 = vadd.f32 %v4908, %v5214
    %v5238 = vadd.f32 %v4909, %v5217
    %v5239 = vadd.f32 %v4910, %v5219
    %v5240 = vadd.f32 %v4911, %v5222
    %v5241 = vadd.f32 %v4912, %v5224
    %v5242 = vld [vmem:[%s4767] sm:$0xe]
    %v5243 = vld [vmem:[%s4767 + $0xc] sm:$0xe]
    %v5244 = vld [vmem:[%s4767 + $0x18] sm:$0xe]
    %v5245 = vld [vmem:[%s4767 + $0x24] sm:$0xe]
    %v5246 = vld [vmem:[%s4767 + $0xd8] sm:$0xe]
    %v5247 = vld [vmem:[%s4767 + $0xe4] sm:$0xe]
    %v5248 = vld [vmem:[%s4767 + $0xf0] sm:$0xe]
    %v5249 = vld [vmem:[%s4767 + $0xfc] sm:$0xe]
    %v5274 = vrot.slane %v5242, 5
    %v5275 = vrot.slane %v5274, 4
    %v5276 = vrot.slane %v4914, 5
    %v5277 = vsel %vm509, %v5275, %v5276
    %v5278 = vrot.slane %v5276, 4
    %v5279 = vrot.slane %v4915, 5
    %v5280 = vsel %vm509, %v5278, %v5279
    %v5281 = vrot.slane %v5243, 5
    %v5282 = vrot.slane %v5281, 4
    %v5283 = vrot.slane %v4917, 5
    %v5284 = vsel %vm509, %v5282, %v5283
    %v5285 = vrot.slane %v5283, 4
    %v5286 = vrot.slane %v4918, 5
    %v5287 = vsel %vm509, %v5285, %v5286
    %v5288 = vrot.slane %v5244, 5
    %v5289 = vrot.slane %v5288, 4
    %v5290 = vrot.slane %v4920, 5
    %v5291 = vsel %vm509, %v5289, %v5290
    %v5292 = vrot.slane %v5290, 4
    %v5293 = vrot.slane %v4921, 5
    %v5294 = vsel %vm509, %v5292, %v5293
    %v5295 = vrot.slane %v5245, 5
    %v5296 = vrot.slane %v5295, 4
    %v5297 = vrot.slane %v4923, 5
    %v5298 = vsel %vm509, %v5296, %v5297
    %v5299 = vrot.slane %v5297, 4
    %v5300 = vrot.slane %v4924, 5
    %v5301 = vsel %vm509, %v5299, %v5300
    %v5302 = vrot.slane %v5246, 5
    %v5303 = vrot.slane %v5302, 4
    %v5304 = vrot.slane %v4926, 5
    %v5305 = vsel %vm509, %v5303, %v5304
    %v5306 = vrot.slane %v5304, 4
    %v5307 = vrot.slane %v4927, 5
    %v5308 = vsel %vm509, %v5306, %v5307
    %v5309 = vrot.slane %v5247, 5
    %v5310 = vrot.slane %v5309, 4
    %v5311 = vrot.slane %v4929, 5
    %v5312 = vsel %vm509, %v5310, %v5311
    %v5313 = vrot.slane %v5311, 4
    %v5314 = vrot.slane %v4930, 5
    %v5315 = vsel %vm509, %v5313, %v5314
    %v5316 = vrot.slane %v5248, 5
    %v5317 = vrot.slane %v5316, 4
    %v5318 = vrot.slane %v4932, 5
    %v5319 = vsel %vm509, %v5317, %v5318
    %v5320 = vrot.slane %v5318, 4
    %v5321 = vrot.slane %v4933, 5
    %v5322 = vsel %vm509, %v5320, %v5321
    %v5323 = vrot.slane %v5249, 5
    %v5324 = vrot.slane %v5323, 4
    %v5325 = vrot.slane %v4935, 5
    %v5326 = vsel %vm509, %v5324, %v5325
    %v5327 = vrot.slane %v5325, 4
    %v5328 = vrot.slane %v4936, 5
    %v5329 = vsel %vm509, %v5327, %v5328
    %v5330 = vunpack.c.l.b16 %v5277
    %v5331 = vunpack.c.l.b16 %v5280
    %v5332 = vunpack.c.l.b16 %v5284
    %v5333 = vunpack.c.l.b16 %v5287
    %v5334 = vunpack.c.l.b16 %v5291
    %v5335 = vunpack.c.l.b16 %v5294
    %v5336 = vunpack.c.l.b16 %v5298
    %v5337 = vunpack.c.l.b16 %v5301
    %v5338 = vunpack.c.l.b16 %v5305
    %v5339 = vunpack.c.l.b16 %v5308
    %v5340 = vunpack.c.l.b16 %v5312
    %v5341 = vunpack.c.l.b16 %v5315
    %v5342 = vunpack.c.l.b16 %v5319
    %v5343 = vunpack.c.l.b16 %v5322
    %v5344 = vunpack.c.l.b16 %v5326
    %v5345 = vunpack.c.l.b16 %v5329
    %v5346 = vpack.c.b16 %v5331, %v5330
    %v5347 = vpack.c.b16 %v5333, %v5332
    %v5348 = vpack.c.b16 %v5335, %v5334
    %v5349 = vpack.c.b16 %v5337, %v5336
    %v5350 = vpack.c.b16 %v5339, %v5338
    %v5351 = vpack.c.b16 %v5341, %v5340
    %v5352 = vpack.c.b16 %v5343, %v5342
    %v5353 = vpack.c.b16 %v5345, %v5344
    %v5355 = vsel %vm289, %v5346, 0
    %v5358 = vsel %vm289, %v5347, 0
    %v5361 = vsel %vm289, %v5348, 0
    %v5364 = vsel %vm289, %v5349, 0
    %v5367 = vsel %vm289, %v5350, 0
    %v5370 = vsel %vm289, %v5351, 0
    %v5373 = vsel %vm289, %v5352, 0
    %v5376 = vsel %vm289, %v5353, 0
    %5378 = vmatpush.bf16.msra.mxu0 0
    %5379 = vmatpush.bf16.msra.mxu0 0
    %5380 = vmatpush.bf16.msra.mxu0 0
    %5381 = vmatpush.bf16.msra.mxu0 0
    %5382 = vmatpush.bf16.msra.mxu0 0
    %5383 = vmatpush.bf16.msra.mxu0 0
    %5384 = vmatpush.bf16.msra.mxu0 0
    %5385 = vmatpush.bf16.msra.mxu0 %v1300
    %5386 = vmatmul.bf16.gmra.mxu0 %v5355
    %v5387 = vpop.f32.mrf.mxu0
    %v5388 = vadd.f32 0.0, %v5387
    %v5389 = vpop.f32.mrf.mxu0
    %v5390 = vadd.f32 0.0, %v5389
    %5391 = vmatmul.bf16.gmra.mxu0 %v5358
    %v5392 = vpop.f32.mrf.mxu0
    %v5393 = vadd.f32 0.0, %v5392
    %v5394 = vpop.f32.mrf.mxu0
    %v5395 = vadd.f32 0.0, %v5394
    %5396 = vmatmul.bf16.gmra.mxu0 %v5361
    %v5397 = vpop.f32.mrf.mxu0
    %v5398 = vadd.f32 0.0, %v5397
    %v5399 = vpop.f32.mrf.mxu0
    %v5400 = vadd.f32 0.0, %v5399
    %5401 = vmatmul.bf16.gmra.mxu0 %v5364
    %v5402 = vpop.f32.mrf.mxu0
    %v5403 = vadd.f32 0.0, %v5402
    %v5404 = vpop.f32.mrf.mxu0
    %v5405 = vadd.f32 0.0, %v5404
    %5406 = vmatmul.bf16.gmra.mxu0 %v5367
    %v5407 = vpop.f32.mrf.mxu0
    %v5408 = vadd.f32 0.0, %v5407
    %v5409 = vpop.f32.mrf.mxu0
    %v5410 = vadd.f32 0.0, %v5409
    %5411 = vmatmul.bf16.gmra.mxu0 %v5370
    %v5412 = vpop.f32.mrf.mxu0
    %v5413 = vadd.f32 0.0, %v5412
    %v5414 = vpop.f32.mrf.mxu0
    %v5415 = vadd.f32 0.0, %v5414
    %5416 = vmatmul.bf16.gmra.mxu0 %v5373
    %v5417 = vpop.f32.mrf.mxu0
    %v5418 = vadd.f32 0.0, %v5417
    %v5419 = vpop.f32.mrf.mxu0
    %v5420 = vadd.f32 0.0, %v5419
    %5421 = vmatmul.bf16.gmra.mxu0 %v5376
    %v5422 = vpop.f32.mrf.mxu0
    %v5423 = vadd.f32 0.0, %v5422
    %v5424 = vpop.f32.mrf.mxu0
    %v5425 = vadd.f32 0.0, %v5424
    %5426 = vdwg.mxu0
    %v5427 = vadd.f32 %v5226, %v5388
    %v5428 = vadd.f32 %v5227, %v5390
    %v5429 = vadd.f32 %v5228, %v5393
    %v5430 = vadd.f32 %v5229, %v5395
    %v5431 = vadd.f32 %v5230, %v5398
    %v5432 = vadd.f32 %v5231, %v5400
    %v5433 = vadd.f32 %v5232, %v5403
    %v5434 = vadd.f32 %v5233, %v5405
    %v5435 = vadd.f32 %v5234, %v5408
    %v5436 = vadd.f32 %v5235, %v5410
    %v5437 = vadd.f32 %v5236, %v5413
    %v5438 = vadd.f32 %v5237, %v5415
    %v5439 = vadd.f32 %v5238, %v5418
    %v5440 = vadd.f32 %v5239, %v5420
    %v5441 = vadd.f32 %v5240, %v5423
    %v5442 = vadd.f32 %v5241, %v5425
    %s5443 = scalar_lea.vmem %s0, 120
    %v5444 = vld [vmem:[%s5443] sm:$0xf]
    %v5445 = vld [vmem:[%s5443 + $0x4] sm:$0xf]
    %v5446 = vld [vmem:[%s5443 + $0xc] sm:$0xf]
    %v5447 = vld [vmem:[%s5443 + $0x10] sm:$0xf]
    %v5448 = vld [vmem:[%s5443 + $0x18] sm:$0xf]
    %v5449 = vld [vmem:[%s5443 + $0x1c] sm:$0xf]
    %v5450 = vld [vmem:[%s5443 + $0x24] sm:$0xf]
    %v5451 = vld [vmem:[%s5443 + $0x28] sm:$0xf]
    %v5452 = vld [vmem:[%s5443 + $0xd8] sm:$0xf]
    %v5453 = vld [vmem:[%s5443 + $0xdc] sm:$0xf]
    %v5454 = vld [vmem:[%s5443 + $0xe4] sm:$0xf]
    %v5455 = vld [vmem:[%s5443 + $0xe8] sm:$0xf]
    %v5456 = vld [vmem:[%s5443 + $0xf0] sm:$0xf]
    %v5457 = vld [vmem:[%s5443 + $0xf4] sm:$0xf]
    %v5458 = vld [vmem:[%s5443 + $0xfc] sm:$0xf]
    %v5459 = vld [vmem:[%s5443 + $0x100] sm:$0xf]
    %v5476 = vunpack.c.l.b16 %v5444
    %v5477 = vunpack.c.l.b16 %v5445
    %v5478 = vunpack.c.l.b16 %v5446
    %v5479 = vunpack.c.l.b16 %v5447
    %v5480 = vunpack.c.l.b16 %v5448
    %v5481 = vunpack.c.l.b16 %v5449
    %v5482 = vunpack.c.l.b16 %v5450
    %v5483 = vunpack.c.l.b16 %v5451
    %v5484 = vunpack.c.l.b16 %v5452
    %v5485 = vunpack.c.l.b16 %v5453
    %v5486 = vunpack.c.l.b16 %v5454
    %v5487 = vunpack.c.l.b16 %v5455
    %v5488 = vunpack.c.l.b16 %v5456
    %v5489 = vunpack.c.l.b16 %v5457
    %v5490 = vunpack.c.l.b16 %v5458
    %v5491 = vunpack.c.l.b16 %v5459
    %v5492 = vpack.c.b16 %v5477, %v5476
    %v5493 = vpack.c.b16 %v5479, %v5478
    %v5494 = vpack.c.b16 %v5481, %v5480
    %v5495 = vpack.c.b16 %v5483, %v5482
    %v5496 = vpack.c.b16 %v5485, %v5484
    %v5497 = vpack.c.b16 %v5487, %v5486
    %v5498 = vpack.c.b16 %v5489, %v5488
    %v5499 = vpack.c.b16 %v5491, %v5490
    %v5501 = vsel %vm289, %v5492, 0
    %v5504 = vsel %vm289, %v5493, 0
    %v5507 = vsel %vm289, %v5494, 0
    %v5510 = vsel %vm289, %v5495, 0
    %v5513 = vsel %vm289, %v5496, 0
    %v5516 = vsel %vm289, %v5497, 0
    %v5519 = vsel %vm289, %v5498, 0
    %v5522 = vsel %vm289, %v5499, 0
    %5524 = vmatpush.bf16.msra.mxu0 0
    %5525 = vmatpush.bf16.msra.mxu0 0
    %5526 = vmatpush.bf16.msra.mxu0 0
    %5527 = vmatpush.bf16.msra.mxu0 0
    %5528 = vmatpush.bf16.msra.mxu0 0
    %5529 = vmatpush.bf16.msra.mxu0 0
    %5530 = vmatpush.bf16.msra.mxu0 0
    %5531 = vmatpush.bf16.msra.mxu0 %v1449
    %5532 = vmatmul.bf16.gmra.mxu0 %v5501
    %v5533 = vpop.f32.mrf.mxu0
    %v5534 = vadd.f32 0.0, %v5533
    %v5535 = vpop.f32.mrf.mxu0
    %v5536 = vadd.f32 0.0, %v5535
    %5537 = vmatmul.bf16.gmra.mxu0 %v5504
    %v5538 = vpop.f32.mrf.mxu0
    %v5539 = vadd.f32 0.0, %v5538
    %v5540 = vpop.f32.mrf.mxu0
    %v5541 = vadd.f32 0.0, %v5540
    %5542 = vmatmul.bf16.gmra.mxu0 %v5507
    %v5543 = vpop.f32.mrf.mxu0
    %v5544 = vadd.f32 0.0, %v5543
    %v5545 = vpop.f32.mrf.mxu0
    %v5546 = vadd.f32 0.0, %v5545
    %5547 = vmatmul.bf16.gmra.mxu0 %v5510
    %v5548 = vpop.f32.mrf.mxu0
    %v5549 = vadd.f32 0.0, %v5548
    %v5550 = vpop.f32.mrf.mxu0
    %v5551 = vadd.f32 0.0, %v5550
    %5552 = vmatmul.bf16.gmra.mxu0 %v5513
    %v5553 = vpop.f32.mrf.mxu0
    %v5554 = vadd.f32 0.0, %v5553
    %v5555 = vpop.f32.mrf.mxu0
    %v5556 = vadd.f32 0.0, %v5555
    %5557 = vmatmul.bf16.gmra.mxu0 %v5516
    %v5558 = vpop.f32.mrf.mxu0
    %v5559 = vadd.f32 0.0, %v5558
    %v5560 = vpop.f32.mrf.mxu0
    %v5561 = vadd.f32 0.0, %v5560
    %5562 = vmatmul.bf16.gmra.mxu0 %v5519
    %v5563 = vpop.f32.mrf.mxu0
    %v5564 = vadd.f32 0.0, %v5563
    %v5565 = vpop.f32.mrf.mxu0
    %v5566 = vadd.f32 0.0, %v5565
    %5567 = vmatmul.bf16.gmra.mxu0 %v5522
    %v5568 = vpop.f32.mrf.mxu0
    %v5569 = vadd.f32 0.0, %v5568
    %v5570 = vpop.f32.mrf.mxu0
    %v5571 = vadd.f32 0.0, %v5570
    %5572 = vdwg.mxu0
    %v5573 = vadd.f32 %v5427, %v5534
    %v5574 = vadd.f32 %v5428, %v5536
    %v5575 = vadd.f32 %v5429, %v5539
    %v5576 = vadd.f32 %v5430, %v5541
    %v5577 = vadd.f32 %v5431, %v5544
    %v5578 = vadd.f32 %v5432, %v5546
    %v5579 = vadd.f32 %v5433, %v5549
    %v5580 = vadd.f32 %v5434, %v5551
    %v5581 = vadd.f32 %v5435, %v5554
    %v5582 = vadd.f32 %v5436, %v5556
    %v5583 = vadd.f32 %v5437, %v5559
    %v5584 = vadd.f32 %v5438, %v5561
    %v5585 = vadd.f32 %v5439, %v5564
    %v5586 = vadd.f32 %v5440, %v5566
    %v5587 = vadd.f32 %v5441, %v5569
    %v5588 = vadd.f32 %v5442, %v5571
    %v5589 = vld [vmem:[%s5443] sm:$0xf]
    %v5590 = vld [vmem:[%s5443 + $0x4] sm:$0xf]
    %v5591 = vld [vmem:[%s5443 + $0x8] sm:$0x1]
    %v5592 = vld [vmem:[%s5443 + $0xc] sm:$0xf]
    %v5593 = vld [vmem:[%s5443 + $0x10] sm:$0xf]
    %v5594 = vld [vmem:[%s5443 + $0x14] sm:$0x1]
    %v5595 = vld [vmem:[%s5443 + $0x18] sm:$0xf]
    %v5596 = vld [vmem:[%s5443 + $0x1c] sm:$0xf]
    %v5597 = vld [vmem:[%s5443 + $0x20] sm:$0x1]
    %v5598 = vld [vmem:[%s5443 + $0x24] sm:$0xf]
    %v5599 = vld [vmem:[%s5443 + $0x28] sm:$0xf]
    %v5600 = vld [vmem:[%s5443 + $0x2c] sm:$0x1]
    %v5601 = vld [vmem:[%s5443 + $0xd8] sm:$0xf]
    %v5602 = vld [vmem:[%s5443 + $0xdc] sm:$0xf]
    %v5603 = vld [vmem:[%s5443 + $0xe0] sm:$0x1]
    %v5604 = vld [vmem:[%s5443 + $0xe4] sm:$0xf]
    %v5605 = vld [vmem:[%s5443 + $0xe8] sm:$0xf]
    %v5606 = vld [vmem:[%s5443 + $0xec] sm:$0x1]
    %v5607 = vld [vmem:[%s5443 + $0xf0] sm:$0xf]
    %v5608 = vld [vmem:[%s5443 + $0xf4] sm:$0xf]
    %v5609 = vld [vmem:[%s5443 + $0xf8] sm:$0x1]
    %v5610 = vld [vmem:[%s5443 + $0xfc] sm:$0xf]
    %v5611 = vld [vmem:[%s5443 + $0x100] sm:$0xf]
    %v5612 = vld [vmem:[%s5443 + $0x104] sm:$0x1]
    %v5614 = vshrl.u32 %v5589, 16
    %v5616 = vrot.slane %v5614, 4
    %v5617 = vshll.u32 %v5589, 16
    %v5619 = vrot.slane %v5617, 5
    %v5620 = vor.u32 %v5616, %v5619
    %v5621 = vrot.slane %v5620, 4
    %v5623 = vshll.u32 %v5590, 16
    %v5625 = vrot.slane %v5623, 5
    %v5626 = vsel %vm72, %v5621, %v5625
    %v5627 = vshrl.u32 %v5590, 16
    %v5629 = vrot.slane %v5627, 4
    %v5630 = vor.u32 %v5629, %v5625
    %v5631 = vrot.slane %v5630, 4
    %v5633 = vshll.u32 %v5591, 16
    %v5635 = vrot.slane %v5633, 5
    %v5636 = vsel %vm72, %v5631, %v5635
    %v5638 = vshrl.u32 %v5592, 16
    %v5640 = vrot.slane %v5638, 4
    %v5641 = vshll.u32 %v5592, 16
    %v5643 = vrot.slane %v5641, 5
    %v5644 = vor.u32 %v5640, %v5643
    %v5645 = vrot.slane %v5644, 4
    %v5647 = vshll.u32 %v5593, 16
    %v5649 = vrot.slane %v5647, 5
    %v5650 = vsel %vm72, %v5645, %v5649
    %v5651 = vshrl.u32 %v5593, 16
    %v5653 = vrot.slane %v5651, 4
    %v5654 = vor.u32 %v5653, %v5649
    %v5655 = vrot.slane %v5654, 4
    %v5657 = vshll.u32 %v5594, 16
    %v5659 = vrot.slane %v5657, 5
    %v5660 = vsel %vm72, %v5655, %v5659
    %v5662 = vshrl.u32 %v5595, 16
    %v5664 = vrot.slane %v5662, 4
    %v5665 = vshll.u32 %v5595, 16
    %v5667 = vrot.slane %v5665, 5
    %v5668 = vor.u32 %v5664, %v5667
    %v5669 = vrot.slane %v5668, 4
    %v5671 = vshll.u32 %v5596, 16
    %v5673 = vrot.slane %v5671, 5
    %v5674 = vsel %vm72, %v5669, %v5673
    %v5675 = vshrl.u32 %v5596, 16
    %v5677 = vrot.slane %v5675, 4
    %v5678 = vor.u32 %v5677, %v5673
    %v5679 = vrot.slane %v5678, 4
    %v5681 = vshll.u32 %v5597, 16
    %v5683 = vrot.slane %v5681, 5
    %v5684 = vsel %vm72, %v5679, %v5683
    %v5686 = vshrl.u32 %v5598, 16
    %v5688 = vrot.slane %v5686, 4
    %v5689 = vshll.u32 %v5598, 16
    %v5691 = vrot.slane %v5689, 5
    %v5692 = vor.u32 %v5688, %v5691
    %v5693 = vrot.slane %v5692, 4
    %v5695 = vshll.u32 %v5599, 16
    %v5697 = vrot.slane %v5695, 5
    %v5698 = vsel %vm72, %v5693, %v5697
    %v5699 = vshrl.u32 %v5599, 16
    %v5701 = vrot.slane %v5699, 4
    %v5702 = vor.u32 %v5701, %v5697
    %v5703 = vrot.slane %v5702, 4
    %v5705 = vshll.u32 %v5600, 16
    %v5707 = vrot.slane %v5705, 5
    %v5708 = vsel %vm72, %v5703, %v5707
    %v5710 = vshrl.u32 %v5601, 16
    %v5712 = vrot.slane %v5710, 4
    %v5713 = vshll.u32 %v5601, 16
    %v5715 = vrot.slane %v5713, 5
    %v5716 = vor.u32 %v5712, %v5715
    %v5717 = vrot.slane %v5716, 4
    %v5719 = vshll.u32 %v5602, 16
    %v5721 = vrot.slane %v5719, 5
    %v5722 = vsel %vm72, %v5717, %v5721
    %v5723 = vshrl.u32 %v5602, 16
    %v5725 = vrot.slane %v5723, 4
    %v5726 = vor.u32 %v5725, %v5721
    %v5727 = vrot.slane %v5726, 4
    %v5729 = vshll.u32 %v5603, 16
    %v5731 = vrot.slane %v5729, 5
    %v5732 = vsel %vm72, %v5727, %v5731
    %v5734 = vshrl.u32 %v5604, 16
    %v5736 = vrot.slane %v5734, 4
    %v5737 = vshll.u32 %v5604, 16
    %v5739 = vrot.slane %v5737, 5
    %v5740 = vor.u32 %v5736, %v5739
    %v5741 = vrot.slane %v5740, 4
    %v5743 = vshll.u32 %v5605, 16
    %v5745 = vrot.slane %v5743, 5
    %v5746 = vsel %vm72, %v5741, %v5745
    %v5747 = vshrl.u32 %v5605, 16
    %v5749 = vrot.slane %v5747, 4
    %v5750 = vor.u32 %v5749, %v5745
    %v5751 = vrot.slane %v5750, 4
    %v5753 = vshll.u32 %v5606, 16
    %v5755 = vrot.slane %v5753, 5
    %v5756 = vsel %vm72, %v5751, %v5755
    %v5758 = vshrl.u32 %v5607, 16
    %v5760 = vrot.slane %v5758, 4
    %v5761 = vshll.u32 %v5607, 16
    %v5763 = vrot.slane %v5761, 5
    %v5764 = vor.u32 %v5760, %v5763
    %v5765 = vrot.slane %v5764, 4
    %v5767 = vshll.u32 %v5608, 16
    %v5769 = vrot.slane %v5767, 5
    %v5770 = vsel %vm72, %v5765, %v5769
    %v5771 = vshrl.u32 %v5608, 16
    %v5773 = vrot.slane %v5771, 4
    %v5774 = vor.u32 %v5773, %v5769
    %v5775 = vrot.slane %v5774, 4
    %v5777 = vshll.u32 %v5609, 16
    %v5779 = vrot.slane %v5777, 5
    %v5780 = vsel %vm72, %v5775, %v5779
    %v5782 = vshrl.u32 %v5610, 16
    %v5784 = vrot.slane %v5782, 4
    %v5785 = vshll.u32 %v5610, 16
    %v5787 = vrot.slane %v5785, 5
    %v5788 = vor.u32 %v5784, %v5787
    %v5789 = vrot.slane %v5788, 4
    %v5791 = vshll.u32 %v5611, 16
    %v5793 = vrot.slane %v5791, 5
    %v5794 = vsel %vm72, %v5789, %v5793
    %v5795 = vshrl.u32 %v5611, 16
    %v5797 = vrot.slane %v5795, 4
    %v5798 = vor.u32 %v5797, %v5793
    %v5799 = vrot.slane %v5798, 4
    %v5801 = vshll.u32 %v5612, 16
    %v5803 = vrot.slane %v5801, 5
    %v5804 = vsel %vm72, %v5799, %v5803
    %v5805 = vunpack.c.l.b16 %v5626
    %v5806 = vunpack.c.l.b16 %v5636
    %v5807 = vunpack.c.l.b16 %v5650
    %v5808 = vunpack.c.l.b16 %v5660
    %v5809 = vunpack.c.l.b16 %v5674
    %v5810 = vunpack.c.l.b16 %v5684
    %v5811 = vunpack.c.l.b16 %v5698
    %v5812 = vunpack.c.l.b16 %v5708
    %v5813 = vunpack.c.l.b16 %v5722
    %v5814 = vunpack.c.l.b16 %v5732
    %v5815 = vunpack.c.l.b16 %v5746
    %v5816 = vunpack.c.l.b16 %v5756
    %v5817 = vunpack.c.l.b16 %v5770
    %v5818 = vunpack.c.l.b16 %v5780
    %v5819 = vunpack.c.l.b16 %v5794
    %v5820 = vunpack.c.l.b16 %v5804
    %v5821 = vpack.c.b16 %v5806, %v5805
    %v5822 = vpack.c.b16 %v5808, %v5807
    %v5823 = vpack.c.b16 %v5810, %v5809
    %v5824 = vpack.c.b16 %v5812, %v5811
    %v5825 = vpack.c.b16 %v5814, %v5813
    %v5826 = vpack.c.b16 %v5816, %v5815
    %v5827 = vpack.c.b16 %v5818, %v5817
    %v5828 = vpack.c.b16 %v5820, %v5819
    %v5830 = vsel %vm289, %v5821, 0
    %v5833 = vsel %vm289, %v5822, 0
    %v5836 = vsel %vm289, %v5823, 0
    %v5839 = vsel %vm289, %v5824, 0
    %v5842 = vsel %vm289, %v5825, 0
    %v5845 = vsel %vm289, %v5826, 0
    %v5848 = vsel %vm289, %v5827, 0
    %v5851 = vsel %vm289, %v5828, 0
    %5853 = vmatpush.bf16.msra.mxu0 0
    %5854 = vmatpush.bf16.msra.mxu0 0
    %5855 = vmatpush.bf16.msra.mxu0 0
    %5856 = vmatpush.bf16.msra.mxu0 0
    %5857 = vmatpush.bf16.msra.mxu0 0
    %5858 = vmatpush.bf16.msra.mxu0 0
    %5859 = vmatpush.bf16.msra.mxu0 0
    %5860 = vmatpush.bf16.msra.mxu0 %v1781
    %5861 = vmatmul.bf16.gmra.mxu0 %v5830
    %v5862 = vpop.f32.mrf.mxu0
    %v5863 = vadd.f32 0.0, %v5862
    %v5864 = vpop.f32.mrf.mxu0
    %v5865 = vadd.f32 0.0, %v5864
    %5866 = vmatmul.bf16.gmra.mxu0 %v5833
    %v5867 = vpop.f32.mrf.mxu0
    %v5868 = vadd.f32 0.0, %v5867
    %v5869 = vpop.f32.mrf.mxu0
    %v5870 = vadd.f32 0.0, %v5869
    %5871 = vmatmul.bf16.gmra.mxu0 %v5836
    %v5872 = vpop.f32.mrf.mxu0
    %v5873 = vadd.f32 0.0, %v5872
    %v5874 = vpop.f32.mrf.mxu0
    %v5875 = vadd.f32 0.0, %v5874
    %5876 = vmatmul.bf16.gmra.mxu0 %v5839
    %v5877 = vpop.f32.mrf.mxu0
    %v5878 = vadd.f32 0.0, %v5877
    %v5879 = vpop.f32.mrf.mxu0
    %v5880 = vadd.f32 0.0, %v5879
    %5881 = vmatmul.bf16.gmra.mxu0 %v5842
    %v5882 = vpop.f32.mrf.mxu0
    %v5883 = vadd.f32 0.0, %v5882
    %v5884 = vpop.f32.mrf.mxu0
    %v5885 = vadd.f32 0.0, %v5884
    %5886 = vmatmul.bf16.gmra.mxu0 %v5845
    %v5887 = vpop.f32.mrf.mxu0
    %v5888 = vadd.f32 0.0, %v5887
    %v5889 = vpop.f32.mrf.mxu0
    %v5890 = vadd.f32 0.0, %v5889
    %5891 = vmatmul.bf16.gmra.mxu0 %v5848
    %v5892 = vpop.f32.mrf.mxu0
    %v5893 = vadd.f32 0.0, %v5892
    %v5894 = vpop.f32.mrf.mxu0
    %v5895 = vadd.f32 0.0, %v5894
    %5896 = vmatmul.bf16.gmra.mxu0 %v5851
    %v5897 = vpop.f32.mrf.mxu0
    %v5898 = vadd.f32 0.0, %v5897
    %v5899 = vpop.f32.mrf.mxu0
    %v5900 = vadd.f32 0.0, %v5899
    %5901 = vdwg.mxu0
    %v5902 = vadd.f32 %v5573, %v5863
    %v5903 = vadd.f32 %v5574, %v5865
    %v5904 = vadd.f32 %v5575, %v5868
    %v5905 = vadd.f32 %v5576, %v5870
    %v5906 = vadd.f32 %v5577, %v5873
    %v5907 = vadd.f32 %v5578, %v5875
    %v5908 = vadd.f32 %v5579, %v5878
    %v5909 = vadd.f32 %v5580, %v5880
    %v5910 = vadd.f32 %v5581, %v5883
    %v5911 = vadd.f32 %v5582, %v5885
    %v5912 = vadd.f32 %v5583, %v5888
    %v5913 = vadd.f32 %v5584, %v5890
    %v5914 = vadd.f32 %v5585, %v5893
    %v5915 = vadd.f32 %v5586, %v5895
    %v5916 = vadd.f32 %v5587, %v5898
    %v5917 = vadd.f32 %v5588, %v5900
    %v5918 = vld [vmem:[%s5443] sm:$0xe]
    %v5919 = vld [vmem:[%s5443 + $0xc] sm:$0xe]
    %v5920 = vld [vmem:[%s5443 + $0x18] sm:$0xe]
    %v5921 = vld [vmem:[%s5443 + $0x24] sm:$0xe]
    %v5922 = vld [vmem:[%s5443 + $0xd8] sm:$0xe]
    %v5923 = vld [vmem:[%s5443 + $0xe4] sm:$0xe]
    %v5924 = vld [vmem:[%s5443 + $0xf0] sm:$0xe]
    %v5925 = vld [vmem:[%s5443 + $0xfc] sm:$0xe]
    %v5950 = vrot.slane %v5918, 5
    %v5951 = vrot.slane %v5950, 4
    %v5952 = vrot.slane %v5590, 5
    %v5953 = vsel %vm509, %v5951, %v5952
    %v5954 = vrot.slane %v5952, 4
    %v5955 = vrot.slane %v5591, 5
    %v5956 = vsel %vm509, %v5954, %v5955
    %v5957 = vrot.slane %v5919, 5
    %v5958 = vrot.slane %v5957, 4
    %v5959 = vrot.slane %v5593, 5
    %v5960 = vsel %vm509, %v5958, %v5959
    %v5961 = vrot.slane %v5959, 4
    %v5962 = vrot.slane %v5594, 5
    %v5963 = vsel %vm509, %v5961, %v5962
    %v5964 = vrot.slane %v5920, 5
    %v5965 = vrot.slane %v5964, 4
    %v5966 = vrot.slane %v5596, 5
    %v5967 = vsel %vm509, %v5965, %v5966
    %v5968 = vrot.slane %v5966, 4
    %v5969 = vrot.slane %v5597, 5
    %v5970 = vsel %vm509, %v5968, %v5969
    %v5971 = vrot.slane %v5921, 5
    %v5972 = vrot.slane %v5971, 4
    %v5973 = vrot.slane %v5599, 5
    %v5974 = vsel %vm509, %v5972, %v5973
    %v5975 = vrot.slane %v5973, 4
    %v5976 = vrot.slane %v5600, 5
    %v5977 = vsel %vm509, %v5975, %v5976
    %v5978 = vrot.slane %v5922, 5
    %v5979 = vrot.slane %v5978, 4
    %v5980 = vrot.slane %v5602, 5
    %v5981 = vsel %vm509, %v5979, %v5980
    %v5982 = vrot.slane %v5980, 4
    %v5983 = vrot.slane %v5603, 5
    %v5984 = vsel %vm509, %v5982, %v5983
    %v5985 = vrot.slane %v5923, 5
    %v5986 = vrot.slane %v5985, 4
    %v5987 = vrot.slane %v5605, 5
    %v5988 = vsel %vm509, %v5986, %v5987
    %v5989 = vrot.slane %v5987, 4
    %v5990 = vrot.slane %v5606, 5
    %v5991 = vsel %vm509, %v5989, %v5990
    %v5992 = vrot.slane %v5924, 5
    %v5993 = vrot.slane %v5992, 4
    %v5994 = vrot.slane %v5608, 5
    %v5995 = vsel %vm509, %v5993, %v5994
    %v5996 = vrot.slane %v5994, 4
    %v5997 = vrot.slane %v5609, 5
    %v5998 = vsel %vm509, %v5996, %v5997
    %v5999 = vrot.slane %v5925, 5
    %v6000 = vrot.slane %v5999, 4
    %v6001 = vrot.slane %v5611, 5
    %v6002 = vsel %vm509, %v6000, %v6001
    %v6003 = vrot.slane %v6001, 4
    %v6004 = vrot.slane %v5612, 5
    %v6005 = vsel %vm509, %v6003, %v6004
    %v6006 = vunpack.c.l.b16 %v5953
    %v6007 = vunpack.c.l.b16 %v5956
    %v6008 = vunpack.c.l.b16 %v5960
    %v6009 = vunpack.c.l.b16 %v5963
    %v6010 = vunpack.c.l.b16 %v5967
    %v6011 = vunpack.c.l.b16 %v5970
    %v6012 = vunpack.c.l.b16 %v5974
    %v6013 = vunpack.c.l.b16 %v5977
    %v6014 = vunpack.c.l.b16 %v5981
    %v6015 = vunpack.c.l.b16 %v5984
    %v6016 = vunpack.c.l.b16 %v5988
    %v6017 = vunpack.c.l.b16 %v5991
    %v6018 = vunpack.c.l.b16 %v5995
    %v6019 = vunpack.c.l.b16 %v5998
    %v6020 = vunpack.c.l.b16 %v6002
    %v6021 = vunpack.c.l.b16 %v6005
    %v6022 = vpack.c.b16 %v6007, %v6006
    %v6023 = vpack.c.b16 %v6009, %v6008
    %v6024 = vpack.c.b16 %v6011, %v6010
    %v6025 = vpack.c.b16 %v6013, %v6012
    %v6026 = vpack.c.b16 %v6015, %v6014
    %v6027 = vpack.c.b16 %v6017, %v6016
    %v6028 = vpack.c.b16 %v6019, %v6018
    %v6029 = vpack.c.b16 %v6021, %v6020
    %v6031 = vsel %vm289, %v6022, 0
    %v6034 = vsel %vm289, %v6023, 0
    %v6037 = vsel %vm289, %v6024, 0
    %v6040 = vsel %vm289, %v6025, 0
    %v6043 = vsel %vm289, %v6026, 0
    %v6046 = vsel %vm289, %v6027, 0
    %v6049 = vsel %vm289, %v6028, 0
    %v6052 = vsel %vm289, %v6029, 0
    %6054 = vmatpush.bf16.msra.mxu0 0
    %6055 = vmatpush.bf16.msra.mxu0 0
    %6056 = vmatpush.bf16.msra.mxu0 0
    %6057 = vmatpush.bf16.msra.mxu0 0
    %6058 = vmatpush.bf16.msra.mxu0 0
    %6059 = vmatpush.bf16.msra.mxu0 0
    %6060 = vmatpush.bf16.msra.mxu0 0
    %6061 = vmatpush.bf16.msra.mxu0 %v1985
    %6062 = vmatmul.bf16.gmra.mxu0 %v6031
    %v6063 = vpop.f32.mrf.mxu0
    %v6064 = vadd.f32 0.0, %v6063
    %v6065 = vpop.f32.mrf.mxu0
    %v6066 = vadd.f32 0.0, %v6065
    %6067 = vmatmul.bf16.gmra.mxu0 %v6034
    %v6068 = vpop.f32.mrf.mxu0
    %v6069 = vadd.f32 0.0, %v6068
    %v6070 = vpop.f32.mrf.mxu0
    %v6071 = vadd.f32 0.0, %v6070
    %6072 = vmatmul.bf16.gmra.mxu0 %v6037
    %v6073 = vpop.f32.mrf.mxu0
    %v6074 = vadd.f32 0.0, %v6073
    %v6075 = vpop.f32.mrf.mxu0
    %v6076 = vadd.f32 0.0, %v6075
    %6077 = vmatmul.bf16.gmra.mxu0 %v6040
    %v6078 = vpop.f32.mrf.mxu0
    %v6079 = vadd.f32 0.0, %v6078
    %v6080 = vpop.f32.mrf.mxu0
    %v6081 = vadd.f32 0.0, %v6080
    %6082 = vmatmul.bf16.gmra.mxu0 %v6043
    %v6083 = vpop.f32.mrf.mxu0
    %v6084 = vadd.f32 0.0, %v6083
    %v6085 = vpop.f32.mrf.mxu0
    %v6086 = vadd.f32 0.0, %v6085
    %6087 = vmatmul.bf16.gmra.mxu0 %v6046
    %v6088 = vpop.f32.mrf.mxu0
    %v6089 = vadd.f32 0.0, %v6088
    %v6090 = vpop.f32.mrf.mxu0
    %v6091 = vadd.f32 0.0, %v6090
    %6092 = vmatmul.bf16.gmra.mxu0 %v6049
    %v6093 = vpop.f32.mrf.mxu0
    %v6094 = vadd.f32 0.0, %v6093
    %v6095 = vpop.f32.mrf.mxu0
    %v6096 = vadd.f32 0.0, %v6095
    %6097 = vmatmul.bf16.gmra.mxu0 %v6052
    %v6098 = vpop.f32.mrf.mxu0
    %v6099 = vadd.f32 0.0, %v6098
    %v6100 = vpop.f32.mrf.mxu0
    %v6101 = vadd.f32 0.0, %v6100
    %6102 = vdwg.mxu0
    %v6103 = vadd.f32 %v5902, %v6064
    %v6104 = vadd.f32 %v5903, %v6066
    %v6105 = vadd.f32 %v5904, %v6069
    %v6106 = vadd.f32 %v5905, %v6071
    %v6107 = vadd.f32 %v5906, %v6074
    %v6108 = vadd.f32 %v5907, %v6076
    %v6109 = vadd.f32 %v5908, %v6079
    %v6110 = vadd.f32 %v5909, %v6081
    %v6111 = vadd.f32 %v5910, %v6084
    %v6112 = vadd.f32 %v5911, %v6086
    %v6113 = vadd.f32 %v5912, %v6089
    %v6114 = vadd.f32 %v5913, %v6091
    %v6115 = vadd.f32 %v5914, %v6094
    %v6116 = vadd.f32 %v5915, %v6096
    %v6117 = vadd.f32 %v5916, %v6099
    %v6118 = vadd.f32 %v5917, %v6101
    %v6119 = vadd.f32 %v6103, %v2053
    %v6120 = vadd.f32 %v6104, %v2053
    %v6121 = vadd.f32 %v6105, %v2053
    %v6122 = vadd.f32 %v6106, %v2053
    %v6123 = vadd.f32 %v6107, %v2053
    %v6124 = vadd.f32 %v6108, %v2053
    %v6125 = vadd.f32 %v6109, %v2053
    %v6126 = vadd.f32 %v6110, %v2053
    %v6127 = vadd.f32 %v6111, %v2053
    %v6128 = vadd.f32 %v6112, %v2053
    %v6129 = vadd.f32 %v6113, %v2053
    %v6130 = vadd.f32 %v6114, %v2053
    %v6131 = vadd.f32 %v6115, %v2053
    %v6132 = vadd.f32 %v6116, %v2053
    %v6133 = vadd.f32 %v6117, %v2053
    %v6134 = vadd.f32 %v6118, %v2053
    %v6135 = vmax.f32 %v6119, 0.0
    %v6136 = vmax.f32 %v6120, 0.0
    %v6137 = vmax.f32 %v6121, 0.0
    %v6138 = vmax.f32 %v6122, 0.0
    %v6139 = vmax.f32 %v6123, 0.0
    %v6140 = vmax.f32 %v6124, 0.0
    %v6141 = vmax.f32 %v6125, 0.0
    %v6142 = vmax.f32 %v6126, 0.0
    %v6143 = vmax.f32 %v6127, 0.0
    %v6144 = vmax.f32 %v6128, 0.0
    %v6145 = vmax.f32 %v6129, 0.0
    %v6146 = vmax.f32 %v6130, 0.0
    %v6147 = vmax.f32 %v6131, 0.0
    %v6148 = vmax.f32 %v6132, 0.0
    %v6149 = vmax.f32 %v6133, 0.0
    %v6150 = vmax.f32 %v6134, 0.0
    %v6151 = vadd.f32 %v6135, %v6136
    %v6152 = vadd.f32 %v6151, %v6137
    %v6153 = vadd.f32 %v6152, %v6138
    %v6154 = vadd.f32 %v6153, %v6139
    %v6155 = vadd.f32 %v6154, %v6140
    %v6156 = vadd.f32 %v6155, %v6141
    %v6157 = vadd.f32 %v6156, %v6142
    %v6158 = vrot.slane %v6157, 4
    %v6159 = vadd.f32 %v6157, %v6158
    %v6160 = vrot.slane %v6159, 2
    %v6161 = vadd.f32 %v6159, %v6160
    %v6162 = vrot.slane %v6161, 1
    %v6163 = vadd.f32 %v6161, %v6162
    %v6164 = vadd.f32 %v6143, %v6144
    %v6165 = vadd.f32 %v6164, %v6145
    %v6166 = vadd.f32 %v6165, %v6146
    %v6167 = vadd.f32 %v6166, %v6147
    %v6168 = vadd.f32 %v6167, %v6148
    %v6169 = vadd.f32 %v6168, %v6149
    %v6170 = vadd.f32 %v6169, %v6150
    %v6171 = vrot.slane %v6170, 4
    %v6172 = vadd.f32 %v6170, %v6171
    %v6173 = vrot.slane %v6172, 2
    %v6174 = vadd.f32 %v6172, %v6173
    %v6175 = vrot.slane %v6174, 1
    %v6176 = vadd.f32 %v6174, %v6175
    %v6177 = vadd.f32 %v4145, %v6163
    %v6178 = vadd.f32 %v4146, %v6176
    %s6179 = scalar_lea.vmem %s0, 144
    %v6180 = vld [vmem:[%s6179] sm:$0xf]
    %v6181 = vld [vmem:[%s6179 + $0x4] sm:$0xf]
    %v6182 = vld [vmem:[%s6179 + $0xc] sm:$0xf]
    %v6183 = vld [vmem:[%s6179 + $0x10] sm:$0xf]
    %v6184 = vld [vmem:[%s6179 + $0x18] sm:$0xf]
    %v6185 = vld [vmem:[%s6179 + $0x1c] sm:$0xf]
    %v6186 = vld [vmem:[%s6179 + $0x24] sm:$0xf]
    %v6187 = vld [vmem:[%s6179 + $0x28] sm:$0xf]
    %v6188 = vld [vmem:[%s6179 + $0xd8] sm:$0xf]
    %v6189 = vld [vmem:[%s6179 + $0xdc] sm:$0xf]
    %v6190 = vld [vmem:[%s6179 + $0xe4] sm:$0xf]
    %v6191 = vld [vmem:[%s6179 + $0xe8] sm:$0xf]
    %v6192 = vld [vmem:[%s6179 + $0xf0] sm:$0xf]
    %v6193 = vld [vmem:[%s6179 + $0xf4] sm:$0xf]
    %v6194 = vld [vmem:[%s6179 + $0xfc] sm:$0xf]
    %v6195 = vld [vmem:[%s6179 + $0x100] sm:$0xf]
    %v6196 = vld [vmem:[%s6179 + $0x8] sm:$0x1]
    %v6197 = vld [vmem:[%s6179 + $0x14] sm:$0x1]
    %v6198 = vld [vmem:[%s6179 + $0x20] sm:$0x1]
    %v6199 = vld [vmem:[%s6179 + $0x2c] sm:$0x1]
    %v6200 = vld [vmem:[%s6179 + $0xe0] sm:$0x1]
    %v6201 = vld [vmem:[%s6179 + $0xec] sm:$0x1]
    %v6202 = vld [vmem:[%s6179 + $0xf8] sm:$0x1]
    %v6203 = vld [vmem:[%s6179 + $0x104] sm:$0x1]
    %v6205 = vshrl.u32 %v6180, 16
    %v6207 = vrot.slane %v6205, 4
    %v6208 = vshll.u32 %v6180, 16
    %v6210 = vrot.slane %v6208, 5
    %v6211 = vor.u32 %v6207, %v6210
    %v6212 = vrot.slane %v6211, 4
    %v6214 = vshll.u32 %v6181, 16
    %v6216 = vrot.slane %v6214, 5
    %v6217 = vsel %vm72, %v6212, %v6216
    %v6218 = vshrl.u32 %v6181, 16
    %v6220 = vrot.slane %v6218, 4
    %v6221 = vor.u32 %v6220, %v6216
    %v6222 = vrot.slane %v6221, 4
    %v6224 = vshll.u32 %v6196, 16
    %v6226 = vrot.slane %v6224, 5
    %v6227 = vsel %vm72, %v6222, %v6226
    %v6229 = vshrl.u32 %v6182, 16
    %v6231 = vrot.slane %v6229, 4
    %v6232 = vshll.u32 %v6182, 16
    %v6234 = vrot.slane %v6232, 5
    %v6235 = vor.u32 %v6231, %v6234
    %v6236 = vrot.slane %v6235, 4
    %v6238 = vshll.u32 %v6183, 16
    %v6240 = vrot.slane %v6238, 5
    %v6241 = vsel %vm72, %v6236, %v6240
    %v6242 = vshrl.u32 %v6183, 16
    %v6244 = vrot.slane %v6242, 4
    %v6245 = vor.u32 %v6244, %v6240
    %v6246 = vrot.slane %v6245, 4
    %v6248 = vshll.u32 %v6197, 16
    %v6250 = vrot.slane %v6248, 5
    %v6251 = vsel %vm72, %v6246, %v6250
    %v6253 = vshrl.u32 %v6184, 16
    %v6255 = vrot.slane %v6253, 4
    %v6256 = vshll.u32 %v6184, 16
    %v6258 = vrot.slane %v6256, 5
    %v6259 = vor.u32 %v6255, %v6258
    %v6260 = vrot.slane %v6259, 4
    %v6262 = vshll.u32 %v6185, 16
    %v6264 = vrot.slane %v6262, 5
    %v6265 = vsel %vm72, %v6260, %v6264
    %v6266 = vshrl.u32 %v6185, 16
    %v6268 = vrot.slane %v6266, 4
    %v6269 = vor.u32 %v6268, %v6264
    %v6270 = vrot.slane %v6269, 4
    %v6272 = vshll.u32 %v6198, 16
    %v6274 = vrot.slane %v6272, 5
    %v6275 = vsel %vm72, %v6270, %v6274
    %v6277 = vshrl.u32 %v6186, 16
    %v6279 = vrot.slane %v6277, 4
    %v6280 = vshll.u32 %v6186, 16
    %v6282 = vrot.slane %v6280, 5
    %v6283 = vor.u32 %v6279, %v6282
    %v6284 = vrot.slane %v6283, 4
    %v6286 = vshll.u32 %v6187, 16
    %v6288 = vrot.slane %v6286, 5
    %v6289 = vsel %vm72, %v6284, %v6288
    %v6290 = vshrl.u32 %v6187, 16
    %v6292 = vrot.slane %v6290, 4
    %v6293 = vor.u32 %v6292, %v6288
    %v6294 = vrot.slane %v6293, 4
    %v6296 = vshll.u32 %v6199, 16
    %v6298 = vrot.slane %v6296, 5
    %v6299 = vsel %vm72, %v6294, %v6298
    %v6301 = vshrl.u32 %v6188, 16
    %v6303 = vrot.slane %v6301, 4
    %v6304 = vshll.u32 %v6188, 16
    %v6306 = vrot.slane %v6304, 5
    %v6307 = vor.u32 %v6303, %v6306
    %v6308 = vrot.slane %v6307, 4
    %v6310 = vshll.u32 %v6189, 16
    %v6312 = vrot.slane %v6310, 5
    %v6313 = vsel %vm72, %v6308, %v6312
    %v6314 = vshrl.u32 %v6189, 16
    %v6316 = vrot.slane %v6314, 4
    %v6317 = vor.u32 %v6316, %v6312
    %v6318 = vrot.slane %v6317, 4
    %v6320 = vshll.u32 %v6200, 16
    %v6322 = vrot.slane %v6320, 5
    %v6323 = vsel %vm72, %v6318, %v6322
    %v6325 = vshrl.u32 %v6190, 16
    %v6327 = vrot.slane %v6325, 4
    %v6328 = vshll.u32 %v6190, 16
    %v6330 = vrot.slane %v6328, 5
    %v6331 = vor.u32 %v6327, %v6330
    %v6332 = vrot.slane %v6331, 4
    %v6334 = vshll.u32 %v6191, 16
    %v6336 = vrot.slane %v6334, 5
    %v6337 = vsel %vm72, %v6332, %v6336
    %v6338 = vshrl.u32 %v6191, 16
    %v6340 = vrot.slane %v6338, 4
    %v6341 = vor.u32 %v6340, %v6336
    %v6342 = vrot.slane %v6341, 4
    %v6344 = vshll.u32 %v6201, 16
    %v6346 = vrot.slane %v6344, 5
    %v6347 = vsel %vm72, %v6342, %v6346
    %v6349 = vshrl.u32 %v6192, 16
    %v6351 = vrot.slane %v6349, 4
    %v6352 = vshll.u32 %v6192, 16
    %v6354 = vrot.slane %v6352, 5
    %v6355 = vor.u32 %v6351, %v6354
    %v6356 = vrot.slane %v6355, 4
    %v6358 = vshll.u32 %v6193, 16
    %v6360 = vrot.slane %v6358, 5
    %v6361 = vsel %vm72, %v6356, %v6360
    %v6362 = vshrl.u32 %v6193, 16
    %v6364 = vrot.slane %v6362, 4
    %v6365 = vor.u32 %v6364, %v6360
    %v6366 = vrot.slane %v6365, 4
    %v6368 = vshll.u32 %v6202, 16
    %v6370 = vrot.slane %v6368, 5
    %v6371 = vsel %vm72, %v6366, %v6370
    %v6373 = vshrl.u32 %v6194, 16
    %v6375 = vrot.slane %v6373, 4
    %v6376 = vshll.u32 %v6194, 16
    %v6378 = vrot.slane %v6376, 5
    %v6379 = vor.u32 %v6375, %v6378
    %v6380 = vrot.slane %v6379, 4
    %v6382 = vshll.u32 %v6195, 16
    %v6384 = vrot.slane %v6382, 5
    %v6385 = vsel %vm72, %v6380, %v6384
    %v6386 = vshrl.u32 %v6195, 16
    %v6388 = vrot.slane %v6386, 4
    %v6389 = vor.u32 %v6388, %v6384
    %v6390 = vrot.slane %v6389, 4
    %v6392 = vshll.u32 %v6203, 16
    %v6394 = vrot.slane %v6392, 5
    %v6395 = vsel %vm72, %v6390, %v6394
    %v6396 = vunpack.c.l.b16 %v6217
    %v6397 = vunpack.c.l.b16 %v6227
    %v6398 = vunpack.c.l.b16 %v6241
    %v6399 = vunpack.c.l.b16 %v6251
    %v6400 = vunpack.c.l.b16 %v6265
    %v6401 = vunpack.c.l.b16 %v6275
    %v6402 = vunpack.c.l.b16 %v6289
    %v6403 = vunpack.c.l.b16 %v6299
    %v6404 = vunpack.c.l.b16 %v6313
    %v6405 = vunpack.c.l.b16 %v6323
    %v6406 = vunpack.c.l.b16 %v6337
    %v6407 = vunpack.c.l.b16 %v6347
    %v6408 = vunpack.c.l.b16 %v6361
    %v6409 = vunpack.c.l.b16 %v6371
    %v6410 = vunpack.c.l.b16 %v6385
    %v6411 = vunpack.c.l.b16 %v6395
    %v6412 = vpack.c.b16 %v6397, %v6396
    %v6413 = vpack.c.b16 %v6399, %v6398
    %v6414 = vpack.c.b16 %v6401, %v6400
    %v6415 = vpack.c.b16 %v6403, %v6402
    %v6416 = vpack.c.b16 %v6405, %v6404
    %v6417 = vpack.c.b16 %v6407, %v6406
    %v6418 = vpack.c.b16 %v6409, %v6408
    %v6419 = vpack.c.b16 %v6411, %v6410
    %v6421 = vsel %vm289, %v6412, 0
    %v6424 = vsel %vm289, %v6413, 0
    %v6427 = vsel %vm289, %v6414, 0
    %v6430 = vsel %vm289, %v6415, 0
    %v6433 = vsel %vm289, %v6416, 0
    %v6436 = vsel %vm289, %v6417, 0
    %v6439 = vsel %vm289, %v6418, 0
    %v6442 = vsel %vm289, %v6419, 0
    %6444 = vmatpush.bf16.msra.mxu0 0
    %6445 = vmatpush.bf16.msra.mxu0 0
    %6446 = vmatpush.bf16.msra.mxu0 0
    %6447 = vmatpush.bf16.msra.mxu0 0
    %6448 = vmatpush.bf16.msra.mxu0 0
    %6449 = vmatpush.bf16.msra.mxu0 0
    %6450 = vmatpush.bf16.msra.mxu0 0
    %6451 = vmatpush.bf16.msra.mxu0 %v316
    %6452 = vmatmul.bf16.gmra.mxu0 %v6421
    %v6453 = vpop.f32.mrf.mxu0
    %v6454 = vadd.f32 0.0, %v6453
    %v6455 = vpop.f32.mrf.mxu0
    %v6456 = vadd.f32 0.0, %v6455
    %6457 = vmatmul.bf16.gmra.mxu0 %v6424
    %v6458 = vpop.f32.mrf.mxu0
    %v6459 = vadd.f32 0.0, %v6458
    %v6460 = vpop.f32.mrf.mxu0
    %v6461 = vadd.f32 0.0, %v6460
    %6462 = vmatmul.bf16.gmra.mxu0 %v6427
    %v6463 = vpop.f32.mrf.mxu0
    %v6464 = vadd.f32 0.0, %v6463
    %v6465 = vpop.f32.mrf.mxu0
    %v6466 = vadd.f32 0.0, %v6465
    %6467 = vmatmul.bf16.gmra.mxu0 %v6430
    %v6468 = vpop.f32.mrf.mxu0
    %v6469 = vadd.f32 0.0, %v6468
    %v6470 = vpop.f32.mrf.mxu0
    %v6471 = vadd.f32 0.0, %v6470
    %6472 = vmatmul.bf16.gmra.mxu0 %v6433
    %v6473 = vpop.f32.mrf.mxu0
    %v6474 = vadd.f32 0.0, %v6473
    %v6475 = vpop.f32.mrf.mxu0
    %v6476 = vadd.f32 0.0, %v6475
    %6477 = vmatmul.bf16.gmra.mxu0 %v6436
    %v6478 = vpop.f32.mrf.mxu0
    %v6479 = vadd.f32 0.0, %v6478
    %v6480 = vpop.f32.mrf.mxu0
    %v6481 = vadd.f32 0.0, %v6480
    %6482 = vmatmul.bf16.gmra.mxu0 %v6439
    %v6483 = vpop.f32.mrf.mxu0
    %v6484 = vadd.f32 0.0, %v6483
    %v6485 = vpop.f32.mrf.mxu0
    %v6486 = vadd.f32 0.0, %v6485
    %6487 = vmatmul.bf16.gmra.mxu0 %v6442
    %v6488 = vpop.f32.mrf.mxu0
    %v6489 = vadd.f32 0.0, %v6488
    %v6490 = vpop.f32.mrf.mxu0
    %v6491 = vadd.f32 0.0, %v6490
    %6492 = vdwg.mxu0
    %v6509 = vunpack.c.l.b16 %v6180
    %v6510 = vunpack.c.l.b16 %v6181
    %v6511 = vunpack.c.l.b16 %v6182
    %v6512 = vunpack.c.l.b16 %v6183
    %v6513 = vunpack.c.l.b16 %v6184
    %v6514 = vunpack.c.l.b16 %v6185
    %v6515 = vunpack.c.l.b16 %v6186
    %v6516 = vunpack.c.l.b16 %v6187
    %v6517 = vunpack.c.l.b16 %v6188
    %v6518 = vunpack.c.l.b16 %v6189
    %v6519 = vunpack.c.l.b16 %v6190
    %v6520 = vunpack.c.l.b16 %v6191
    %v6521 = vunpack.c.l.b16 %v6192
    %v6522 = vunpack.c.l.b16 %v6193
    %v6523 = vunpack.c.l.b16 %v6194
    %v6524 = vunpack.c.l.b16 %v6195
    %v6525 = vpack.c.b16 %v6510, %v6509
    %v6526 = vpack.c.b16 %v6512, %v6511
    %v6527 = vpack.c.b16 %v6514, %v6513
    %v6528 = vpack.c.b16 %v6516, %v6515
    %v6529 = vpack.c.b16 %v6518, %v6517
    %v6530 = vpack.c.b16 %v6520, %v6519
    %v6531 = vpack.c.b16 %v6522, %v6521
    %v6532 = vpack.c.b16 %v6524, %v6523
    %v6534 = vsel %vm289, %v6525, 0
    %v6537 = vsel %vm289, %v6526, 0
    %v6540 = vsel %vm289, %v6527, 0
    %v6543 = vsel %vm289, %v6528, 0
    %v6546 = vsel %vm289, %v6529, 0
    %v6549 = vsel %vm289, %v6530, 0
    %v6552 = vsel %vm289, %v6531, 0
    %v6555 = vsel %vm289, %v6532, 0
    %6557 = vmatpush.bf16.msra.mxu0 0
    %6558 = vmatpush.bf16.msra.mxu0 0
    %6559 = vmatpush.bf16.msra.mxu0 0
    %6560 = vmatpush.bf16.msra.mxu0 0
    %6561 = vmatpush.bf16.msra.mxu0 0
    %6562 = vmatpush.bf16.msra.mxu0 0
    %6563 = vmatpush.bf16.msra.mxu0 0
    %6564 = vmatpush.bf16.msra.mxu0 %v432
    %6565 = vmatmul.bf16.gmra.mxu0 %v6534
    %v6566 = vpop.f32.mrf.mxu0
    %v6567 = vadd.f32 %v6454, %v6566
    %v6568 = vpop.f32.mrf.mxu0
    %v6569 = vadd.f32 %v6456, %v6568
    %6570 = vmatmul.bf16.gmra.mxu0 %v6537
    %v6571 = vpop.f32.mrf.mxu0
    %v6572 = vadd.f32 %v6459, %v6571
    %v6573 = vpop.f32.mrf.mxu0
    %v6574 = vadd.f32 %v6461, %v6573
    %6575 = vmatmul.bf16.gmra.mxu0 %v6540
    %v6576 = vpop.f32.mrf.mxu0
    %v6577 = vadd.f32 %v6464, %v6576
    %v6578 = vpop.f32.mrf.mxu0
    %v6579 = vadd.f32 %v6466, %v6578
    %6580 = vmatmul.bf16.gmra.mxu0 %v6543
    %v6581 = vpop.f32.mrf.mxu0
    %v6582 = vadd.f32 %v6469, %v6581
    %v6583 = vpop.f32.mrf.mxu0
    %v6584 = vadd.f32 %v6471, %v6583
    %6585 = vmatmul.bf16.gmra.mxu0 %v6546
    %v6586 = vpop.f32.mrf.mxu0
    %v6587 = vadd.f32 %v6474, %v6586
    %v6588 = vpop.f32.mrf.mxu0
    %v6589 = vadd.f32 %v6476, %v6588
    %6590 = vmatmul.bf16.gmra.mxu0 %v6549
    %v6591 = vpop.f32.mrf.mxu0
    %v6592 = vadd.f32 %v6479, %v6591
    %v6593 = vpop.f32.mrf.mxu0
    %v6594 = vadd.f32 %v6481, %v6593
    %6595 = vmatmul.bf16.gmra.mxu0 %v6552
    %v6596 = vpop.f32.mrf.mxu0
    %v6597 = vadd.f32 %v6484, %v6596
    %v6598 = vpop.f32.mrf.mxu0
    %v6599 = vadd.f32 %v6486, %v6598
    %6600 = vmatmul.bf16.gmra.mxu0 %v6555
    %v6601 = vpop.f32.mrf.mxu0
    %v6602 = vadd.f32 %v6489, %v6601
    %v6603 = vpop.f32.mrf.mxu0
    %v6604 = vadd.f32 %v6491, %v6603
    %6605 = vdwg.mxu0
    %v6606 = vld [vmem:[%s6179] sm:$0xe]
    %v6607 = vld [vmem:[%s6179 + $0xc] sm:$0xe]
    %v6608 = vld [vmem:[%s6179 + $0x18] sm:$0xe]
    %v6609 = vld [vmem:[%s6179 + $0x24] sm:$0xe]
    %v6610 = vld [vmem:[%s6179 + $0xd8] sm:$0xe]
    %v6611 = vld [vmem:[%s6179 + $0xe4] sm:$0xe]
    %v6612 = vld [vmem:[%s6179 + $0xf0] sm:$0xe]
    %v6613 = vld [vmem:[%s6179 + $0xfc] sm:$0xe]
    %v6630 = vrot.slane %v6606, 5
    %v6631 = vrot.slane %v6630, 4
    %v6632 = vrot.slane %v6181, 5
    %v6633 = vsel %vm509, %v6631, %v6632
    %v6634 = vrot.slane %v6632, 4
    %v6635 = vrot.slane %v6196, 5
    %v6636 = vsel %vm509, %v6634, %v6635
    %v6637 = vrot.slane %v6607, 5
    %v6638 = vrot.slane %v6637, 4
    %v6639 = vrot.slane %v6183, 5
    %v6640 = vsel %vm509, %v6638, %v6639
    %v6641 = vrot.slane %v6639, 4
    %v6642 = vrot.slane %v6197, 5
    %v6643 = vsel %vm509, %v6641, %v6642
    %v6644 = vrot.slane %v6608, 5
    %v6645 = vrot.slane %v6644, 4
    %v6646 = vrot.slane %v6185, 5
    %v6647 = vsel %vm509, %v6645, %v6646
    %v6648 = vrot.slane %v6646, 4
    %v6649 = vrot.slane %v6198, 5
    %v6650 = vsel %vm509, %v6648, %v6649
    %v6651 = vrot.slane %v6609, 5
    %v6652 = vrot.slane %v6651, 4
    %v6653 = vrot.slane %v6187, 5
    %v6654 = vsel %vm509, %v6652, %v6653
    %v6655 = vrot.slane %v6653, 4
    %v6656 = vrot.slane %v6199, 5
    %v6657 = vsel %vm509, %v6655, %v6656
    %v6658 = vrot.slane %v6610, 5
    %v6659 = vrot.slane %v6658, 4
    %v6660 = vrot.slane %v6189, 5
    %v6661 = vsel %vm509, %v6659, %v6660
    %v6662 = vrot.slane %v6660, 4
    %v6663 = vrot.slane %v6200, 5
    %v6664 = vsel %vm509, %v6662, %v6663
    %v6665 = vrot.slane %v6611, 5
    %v6666 = vrot.slane %v6665, 4
    %v6667 = vrot.slane %v6191, 5
    %v6668 = vsel %vm509, %v6666, %v6667
    %v6669 = vrot.slane %v6667, 4
    %v6670 = vrot.slane %v6201, 5
    %v6671 = vsel %vm509, %v6669, %v6670
    %v6672 = vrot.slane %v6612, 5
    %v6673 = vrot.slane %v6672, 4
    %v6674 = vrot.slane %v6193, 5
    %v6675 = vsel %vm509, %v6673, %v6674
    %v6676 = vrot.slane %v6674, 4
    %v6677 = vrot.slane %v6202, 5
    %v6678 = vsel %vm509, %v6676, %v6677
    %v6679 = vrot.slane %v6613, 5
    %v6680 = vrot.slane %v6679, 4
    %v6681 = vrot.slane %v6195, 5
    %v6682 = vsel %vm509, %v6680, %v6681
    %v6683 = vrot.slane %v6681, 4
    %v6684 = vrot.slane %v6203, 5
    %v6685 = vsel %vm509, %v6683, %v6684
    %v6686 = vunpack.c.l.b16 %v6633
    %v6687 = vunpack.c.l.b16 %v6636
    %v6688 = vunpack.c.l.b16 %v6640
    %v6689 = vunpack.c.l.b16 %v6643
    %v6690 = vunpack.c.l.b16 %v6647
    %v6691 = vunpack.c.l.b16 %v6650
    %v6692 = vunpack.c.l.b16 %v6654
    %v6693 = vunpack.c.l.b16 %v6657
    %v6694 = vunpack.c.l.b16 %v6661
    %v6695 = vunpack.c.l.b16 %v6664
    %v6696 = vunpack.c.l.b16 %v6668
    %v6697 = vunpack.c.l.b16 %v6671
    %v6698 = vunpack.c.l.b16 %v6675
    %v6699 = vunpack.c.l.b16 %v6678
    %v6700 = vunpack.c.l.b16 %v6682
    %v6701 = vunpack.c.l.b16 %v6685
    %v6702 = vpack.c.b16 %v6687, %v6686
    %v6703 = vpack.c.b16 %v6689, %v6688
    %v6704 = vpack.c.b16 %v6691, %v6690
    %v6705 = vpack.c.b16 %v6693, %v6692
    %v6706 = vpack.c.b16 %v6695, %v6694
    %v6707 = vpack.c.b16 %v6697, %v6696
    %v6708 = vpack.c.b16 %v6699, %v6698
    %v6709 = vpack.c.b16 %v6701, %v6700
    %v6711 = vsel %vm289, %v6702, 0
    %v6714 = vsel %vm289, %v6703, 0
    %v6717 = vsel %vm289, %v6704, 0
    %v6720 = vsel %vm289, %v6705, 0
    %v6723 = vsel %vm289, %v6706, 0
    %v6726 = vsel %vm289, %v6707, 0
    %v6729 = vsel %vm289, %v6708, 0
    %v6732 = vsel %vm289, %v6709, 0
    %6734 = vmatpush.bf16.msra.mxu0 0
    %6735 = vmatpush.bf16.msra.mxu0 0
    %6736 = vmatpush.bf16.msra.mxu0 0
    %6737 = vmatpush.bf16.msra.mxu0 0
    %6738 = vmatpush.bf16.msra.mxu0 0
    %6739 = vmatpush.bf16.msra.mxu0 0
    %6740 = vmatpush.bf16.msra.mxu0 0
    %6741 = vmatpush.bf16.msra.mxu0 %v615
    %6742 = vmatmul.bf16.gmra.mxu0 %v6711
    %v6743 = vpop.f32.mrf.mxu0
    %v6744 = vadd.f32 0.0, %v6743
    %v6745 = vpop.f32.mrf.mxu0
    %v6746 = vadd.f32 0.0, %v6745
    %6747 = vmatmul.bf16.gmra.mxu0 %v6714
    %v6748 = vpop.f32.mrf.mxu0
    %v6749 = vadd.f32 0.0, %v6748
    %v6750 = vpop.f32.mrf.mxu0
    %v6751 = vadd.f32 0.0, %v6750
    %6752 = vmatmul.bf16.gmra.mxu0 %v6717
    %v6753 = vpop.f32.mrf.mxu0
    %v6754 = vadd.f32 0.0, %v6753
    %v6755 = vpop.f32.mrf.mxu0
    %v6756 = vadd.f32 0.0, %v6755
    %6757 = vmatmul.bf16.gmra.mxu0 %v6720
    %v6758 = vpop.f32.mrf.mxu0
    %v6759 = vadd.f32 0.0, %v6758
    %v6760 = vpop.f32.mrf.mxu0
    %v6761 = vadd.f32 0.0, %v6760
    %6762 = vmatmul.bf16.gmra.mxu0 %v6723
    %v6763 = vpop.f32.mrf.mxu0
    %v6764 = vadd.f32 0.0, %v6763
    %v6765 = vpop.f32.mrf.mxu0
    %v6766 = vadd.f32 0.0, %v6765
    %6767 = vmatmul.bf16.gmra.mxu0 %v6726
    %v6768 = vpop.f32.mrf.mxu0
    %v6769 = vadd.f32 0.0, %v6768
    %v6770 = vpop.f32.mrf.mxu0
    %v6771 = vadd.f32 0.0, %v6770
    %6772 = vmatmul.bf16.gmra.mxu0 %v6729
    %v6773 = vpop.f32.mrf.mxu0
    %v6774 = vadd.f32 0.0, %v6773
    %v6775 = vpop.f32.mrf.mxu0
    %v6776 = vadd.f32 0.0, %v6775
    %6777 = vmatmul.bf16.gmra.mxu0 %v6732
    %v6778 = vpop.f32.mrf.mxu0
    %v6779 = vadd.f32 0.0, %v6778
    %v6780 = vpop.f32.mrf.mxu0
    %v6781 = vadd.f32 0.0, %v6780
    %6782 = vdwg.mxu0
    %v6783 = vadd.f32 %v6567, %v6744
    %v6784 = vadd.f32 %v6569, %v6746
    %v6785 = vadd.f32 %v6572, %v6749
    %v6786 = vadd.f32 %v6574, %v6751
    %v6787 = vadd.f32 %v6577, %v6754
    %v6788 = vadd.f32 %v6579, %v6756
    %v6789 = vadd.f32 %v6582, %v6759
    %v6790 = vadd.f32 %v6584, %v6761
    %v6791 = vadd.f32 %v6587, %v6764
    %v6792 = vadd.f32 %v6589, %v6766
    %v6793 = vadd.f32 %v6592, %v6769
    %v6794 = vadd.f32 %v6594, %v6771
    %v6795 = vadd.f32 %v6597, %v6774
    %v6796 = vadd.f32 %v6599, %v6776
    %v6797 = vadd.f32 %v6602, %v6779
    %v6798 = vadd.f32 %v6604, %v6781
    %s6799 = scalar_lea.vmem %s0, 156
    %v6800 = vld [vmem:[%s6799] sm:$0xf]
    %v6801 = vld [vmem:[%s6799 + $0x4] sm:$0xf]
    %v6802 = vld [vmem:[%s6799 + $0xc] sm:$0xf]
    %v6803 = vld [vmem:[%s6799 + $0x10] sm:$0xf]
    %v6804 = vld [vmem:[%s6799 + $0x18] sm:$0xf]
    %v6805 = vld [vmem:[%s6799 + $0x1c] sm:$0xf]
    %v6806 = vld [vmem:[%s6799 + $0x24] sm:$0xf]
    %v6807 = vld [vmem:[%s6799 + $0x28] sm:$0xf]
    %v6808 = vld [vmem:[%s6799 + $0xd8] sm:$0xf]
    %v6809 = vld [vmem:[%s6799 + $0xdc] sm:$0xf]
    %v6810 = vld [vmem:[%s6799 + $0xe4] sm:$0xf]
    %v6811 = vld [vmem:[%s6799 + $0xe8] sm:$0xf]
    %v6812 = vld [vmem:[%s6799 + $0xf0] sm:$0xf]
    %v6813 = vld [vmem:[%s6799 + $0xf4] sm:$0xf]
    %v6814 = vld [vmem:[%s6799 + $0xfc] sm:$0xf]
    %v6815 = vld [vmem:[%s6799 + $0x100] sm:$0xf]
    %v6832 = vunpack.c.l.b16 %v6800
    %v6833 = vunpack.c.l.b16 %v6801
    %v6834 = vunpack.c.l.b16 %v6802
    %v6835 = vunpack.c.l.b16 %v6803
    %v6836 = vunpack.c.l.b16 %v6804
    %v6837 = vunpack.c.l.b16 %v6805
    %v6838 = vunpack.c.l.b16 %v6806
    %v6839 = vunpack.c.l.b16 %v6807
    %v6840 = vunpack.c.l.b16 %v6808
    %v6841 = vunpack.c.l.b16 %v6809
    %v6842 = vunpack.c.l.b16 %v6810
    %v6843 = vunpack.c.l.b16 %v6811
    %v6844 = vunpack.c.l.b16 %v6812
    %v6845 = vunpack.c.l.b16 %v6813
    %v6846 = vunpack.c.l.b16 %v6814
    %v6847 = vunpack.c.l.b16 %v6815
    %v6848 = vpack.c.b16 %v6833, %v6832
    %v6849 = vpack.c.b16 %v6835, %v6834
    %v6850 = vpack.c.b16 %v6837, %v6836
    %v6851 = vpack.c.b16 %v6839, %v6838
    %v6852 = vpack.c.b16 %v6841, %v6840
    %v6853 = vpack.c.b16 %v6843, %v6842
    %v6854 = vpack.c.b16 %v6845, %v6844
    %v6855 = vpack.c.b16 %v6847, %v6846
    %v6857 = vsel %vm289, %v6848, 0
    %v6860 = vsel %vm289, %v6849, 0
    %v6863 = vsel %vm289, %v6850, 0
    %v6866 = vsel %vm289, %v6851, 0
    %v6869 = vsel %vm289, %v6852, 0
    %v6872 = vsel %vm289, %v6853, 0
    %v6875 = vsel %vm289, %v6854, 0
    %v6878 = vsel %vm289, %v6855, 0
    %6880 = vmatpush.bf16.msra.mxu0 0
    %6881 = vmatpush.bf16.msra.mxu0 0
    %6882 = vmatpush.bf16.msra.mxu0 0
    %6883 = vmatpush.bf16.msra.mxu0 0
    %6884 = vmatpush.bf16.msra.mxu0 0
    %6885 = vmatpush.bf16.msra.mxu0 0
    %6886 = vmatpush.bf16.msra.mxu0 0
    %6887 = vmatpush.bf16.msra.mxu0 %v764
    %6888 = vmatmul.bf16.gmra.mxu0 %v6857
    %v6889 = vpop.f32.mrf.mxu0
    %v6890 = vadd.f32 0.0, %v6889
    %v6891 = vpop.f32.mrf.mxu0
    %v6892 = vadd.f32 0.0, %v6891
    %6893 = vmatmul.bf16.gmra.mxu0 %v6860
    %v6894 = vpop.f32.mrf.mxu0
    %v6895 = vadd.f32 0.0, %v6894
    %v6896 = vpop.f32.mrf.mxu0
    %v6897 = vadd.f32 0.0, %v6896
    %6898 = vmatmul.bf16.gmra.mxu0 %v6863
    %v6899 = vpop.f32.mrf.mxu0
    %v6900 = vadd.f32 0.0, %v6899
    %v6901 = vpop.f32.mrf.mxu0
    %v6902 = vadd.f32 0.0, %v6901
    %6903 = vmatmul.bf16.gmra.mxu0 %v6866
    %v6904 = vpop.f32.mrf.mxu0
    %v6905 = vadd.f32 0.0, %v6904
    %v6906 = vpop.f32.mrf.mxu0
    %v6907 = vadd.f32 0.0, %v6906
    %6908 = vmatmul.bf16.gmra.mxu0 %v6869
    %v6909 = vpop.f32.mrf.mxu0
    %v6910 = vadd.f32 0.0, %v6909
    %v6911 = vpop.f32.mrf.mxu0
    %v6912 = vadd.f32 0.0, %v6911
    %6913 = vmatmul.bf16.gmra.mxu0 %v6872
    %v6914 = vpop.f32.mrf.mxu0
    %v6915 = vadd.f32 0.0, %v6914
    %v6916 = vpop.f32.mrf.mxu0
    %v6917 = vadd.f32 0.0, %v6916
    %6918 = vmatmul.bf16.gmra.mxu0 %v6875
    %v6919 = vpop.f32.mrf.mxu0
    %v6920 = vadd.f32 0.0, %v6919
    %v6921 = vpop.f32.mrf.mxu0
    %v6922 = vadd.f32 0.0, %v6921
    %6923 = vmatmul.bf16.gmra.mxu0 %v6878
    %v6924 = vpop.f32.mrf.mxu0
    %v6925 = vadd.f32 0.0, %v6924
    %v6926 = vpop.f32.mrf.mxu0
    %v6927 = vadd.f32 0.0, %v6926
    %6928 = vdwg.mxu0
    %v6929 = vadd.f32 %v6783, %v6890
    %v6930 = vadd.f32 %v6784, %v6892
    %v6931 = vadd.f32 %v6785, %v6895
    %v6932 = vadd.f32 %v6786, %v6897
    %v6933 = vadd.f32 %v6787, %v6900
    %v6934 = vadd.f32 %v6788, %v6902
    %v6935 = vadd.f32 %v6789, %v6905
    %v6936 = vadd.f32 %v6790, %v6907
    %v6937 = vadd.f32 %v6791, %v6910
    %v6938 = vadd.f32 %v6792, %v6912
    %v6939 = vadd.f32 %v6793, %v6915
    %v6940 = vadd.f32 %v6794, %v6917
    %v6941 = vadd.f32 %v6795, %v6920
    %v6942 = vadd.f32 %v6796, %v6922
    %v6943 = vadd.f32 %v6797, %v6925
    %v6944 = vadd.f32 %v6798, %v6927
    %v6945 = vld [vmem:[%s6799] sm:$0xf]
    %v6946 = vld [vmem:[%s6799 + $0x4] sm:$0xf]
    %v6947 = vld [vmem:[%s6799 + $0x8] sm:$0x1]
    %v6948 = vld [vmem:[%s6799 + $0xc] sm:$0xf]
    %v6949 = vld [vmem:[%s6799 + $0x10] sm:$0xf]
    %v6950 = vld [vmem:[%s6799 + $0x14] sm:$0x1]
    %v6951 = vld [vmem:[%s6799 + $0x18] sm:$0xf]
    %v6952 = vld [vmem:[%s6799 + $0x1c] sm:$0xf]
    %v6953 = vld [vmem:[%s6799 + $0x20] sm:$0x1]
    %v6954 = vld [vmem:[%s6799 + $0x24] sm:$0xf]
    %v6955 = vld [vmem:[%s6799 + $0x28] sm:$0xf]
    %v6956 = vld [vmem:[%s6799 + $0x2c] sm:$0x1]
    %v6957 = vld [vmem:[%s6799 + $0xd8] sm:$0xf]
    %v6958 = vld [vmem:[%s6799 + $0xdc] sm:$0xf]
    %v6959 = vld [vmem:[%s6799 + $0xe0] sm:$0x1]
    %v6960 = vld [vmem:[%s6799 + $0xe4] sm:$0xf]
    %v6961 = vld [vmem:[%s6799 + $0xe8] sm:$0xf]
    %v6962 = vld [vmem:[%s6799 + $0xec] sm:$0x1]
    %v6963 = vld [vmem:[%s6799 + $0xf0] sm:$0xf]
    %v6964 = vld [vmem:[%s6799 + $0xf4] sm:$0xf]
    %v6965 = vld [vmem:[%s6799 + $0xf8] sm:$0x1]
    %v6966 = vld [vmem:[%s6799 + $0xfc] sm:$0xf]
    %v6967 = vld [vmem:[%s6799 + $0x100] sm:$0xf]
    %v6968 = vld [vmem:[%s6799 + $0x104] sm:$0x1]
    %v6970 = vshrl.u32 %v6945, 16
    %v6972 = vrot.slane %v6970, 4
    %v6973 = vshll.u32 %v6945, 16
    %v6975 = vrot.slane %v6973, 5
    %v6976 = vor.u32 %v6972, %v6975
    %v6977 = vrot.slane %v6976, 4
    %v6979 = vshll.u32 %v6946, 16
    %v6981 = vrot.slane %v6979, 5
    %v6982 = vsel %vm72, %v6977, %v6981
    %v6983 = vshrl.u32 %v6946, 16
    %v6985 = vrot.slane %v6983, 4
    %v6986 = vor.u32 %v6985, %v6981
    %v6987 = vrot.slane %v6986, 4
    %v6989 = vshll.u32 %v6947, 16
    %v6991 = vrot.slane %v6989, 5
    %v6992 = vsel %vm72, %v6987, %v6991
    %v6994 = vshrl.u32 %v6948, 16
    %v6996 = vrot.slane %v6994, 4
    %v6997 = vshll.u32 %v6948, 16
    %v6999 = vrot.slane %v6997, 5
    %v7000 = vor.u32 %v6996, %v6999
    %v7001 = vrot.slane %v7000, 4
    %v7003 = vshll.u32 %v6949, 16
    %v7005 = vrot.slane %v7003, 5
    %v7006 = vsel %vm72, %v7001, %v7005
    %v7007 = vshrl.u32 %v6949, 16
    %v7009 = vrot.slane %v7007, 4
    %v7010 = vor.u32 %v7009, %v7005
    %v7011 = vrot.slane %v7010, 4
    %v7013 = vshll.u32 %v6950, 16
    %v7015 = vrot.slane %v7013, 5
    %v7016 = vsel %vm72, %v7011, %v7015
    %v7018 = vshrl.u32 %v6951, 16
    %v7020 = vrot.slane %v7018, 4
    %v7021 = vshll.u32 %v6951, 16
    %v7023 = vrot.slane %v7021, 5
    %v7024 = vor.u32 %v7020, %v7023
    %v7025 = vrot.slane %v7024, 4
    %v7027 = vshll.u32 %v6952, 16
    %v7029 = vrot.slane %v7027, 5
    %v7030 = vsel %vm72, %v7025, %v7029
    %v7031 = vshrl.u32 %v6952, 16
    %v7033 = vrot.slane %v7031, 4
    %v7034 = vor.u32 %v7033, %v7029
    %v7035 = vrot.slane %v7034, 4
    %v7037 = vshll.u32 %v6953, 16
    %v7039 = vrot.slane %v7037, 5
    %v7040 = vsel %vm72, %v7035, %v7039
    %v7042 = vshrl.u32 %v6954, 16
    %v7044 = vrot.slane %v7042, 4
    %v7045 = vshll.u32 %v6954, 16
    %v7047 = vrot.slane %v7045, 5
    %v7048 = vor.u32 %v7044, %v7047
    %v7049 = vrot.slane %v7048, 4
    %v7051 = vshll.u32 %v6955, 16
    %v7053 = vrot.slane %v7051, 5
    %v7054 = vsel %vm72, %v7049, %v7053
    %v7055 = vshrl.u32 %v6955, 16
    %v7057 = vrot.slane %v7055, 4
    %v7058 = vor.u32 %v7057, %v7053
    %v7059 = vrot.slane %v7058, 4
    %v7061 = vshll.u32 %v6956, 16
    %v7063 = vrot.slane %v7061, 5
    %v7064 = vsel %vm72, %v7059, %v7063
    %v7066 = vshrl.u32 %v6957, 16
    %v7068 = vrot.slane %v7066, 4
    %v7069 = vshll.u32 %v6957, 16
    %v7071 = vrot.slane %v7069, 5
    %v7072 = vor.u32 %v7068, %v7071
    %v7073 = vrot.slane %v7072, 4
    %v7075 = vshll.u32 %v6958, 16
    %v7077 = vrot.slane %v7075, 5
    %v7078 = vsel %vm72, %v7073, %v7077
    %v7079 = vshrl.u32 %v6958, 16
    %v7081 = vrot.slane %v7079, 4
    %v7082 = vor.u32 %v7081, %v7077
    %v7083 = vrot.slane %v7082, 4
    %v7085 = vshll.u32 %v6959, 16
    %v7087 = vrot.slane %v7085, 5
    %v7088 = vsel %vm72, %v7083, %v7087
    %v7090 = vshrl.u32 %v6960, 16
    %v7092 = vrot.slane %v7090, 4
    %v7093 = vshll.u32 %v6960, 16
    %v7095 = vrot.slane %v7093, 5
    %v7096 = vor.u32 %v7092, %v7095
    %v7097 = vrot.slane %v7096, 4
    %v7099 = vshll.u32 %v6961, 16
    %v7101 = vrot.slane %v7099, 5
    %v7102 = vsel %vm72, %v7097, %v7101
    %v7103 = vshrl.u32 %v6961, 16
    %v7105 = vrot.slane %v7103, 4
    %v7106 = vor.u32 %v7105, %v7101
    %v7107 = vrot.slane %v7106, 4
    %v7109 = vshll.u32 %v6962, 16
    %v7111 = vrot.slane %v7109, 5
    %v7112 = vsel %vm72, %v7107, %v7111
    %v7114 = vshrl.u32 %v6963, 16
    %v7116 = vrot.slane %v7114, 4
    %v7117 = vshll.u32 %v6963, 16
    %v7119 = vrot.slane %v7117, 5
    %v7120 = vor.u32 %v7116, %v7119
    %v7121 = vrot.slane %v7120, 4
    %v7123 = vshll.u32 %v6964, 16
    %v7125 = vrot.slane %v7123, 5
    %v7126 = vsel %vm72, %v7121, %v7125
    %v7127 = vshrl.u32 %v6964, 16
    %v7129 = vrot.slane %v7127, 4
    %v7130 = vor.u32 %v7129, %v7125
    %v7131 = vrot.slane %v7130, 4
    %v7133 = vshll.u32 %v6965, 16
    %v7135 = vrot.slane %v7133, 5
    %v7136 = vsel %vm72, %v7131, %v7135
    %v7138 = vshrl.u32 %v6966, 16
    %v7140 = vrot.slane %v7138, 4
    %v7141 = vshll.u32 %v6966, 16
    %v7143 = vrot.slane %v7141, 5
    %v7144 = vor.u32 %v7140, %v7143
    %v7145 = vrot.slane %v7144, 4
    %v7147 = vshll.u32 %v6967, 16
    %v7149 = vrot.slane %v7147, 5
    %v7150 = vsel %vm72, %v7145, %v7149
    %v7151 = vshrl.u32 %v6967, 16
    %v7153 = vrot.slane %v7151, 4
    %v7154 = vor.u32 %v7153, %v7149
    %v7155 = vrot.slane %v7154, 4
    %v7157 = vshll.u32 %v6968, 16
    %v7159 = vrot.slane %v7157, 5
    %v7160 = vsel %vm72, %v7155, %v7159
    %v7161 = vunpack.c.l.b16 %v6982
    %v7162 = vunpack.c.l.b16 %v6992
    %v7163 = vunpack.c.l.b16 %v7006
    %v7164 = vunpack.c.l.b16 %v7016
    %v7165 = vunpack.c.l.b16 %v7030
    %v7166 = vunpack.c.l.b16 %v7040
    %v7167 = vunpack.c.l.b16 %v7054
    %v7168 = vunpack.c.l.b16 %v7064
    %v7169 = vunpack.c.l.b16 %v7078
    %v7170 = vunpack.c.l.b16 %v7088
    %v7171 = vunpack.c.l.b16 %v7102
    %v7172 = vunpack.c.l.b16 %v7112
    %v7173 = vunpack.c.l.b16 %v7126
    %v7174 = vunpack.c.l.b16 %v7136
    %v7175 = vunpack.c.l.b16 %v7150
    %v7176 = vunpack.c.l.b16 %v7160
    %v7177 = vpack.c.b16 %v7162, %v7161
    %v7178 = vpack.c.b16 %v7164, %v7163
    %v7179 = vpack.c.b16 %v7166, %v7165
    %v7180 = vpack.c.b16 %v7168, %v7167
    %v7181 = vpack.c.b16 %v7170, %v7169
    %v7182 = vpack.c.b16 %v7172, %v7171
    %v7183 = vpack.c.b16 %v7174, %v7173
    %v7184 = vpack.c.b16 %v7176, %v7175
    %v7186 = vsel %vm289, %v7177, 0
    %v7189 = vsel %vm289, %v7178, 0
    %v7192 = vsel %vm289, %v7179, 0
    %v7195 = vsel %vm289, %v7180, 0
    %v7198 = vsel %vm289, %v7181, 0
    %v7201 = vsel %vm289, %v7182, 0
    %v7204 = vsel %vm289, %v7183, 0
    %v7207 = vsel %vm289, %v7184, 0
    %7209 = vmatpush.bf16.msra.mxu0 0
    %7210 = vmatpush.bf16.msra.mxu0 0
    %7211 = vmatpush.bf16.msra.mxu0 0
    %7212 = vmatpush.bf16.msra.mxu0 0
    %7213 = vmatpush.bf16.msra.mxu0 0
    %7214 = vmatpush.bf16.msra.mxu0 0
    %7215 = vmatpush.bf16.msra.mxu0 0
    %7216 = vmatpush.bf16.msra.mxu0 %v1096
    %7217 = vmatmul.bf16.gmra.mxu0 %v7186
    %v7218 = vpop.f32.mrf.mxu0
    %v7219 = vadd.f32 0.0, %v7218
    %v7220 = vpop.f32.mrf.mxu0
    %v7221 = vadd.f32 0.0, %v7220
    %7222 = vmatmul.bf16.gmra.mxu0 %v7189
    %v7223 = vpop.f32.mrf.mxu0
    %v7224 = vadd.f32 0.0, %v7223
    %v7225 = vpop.f32.mrf.mxu0
    %v7226 = vadd.f32 0.0, %v7225
    %7227 = vmatmul.bf16.gmra.mxu0 %v7192
    %v7228 = vpop.f32.mrf.mxu0
    %v7229 = vadd.f32 0.0, %v7228
    %v7230 = vpop.f32.mrf.mxu0
    %v7231 = vadd.f32 0.0, %v7230
    %7232 = vmatmul.bf16.gmra.mxu0 %v7195
    %v7233 = vpop.f32.mrf.mxu0
    %v7234 = vadd.f32 0.0, %v7233
    %v7235 = vpop.f32.mrf.mxu0
    %v7236 = vadd.f32 0.0, %v7235
    %7237 = vmatmul.bf16.gmra.mxu0 %v7198
    %v7238 = vpop.f32.mrf.mxu0
    %v7239 = vadd.f32 0.0, %v7238
    %v7240 = vpop.f32.mrf.mxu0
    %v7241 = vadd.f32 0.0, %v7240
    %7242 = vmatmul.bf16.gmra.mxu0 %v7201
    %v7243 = vpop.f32.mrf.mxu0
    %v7244 = vadd.f32 0.0, %v7243
    %v7245 = vpop.f32.mrf.mxu0
    %v7246 = vadd.f32 0.0, %v7245
    %7247 = vmatmul.bf16.gmra.mxu0 %v7204
    %v7248 = vpop.f32.mrf.mxu0
    %v7249 = vadd.f32 0.0, %v7248
    %v7250 = vpop.f32.mrf.mxu0
    %v7251 = vadd.f32 0.0, %v7250
    %7252 = vmatmul.bf16.gmra.mxu0 %v7207
    %v7253 = vpop.f32.mrf.mxu0
    %v7254 = vadd.f32 0.0, %v7253
    %v7255 = vpop.f32.mrf.mxu0
    %v7256 = vadd.f32 0.0, %v7255
    %7257 = vdwg.mxu0
    %v7258 = vadd.f32 %v6929, %v7219
    %v7259 = vadd.f32 %v6930, %v7221
    %v7260 = vadd.f32 %v6931, %v7224
    %v7261 = vadd.f32 %v6932, %v7226
    %v7262 = vadd.f32 %v6933, %v7229
    %v7263 = vadd.f32 %v6934, %v7231
    %v7264 = vadd.f32 %v6935, %v7234
    %v7265 = vadd.f32 %v6936, %v7236
    %v7266 = vadd.f32 %v6937, %v7239
    %v7267 = vadd.f32 %v6938, %v7241
    %v7268 = vadd.f32 %v6939, %v7244
    %v7269 = vadd.f32 %v6940, %v7246
    %v7270 = vadd.f32 %v6941, %v7249
    %v7271 = vadd.f32 %v6942, %v7251
    %v7272 = vadd.f32 %v6943, %v7254
    %v7273 = vadd.f32 %v6944, %v7256
    %v7274 = vld [vmem:[%s6799] sm:$0xe]
    %v7275 = vld [vmem:[%s6799 + $0xc] sm:$0xe]
    %v7276 = vld [vmem:[%s6799 + $0x18] sm:$0xe]
    %v7277 = vld [vmem:[%s6799 + $0x24] sm:$0xe]
    %v7278 = vld [vmem:[%s6799 + $0xd8] sm:$0xe]
    %v7279 = vld [vmem:[%s6799 + $0xe4] sm:$0xe]
    %v7280 = vld [vmem:[%s6799 + $0xf0] sm:$0xe]
    %v7281 = vld [vmem:[%s6799 + $0xfc] sm:$0xe]
    %v7306 = vrot.slane %v7274, 5
    %v7307 = vrot.slane %v7306, 4
    %v7308 = vrot.slane %v6946, 5
    %v7309 = vsel %vm509, %v7307, %v7308
    %v7310 = vrot.slane %v7308, 4
    %v7311 = vrot.slane %v6947, 5
    %v7312 = vsel %vm509, %v7310, %v7311
    %v7313 = vrot.slane %v7275, 5
    %v7314 = vrot.slane %v7313, 4
    %v7315 = vrot.slane %v6949, 5
    %v7316 = vsel %vm509, %v7314, %v7315
    %v7317 = vrot.slane %v7315, 4
    %v7318 = vrot.slane %v6950, 5
    %v7319 = vsel %vm509, %v7317, %v7318
    %v7320 = vrot.slane %v7276, 5
    %v7321 = vrot.slane %v7320, 4
    %v7322 = vrot.slane %v6952, 5
    %v7323 = vsel %vm509, %v7321, %v7322
    %v7324 = vrot.slane %v7322, 4
    %v7325 = vrot.slane %v6953, 5
    %v7326 = vsel %vm509, %v7324, %v7325
    %v7327 = vrot.slane %v7277, 5
    %v7328 = vrot.slane %v7327, 4
    %v7329 = vrot.slane %v6955, 5
    %v7330 = vsel %vm509, %v7328, %v7329
    %v7331 = vrot.slane %v7329, 4
    %v7332 = vrot.slane %v6956, 5
    %v7333 = vsel %vm509, %v7331, %v7332
    %v7334 = vrot.slane %v7278, 5
    %v7335 = vrot.slane %v7334, 4
    %v7336 = vrot.slane %v6958, 5
    %v7337 = vsel %vm509, %v7335, %v7336
    %v7338 = vrot.slane %v7336, 4
    %v7339 = vrot.slane %v6959, 5
    %v7340 = vsel %vm509, %v7338, %v7339
    %v7341 = vrot.slane %v7279, 5
    %v7342 = vrot.slane %v7341, 4
    %v7343 = vrot.slane %v6961, 5
    %v7344 = vsel %vm509, %v7342, %v7343
    %v7345 = vrot.slane %v7343, 4
    %v7346 = vrot.slane %v6962, 5
    %v7347 = vsel %vm509, %v7345, %v7346
    %v7348 = vrot.slane %v7280, 5
    %v7349 = vrot.slane %v7348, 4
    %v7350 = vrot.slane %v6964, 5
    %v7351 = vsel %vm509, %v7349, %v7350
    %v7352 = vrot.slane %v7350, 4
    %v7353 = vrot.slane %v6965, 5
    %v7354 = vsel %vm509, %v7352, %v7353
    %v7355 = vrot.slane %v7281, 5
    %v7356 = vrot.slane %v7355, 4
    %v7357 = vrot.slane %v6967, 5
    %v7358 = vsel %vm509, %v7356, %v7357
    %v7359 = vrot.slane %v7357, 4
    %v7360 = vrot.slane %v6968, 5
    %v7361 = vsel %vm509, %v7359, %v7360
    %v7362 = vunpack.c.l.b16 %v7309
    %v7363 = vunpack.c.l.b16 %v7312
    %v7364 = vunpack.c.l.b16 %v7316
    %v7365 = vunpack.c.l.b16 %v7319
    %v7366 = vunpack.c.l.b16 %v7323
    %v7367 = vunpack.c.l.b16 %v7326
    %v7368 = vunpack.c.l.b16 %v7330
    %v7369 = vunpack.c.l.b16 %v7333
    %v7370 = vunpack.c.l.b16 %v7337
    %v7371 = vunpack.c.l.b16 %v7340
    %v7372 = vunpack.c.l.b16 %v7344
    %v7373 = vunpack.c.l.b16 %v7347
    %v7374 = vunpack.c.l.b16 %v7351
    %v7375 = vunpack.c.l.b16 %v7354
    %v7376 = vunpack.c.l.b16 %v7358
    %v7377 = vunpack.c.l.b16 %v7361
    %v7378 = vpack.c.b16 %v7363, %v7362
    %v7379 = vpack.c.b16 %v7365, %v7364
    %v7380 = vpack.c.b16 %v7367, %v7366
    %v7381 = vpack.c.b16 %v7369, %v7368
    %v7382 = vpack.c.b16 %v7371, %v7370
    %v7383 = vpack.c.b16 %v7373, %v7372
    %v7384 = vpack.c.b16 %v7375, %v7374
    %v7385 = vpack.c.b16 %v7377, %v7376
    %v7387 = vsel %vm289, %v7378, 0
    %v7390 = vsel %vm289, %v7379, 0
    %v7393 = vsel %vm289, %v7380, 0
    %v7396 = vsel %vm289, %v7381, 0
    %v7399 = vsel %vm289, %v7382, 0
    %v7402 = vsel %vm289, %v7383, 0
    %v7405 = vsel %vm289, %v7384, 0
    %v7408 = vsel %vm289, %v7385, 0
    %7410 = vmatpush.bf16.msra.mxu0 0
    %7411 = vmatpush.bf16.msra.mxu0 0
    %7412 = vmatpush.bf16.msra.mxu0 0
    %7413 = vmatpush.bf16.msra.mxu0 0
    %7414 = vmatpush.bf16.msra.mxu0 0
    %7415 = vmatpush.bf16.msra.mxu0 0
    %7416 = vmatpush.bf16.msra.mxu0 0
    %7417 = vmatpush.bf16.msra.mxu0 %v1300
    %7418 = vmatmul.bf16.gmra.mxu0 %v7387
    %v7419 = vpop.f32.mrf.mxu0
    %v7420 = vadd.f32 0.0, %v7419
    %v7421 = vpop.f32.mrf.mxu0
    %v7422 = vadd.f32 0.0, %v7421
    %7423 = vmatmul.bf16.gmra.mxu0 %v7390
    %v7424 = vpop.f32.mrf.mxu0
    %v7425 = vadd.f32 0.0, %v7424
    %v7426 = vpop.f32.mrf.mxu0
    %v7427 = vadd.f32 0.0, %v7426
    %7428 = vmatmul.bf16.gmra.mxu0 %v7393
    %v7429 = vpop.f32.mrf.mxu0
    %v7430 = vadd.f32 0.0, %v7429
    %v7431 = vpop.f32.mrf.mxu0
    %v7432 = vadd.f32 0.0, %v7431
    %7433 = vmatmul.bf16.gmra.mxu0 %v7396
    %v7434 = vpop.f32.mrf.mxu0
    %v7435 = vadd.f32 0.0, %v7434
    %v7436 = vpop.f32.mrf.mxu0
    %v7437 = vadd.f32 0.0, %v7436
    %7438 = vmatmul.bf16.gmra.mxu0 %v7399
    %v7439 = vpop.f32.mrf.mxu0
    %v7440 = vadd.f32 0.0, %v7439
    %v7441 = vpop.f32.mrf.mxu0
    %v7442 = vadd.f32 0.0, %v7441
    %7443 = vmatmul.bf16.gmra.mxu0 %v7402
    %v7444 = vpop.f32.mrf.mxu0
    %v7445 = vadd.f32 0.0, %v7444
    %v7446 = vpop.f32.mrf.mxu0
    %v7447 = vadd.f32 0.0, %v7446
    %7448 = vmatmul.bf16.gmra.mxu0 %v7405
    %v7449 = vpop.f32.mrf.mxu0
    %v7450 = vadd.f32 0.0, %v7449
    %v7451 = vpop.f32.mrf.mxu0
    %v7452 = vadd.f32 0.0, %v7451
    %7453 = vmatmul.bf16.gmra.mxu0 %v7408
    %v7454 = vpop.f32.mrf.mxu0
    %v7455 = vadd.f32 0.0, %v7454
    %v7456 = vpop.f32.mrf.mxu0
    %v7457 = vadd.f32 0.0, %v7456
    %7458 = vdwg.mxu0
    %v7459 = vadd.f32 %v7258, %v7420
    %v7460 = vadd.f32 %v7259, %v7422
    %v7461 = vadd.f32 %v7260, %v7425
    %v7462 = vadd.f32 %v7261, %v7427
    %v7463 = vadd.f32 %v7262, %v7430
    %v7464 = vadd.f32 %v7263, %v7432
    %v7465 = vadd.f32 %v7264, %v7435
    %v7466 = vadd.f32 %v7265, %v7437
    %v7467 = vadd.f32 %v7266, %v7440
    %v7468 = vadd.f32 %v7267, %v7442
    %v7469 = vadd.f32 %v7268, %v7445
    %v7470 = vadd.f32 %v7269, %v7447
    %v7471 = vadd.f32 %v7270, %v7450
    %v7472 = vadd.f32 %v7271, %v7452
    %v7473 = vadd.f32 %v7272, %v7455
    %v7474 = vadd.f32 %v7273, %v7457
    %s7475 = scalar_lea.vmem %s0, 168
    %v7476 = vld [vmem:[%s7475] sm:$0xf]
    %v7477 = vld [vmem:[%s7475 + $0x4] sm:$0xf]
    %v7478 = vld [vmem:[%s7475 + $0xc] sm:$0xf]
    %v7479 = vld [vmem:[%s7475 + $0x10] sm:$0xf]
    %v7480 = vld [vmem:[%s7475 + $0x18] sm:$0xf]
    %v7481 = vld [vmem:[%s7475 + $0x1c] sm:$0xf]
    %v7482 = vld [vmem:[%s7475 + $0x24] sm:$0xf]
    %v7483 = vld [vmem:[%s7475 + $0x28] sm:$0xf]
    %v7484 = vld [vmem:[%s7475 + $0xd8] sm:$0xf]
    %v7485 = vld [vmem:[%s7475 + $0xdc] sm:$0xf]
    %v7486 = vld [vmem:[%s7475 + $0xe4] sm:$0xf]
    %v7487 = vld [vmem:[%s7475 + $0xe8] sm:$0xf]
    %v7488 = vld [vmem:[%s7475 + $0xf0] sm:$0xf]
    %v7489 = vld [vmem:[%s7475 + $0xf4] sm:$0xf]
    %v7490 = vld [vmem:[%s7475 + $0xfc] sm:$0xf]
    %v7491 = vld [vmem:[%s7475 + $0x100] sm:$0xf]
    %v7508 = vunpack.c.l.b16 %v7476
    %v7509 = vunpack.c.l.b16 %v7477
    %v7510 = vunpack.c.l.b16 %v7478
    %v7511 = vunpack.c.l.b16 %v7479
    %v7512 = vunpack.c.l.b16 %v7480
    %v7513 = vunpack.c.l.b16 %v7481
    %v7514 = vunpack.c.l.b16 %v7482
    %v7515 = vunpack.c.l.b16 %v7483
    %v7516 = vunpack.c.l.b16 %v7484
    %v7517 = vunpack.c.l.b16 %v7485
    %v7518 = vunpack.c.l.b16 %v7486
    %v7519 = vunpack.c.l.b16 %v7487
    %v7520 = vunpack.c.l.b16 %v7488
    %v7521 = vunpack.c.l.b16 %v7489
    %v7522 = vunpack.c.l.b16 %v7490
    %v7523 = vunpack.c.l.b16 %v7491
    %v7524 = vpack.c.b16 %v7509, %v7508
    %v7525 = vpack.c.b16 %v7511, %v7510
    %v7526 = vpack.c.b16 %v7513, %v7512
    %v7527 = vpack.c.b16 %v7515, %v7514
    %v7528 = vpack.c.b16 %v7517, %v7516
    %v7529 = vpack.c.b16 %v7519, %v7518
    %v7530 = vpack.c.b16 %v7521, %v7520
    %v7531 = vpack.c.b16 %v7523, %v7522
    %v7533 = vsel %vm289, %v7524, 0
    %v7536 = vsel %vm289, %v7525, 0
    %v7539 = vsel %vm289, %v7526, 0
    %v7542 = vsel %vm289, %v7527, 0
    %v7545 = vsel %vm289, %v7528, 0
    %v7548 = vsel %vm289, %v7529, 0
    %v7551 = vsel %vm289, %v7530, 0
    %v7554 = vsel %vm289, %v7531, 0
    %7556 = vmatpush.bf16.msra.mxu0 0
    %7557 = vmatpush.bf16.msra.mxu0 0
    %7558 = vmatpush.bf16.msra.mxu0 0
    %7559 = vmatpush.bf16.msra.mxu0 0
    %7560 = vmatpush.bf16.msra.mxu0 0
    %7561 = vmatpush.bf16.msra.mxu0 0
    %7562 = vmatpush.bf16.msra.mxu0 0
    %7563 = vmatpush.bf16.msra.mxu0 %v1449
    %7564 = vmatmul.bf16.gmra.mxu0 %v7533
    %v7565 = vpop.f32.mrf.mxu0
    %v7566 = vadd.f32 0.0, %v7565
    %v7567 = vpop.f32.mrf.mxu0
    %v7568 = vadd.f32 0.0, %v7567
    %7569 = vmatmul.bf16.gmra.mxu0 %v7536
    %v7570 = vpop.f32.mrf.mxu0
    %v7571 = vadd.f32 0.0, %v7570
    %v7572 = vpop.f32.mrf.mxu0
    %v7573 = vadd.f32 0.0, %v7572
    %7574 = vmatmul.bf16.gmra.mxu0 %v7539
    %v7575 = vpop.f32.mrf.mxu0
    %v7576 = vadd.f32 0.0, %v7575
    %v7577 = vpop.f32.mrf.mxu0
    %v7578 = vadd.f32 0.0, %v7577
    %7579 = vmatmul.bf16.gmra.mxu0 %v7542
    %v7580 = vpop.f32.mrf.mxu0
    %v7581 = vadd.f32 0.0, %v7580
    %v7582 = vpop.f32.mrf.mxu0
    %v7583 = vadd.f32 0.0, %v7582
    %7584 = vmatmul.bf16.gmra.mxu0 %v7545
    %v7585 = vpop.f32.mrf.mxu0
    %v7586 = vadd.f32 0.0, %v7585
    %v7587 = vpop.f32.mrf.mxu0
    %v7588 = vadd.f32 0.0, %v7587
    %7589 = vmatmul.bf16.gmra.mxu0 %v7548
    %v7590 = vpop.f32.mrf.mxu0
    %v7591 = vadd.f32 0.0, %v7590
    %v7592 = vpop.f32.mrf.mxu0
    %v7593 = vadd.f32 0.0, %v7592
    %7594 = vmatmul.bf16.gmra.mxu0 %v7551
    %v7595 = vpop.f32.mrf.mxu0
    %v7596 = vadd.f32 0.0, %v7595
    %v7597 = vpop.f32.mrf.mxu0
    %v7598 = vadd.f32 0.0, %v7597
    %7599 = vmatmul.bf16.gmra.mxu0 %v7554
    %v7600 = vpop.f32.mrf.mxu0
    %v7601 = vadd.f32 0.0, %v7600
    %v7602 = vpop.f32.mrf.mxu0
    %v7603 = vadd.f32 0.0, %v7602
    %7604 = vdwg.mxu0
    %v7605 = vadd.f32 %v7459, %v7566
    %v7606 = vadd.f32 %v7460, %v7568
    %v7607 = vadd.f32 %v7461, %v7571
    %v7608 = vadd.f32 %v7462, %v7573
    %v7609 = vadd.f32 %v7463, %v7576
    %v7610 = vadd.f32 %v7464, %v7578
    %v7611 = vadd.f32 %v7465, %v7581
    %v7612 = vadd.f32 %v7466, %v7583
    %v7613 = vadd.f32 %v7467, %v7586
    %v7614 = vadd.f32 %v7468, %v7588
    %v7615 = vadd.f32 %v7469, %v7591
    %v7616 = vadd.f32 %v7470, %v7593
    %v7617 = vadd.f32 %v7471, %v7596
    %v7618 = vadd.f32 %v7472, %v7598
    %v7619 = vadd.f32 %v7473, %v7601
    %v7620 = vadd.f32 %v7474, %v7603
    %v7621 = vld [vmem:[%s7475] sm:$0xf]
    %v7622 = vld [vmem:[%s7475 + $0x4] sm:$0xf]
    %v7623 = vld [vmem:[%s7475 + $0x8] sm:$0x1]
    %v7624 = vld [vmem:[%s7475 + $0xc] sm:$0xf]
    %v7625 = vld [vmem:[%s7475 + $0x10] sm:$0xf]
    %v7626 = vld [vmem:[%s7475 + $0x14] sm:$0x1]
    %v7627 = vld [vmem:[%s7475 + $0x18] sm:$0xf]
    %v7628 = vld [vmem:[%s7475 + $0x1c] sm:$0xf]
    %v7629 = vld [vmem:[%s7475 + $0x20] sm:$0x1]
    %v7630 = vld [vmem:[%s7475 + $0x24] sm:$0xf]
    %v7631 = vld [vmem:[%s7475 + $0x28] sm:$0xf]
    %v7632 = vld [vmem:[%s7475 + $0x2c] sm:$0x1]
    %v7633 = vld [vmem:[%s7475 + $0xd8] sm:$0xf]
    %v7634 = vld [vmem:[%s7475 + $0xdc] sm:$0xf]
    %v7635 = vld [vmem:[%s7475 + $0xe0] sm:$0x1]
    %v7636 = vld [vmem:[%s7475 + $0xe4] sm:$0xf]
    %v7637 = vld [vmem:[%s7475 + $0xe8] sm:$0xf]
    %v7638 = vld [vmem:[%s7475 + $0xec] sm:$0x1]
    %v7639 = vld [vmem:[%s7475 + $0xf0] sm:$0xf]
    %v7640 = vld [vmem:[%s7475 + $0xf4] sm:$0xf]
    %v7641 = vld [vmem:[%s7475 + $0xf8] sm:$0x1]
    %v7642 = vld [vmem:[%s7475 + $0xfc] sm:$0xf]
    %v7643 = vld [vmem:[%s7475 + $0x100] sm:$0xf]
    %v7644 = vld [vmem:[%s7475 + $0x104] sm:$0x1]
    %v7646 = vshrl.u32 %v7621, 16
    %v7648 = vrot.slane %v7646, 4
    %v7649 = vshll.u32 %v7621, 16
    %v7651 = vrot.slane %v7649, 5
    %v7652 = vor.u32 %v7648, %v7651
    %v7653 = vrot.slane %v7652, 4
    %v7655 = vshll.u32 %v7622, 16
    %v7657 = vrot.slane %v7655, 5
    %v7658 = vsel %vm72, %v7653, %v7657
    %v7659 = vshrl.u32 %v7622, 16
    %v7661 = vrot.slane %v7659, 4
    %v7662 = vor.u32 %v7661, %v7657
    %v7663 = vrot.slane %v7662, 4
    %v7665 = vshll.u32 %v7623, 16
    %v7667 = vrot.slane %v7665, 5
    %v7668 = vsel %vm72, %v7663, %v7667
    %v7670 = vshrl.u32 %v7624, 16
    %v7672 = vrot.slane %v7670, 4
    %v7673 = vshll.u32 %v7624, 16
    %v7675 = vrot.slane %v7673, 5
    %v7676 = vor.u32 %v7672, %v7675
    %v7677 = vrot.slane %v7676, 4
    %v7679 = vshll.u32 %v7625, 16
    %v7681 = vrot.slane %v7679, 5
    %v7682 = vsel %vm72, %v7677, %v7681
    %v7683 = vshrl.u32 %v7625, 16
    %v7685 = vrot.slane %v7683, 4
    %v7686 = vor.u32 %v7685, %v7681
    %v7687 = vrot.slane %v7686, 4
    %v7689 = vshll.u32 %v7626, 16
    %v7691 = vrot.slane %v7689, 5
    %v7692 = vsel %vm72, %v7687, %v7691
    %v7694 = vshrl.u32 %v7627, 16
    %v7696 = vrot.slane %v7694, 4
    %v7697 = vshll.u32 %v7627, 16
    %v7699 = vrot.slane %v7697, 5
    %v7700 = vor.u32 %v7696, %v7699
    %v7701 = vrot.slane %v7700, 4
    %v7703 = vshll.u32 %v7628, 16
    %v7705 = vrot.slane %v7703, 5
    %v7706 = vsel %vm72, %v7701, %v7705
    %v7707 = vshrl.u32 %v7628, 16
    %v7709 = vrot.slane %v7707, 4
    %v7710 = vor.u32 %v7709, %v7705
    %v7711 = vrot.slane %v7710, 4
    %v7713 = vshll.u32 %v7629, 16
    %v7715 = vrot.slane %v7713, 5
    %v7716 = vsel %vm72, %v7711, %v7715
    %v7718 = vshrl.u32 %v7630, 16
    %v7720 = vrot.slane %v7718, 4
    %v7721 = vshll.u32 %v7630, 16
    %v7723 = vrot.slane %v7721, 5
    %v7724 = vor.u32 %v7720, %v7723
    %v7725 = vrot.slane %v7724, 4
    %v7727 = vshll.u32 %v7631, 16
    %v7729 = vrot.slane %v7727, 5
    %v7730 = vsel %vm72, %v7725, %v7729
    %v7731 = vshrl.u32 %v7631, 16
    %v7733 = vrot.slane %v7731, 4
    %v7734 = vor.u32 %v7733, %v7729
    %v7735 = vrot.slane %v7734, 4
    %v7737 = vshll.u32 %v7632, 16
    %v7739 = vrot.slane %v7737, 5
    %v7740 = vsel %vm72, %v7735, %v7739
    %v7742 = vshrl.u32 %v7633, 16
    %v7744 = vrot.slane %v7742, 4
    %v7745 = vshll.u32 %v7633, 16
    %v7747 = vrot.slane %v7745, 5
    %v7748 = vor.u32 %v7744, %v7747
    %v7749 = vrot.slane %v7748, 4
    %v7751 = vshll.u32 %v7634, 16
    %v7753 = vrot.slane %v7751, 5
    %v7754 = vsel %vm72, %v7749, %v7753
    %v7755 = vshrl.u32 %v7634, 16
    %v7757 = vrot.slane %v7755, 4
    %v7758 = vor.u32 %v7757, %v7753
    %v7759 = vrot.slane %v7758, 4
    %v7761 = vshll.u32 %v7635, 16
    %v7763 = vrot.slane %v7761, 5
    %v7764 = vsel %vm72, %v7759, %v7763
    %v7766 = vshrl.u32 %v7636, 16
    %v7768 = vrot.slane %v7766, 4
    %v7769 = vshll.u32 %v7636, 16
    %v7771 = vrot.slane %v7769, 5
    %v7772 = vor.u32 %v7768, %v7771
    %v7773 = vrot.slane %v7772, 4
    %v7775 = vshll.u32 %v7637, 16
    %v7777 = vrot.slane %v7775, 5
    %v7778 = vsel %vm72, %v7773, %v7777
    %v7779 = vshrl.u32 %v7637, 16
    %v7781 = vrot.slane %v7779, 4
    %v7782 = vor.u32 %v7781, %v7777
    %v7783 = vrot.slane %v7782, 4
    %v7785 = vshll.u32 %v7638, 16
    %v7787 = vrot.slane %v7785, 5
    %v7788 = vsel %vm72, %v7783, %v7787
    %v7790 = vshrl.u32 %v7639, 16
    %v7792 = vrot.slane %v7790, 4
    %v7793 = vshll.u32 %v7639, 16
    %v7795 = vrot.slane %v7793, 5
    %v7796 = vor.u32 %v7792, %v7795
    %v7797 = vrot.slane %v7796, 4
    %v7799 = vshll.u32 %v7640, 16
    %v7801 = vrot.slane %v7799, 5
    %v7802 = vsel %vm72, %v7797, %v7801
    %v7803 = vshrl.u32 %v7640, 16
    %v7805 = vrot.slane %v7803, 4
    %v7806 = vor.u32 %v7805, %v7801
    %v7807 = vrot.slane %v7806, 4
    %v7809 = vshll.u32 %v7641, 16
    %v7811 = vrot.slane %v7809, 5
    %v7812 = vsel %vm72, %v7807, %v7811
    %v7814 = vshrl.u32 %v7642, 16
    %v7816 = vrot.slane %v7814, 4
    %v7817 = vshll.u32 %v7642, 16
    %v7819 = vrot.slane %v7817, 5
    %v7820 = vor.u32 %v7816, %v7819
    %v7821 = vrot.slane %v7820, 4
    %v7823 = vshll.u32 %v7643, 16
    %v7825 = vrot.slane %v7823, 5
    %v7826 = vsel %vm72, %v7821, %v7825
    %v7827 = vshrl.u32 %v7643, 16
    %v7829 = vrot.slane %v7827, 4
    %v7830 = vor.u32 %v7829, %v7825
    %v7831 = vrot.slane %v7830, 4
    %v7833 = vshll.u32 %v7644, 16
    %v7835 = vrot.slane %v7833, 5
    %v7836 = vsel %vm72, %v7831, %v7835
    %v7837 = vunpack.c.l.b16 %v7658
    %v7838 = vunpack.c.l.b16 %v7668
    %v7839 = vunpack.c.l.b16 %v7682
    %v7840 = vunpack.c.l.b16 %v7692
    %v7841 = vunpack.c.l.b16 %v7706
    %v7842 = vunpack.c.l.b16 %v7716
    %v7843 = vunpack.c.l.b16 %v7730
    %v7844 = vunpack.c.l.b16 %v7740
    %v7845 = vunpack.c.l.b16 %v7754
    %v7846 = vunpack.c.l.b16 %v7764
    %v7847 = vunpack.c.l.b16 %v7778
    %v7848 = vunpack.c.l.b16 %v7788
    %v7849 = vunpack.c.l.b16 %v7802
    %v7850 = vunpack.c.l.b16 %v7812
    %v7851 = vunpack.c.l.b16 %v7826
    %v7852 = vunpack.c.l.b16 %v7836
    %v7853 = vpack.c.b16 %v7838, %v7837
    %v7854 = vpack.c.b16 %v7840, %v7839
    %v7855 = vpack.c.b16 %v7842, %v7841
    %v7856 = vpack.c.b16 %v7844, %v7843
    %v7857 = vpack.c.b16 %v7846, %v7845
    %v7858 = vpack.c.b16 %v7848, %v7847
    %v7859 = vpack.c.b16 %v7850, %v7849
    %v7860 = vpack.c.b16 %v7852, %v7851
    %v7862 = vsel %vm289, %v7853, 0
    %v7865 = vsel %vm289, %v7854, 0
    %v7868 = vsel %vm289, %v7855, 0
    %v7871 = vsel %vm289, %v7856, 0
    %v7874 = vsel %vm289, %v7857, 0
    %v7877 = vsel %vm289, %v7858, 0
    %v7880 = vsel %vm289, %v7859, 0
    %v7883 = vsel %vm289, %v7860, 0
    %7885 = vmatpush.bf16.msra.mxu0 0
    %7886 = vmatpush.bf16.msra.mxu0 0
    %7887 = vmatpush.bf16.msra.mxu0 0
    %7888 = vmatpush.bf16.msra.mxu0 0
    %7889 = vmatpush.bf16.msra.mxu0 0
    %7890 = vmatpush.bf16.msra.mxu0 0
    %7891 = vmatpush.bf16.msra.mxu0 0
    %7892 = vmatpush.bf16.msra.mxu0 %v1781
    %7893 = vmatmul.bf16.gmra.mxu0 %v7862
    %v7894 = vpop.f32.mrf.mxu0
    %v7895 = vadd.f32 0.0, %v7894
    %v7896 = vpop.f32.mrf.mxu0
    %v7897 = vadd.f32 0.0, %v7896
    %7898 = vmatmul.bf16.gmra.mxu0 %v7865
    %v7899 = vpop.f32.mrf.mxu0
    %v7900 = vadd.f32 0.0, %v7899
    %v7901 = vpop.f32.mrf.mxu0
    %v7902 = vadd.f32 0.0, %v7901
    %7903 = vmatmul.bf16.gmra.mxu0 %v7868
    %v7904 = vpop.f32.mrf.mxu0
    %v7905 = vadd.f32 0.0, %v7904
    %v7906 = vpop.f32.mrf.mxu0
    %v7907 = vadd.f32 0.0, %v7906
    %7908 = vmatmul.bf16.gmra.mxu0 %v7871
    %v7909 = vpop.f32.mrf.mxu0
    %v7910 = vadd.f32 0.0, %v7909
    %v7911 = vpop.f32.mrf.mxu0
    %v7912 = vadd.f32 0.0, %v7911
    %7913 = vmatmul.bf16.gmra.mxu0 %v7874
    %v7914 = vpop.f32.mrf.mxu0
    %v7915 = vadd.f32 0.0, %v7914
    %v7916 = vpop.f32.mrf.mxu0
    %v7917 = vadd.f32 0.0, %v7916
    %7918 = vmatmul.bf16.gmra.mxu0 %v7877
    %v7919 = vpop.f32.mrf.mxu0
    %v7920 = vadd.f32 0.0, %v7919
    %v7921 = vpop.f32.mrf.mxu0
    %v7922 = vadd.f32 0.0, %v7921
    %7923 = vmatmul.bf16.gmra.mxu0 %v7880
    %v7924 = vpop.f32.mrf.mxu0
    %v7925 = vadd.f32 0.0, %v7924
    %v7926 = vpop.f32.mrf.mxu0
    %v7927 = vadd.f32 0.0, %v7926
    %7928 = vmatmul.bf16.gmra.mxu0 %v7883
    %v7929 = vpop.f32.mrf.mxu0
    %v7930 = vadd.f32 0.0, %v7929
    %v7931 = vpop.f32.mrf.mxu0
    %v7932 = vadd.f32 0.0, %v7931
    %7933 = vdwg.mxu0
    %v7934 = vadd.f32 %v7605, %v7895
    %v7935 = vadd.f32 %v7606, %v7897
    %v7936 = vadd.f32 %v7607, %v7900
    %v7937 = vadd.f32 %v7608, %v7902
    %v7938 = vadd.f32 %v7609, %v7905
    %v7939 = vadd.f32 %v7610, %v7907
    %v7940 = vadd.f32 %v7611, %v7910
    %v7941 = vadd.f32 %v7612, %v7912
    %v7942 = vadd.f32 %v7613, %v7915
    %v7943 = vadd.f32 %v7614, %v7917
    %v7944 = vadd.f32 %v7615, %v7920
    %v7945 = vadd.f32 %v7616, %v7922
    %v7946 = vadd.f32 %v7617, %v7925
    %v7947 = vadd.f32 %v7618, %v7927
    %v7948 = vadd.f32 %v7619, %v7930
    %v7949 = vadd.f32 %v7620, %v7932
    %v7950 = vld [vmem:[%s7475] sm:$0xe]
    %v7951 = vld [vmem:[%s7475 + $0xc] sm:$0xe]
    %v7952 = vld [vmem:[%s7475 + $0x18] sm:$0xe]
    %v7953 = vld [vmem:[%s7475 + $0x24] sm:$0xe]
    %v7954 = vld [vmem:[%s7475 + $0xd8] sm:$0xe]
    %v7955 = vld [vmem:[%s7475 + $0xe4] sm:$0xe]
    %v7956 = vld [vmem:[%s7475 + $0xf0] sm:$0xe]
    %v7957 = vld [vmem:[%s7475 + $0xfc] sm:$0xe]
    %v7982 = vrot.slane %v7950, 5
    %v7983 = vrot.slane %v7982, 4
    %v7984 = vrot.slane %v7622, 5
    %v7985 = vsel %vm509, %v7983, %v7984
    %v7986 = vrot.slane %v7984, 4
    %v7987 = vrot.slane %v7623, 5
    %v7988 = vsel %vm509, %v7986, %v7987
    %v7989 = vrot.slane %v7951, 5
    %v7990 = vrot.slane %v7989, 4
    %v7991 = vrot.slane %v7625, 5
    %v7992 = vsel %vm509, %v7990, %v7991
    %v7993 = vrot.slane %v7991, 4
    %v7994 = vrot.slane %v7626, 5
    %v7995 = vsel %vm509, %v7993, %v7994
    %v7996 = vrot.slane %v7952, 5
    %v7997 = vrot.slane %v7996, 4
    %v7998 = vrot.slane %v7628, 5
    %v7999 = vsel %vm509, %v7997, %v7998
    %v8000 = vrot.slane %v7998, 4
    %v8001 = vrot.slane %v7629, 5
    %v8002 = vsel %vm509, %v8000, %v8001
    %v8003 = vrot.slane %v7953, 5
    %v8004 = vrot.slane %v8003, 4
    %v8005 = vrot.slane %v7631, 5
    %v8006 = vsel %vm509, %v8004, %v8005
    %v8007 = vrot.slane %v8005, 4
    %v8008 = vrot.slane %v7632, 5
    %v8009 = vsel %vm509, %v8007, %v8008
    %v8010 = vrot.slane %v7954, 5
    %v8011 = vrot.slane %v8010, 4
    %v8012 = vrot.slane %v7634, 5
    %v8013 = vsel %vm509, %v8011, %v8012
    %v8014 = vrot.slane %v8012, 4
    %v8015 = vrot.slane %v7635, 5
    %v8016 = vsel %vm509, %v8014, %v8015
    %v8017 = vrot.slane %v7955, 5
    %v8018 = vrot.slane %v8017, 4
    %v8019 = vrot.slane %v7637, 5
    %v8020 = vsel %vm509, %v8018, %v8019
    %v8021 = vrot.slane %v8019, 4
    %v8022 = vrot.slane %v7638, 5
    %v8023 = vsel %vm509, %v8021, %v8022
    %v8024 = vrot.slane %v7956, 5
    %v8025 = vrot.slane %v8024, 4
    %v8026 = vrot.slane %v7640, 5
    %v8027 = vsel %vm509, %v8025, %v8026
    %v8028 = vrot.slane %v8026, 4
    %v8029 = vrot.slane %v7641, 5
    %v8030 = vsel %vm509, %v8028, %v8029
    %v8031 = vrot.slane %v7957, 5
    %v8032 = vrot.slane %v8031, 4
    %v8033 = vrot.slane %v7643, 5
    %v8034 = vsel %vm509, %v8032, %v8033
    %v8035 = vrot.slane %v8033, 4
    %v8036 = vrot.slane %v7644, 5
    %v8037 = vsel %vm509, %v8035, %v8036
    %v8038 = vunpack.c.l.b16 %v7985
    %v8039 = vunpack.c.l.b16 %v7988
    %v8040 = vunpack.c.l.b16 %v7992
    %v8041 = vunpack.c.l.b16 %v7995
    %v8042 = vunpack.c.l.b16 %v7999
    %v8043 = vunpack.c.l.b16 %v8002
    %v8044 = vunpack.c.l.b16 %v8006
    %v8045 = vunpack.c.l.b16 %v8009
    %v8046 = vunpack.c.l.b16 %v8013
    %v8047 = vunpack.c.l.b16 %v8016
    %v8048 = vunpack.c.l.b16 %v8020
    %v8049 = vunpack.c.l.b16 %v8023
    %v8050 = vunpack.c.l.b16 %v8027
    %v8051 = vunpack.c.l.b16 %v8030
    %v8052 = vunpack.c.l.b16 %v8034
    %v8053 = vunpack.c.l.b16 %v8037
    %v8054 = vpack.c.b16 %v8039, %v8038
    %v8055 = vpack.c.b16 %v8041, %v8040
    %v8056 = vpack.c.b16 %v8043, %v8042
    %v8057 = vpack.c.b16 %v8045, %v8044
    %v8058 = vpack.c.b16 %v8047, %v8046
    %v8059 = vpack.c.b16 %v8049, %v8048
    %v8060 = vpack.c.b16 %v8051, %v8050
    %v8061 = vpack.c.b16 %v8053, %v8052
    %v8063 = vsel %vm289, %v8054, 0
    %v8066 = vsel %vm289, %v8055, 0
    %v8069 = vsel %vm289, %v8056, 0
    %v8072 = vsel %vm289, %v8057, 0
    %v8075 = vsel %vm289, %v8058, 0
    %v8078 = vsel %vm289, %v8059, 0
    %v8081 = vsel %vm289, %v8060, 0
    %v8084 = vsel %vm289, %v8061, 0
    %8086 = vmatpush.bf16.msra.mxu0 0
    %8087 = vmatpush.bf16.msra.mxu0 0
    %8088 = vmatpush.bf16.msra.mxu0 0
    %8089 = vmatpush.bf16.msra.mxu0 0
    %8090 = vmatpush.bf16.msra.mxu0 0
    %8091 = vmatpush.bf16.msra.mxu0 0
    %8092 = vmatpush.bf16.msra.mxu0 0
    %8093 = vmatpush.bf16.msra.mxu0 %v1985
    %8094 = vmatmul.bf16.gmra.mxu0 %v8063
    %v8095 = vpop.f32.mrf.mxu0
    %v8096 = vadd.f32 0.0, %v8095
    %v8097 = vpop.f32.mrf.mxu0
    %v8098 = vadd.f32 0.0, %v8097
    %8099 = vmatmul.bf16.gmra.mxu0 %v8066
    %v8100 = vpop.f32.mrf.mxu0
    %v8101 = vadd.f32 0.0, %v8100
    %v8102 = vpop.f32.mrf.mxu0
    %v8103 = vadd.f32 0.0, %v8102
    %8104 = vmatmul.bf16.gmra.mxu0 %v8069
    %v8105 = vpop.f32.mrf.mxu0
    %v8106 = vadd.f32 0.0, %v8105
    %v8107 = vpop.f32.mrf.mxu0
    %v8108 = vadd.f32 0.0, %v8107
    %8109 = vmatmul.bf16.gmra.mxu0 %v8072
    %v8110 = vpop.f32.mrf.mxu0
    %v8111 = vadd.f32 0.0, %v8110
    %v8112 = vpop.f32.mrf.mxu0
    %v8113 = vadd.f32 0.0, %v8112
    %8114 = vmatmul.bf16.gmra.mxu0 %v8075
    %v8115 = vpop.f32.mrf.mxu0
    %v8116 = vadd.f32 0.0, %v8115
    %v8117 = vpop.f32.mrf.mxu0
    %v8118 = vadd.f32 0.0, %v8117
    %8119 = vmatmul.bf16.gmra.mxu0 %v8078
    %v8120 = vpop.f32.mrf.mxu0
    %v8121 = vadd.f32 0.0, %v8120
    %v8122 = vpop.f32.mrf.mxu0
    %v8123 = vadd.f32 0.0, %v8122
    %8124 = vmatmul.bf16.gmra.mxu0 %v8081
    %v8125 = vpop.f32.mrf.mxu0
    %v8126 = vadd.f32 0.0, %v8125
    %v8127 = vpop.f32.mrf.mxu0
    %v8128 = vadd.f32 0.0, %v8127
    %8129 = vmatmul.bf16.gmra.mxu0 %v8084
    %v8130 = vpop.f32.mrf.mxu0
    %v8131 = vadd.f32 0.0, %v8130
    %v8132 = vpop.f32.mrf.mxu0
    %v8133 = vadd.f32 0.0, %v8132
    %8134 = vdwg.mxu0
    %v8135 = vadd.f32 %v7934, %v8096
    %v8136 = vadd.f32 %v7935, %v8098
    %v8137 = vadd.f32 %v7936, %v8101
    %v8138 = vadd.f32 %v7937, %v8103
    %v8139 = vadd.f32 %v7938, %v8106
    %v8140 = vadd.f32 %v7939, %v8108
    %v8141 = vadd.f32 %v7940, %v8111
    %v8142 = vadd.f32 %v7941, %v8113
    %v8143 = vadd.f32 %v7942, %v8116
    %v8144 = vadd.f32 %v7943, %v8118
    %v8145 = vadd.f32 %v7944, %v8121
    %v8146 = vadd.f32 %v7945, %v8123
    %v8147 = vadd.f32 %v7946, %v8126
    %v8148 = vadd.f32 %v7947, %v8128
    %v8149 = vadd.f32 %v7948, %v8131
    %v8150 = vadd.f32 %v7949, %v8133
    %v8151 = vadd.f32 %v8135, %v2053
    %v8152 = vadd.f32 %v8136, %v2053
    %v8153 = vadd.f32 %v8137, %v2053
    %v8154 = vadd.f32 %v8138, %v2053
    %v8155 = vadd.f32 %v8139, %v2053
    %v8156 = vadd.f32 %v8140, %v2053
    %v8157 = vadd.f32 %v8141, %v2053
    %v8158 = vadd.f32 %v8142, %v2053
    %v8159 = vadd.f32 %v8143, %v2053
    %v8160 = vadd.f32 %v8144, %v2053
    %v8161 = vadd.f32 %v8145, %v2053
    %v8162 = vadd.f32 %v8146, %v2053
    %v8163 = vadd.f32 %v8147, %v2053
    %v8164 = vadd.f32 %v8148, %v2053
    %v8165 = vadd.f32 %v8149, %v2053
    %v8166 = vadd.f32 %v8150, %v2053
    %v8167 = vmax.f32 %v8151, 0.0
    %v8168 = vmax.f32 %v8152, 0.0
    %v8169 = vmax.f32 %v8153, 0.0
    %v8170 = vmax.f32 %v8154, 0.0
    %v8171 = vmax.f32 %v8155, 0.0
    %v8172 = vmax.f32 %v8156, 0.0
    %v8173 = vmax.f32 %v8157, 0.0
    %v8174 = vmax.f32 %v8158, 0.0
    %v8175 = vmax.f32 %v8159, 0.0
    %v8176 = vmax.f32 %v8160, 0.0
    %v8177 = vmax.f32 %v8161, 0.0
    %v8178 = vmax.f32 %v8162, 0.0
    %v8179 = vmax.f32 %v8163, 0.0
    %v8180 = vmax.f32 %v8164, 0.0
    %v8181 = vmax.f32 %v8165, 0.0
    %v8182 = vmax.f32 %v8166, 0.0
    %v8183 = vadd.f32 %v8167, %v8168
    %v8184 = vadd.f32 %v8183, %v8169
    %v8185 = vadd.f32 %v8184, %v8170
    %v8186 = vadd.f32 %v8185, %v8171
    %v8187 = vadd.f32 %v8186, %v8172
    %v8188 = vadd.f32 %v8187, %v8173
    %v8189 = vadd.f32 %v8188, %v8174
    %v8190 = vrot.slane %v8189, 4
    %v8191 = vadd.f32 %v8189, %v8190
    %v8192 = vrot.slane %v8191, 2
    %v8193 = vadd.f32 %v8191, %v8192
    %v8194 = vrot.slane %v8193, 1
    %v8195 = vadd.f32 %v8193, %v8194
    %v8196 = vadd.f32 %v8175, %v8176
    %v8197 = vadd.f32 %v8196, %v8177
    %v8198 = vadd.f32 %v8197, %v8178
    %v8199 = vadd.f32 %v8198, %v8179
    %v8200 = vadd.f32 %v8199, %v8180
    %v8201 = vadd.f32 %v8200, %v8181
    %v8202 = vadd.f32 %v8201, %v8182
    %v8203 = vrot.slane %v8202, 4
    %v8204 = vadd.f32 %v8202, %v8203
    %v8205 = vrot.slane %v8204, 2
    %v8206 = vadd.f32 %v8204, %v8205
    %v8207 = vrot.slane %v8206, 1
    %v8208 = vadd.f32 %v8206, %v8207
    %v8209 = vadd.f32 %v6177, %v8195
    %v8210 = vadd.f32 %v6178, %v8208
    %v8211 = vmul.f32 %v8209, 0.00390625
    %v8212 = vmul.f32 %v8210, 0.00390625
    %v8213 = vpack.c.bf16 %v8211, %v8211
    %v8214 = vpack.c.bf16 %v8212, %v8212
    %v8215 = vld [vmem:[%s3] sm:$0xf]
    %v8216 = vld [vmem:[%s3 + $0x4] sm:$0xf]
    %v8217 = vld [vmem:[%s3 + $0x8] sm:$0xf]
    %v8218 = vld [vmem:[%s3 + $0xc] sm:$0xf]
    %v8219 = vld [vmem:[%s4] sm:$0x1]
    %v8221 = vperm.slane %v8219, 0
    %v8225 = vunpack.c.l.b16 %v8213
    %v8226 = vunpack.c.l.b16 %v8214
    %vm8227 = vcmask 1041409
    %v8228 = vsel %vm8227, %v8226, %v8225
    %v8229 = vpack.c.b16 %v8228, %v8228
    %v8234 = vunpack.c.l.b16 %v8215
    %v8235 = vunpack.c.l.b16 %v8216
    %v8236 = vunpack.c.l.b16 %v8217
    %v8237 = vunpack.c.l.b16 %v8218
    %v8238 = vpack.c.b16 %v8235, %v8234
    %v8239 = vpack.c.b16 %v8237, %v8236
    %vm8242 = vcmask 261120
    %v8244 = vsel %vm8242, %v8229, 0
    %8246 = vmatpush.bf16.msra.mxu0 0
    %8247 = vmatpush.bf16.msra.mxu0 0
    %8248 = vmatpush.bf16.msra.mxu0 0
    %8249 = vmatpush.bf16.msra.mxu0 0
    %8250 = vmatpush.bf16.msra.mxu0 0
    %8251 = vmatpush.bf16.msra.mxu0 0
    %8252 = vmatpush.bf16.msra.mxu0 %v8239
    %8253 = vmatpush.bf16.msra.mxu0 %v8238
    %8254 = vmatmul.bf16.gmra.mxu0 %v8244
    %v8255 = vpop.f32.mrf.mxu0
    %v8256 = vadd.f32 %v8221, %v8255
    %v8257 = vpop.f32.mrf.mxu0
    %8258 = vdwg.mxu0
    %v8259 = vmax.f32 %v8256, 0.0
    %v8260 = vpack.c.bf16 %v8259, %v8259
    %v8261 = vld [vmem:[%s5] sm:$0xf]
    %v8262 = vld [vmem:[%s5 + $0x4] sm:$0xf]
    %v8263 = vld [vmem:[%s5 + $0x8] sm:$0xf]
    %v8264 = vld [vmem:[%s5 + $0xc] sm:$0xf]
    %v8265 = vld [vmem:[%s6] sm:$0x1]
    %v8267 = vperm.slane %v8265, 0
    %v8273 = vunpack.c.l.b16 %v8261
    %v8274 = vunpack.c.l.b16 %v8262
    %v8275 = vunpack.c.l.b16 %v8263
    %v8276 = vunpack.c.l.b16 %v8264
    %v8277 = vpack.c.b16 %v8274, %v8273
    %v8278 = vpack.c.b16 %v8276, %v8275
    %v8282 = vsel %vm8242, %v8260, 0
    %8284 = vmatpush.bf16.msra.mxu0 0
    %8285 = vmatpush.bf16.msra.mxu0 0
    %8286 = vmatpush.bf16.msra.mxu0 0
    %8287 = vmatpush.bf16.msra.mxu0 0
    %8288 = vmatpush.bf16.msra.mxu0 0
    %8289 = vmatpush.bf16.msra.mxu0 0
    %8290 = vmatpush.bf16.msra.mxu0 %v8278
    %8291 = vmatpush.bf16.msra.mxu0 %v8277
    %8292 = vmatmul.bf16.gmra.mxu0 %v8282
    %v8293 = vpop.f32.mrf.mxu0
    %v8294 = vadd.f32 %v8267, %v8293
    %v8295 = vpop.f32.mrf.mxu0
    %8296 = vdwg.mxu0
    %8297 = vst [vmem:[#allocation2] sm:$0x3] %v8294
    // Predicated region
    $region30: #{moco_encoder_forward.1} parent=1 // pred_check
      _
    $region31: #{moco_encoder_forward.1} parent=1 // pred_check_branch
      %8299 = sbr.rel (0) target = $region33
    $region32: #{moco_encoder_forward.1} parent=1 // pred_region
      %8301 = vsyncadd [#allocation3], 0
      %s8303 = sshll.u32 [#allocation2], 4
      %s8304 = int_to_ptr.vmem [resolvable:$true] %s8303
      %s8305 = sshll.u32 %s7, 4
      %s8306 = int_to_ptr.hbm [resolvable:$true] %s8305
      %8308 = dma.vmem_to_hbm [thread:$0]  %s8304, 32, %s8306, [#allocation3]
    $region33: #{moco_encoder_forward.1} parent=1 // pred_fallthru
      _
    // Predicated region
    $region34: #{moco_encoder_forward.1} parent=1 // pred_check
      _
    $region35: #{moco_encoder_forward.1} parent=1 // pred_check_branch
      %8310 = sbr.rel (0) target = $region37
    $region36: #{moco_encoder_forward.1} parent=1 // pred_region
      %8312 = dma.done [#allocation3], 32
    $region37: #{moco_encoder_forward.1} parent=1 // pred_fallthru
      _
    %8313 = vsyncpa [#allocation3], 1

</llo_original>
